<compile_context>
chip_gen: v6e
topology: v6e:2x2x1
jax: 0.10.0
libtpu: 0.0.40
codegen_flags: <defaults>
</compile_context>

<pallas_src>
import functools
import math

import numpy as np
import jax
import jax.numpy as jnp
from jax.experimental import pallas as pl
from jax.experimental.pallas import tpu as pltpu


# ----------------------------------------------------------------------------
# Sequence-block picker: coarse grid steps, bounded VMEM, >=2 steps when we can
# ----------------------------------------------------------------------------
def _pick_seq_block(N, L, D, budget_bytes=4 << 20):
    """Largest divisor TN of N whose f32 working set fits `budget_bytes`; when
    possible keep at least 2 grid steps so a v7x megacore uses both TCs."""
    divisors = [t for t in range(1, N + 1) if N % t == 0]

    def fits(t):
        # rough f32 residency per step: in/out blocks, qkv, per-head scores.
        return 4 * t * L * (L + 10 * D) <= budget_bytes

    tn = max([t for t in divisors if fits(t)] or [1])
    if tn == N and N >= 2:
        tn = max(t for t in divisors if t <= N // 2)
    return tn


# ----------------------------------------------------------------------------
# Fused multi-head self-attention kernel (one block of sequences per step)
# ----------------------------------------------------------------------------
def _mha_kernel(x_ref, w_in_ref, b_in_ref, w_out_ref, b_out_ref, o_ref, *,
                num_heads, scale):
    TN, L, D = x_ref.shape
    H = num_heads
    dh = D // H

    # --- fused QKV projection (f32 accumulation, native-dtype operands) -----
    x2d = x_ref[...].reshape(TN * L, D)
    qkv = jnp.dot(x2d, w_in_ref[...], preferred_element_type=jnp.float32)
    qkv = qkv + b_in_ref[...].astype(jnp.float32)            # (TN*L, 3D)
    qkv = qkv.astype(x_ref.dtype).reshape(TN, L, 3 * D)

    # --- per-head attention, accumulated straight into the output proj ------
    w_out = w_out_ref[...]
    out2d = jnp.zeros((TN * L, D), jnp.float32)
    for h in range(H):
        q = qkv[:, :, h * dh:(h + 1) * dh]                   # (TN, L, dh)
        k = qkv[:, :, D + h * dh:D + (h + 1) * dh]
        v = qkv[:, :, 2 * D + h * dh:2 * D + (h + 1) * dh]

        s = jnp.einsum("nqd,nkd->nqk", q, k,
                       preferred_element_type=jnp.float32) * scale
        s = s - jnp.max(s, axis=-1, keepdims=True)
        p = jnp.exp(s)
        p = p * pl.reciprocal(jnp.sum(p, axis=-1, keepdims=True), approx=True)

        o = jnp.einsum("nqk,nkd->nqd", p.astype(v.dtype), v,
                       preferred_element_type=jnp.float32)   # (TN, L, dh)

        # out += o_h @ W_out[h*dh:(h+1)*dh, :]  (== concat-heads @ W_out)
        o2d = o.reshape(TN * L, dh).astype(x_ref.dtype)
        out2d = out2d + jnp.dot(o2d, w_out[h * dh:(h + 1) * dh, :],
                                preferred_element_type=jnp.float32)

    out2d = out2d + b_out_ref[...].astype(jnp.float32)
    o_ref[...] = out2d.reshape(TN, L, D).astype(o_ref.dtype)


def multihead_attention(x_nld, p, num_heads):
    """Fused MHA self-attention on batch-major (N, L, D) input -> (N, L, D).

    One pallas_call: weights stay VMEM-resident (constant index_maps -> DMA'd
    once), a block of sequences per grid step, no HBM intermediates."""
    N, L, D = x_nld.shape
    dh = D // num_heads
    tn = _pick_seq_block(N, L, D)
    kern = functools.partial(_mha_kernel, num_heads=num_heads,
                             scale=1.0 / math.sqrt(dh))
    return pl.pallas_call(
        kern,
        out_shape=jax.ShapeDtypeStruct((N, L, D), x_nld.dtype),
        grid=(N // tn,),
        in_specs=[
            pl.BlockSpec((tn, L, D), lambda n: (n, 0, 0)),     # activations
            pl.BlockSpec((D, 3 * D), lambda n: (0, 0)),        # W_in^T (resident)
            pl.BlockSpec((1, 3 * D), lambda n: (0, 0)),        # b_in
            pl.BlockSpec((D, D), lambda n: (0, 0)),            # W_out^T (resident)
            pl.BlockSpec((1, D), lambda n: (0, 0)),            # b_out
        ],
        out_specs=pl.BlockSpec((tn, L, D), lambda n: (n, 0, 0)),
        compiler_params=pltpu.CompilerParams(
            dimension_semantics=("parallel",),
            vmem_limit_bytes=32 * 1024 * 1024),
    )(x_nld, p["w_in_t"], p["b_in"], p["w_out_t"], p["b_out"])


# ----------------------------------------------------------------------------
# BeamSplitterAttention forward (Pallas path)
# ----------------------------------------------------------------------------
def beam_splitter_attention(x, params, num_heads, max_len):
    B, S, D = x.shape
    cs = max_len
    assert S % cs == 0, "seq_len must be divisible by max_len"
    nc = S // cs

    # ---- chunk self-attention: batch the PyTorch python loop over i --------
    # sequence (b, i) = { x[b, c*cs + i] : c in [nc] }, batch-major layout.
    xc = x.reshape(B, nc, cs, D).transpose(0, 2, 1, 3).reshape(B * cs, nc, D)
    co = multihead_attention(xc, params["chunk"], num_heads)  # [b*cs+i, c, :]

    # == torch.stack(dim=1).transpose(1, 2).reshape(B, S, D) (row-major exact)
    xa = co.reshape(B, cs, nc, D).transpose(2, 0, 1, 3).reshape(B, S, D)

    # ---- global self-attention (batch-major: no seq-first round trip) ------
    return multihead_attention(xa, params["global"], num_heads)


# ----------------------------------------------------------------------------
# Parameter setup (mirrors nn.MultiheadAttention parameters)
# ----------------------------------------------------------------------------
def init_mha_params(key, d_model, dtype=jnp.float32):
    k1, k2 = jax.random.split(key)
    lim_in = math.sqrt(6.0 / (4 * d_model))            # xavier_uniform on (3D, D)
    w_in = jax.random.uniform(k1, (3 * d_model, d_model), dtype, -lim_in, lim_in)
    lim_out = math.sqrt(1.0 / d_model)
    w_out = jax.random.uniform(k2, (d_model, d_model), dtype, -lim_out, lim_out)
    return {
        "w_in_t": w_in.T,                               # (D, 3D) lane-dense
        "b_in": jnp.zeros((1, 3 * d_model), dtype),
        "w_out_t": w_out.T,                             # (D, D)
        "b_out": jnp.zeros((1, d_model), dtype),
    }


# ----------------------------------------------------------------------------
# Pure-JAX reference (mirrors the PyTorch module exactly) for correctness
# ----------------------------------------------------------------------------
_HI = jax.lax.Precision.HIGHEST


def _ref_mha_seqfirst(x, p, num_heads):
    L, N, D = x.shape
    H, dh = num_heads, D // num_heads
    qkv = jnp.matmul(x, p["w_in_t"], precision=_HI) + p["b_in"]
    qkv = qkv.reshape(L, N, 3, H, dh)
    q = qkv[:, :, 0].transpose(1, 2, 0, 3) * (1.0 / math.sqrt(dh))
    k = qkv[:, :, 1].transpose(1, 2, 0, 3)
    v = qkv[:, :, 2].transpose(1, 2, 0, 3)
    s = jnp.einsum("nhqd,nhkd->nhqk", q, k, precision=_HI)
    a = jax.nn.softmax(s, axis=-1)
    o = jnp.einsum("nhqk,nhkd->nhqd", a, v, precision=_HI)
    o = o.transpose(2, 0, 1, 3).reshape(L * N, D)
    out = jnp.matmul(o, p["w_out_t"], precision=_HI) + p["b_out"]
    return out.reshape(L, N, D)


def _ref_beam_splitter(x, params, num_heads, max_len):
    B, S, D = x.shape
    cs = max_len
    nc = S // cs
    xc = x.reshape(B, nc, cs, D).transpose(0, 2, 1, 3)             # (B, cs, nc, D)
    chunk_in = xc.transpose(2, 1, 0, 3).reshape(nc, cs * B, D)     # (nc, cs*B, D)
    chunk_out = _ref_mha_seqfirst(chunk_in, params["chunk"], num_heads)
    xa = chunk_out.reshape(nc, cs, B, D).transpose(0, 2, 1, 3).reshape(B, S, D)
    g_in = xa.transpose(1, 0, 2)
    g_out = _ref_mha_seqfirst(g_in, params["global"], num_heads)
    return g_out.transpose(1, 0, 2)


# ----------------------------------------------------------------------------
# Demo
# ----------------------------------------------------------------------------
if __name__ == "__main__":
    B, S, D = 2, 64, 32          # batch, seq_len, d_model
    NUM_HEADS = 4                # head_dim = 8
    MAX_LEN = 8                  # chunk_size; num_chunks = S // MAX_LEN = 8

    key = jax.random.PRNGKey(0)
    kx, kc, kg = jax.random.split(key, 3)
    x = jax.random.normal(kx, (B, S, D), dtype=jnp.float32)
    params = {"chunk": init_mha_params(kc, D), "global": init_mha_params(kg, D)}

    fwd = jax.jit(functools.partial(beam_splitter_attention,
                                    num_heads=NUM_HEADS, max_len=MAX_LEN))
    out = jax.block_until_ready(fwd(x, params))
    assert out.shape == (B, S, D)

    ref = _ref_beam_splitter(x, params, NUM_HEADS, MAX_LEN)
    np.testing.assert_allclose(np.asarray(out), np.asarray(ref),
                               rtol=1e-3, atol=1e-3)

    print("KERNEL_OK")
</pallas_src>

<mosaic_0001>
module attributes {stable_mosaic.version = 11 : i64} {
  func.func @_mha_kernel(%arg0: i32, %arg1: memref<8x8x32xf32, #tpu.memory_space<vmem>>, %arg2: memref<32x96xf32, #tpu.memory_space<vmem>>, %arg3: memref<1x96xf32, #tpu.memory_space<vmem>>, %arg4: memref<32x32xf32, #tpu.memory_space<vmem>>, %arg5: memref<1x32xf32, #tpu.memory_space<vmem>>, %arg6: memref<8x8x32xf32, #tpu.memory_space<vmem>>) attributes {dimension_semantics = [#tpu.dimension_semantics<parallel>], iteration_bounds = array<i64: 2>, scalar_prefetch = 0 : i64, scratch_operands = 0 : i64, tpu.core_type = #tpu.core_type<tc>, window_params = [{transform_indices = @transform_0, window_bounds = array<i64: 8, 8, 32>}, {pipeline_mode = #tpu.pipeline_mode<synchronous>, transform_indices = @transform_1, window_bounds = array<i64: 32, 96>}, {pipeline_mode = #tpu.pipeline_mode<synchronous>, transform_indices = @transform_2, window_bounds = array<i64: 1, 96>}, {pipeline_mode = #tpu.pipeline_mode<synchronous>, transform_indices = @transform_3, window_bounds = array<i64: 32, 32>}, {pipeline_mode = #tpu.pipeline_mode<synchronous>, transform_indices = @transform_4, window_bounds = array<i64: 1, 32>}, {transform_indices = @transform_5, window_bounds = array<i64: 8, 8, 32>}]} {
    %c0 = arith.constant 0 : index
    %c0_0 = arith.constant 0 : index
    %c0_1 = arith.constant 0 : index
    %0 = vector.load %arg1[%c0, %c0_0, %c0_1] : memref<8x8x32xf32, #tpu.memory_space<vmem>>, vector<8x8x32xf32>
    %1 = vector.shape_cast %0 : vector<8x8x32xf32> to vector<64x32xf32>
    %c0_2 = arith.constant 0 : index
    %c0_3 = arith.constant 0 : index
    %2 = vector.load %arg2[%c0_2, %c0_3] : memref<32x96xf32, #tpu.memory_space<vmem>>, vector<32x96xf32>
    %cst = arith.constant dense<0.000000e+00> : vector<64x96xf32>
    %3 = tpu.matmul %1, %2, %cst {dimension_numbers = #tpu.dot_dimension_numbers<[1], [0], [0], [1], [0, 0, 1, 1], [], []>} : vector<64x32xf32>, vector<32x96xf32>, vector<64x96xf32> -> vector<64x96xf32>
    %c0_4 = arith.constant 0 : index
    %c0_5 = arith.constant 0 : index
    %4 = vector.load %arg3[%c0_4, %c0_5] : memref<1x96xf32, #tpu.memory_space<vmem>>, vector<1x96xf32>
    %5 = vector.broadcast %4 : vector<1x96xf32> to vector<64x96xf32>
    %6 = arith.addf %3, %5 : vector<64x96xf32>
    %7 = vector.shape_cast %6 : vector<64x96xf32> to vector<8x8x96xf32>
    %c0_6 = arith.constant 0 : index
    %c0_7 = arith.constant 0 : index
    %8 = vector.load %arg4[%c0_6, %c0_7] : memref<32x32xf32, #tpu.memory_space<vmem>>, vector<32x32xf32>
    %cst_8 = arith.constant 0.000000e+00 : f32
    %9 = vector.broadcast %cst_8 : f32 to vector<64x32xf32>
    %10 = vector.extract_strided_slice %7 {offsets = [0, 0, 0], sizes = [8, 8, 8], strides = [1, 1, 1]} : vector<8x8x96xf32> to vector<8x8x8xf32>
    %11 = vector.extract_strided_slice %7 {offsets = [0, 0, 32], sizes = [8, 8, 8], strides = [1, 1, 1]} : vector<8x8x96xf32> to vector<8x8x8xf32>
    %12 = vector.extract_strided_slice %7 {offsets = [0, 0, 64], sizes = [8, 8, 8], strides = [1, 1, 1]} : vector<8x8x96xf32> to vector<8x8x8xf32>
    "tpu.trace_start"() <{level = 10 : i32, message = "nqd,nkd->nqk"}> : () -> ()
    %cst_9 = arith.constant dense<0.000000e+00> : vector<8x8x8xf32>
    %13 = tpu.matmul %10, %11, %cst_9 {dimension_numbers = #tpu.dot_dimension_numbers<[2], [2], [1], [1], [0, 0, 0, 1, 1, 1], [0], [0]>} : vector<8x8x8xf32>, vector<8x8x8xf32>, vector<8x8x8xf32> -> vector<8x8x8xf32>
    "tpu.trace_stop"() : () -> ()
    %cst_10 = arith.constant 0.353553385 : f32
    %14 = vector.broadcast %cst_10 : f32 to vector<8x8x8xf32>
    %15 = arith.mulf %13, %14 : vector<8x8x8xf32>
    %cst_11 = arith.constant dense<0xFF800000> : vector<8x8xf32>
    %16 = vector.multi_reduction <maximumf>, %15, %cst_11 [2] : vector<8x8x8xf32> to vector<8x8xf32>
    %17 = vector.shape_cast %16 : vector<8x8xf32> to vector<8x8x1xf32>
    %18 = vector.broadcast %17 : vector<8x8x1xf32> to vector<8x8x8xf32>
    %19 = arith.subf %15, %18 : vector<8x8x8xf32>
    %20 = math.exp %19 : vector<8x8x8xf32>
    %cst_12 = arith.constant dense<0.000000e+00> : vector<8x8xf32>
    %21 = vector.multi_reduction <add>, %20, %cst_12 [2] : vector<8x8x8xf32> to vector<8x8xf32>
    %22 = vector.shape_cast %21 : vector<8x8xf32> to vector<8x8x1xf32>
    %23 = tpu.reciprocal %22 {approx = true} : vector<8x8x1xf32> -> vector<8x8x1xf32>
    %24 = vector.broadcast %23 : vector<8x8x1xf32> to vector<8x8x8xf32>
    %25 = arith.mulf %20, %24 : vector<8x8x8xf32>
    "tpu.trace_start"() <{level = 10 : i32, message = "nqk,nkd->nqd"}> : () -> ()
    %cst_13 = arith.constant dense<0.000000e+00> : vector<8x8x8xf32>
    %26 = tpu.matmul %25, %12, %cst_13 {dimension_numbers = #tpu.dot_dimension_numbers<[2], [1], [1], [2], [0, 0, 0, 1, 1, 2], [0], [0]>} : vector<8x8x8xf32>, vector<8x8x8xf32>, vector<8x8x8xf32> -> vector<8x8x8xf32>
    "tpu.trace_stop"() : () -> ()
    %27 = vector.shape_cast %26 : vector<8x8x8xf32> to vector<64x8xf32>
    %28 = vector.extract_strided_slice %8 {offsets = [0, 0], sizes = [8, 32], strides = [1, 1]} : vector<32x32xf32> to vector<8x32xf32>
    %cst_14 = arith.constant dense<0.000000e+00> : vector<64x32xf32>
    %29 = tpu.matmul %27, %28, %cst_14 {dimension_numbers = #tpu.dot_dimension_numbers<[1], [0], [0], [1], [0, 0, 1, 1], [], []>} : vector<64x8xf32>, vector<8x32xf32>, vector<64x32xf32> -> vector<64x32xf32>
    %30 = arith.addf %9, %29 : vector<64x32xf32>
    %31 = vector.extract_strided_slice %7 {offsets = [0, 0, 8], sizes = [8, 8, 8], strides = [1, 1, 1]} : vector<8x8x96xf32> to vector<8x8x8xf32>
    %32 = vector.extract_strided_slice %7 {offsets = [0, 0, 40], sizes = [8, 8, 8], strides = [1, 1, 1]} : vector<8x8x96xf32> to vector<8x8x8xf32>
    %33 = vector.extract_strided_slice %7 {offsets = [0, 0, 72], sizes = [8, 8, 8], strides = [1, 1, 1]} : vector<8x8x96xf32> to vector<8x8x8xf32>
    "tpu.trace_start"() <{level = 10 : i32, message = "nqd,nkd->nqk"}> : () -> ()
    %cst_15 = arith.constant dense<0.000000e+00> : vector<8x8x8xf32>
    %34 = tpu.matmul %31, %32, %cst_15 {dimension_numbers = #tpu.dot_dimension_numbers<[2], [2], [1], [1], [0, 0, 0, 1, 1, 1], [0], [0]>} : vector<8x8x8xf32>, vector<8x8x8xf32>, vector<8x8x8xf32> -> vector<8x8x8xf32>
    "tpu.trace_stop"() : () -> ()
    %cst_16 = arith.constant 0.353553385 : f32
    %35 = vector.broadcast %cst_16 : f32 to vector<8x8x8xf32>
    %36 = arith.mulf %34, %35 : vector<8x8x8xf32>
    %cst_17 = arith.constant dense<0xFF800000> : vector<8x8xf32>
    %37 = vector.multi_reduction <maximumf>, %36, %cst_17 [2] : vector<8x8x8xf32> to vector<8x8xf32>
    %38 = vector.shape_cast %37 : vector<8x8xf32> to vector<8x8x1xf32>
    %39 = vector.broadcast %38 : vector<8x8x1xf32> to vector<8x8x8xf32>
    %40 = arith.subf %36, %39 : vector<8x8x8xf32>
    %41 = math.exp %40 : vector<8x8x8xf32>
    %cst_18 = arith.constant dense<0.000000e+00> : vector<8x8xf32>
    %42 = vector.multi_reduction <add>, %41, %cst_18 [2] : vector<8x8x8xf32> to vector<8x8xf32>
    %43 = vector.shape_cast %42 : vector<8x8xf32> to vector<8x8x1xf32>
    %44 = tpu.reciprocal %43 {approx = true} : vector<8x8x1xf32> -> vector<8x8x1xf32>
    %45 = vector.broadcast %44 : vector<8x8x1xf32> to vector<8x8x8xf32>
    %46 = arith.mulf %41, %45 : vector<8x8x8xf32>
    "tpu.trace_start"() <{level = 10 : i32, message = "nqk,nkd->nqd"}> : () -> ()
    %cst_19 = arith.constant dense<0.000000e+00> : vector<8x8x8xf32>
    %47 = tpu.matmul %46, %33, %cst_19 {dimension_numbers = #tpu.dot_dimension_numbers<[2], [1], [1], [2], [0, 0, 0, 1, 1, 2], [0], [0]>} : vector<8x8x8xf32>, vector<8x8x8xf32>, vector<8x8x8xf32> -> vector<8x8x8xf32>
    "tpu.trace_stop"() : () -> ()
    %48 = vector.shape_cast %47 : vector<8x8x8xf32> to vector<64x8xf32>
    %49 = vector.extract_strided_slice %8 {offsets = [8, 0], sizes = [8, 32], strides = [1, 1]} : vector<32x32xf32> to vector<8x32xf32>
    %cst_20 = arith.constant dense<0.000000e+00> : vector<64x32xf32>
    %50 = tpu.matmul %48, %49, %cst_20 {dimension_numbers = #tpu.dot_dimension_numbers<[1], [0], [0], [1], [0, 0, 1, 1], [], []>} : vector<64x8xf32>, vector<8x32xf32>, vector<64x32xf32> -> vector<64x32xf32>
    %51 = arith.addf %30, %50 : vector<64x32xf32>
    %52 = vector.extract_strided_slice %7 {offsets = [0, 0, 16], sizes = [8, 8, 8], strides = [1, 1, 1]} : vector<8x8x96xf32> to vector<8x8x8xf32>
    %53 = vector.extract_strided_slice %7 {offsets = [0, 0, 48], sizes = [8, 8, 8], strides = [1, 1, 1]} : vector<8x8x96xf32> to vector<8x8x8xf32>
    %54 = vector.extract_strided_slice %7 {offsets = [0, 0, 80], sizes = [8, 8, 8], strides = [1, 1, 1]} : vector<8x8x96xf32> to vector<8x8x8xf32>
    "tpu.trace_start"() <{level = 10 : i32, message = "nqd,nkd->nqk"}> : () -> ()
    %cst_21 = arith.constant dense<0.000000e+00> : vector<8x8x8xf32>
    %55 = tpu.matmul %52, %53, %cst_21 {dimension_numbers = #tpu.dot_dimension_numbers<[2], [2], [1], [1], [0, 0, 0, 1, 1, 1], [0], [0]>} : vector<8x8x8xf32>, vector<8x8x8xf32>, vector<8x8x8xf32> -> vector<8x8x8xf32>
    "tpu.trace_stop"() : () -> ()
    %cst_22 = arith.constant 0.353553385 : f32
    %56 = vector.broadcast %cst_22 : f32 to vector<8x8x8xf32>
    %57 = arith.mulf %55, %56 : vector<8x8x8xf32>
    %cst_23 = arith.constant dense<0xFF800000> : vector<8x8xf32>
    %58 = vector.multi_reduction <maximumf>, %57, %cst_23 [2] : vector<8x8x8xf32> to vector<8x8xf32>
    %59 = vector.shape_cast %58 : vector<8x8xf32> to vector<8x8x1xf32>
    %60 = vector.broadcast %59 : vector<8x8x1xf32> to vector<8x8x8xf32>
    %61 = arith.subf %57, %60 : vector<8x8x8xf32>
    %62 = math.exp %61 : vector<8x8x8xf32>
    %cst_24 = arith.constant dense<0.000000e+00> : vector<8x8xf32>
    %63 = vector.multi_reduction <add>, %62, %cst_24 [2] : vector<8x8x8xf32> to vector<8x8xf32>
    %64 = vector.shape_cast %63 : vector<8x8xf32> to vector<8x8x1xf32>
    %65 = tpu.reciprocal %64 {approx = true} : vector<8x8x1xf32> -> vector<8x8x1xf32>
    %66 = vector.broadcast %65 : vector<8x8x1xf32> to vector<8x8x8xf32>
    %67 = arith.mulf %62, %66 : vector<8x8x8xf32>
    "tpu.trace_start"() <{level = 10 : i32, message = "nqk,nkd->nqd"}> : () -> ()
    %cst_25 = arith.constant dense<0.000000e+00> : vector<8x8x8xf32>
    %68 = tpu.matmul %67, %54, %cst_25 {dimension_numbers = #tpu.dot_dimension_numbers<[2], [1], [1], [2], [0, 0, 0, 1, 1, 2], [0], [0]>} : vector<8x8x8xf32>, vector<8x8x8xf32>, vector<8x8x8xf32> -> vector<8x8x8xf32>
    "tpu.trace_stop"() : () -> ()
    %69 = vector.shape_cast %68 : vector<8x8x8xf32> to vector<64x8xf32>
    %70 = vector.extract_strided_slice %8 {offsets = [16, 0], sizes = [8, 32], strides = [1, 1]} : vector<32x32xf32> to vector<8x32xf32>
    %cst_26 = arith.constant dense<0.000000e+00> : vector<64x32xf32>
    %71 = tpu.matmul %69, %70, %cst_26 {dimension_numbers = #tpu.dot_dimension_numbers<[1], [0], [0], [1], [0, 0, 1, 1], [], []>} : vector<64x8xf32>, vector<8x32xf32>, vector<64x32xf32> -> vector<64x32xf32>
    %72 = arith.addf %51, %71 : vector<64x32xf32>
    %73 = vector.extract_strided_slice %7 {offsets = [0, 0, 24], sizes = [8, 8, 8], strides = [1, 1, 1]} : vector<8x8x96xf32> to vector<8x8x8xf32>
    %74 = vector.extract_strided_slice %7 {offsets = [0, 0, 56], sizes = [8, 8, 8], strides = [1, 1, 1]} : vector<8x8x96xf32> to vector<8x8x8xf32>
    %75 = vector.extract_strided_slice %7 {offsets = [0, 0, 88], sizes = [8, 8, 8], strides = [1, 1, 1]} : vector<8x8x96xf32> to vector<8x8x8xf32>
    "tpu.trace_start"() <{level = 10 : i32, message = "nqd,nkd->nqk"}> : () -> ()
    %cst_27 = arith.constant dense<0.000000e+00> : vector<8x8x8xf32>
    %76 = tpu.matmul %73, %74, %cst_27 {dimension_numbers = #tpu.dot_dimension_numbers<[2], [2], [1], [1], [0, 0, 0, 1, 1, 1], [0], [0]>} : vector<8x8x8xf32>, vector<8x8x8xf32>, vector<8x8x8xf32> -> vector<8x8x8xf32>
    "tpu.trace_stop"() : () -> ()
    %cst_28 = arith.constant 0.353553385 : f32
    %77 = vector.broadcast %cst_28 : f32 to vector<8x8x8xf32>
    %78 = arith.mulf %76, %77 : vector<8x8x8xf32>
    %cst_29 = arith.constant dense<0xFF800000> : vector<8x8xf32>
    %79 = vector.multi_reduction <maximumf>, %78, %cst_29 [2] : vector<8x8x8xf32> to vector<8x8xf32>
    %80 = vector.shape_cast %79 : vector<8x8xf32> to vector<8x8x1xf32>
    %81 = vector.broadcast %80 : vector<8x8x1xf32> to vector<8x8x8xf32>
    %82 = arith.subf %78, %81 : vector<8x8x8xf32>
    %83 = math.exp %82 : vector<8x8x8xf32>
    %cst_30 = arith.constant dense<0.000000e+00> : vector<8x8xf32>
    %84 = vector.multi_reduction <add>, %83, %cst_30 [2] : vector<8x8x8xf32> to vector<8x8xf32>
    %85 = vector.shape_cast %84 : vector<8x8xf32> to vector<8x8x1xf32>
    %86 = tpu.reciprocal %85 {approx = true} : vector<8x8x1xf32> -> vector<8x8x1xf32>
    %87 = vector.broadcast %86 : vector<8x8x1xf32> to vector<8x8x8xf32>
    %88 = arith.mulf %83, %87 : vector<8x8x8xf32>
    "tpu.trace_start"() <{level = 10 : i32, message = "nqk,nkd->nqd"}> : () -> ()
    %cst_31 = arith.constant dense<0.000000e+00> : vector<8x8x8xf32>
    %89 = tpu.matmul %88, %75, %cst_31 {dimension_numbers = #tpu.dot_dimension_numbers<[2], [1], [1], [2], [0, 0, 0, 1, 1, 2], [0], [0]>} : vector<8x8x8xf32>, vector<8x8x8xf32>, vector<8x8x8xf32> -> vector<8x8x8xf32>
    "tpu.trace_stop"() : () -> ()
    %90 = vector.shape_cast %89 : vector<8x8x8xf32> to vector<64x8xf32>
    %91 = vector.extract_strided_slice %8 {offsets = [24, 0], sizes = [8, 32], strides = [1, 1]} : vector<32x32xf32> to vector<8x32xf32>
    %cst_32 = arith.constant dense<0.000000e+00> : vector<64x32xf32>
    %92 = tpu.matmul %90, %91, %cst_32 {dimension_numbers = #tpu.dot_dimension_numbers<[1], [0], [0], [1], [0, 0, 1, 1], [], []>} : vector<64x8xf32>, vector<8x32xf32>, vector<64x32xf32> -> vector<64x32xf32>
    %93 = arith.addf %72, %92 : vector<64x32xf32>
    %c0_33 = arith.constant 0 : index
    %c0_34 = arith.constant 0 : index
    %94 = vector.load %arg5[%c0_33, %c0_34] : memref<1x32xf32, #tpu.memory_space<vmem>>, vector<1x32xf32>
    %95 = vector.broadcast %94 : vector<1x32xf32> to vector<64x32xf32>
    %96 = arith.addf %93, %95 : vector<64x32xf32>
    %97 = vector.shape_cast %96 : vector<64x32xf32> to vector<8x8x32xf32>
    %c0_35 = arith.constant 0 : index
    %c0_36 = arith.constant 0 : index
    %c0_37 = arith.constant 0 : index
    %98 = vector.load %arg6[%c0_35, %c0_36, %c0_37] : memref<8x8x32xf32, #tpu.memory_space<vmem>>, vector<8x8x32xf32>
    tpu.vector_store %arg6[%c0_35, %c0_36, %c0_37], %97 {strides = array<i32>} : memref<8x8x32xf32, #tpu.memory_space<vmem>>, vector<8x8x32xf32>,
    return
  }
  func.func @transform_0(%arg0: i32) -> (i32, i32, i32) {
    %c0_i32 = arith.constant 0 : i32
    %c0_i32_0 = arith.constant 0 : i32
    %c0_i32_1 = arith.constant 0 : i32
    return %arg0, %c0_i32, %c0_i32_0 : i32, i32, i32
  }
  func.func @transform_1(%arg0: i32) -> (i32, i32) {
    %c0_i32 = arith.constant 0 : i32
    %c0_i32_0 = arith.constant 0 : i32
    %c0_i32_1 = arith.constant 0 : i32
    return %c0_i32, %c0_i32_0 : i32, i32
  }
  func.func @transform_2(%arg0: i32) -> (i32, i32) {
    %c0_i32 = arith.constant 0 : i32
    %c0_i32_0 = arith.constant 0 : i32
    %c0_i32_1 = arith.constant 0 : i32
    return %c0_i32, %c0_i32_0 : i32, i32
  }
  func.func @transform_3(%arg0: i32) -> (i32, i32) {
    %c0_i32 = arith.constant 0 : i32
    %c0_i32_0 = arith.constant 0 : i32
    %c0_i32_1 = arith.constant 0 : i32
    return %c0_i32, %c0_i32_0 : i32, i32
  }
  func.func @transform_4(%arg0: i32) -> (i32, i32) {
    %c0_i32 = arith.constant 0 : i32
    %c0_i32_0 = arith.constant 0 : i32
    %c0_i32_1 = arith.constant 0 : i32
    return %c0_i32, %c0_i32_0 : i32, i32
  }
  func.func @transform_5(%arg0: i32) -> (i32, i32, i32) {
    %c0_i32 = arith.constant 0 : i32
    %c0_i32_0 = arith.constant 0 : i32
    %c0_i32_1 = arith.constant 0 : i32
    return %arg0, %c0_i32, %c0_i32_0 : i32, i32, i32
  }
}

module attributes {stable_mosaic.version = 11 : i64} {
  func.func @_mha_kernel(%arg0: i32, %arg1: memref<1x64x32xf32, #tpu.memory_space<vmem>>, %arg2: memref<32x96xf32, #tpu.memory_space<vmem>>, %arg3: memref<1x96xf32, #tpu.memory_space<vmem>>, %arg4: memref<32x32xf32, #tpu.memory_space<vmem>>, %arg5: memref<1x32xf32, #tpu.memory_space<vmem>>, %arg6: memref<1x64x32xf32, #tpu.memory_space<vmem>>) attributes {dimension_semantics = [#tpu.dimension_semantics<parallel>], iteration_bounds = array<i64: 2>, scalar_prefetch = 0 : i64, scratch_operands = 0 : i64, tpu.core_type = #tpu.core_type<tc>, window_params = [{transform_indices = @transform_0, window_bounds = array<i64: 1, 64, 32>}, {pipeline_mode = #tpu.pipeline_mode<synchronous>, transform_indices = @transform_1, window_bounds = array<i64: 32, 96>}, {pipeline_mode = #tpu.pipeline_mode<synchronous>, transform_indices = @transform_2, window_bounds = array<i64: 1, 96>}, {pipeline_mode = #tpu.pipeline_mode<synchronous>, transform_indices = @transform_3, window_bounds = array<i64: 32, 32>}, {pipeline_mode = #tpu.pipeline_mode<synchronous>, transform_indices = @transform_4, window_bounds = array<i64: 1, 32>}, {transform_indices = @transform_5, window_bounds = array<i64: 1, 64, 32>}]} {
    %c0 = arith.constant 0 : index
    %c0_0 = arith.constant 0 : index
    %c0_1 = arith.constant 0 : index
    %0 = vector.load %arg1[%c0, %c0_0, %c0_1] : memref<1x64x32xf32, #tpu.memory_space<vmem>>, vector<1x64x32xf32>
    %1 = vector.shape_cast %0 : vector<1x64x32xf32> to vector<64x32xf32>
    %c0_2 = arith.constant 0 : index
    %c0_3 = arith.constant 0 : index
    %2 = vector.load %arg2[%c0_2, %c0_3] : memref<32x96xf32, #tpu.memory_space<vmem>>, vector<32x96xf32>
    %cst = arith.constant dense<0.000000e+00> : vector<64x96xf32>
    %3 = tpu.matmul %1, %2, %cst {dimension_numbers = #tpu.dot_dimension_numbers<[1], [0], [0], [1], [0, 0, 1, 1], [], []>} : vector<64x32xf32>, vector<32x96xf32>, vector<64x96xf32> -> vector<64x96xf32>
    %c0_4 = arith.constant 0 : index
    %c0_5 = arith.constant 0 : index
    %4 = vector.load %arg3[%c0_4, %c0_5] : memref<1x96xf32, #tpu.memory_space<vmem>>, vector<1x96xf32>
    %5 = vector.broadcast %4 : vector<1x96xf32> to vector<64x96xf32>
    %6 = arith.addf %3, %5 : vector<64x96xf32>
    %7 = vector.shape_cast %6 : vector<64x96xf32> to vector<1x64x96xf32>
    %c0_6 = arith.constant 0 : index
    %c0_7 = arith.constant 0 : index
    %8 = vector.load %arg4[%c0_6, %c0_7] : memref<32x32xf32, #tpu.memory_space<vmem>>, vector<32x32xf32>
    %cst_8 = arith.constant 0.000000e+00 : f32
    %9 = vector.broadcast %cst_8 : f32 to vector<64x32xf32>
    %10 = vector.extract_strided_slice %7 {offsets = [0, 0, 0], sizes = [1, 64, 8], strides = [1, 1, 1]} : vector<1x64x96xf32> to vector<1x64x8xf32>
    %11 = vector.extract_strided_slice %7 {offsets = [0, 0, 32], sizes = [1, 64, 8], strides = [1, 1, 1]} : vector<1x64x96xf32> to vector<1x64x8xf32>
    %12 = vector.extract_strided_slice %7 {offsets = [0, 0, 64], sizes = [1, 64, 8], strides = [1, 1, 1]} : vector<1x64x96xf32> to vector<1x64x8xf32>
    "tpu.trace_start"() <{level = 10 : i32, message = "nqd,nkd->nqk"}> : () -> ()
    %cst_9 = arith.constant dense<0.000000e+00> : vector<1x64x64xf32>
    %13 = tpu.matmul %10, %11, %cst_9 {dimension_numbers = #tpu.dot_dimension_numbers<[2], [2], [1], [1], [0, 0, 0, 1, 1, 1], [0], [0]>} : vector<1x64x8xf32>, vector<1x64x8xf32>, vector<1x64x64xf32> -> vector<1x64x64xf32>
    "tpu.trace_stop"() : () -> ()
    %cst_10 = arith.constant 0.353553385 : f32
    %14 = vector.broadcast %cst_10 : f32 to vector<1x64x64xf32>
    %15 = arith.mulf %13, %14 : vector<1x64x64xf32>
    %cst_11 = arith.constant dense<0xFF800000> : vector<1x64xf32>
    %16 = vector.multi_reduction <maximumf>, %15, %cst_11 [2] : vector<1x64x64xf32> to vector<1x64xf32>
    %17 = vector.shape_cast %16 : vector<1x64xf32> to vector<1x64x1xf32>
    %18 = vector.broadcast %17 : vector<1x64x1xf32> to vector<1x64x64xf32>
    %19 = arith.subf %15, %18 : vector<1x64x64xf32>
    %20 = math.exp %19 : vector<1x64x64xf32>
    %cst_12 = arith.constant dense<0.000000e+00> : vector<1x64xf32>
    %21 = vector.multi_reduction <add>, %20, %cst_12 [2] : vector<1x64x64xf32> to vector<1x64xf32>
    %22 = vector.shape_cast %21 : vector<1x64xf32> to vector<1x64x1xf32>
    %23 = tpu.reciprocal %22 {approx = true} : vector<1x64x1xf32> -> vector<1x64x1xf32>
    %24 = vector.broadcast %23 : vector<1x64x1xf32> to vector<1x64x64xf32>
    %25 = arith.mulf %20, %24 : vector<1x64x64xf32>
    "tpu.trace_start"() <{level = 10 : i32, message = "nqk,nkd->nqd"}> : () -> ()
    %cst_13 = arith.constant dense<0.000000e+00> : vector<1x64x8xf32>
    %26 = tpu.matmul %25, %12, %cst_13 {dimension_numbers = #tpu.dot_dimension_numbers<[2], [1], [1], [2], [0, 0, 0, 1, 1, 2], [0], [0]>} : vector<1x64x64xf32>, vector<1x64x8xf32>, vector<1x64x8xf32> -> vector<1x64x8xf32>
    "tpu.trace_stop"() : () -> ()
    %27 = vector.shape_cast %26 : vector<1x64x8xf32> to vector<64x8xf32>
    %28 = vector.extract_strided_slice %8 {offsets = [0, 0], sizes = [8, 32], strides = [1, 1]} : vector<32x32xf32> to vector<8x32xf32>
    %cst_14 = arith.constant dense<0.000000e+00> : vector<64x32xf32>
    %29 = tpu.matmul %27, %28, %cst_14 {dimension_numbers = #tpu.dot_dimension_numbers<[1], [0], [0], [1], [0, 0, 1, 1], [], []>} : vector<64x8xf32>, vector<8x32xf32>, vector<64x32xf32> -> vector<64x32xf32>
    %30 = arith.addf %9, %29 : vector<64x32xf32>
    %31 = vector.extract_strided_slice %7 {offsets = [0, 0, 8], sizes = [1, 64, 8], strides = [1, 1, 1]} : vector<1x64x96xf32> to vector<1x64x8xf32>
    %32 = vector.extract_strided_slice %7 {offsets = [0, 0, 40], sizes = [1, 64, 8], strides = [1, 1, 1]} : vector<1x64x96xf32> to vector<1x64x8xf32>
    %33 = vector.extract_strided_slice %7 {offsets = [0, 0, 72], sizes = [1, 64, 8], strides = [1, 1, 1]} : vector<1x64x96xf32> to vector<1x64x8xf32>
    "tpu.trace_start"() <{level = 10 : i32, message = "nqd,nkd->nqk"}> : () -> ()
    %cst_15 = arith.constant dense<0.000000e+00> : vector<1x64x64xf32>
    %34 = tpu.matmul %31, %32, %cst_15 {dimension_numbers = #tpu.dot_dimension_numbers<[2], [2], [1], [1], [0, 0, 0, 1, 1, 1], [0], [0]>} : vector<1x64x8xf32>, vector<1x64x8xf32>, vector<1x64x64xf32> -> vector<1x64x64xf32>
    "tpu.trace_stop"() : () -> ()
    %cst_16 = arith.constant 0.353553385 : f32
    %35 = vector.broadcast %cst_16 : f32 to vector<1x64x64xf32>
    %36 = arith.mulf %34, %35 : vector<1x64x64xf32>
    %cst_17 = arith.constant dense<0xFF800000> : vector<1x64xf32>
    %37 = vector.multi_reduction <maximumf>, %36, %cst_17 [2] : vector<1x64x64xf32> to vector<1x64xf32>
    %38 = vector.shape_cast %37 : vector<1x64xf32> to vector<1x64x1xf32>
    %39 = vector.broadcast %38 : vector<1x64x1xf32> to vector<1x64x64xf32>
    %40 = arith.subf %36, %39 : vector<1x64x64xf32>
    %41 = math.exp %40 : vector<1x64x64xf32>
    %cst_18 = arith.constant dense<0.000000e+00> : vector<1x64xf32>
    %42 = vector.multi_reduction <add>, %41, %cst_18 [2] : vector<1x64x64xf32> to vector<1x64xf32>
    %43 = vector.shape_cast %42 : vector<1x64xf32> to vector<1x64x1xf32>
    %44 = tpu.reciprocal %43 {approx = true} : vector<1x64x1xf32> -> vector<1x64x1xf32>
    %45 = vector.broadcast %44 : vector<1x64x1xf32> to vector<1x64x64xf32>
    %46 = arith.mulf %41, %45 : vector<1x64x64xf32>
    "tpu.trace_start"() <{level = 10 : i32, message = "nqk,nkd->nqd"}> : () -> ()
    %cst_19 = arith.constant dense<0.000000e+00> : vector<1x64x8xf32>
    %47 = tpu.matmul %46, %33, %cst_19 {dimension_numbers = #tpu.dot_dimension_numbers<[2], [1], [1], [2], [0, 0, 0, 1, 1, 2], [0], [0]>} : vector<1x64x64xf32>, vector<1x64x8xf32>, vector<1x64x8xf32> -> vector<1x64x8xf32>
    "tpu.trace_stop"() : () -> ()
    %48 = vector.shape_cast %47 : vector<1x64x8xf32> to vector<64x8xf32>
    %49 = vector.extract_strided_slice %8 {offsets = [8, 0], sizes = [8, 32], strides = [1, 1]} : vector<32x32xf32> to vector<8x32xf32>
    %cst_20 = arith.constant dense<0.000000e+00> : vector<64x32xf32>
    %50 = tpu.matmul %48, %49, %cst_20 {dimension_numbers = #tpu.dot_dimension_numbers<[1], [0], [0], [1], [0, 0, 1, 1], [], []>} : vector<64x8xf32>, vector<8x32xf32>, vector<64x32xf32> -> vector<64x32xf32>
    %51 = arith.addf %30, %50 : vector<64x32xf32>
    %52 = vector.extract_strided_slice %7 {offsets = [0, 0, 16], sizes = [1, 64, 8], strides = [1, 1, 1]} : vector<1x64x96xf32> to vector<1x64x8xf32>
    %53 = vector.extract_strided_slice %7 {offsets = [0, 0, 48], sizes = [1, 64, 8], strides = [1, 1, 1]} : vector<1x64x96xf32> to vector<1x64x8xf32>
    %54 = vector.extract_strided_slice %7 {offsets = [0, 0, 80], sizes = [1, 64, 8], strides = [1, 1, 1]} : vector<1x64x96xf32> to vector<1x64x8xf32>
    "tpu.trace_start"() <{level = 10 : i32, message = "nqd,nkd->nqk"}> : () -> ()
    %cst_21 = arith.constant dense<0.000000e+00> : vector<1x64x64xf32>
    %55 = tpu.matmul %52, %53, %cst_21 {dimension_numbers = #tpu.dot_dimension_numbers<[2], [2], [1], [1], [0, 0, 0, 1, 1, 1], [0], [0]>} : vector<1x64x8xf32>, vector<1x64x8xf32>, vector<1x64x64xf32> -> vector<1x64x64xf32>
    "tpu.trace_stop"() : () -> ()
    %cst_22 = arith.constant 0.353553385 : f32
    %56 = vector.broadcast %cst_22 : f32 to vector<1x64x64xf32>
    %57 = arith.mulf %55, %56 : vector<1x64x64xf32>
    %cst_23 = arith.constant dense<0xFF800000> : vector<1x64xf32>
    %58 = vector.multi_reduction <maximumf>, %57, %cst_23 [2] : vector<1x64x64xf32> to vector<1x64xf32>
    %59 = vector.shape_cast %58 : vector<1x64xf32> to vector<1x64x1xf32>
    %60 = vector.broadcast %59 : vector<1x64x1xf32> to vector<1x64x64xf32>
    %61 = arith.subf %57, %60 : vector<1x64x64xf32>
    %62 = math.exp %61 : vector<1x64x64xf32>
    %cst_24 = arith.constant dense<0.000000e+00> : vector<1x64xf32>
    %63 = vector.multi_reduction <add>, %62, %cst_24 [2] : vector<1x64x64xf32> to vector<1x64xf32>
    %64 = vector.shape_cast %63 : vector<1x64xf32> to vector<1x64x1xf32>
    %65 = tpu.reciprocal %64 {approx = true} : vector<1x64x1xf32> -> vector<1x64x1xf32>
    %66 = vector.broadcast %65 : vector<1x64x1xf32> to vector<1x64x64xf32>
    %67 = arith.mulf %62, %66 : vector<1x64x64xf32>
    "tpu.trace_start"() <{level = 10 : i32, message = "nqk,nkd->nqd"}> : () -> ()
    %cst_25 = arith.constant dense<0.000000e+00> : vector<1x64x8xf32>
    %68 = tpu.matmul %67, %54, %cst_25 {dimension_numbers = #tpu.dot_dimension_numbers<[2], [1], [1], [2], [0, 0, 0, 1, 1, 2], [0], [0]>} : vector<1x64x64xf32>, vector<1x64x8xf32>, vector<1x64x8xf32> -> vector<1x64x8xf32>
    "tpu.trace_stop"() : () -> ()
    %69 = vector.shape_cast %68 : vector<1x64x8xf32> to vector<64x8xf32>
    %70 = vector.extract_strided_slice %8 {offsets = [16, 0], sizes = [8, 32], strides = [1, 1]} : vector<32x32xf32> to vector<8x32xf32>
    %cst_26 = arith.constant dense<0.000000e+00> : vector<64x32xf32>
    %71 = tpu.matmul %69, %70, %cst_26 {dimension_numbers = #tpu.dot_dimension_numbers<[1], [0], [0], [1], [0, 0, 1, 1], [], []>} : vector<64x8xf32>, vector<8x32xf32>, vector<64x32xf32> -> vector<64x32xf32>
    %72 = arith.addf %51, %71 : vector<64x32xf32>
    %73 = vector.extract_strided_slice %7 {offsets = [0, 0, 24], sizes = [1, 64, 8], strides = [1, 1, 1]} : vector<1x64x96xf32> to vector<1x64x8xf32>
    %74 = vector.extract_strided_slice %7 {offsets = [0, 0, 56], sizes = [1, 64, 8], strides = [1, 1, 1]} : vector<1x64x96xf32> to vector<1x64x8xf32>
    %75 = vector.extract_strided_slice %7 {offsets = [0, 0, 88], sizes = [1, 64, 8], strides = [1, 1, 1]} : vector<1x64x96xf32> to vector<1x64x8xf32>
    "tpu.trace_start"() <{level = 10 : i32, message = "nqd,nkd->nqk"}> : () -> ()
    %cst_27 = arith.constant dense<0.000000e+00> : vector<1x64x64xf32>
    %76 = tpu.matmul %73, %74, %cst_27 {dimension_numbers = #tpu.dot_dimension_numbers<[2], [2], [1], [1], [0, 0, 0, 1, 1, 1], [0], [0]>} : vector<1x64x8xf32>, vector<1x64x8xf32>, vector<1x64x64xf32> -> vector<1x64x64xf32>
    "tpu.trace_stop"() : () -> ()
    %cst_28 = arith.constant 0.353553385 : f32
    %77 = vector.broadcast %cst_28 : f32 to vector<1x64x64xf32>
    %78 = arith.mulf %76, %77 : vector<1x64x64xf32>
    %cst_29 = arith.constant dense<0xFF800000> : vector<1x64xf32>
    %79 = vector.multi_reduction <maximumf>, %78, %cst_29 [2] : vector<1x64x64xf32> to vector<1x64xf32>
    %80 = vector.shape_cast %79 : vector<1x64xf32> to vector<1x64x1xf32>
    %81 = vector.broadcast %80 : vector<1x64x1xf32> to vector<1x64x64xf32>
    %82 = arith.subf %78, %81 : vector<1x64x64xf32>
    %83 = math.exp %82 : vector<1x64x64xf32>
    %cst_30 = arith.constant dense<0.000000e+00> : vector<1x64xf32>
    %84 = vector.multi_reduction <add>, %83, %cst_30 [2] : vector<1x64x64xf32> to vector<1x64xf32>
    %85 = vector.shape_cast %84 : vector<1x64xf32> to vector<1x64x1xf32>
    %86 = tpu.reciprocal %85 {approx = true} : vector<1x64x1xf32> -> vector<1x64x1xf32>
    %87 = vector.broadcast %86 : vector<1x64x1xf32> to vector<1x64x64xf32>
    %88 = arith.mulf %83, %87 : vector<1x64x64xf32>
    "tpu.trace_start"() <{level = 10 : i32, message = "nqk,nkd->nqd"}> : () -> ()
    %cst_31 = arith.constant dense<0.000000e+00> : vector<1x64x8xf32>
    %89 = tpu.matmul %88, %75, %cst_31 {dimension_numbers = #tpu.dot_dimension_numbers<[2], [1], [1], [2], [0, 0, 0, 1, 1, 2], [0], [0]>} : vector<1x64x64xf32>, vector<1x64x8xf32>, vector<1x64x8xf32> -> vector<1x64x8xf32>
    "tpu.trace_stop"() : () -> ()
    %90 = vector.shape_cast %89 : vector<1x64x8xf32> to vector<64x8xf32>
    %91 = vector.extract_strided_slice %8 {offsets = [24, 0], sizes = [8, 32], strides = [1, 1]} : vector<32x32xf32> to vector<8x32xf32>
    %cst_32 = arith.constant dense<0.000000e+00> : vector<64x32xf32>
    %92 = tpu.matmul %90, %91, %cst_32 {dimension_numbers = #tpu.dot_dimension_numbers<[1], [0], [0], [1], [0, 0, 1, 1], [], []>} : vector<64x8xf32>, vector<8x32xf32>, vector<64x32xf32> -> vector<64x32xf32>
    %93 = arith.addf %72, %92 : vector<64x32xf32>
    %c0_33 = arith.constant 0 : index
    %c0_34 = arith.constant 0 : index
    %94 = vector.load %arg5[%c0_33, %c0_34] : memref<1x32xf32, #tpu.memory_space<vmem>>, vector<1x32xf32>
    %95 = vector.broadcast %94 : vector<1x32xf32> to vector<64x32xf32>
    %96 = arith.addf %93, %95 : vector<64x32xf32>
    %97 = vector.shape_cast %96 : vector<64x32xf32> to vector<1x64x32xf32>
    %c0_35 = arith.constant 0 : index
    %c0_36 = arith.constant 0 : index
    %c0_37 = arith.constant 0 : index
    %98 = vector.load %arg6[%c0_35, %c0_36, %c0_37] : memref<1x64x32xf32, #tpu.memory_space<vmem>>, vector<1x64x32xf32>
    tpu.vector_store %arg6[%c0_35, %c0_36, %c0_37], %97 {strides = array<i32>} : memref<1x64x32xf32, #tpu.memory_space<vmem>>, vector<1x64x32xf32>,
    return
  }
  func.func @transform_0(%arg0: i32) -> (i32, i32, i32) {
    %c0_i32 = arith.constant 0 : i32
    %c0_i32_0 = arith.constant 0 : i32
    %c0_i32_1 = arith.constant 0 : i32
    return %arg0, %c0_i32, %c0_i32_0 : i32, i32, i32
  }
  func.func @transform_1(%arg0: i32) -> (i32, i32) {
    %c0_i32 = arith.constant 0 : i32
    %c0_i32_0 = arith.constant 0 : i32
    %c0_i32_1 = arith.constant 0 : i32
    return %c0_i32, %c0_i32_0 : i32, i32
  }
  func.func @transform_2(%arg0: i32) -> (i32, i32) {
    %c0_i32 = arith.constant 0 : i32
    %c0_i32_0 = arith.constant 0 : i32
    %c0_i32_1 = arith.constant 0 : i32
    return %c0_i32, %c0_i32_0 : i32, i32
  }
  func.func @transform_3(%arg0: i32) -> (i32, i32) {
    %c0_i32 = arith.constant 0 : i32
    %c0_i32_0 = arith.constant 0 : i32
    %c0_i32_1 = arith.constant 0 : i32
    return %c0_i32, %c0_i32_0 : i32, i32
  }
  func.func @transform_4(%arg0: i32) -> (i32, i32) {
    %c0_i32 = arith.constant 0 : i32
    %c0_i32_0 = arith.constant 0 : i32
    %c0_i32_1 = arith.constant 0 : i32
    return %c0_i32, %c0_i32_0 : i32, i32
  }
  func.func @transform_5(%arg0: i32) -> (i32, i32, i32) {
    %c0_i32 = arith.constant 0 : i32
    %c0_i32_0 = arith.constant 0 : i32
    %c0_i32_1 = arith.constant 0 : i32
    return %arg0, %c0_i32, %c0_i32_0 : i32, i32, i32
  }
}

</mosaic_0001>

<llo_original>
// kernel: beam_splitter_attention.3
$region0: #{beam_splitter_attention.3}
  #allocation0 [shape = 'u32[]', space=smem, size = 0x4, offset = 0x4, fixed_abs, tag = 'smem constant byte address 0x4 - core index']
  #allocation1 [shape = 'u32[144,128]{1,0:T(1,128)}', space=vmem, size = 0x12000, scoped, tag = 'internal scratch']
  %s0 = inlined_call_operand.vmem [shape: f32[2,64,32], index: 0, kind: input, shape index: {}]
  %s1 = inlined_call_operand.vmem [shape: f32[32,96], index: 1, kind: input, shape index: {}]
  %s2 = inlined_call_operand.vmem [shape: f32[1,96], index: 2, kind: input, shape index: {}]
  %s3 = inlined_call_operand.vmem [shape: f32[32,32], index: 3, kind: input, shape index: {}]
  %s4 = inlined_call_operand.vmem [shape: f32[1,32], index: 4, kind: input, shape index: {}]
  %s5 = inlined_call_operand.vmem [shape: f32[2,64,32], index: 5, kind: output, shape index: {}]
  %s6 = sld [smem:[#allocation0]]
  $region53: #{beam_splitter_attention.3} parent=0
    _
  %s8 = ssub.s32 1, %s6
  %s9 = scalar_select 0, %s8, %s6
  loop: start=0, step=1, limit=4
  $region2: #{beam_splitter_attention.3} parent=0 // loop_pre_header
    _
  $region3: #{beam_splitter_attention.3} parent=0 // loop_header
    %s11 = sphi 0, %s15
    %p12 = scmp.ge.s32.totalorder %s11, 4
    %s21 = sphi 0, %s23
    %s24 = sphi 0, %s21
    %s25 = sphi 0, %s24
    %s41 = sphi 0, %s25
    %s45 = sphi 0, %s45
    %s47 = sphi 0, %s45
    %s48 = sphi 0, %s47
    %s62 = sphi 0, %s48
    %s66 = sphi 0, %s66
    %s68 = sphi 0, %s66
    %s69 = sphi 0, %s68
    %s83 = sphi 0, %s69
    %s87 = sphi 0, %s87
    %s89 = sphi 0, %s87
    %s90 = sphi 0, %s89
    %s104 = sphi 0, %s90
    %s108 = sphi 0, %s108
    %s110 = sphi 0, %s108
    %s111 = sphi 0, %s110
    %s125 = sphi 0, %s111
    %s131 = sphi 0, %s133
    %s134 = sphi 0, %s131
    %s135 = sphi 0, %s134
    %s151 = sphi 0, %s135
  $region4: #{beam_splitter_attention.3} parent=0 // loop_header_branch
    %14 = sbr.rel (%p12) target = $region8
  $region5: #{beam_splitter_attention.3} parent=0 // loop_body
    %s16 = ssub.s32 %s11, 1
    %s17 = ssub.s32 %s11, 2
    %s18 = sadd.s32 %s11, 1
    %s19 = ssub.s32 %s11, %s18
    %p20 = scmp.eq.s32.totalorder %s19, 0
    %s22 = sadd.s32 %s21, 1
    %s23 = scalar_select %p20, %s21, %s22
    %p26 = pneg %p20
    %p27 = scmp.eq.s32.totalorder %s11, 1
    %p28 = por %p26, %p27
    %p29 = scmp.ne.s32.totalorder %s21, %s24
    %p30 = scmp.eq.s32.totalorder %s11, 0
    %p31 = por %p29, %p30
    %p32 = scmp.ne.s32.totalorder %s21, %s24
    %p33 = scmp.eq.s32.totalorder %s16, 1
    %p34 = por %p32, %p33
    %p35 = scmp.ne.s32.totalorder %s24, %s25
    %p36 = scmp.eq.s32.totalorder %s16, 0
    %p37 = por %p35, %p36
    %p38 = scmp.ne.s32.totalorder %s24, %s25
    %p39 = scmp.eq.s32.totalorder %s17, 1
    %p40 = por %p38, %p39
    %p42 = scmp.ne.s32.totalorder %s25, %s41
    %p43 = scmp.eq.s32.totalorder %s17, 0
    %p44 = por %p42, %p43
    %s46 = sadd.s32 %s45, 1
    %p49 = scmp.eq.s32.totalorder %s11, 1
    %p50 = scmp.ne.s32.totalorder %s45, %s47
    %p51 = scmp.eq.s32.totalorder %s11, 0
    %p52 = por %p50, %p51
    %p53 = scmp.ne.s32.totalorder %s45, %s47
    %p54 = scmp.eq.s32.totalorder %s16, 1
    %p55 = por %p53, %p54
    %p56 = scmp.ne.s32.totalorder %s47, %s48
    %p57 = scmp.eq.s32.totalorder %s16, 0
    %p58 = por %p56, %p57
    %p59 = scmp.ne.s32.totalorder %s47, %s48
    %p60 = scmp.eq.s32.totalorder %s17, 1
    %p61 = por %p59, %p60
    %p63 = scmp.ne.s32.totalorder %s48, %s62
    %p64 = scmp.eq.s32.totalorder %s17, 0
    %p65 = por %p63, %p64
    %s67 = sadd.s32 %s66, 1
    %p70 = scmp.eq.s32.totalorder %s11, 1
    %p71 = scmp.ne.s32.totalorder %s66, %s68
    %p72 = scmp.eq.s32.totalorder %s11, 0
    %p73 = por %p71, %p72
    %p74 = scmp.ne.s32.totalorder %s66, %s68
    %p75 = scmp.eq.s32.totalorder %s16, 1
    %p76 = por %p74, %p75
    %p77 = scmp.ne.s32.totalorder %s68, %s69
    %p78 = scmp.eq.s32.totalorder %s16, 0
    %p79 = por %p77, %p78
    %p80 = scmp.ne.s32.totalorder %s68, %s69
    %p81 = scmp.eq.s32.totalorder %s17, 1
    %p82 = por %p80, %p81
    %p84 = scmp.ne.s32.totalorder %s69, %s83
    %p85 = scmp.eq.s32.totalorder %s17, 0
    %p86 = por %p84, %p85
    %s88 = sadd.s32 %s87, 1
    %p91 = scmp.eq.s32.totalorder %s11, 1
    %p92 = scmp.ne.s32.totalorder %s87, %s89
    %p93 = scmp.eq.s32.totalorder %s11, 0
    %p94 = por %p92, %p93
    %p95 = scmp.ne.s32.totalorder %s87, %s89
    %p96 = scmp.eq.s32.totalorder %s16, 1
    %p97 = por %p95, %p96
    %p98 = scmp.ne.s32.totalorder %s89, %s90
    %p99 = scmp.eq.s32.totalorder %s16, 0
    %p100 = por %p98, %p99
    %p101 = scmp.ne.s32.totalorder %s89, %s90
    %p102 = scmp.eq.s32.totalorder %s17, 1
    %p103 = por %p101, %p102
    %p105 = scmp.ne.s32.totalorder %s90, %s104
    %p106 = scmp.eq.s32.totalorder %s17, 0
    %p107 = por %p105, %p106
    %s109 = sadd.s32 %s108, 1
    %p112 = scmp.eq.s32.totalorder %s11, 1
    %p113 = scmp.ne.s32.totalorder %s108, %s110
    %p114 = scmp.eq.s32.totalorder %s11, 0
    %p115 = por %p113, %p114
    %p116 = scmp.ne.s32.totalorder %s108, %s110
    %p117 = scmp.eq.s32.totalorder %s16, 1
    %p118 = por %p116, %p117
    %p119 = scmp.ne.s32.totalorder %s110, %s111
    %p120 = scmp.eq.s32.totalorder %s16, 0
    %p121 = por %p119, %p120
    %p122 = scmp.ne.s32.totalorder %s110, %s111
    %p123 = scmp.eq.s32.totalorder %s17, 1
    %p124 = por %p122, %p123
    %p126 = scmp.ne.s32.totalorder %s111, %s125
    %p127 = scmp.eq.s32.totalorder %s17, 0
    %p128 = por %p126, %p127
    %s129 = ssub.s32 %s11, %s18
    %p130 = scmp.eq.s32.totalorder %s129, 0
    %s132 = sadd.s32 %s131, 1
    %s133 = scalar_select %p130, %s131, %s132
    %p136 = pneg %p130
    %p137 = scmp.eq.s32.totalorder %s11, 1
    %p138 = por %p136, %p137
    %p139 = scmp.ne.s32.totalorder %s131, %s134
    %p140 = scmp.eq.s32.totalorder %s11, 0
    %p141 = por %p139, %p140
    %p142 = scmp.ne.s32.totalorder %s131, %s134
    %p143 = scmp.eq.s32.totalorder %s16, 1
    %p144 = por %p142, %p143
    %p145 = scmp.ne.s32.totalorder %s134, %s135
    %p146 = scmp.eq.s32.totalorder %s16, 0
    %p147 = por %p145, %p146
    %p148 = scmp.ne.s32.totalorder %s134, %s135
    %p149 = scmp.eq.s32.totalorder %s17, 1
    %p150 = por %p148, %p149
    %p152 = scmp.ne.s32.totalorder %s135, %s151
    %p153 = scmp.eq.s32.totalorder %s17, 0
    %p154 = por %p152, %p153
    %p155 = scmp.le.s32.totalorder 1, %s11
    %p156 = scmp.lt.s32.totalorder %s11, 3
    %p157 = pnand %p155, %p156
    %p158 = pneg %p157
    // Predicated region
    $region9: #{beam_splitter_attention.3} parent=5 // pred_check
      _
    $region10: #{beam_splitter_attention.3} parent=5 // pred_check_branch
      %160 = sbr.rel (%p157) target = $region12
    $region11: #{beam_splitter_attention.3} parent=5 // pred_region
      %s161 = ssub.s32 %s11, 1
      // Predicated region
      $region13: #{beam_splitter_attention.3} parent=11 // pred_check
        %p162 = pneg %p58
      $region14: #{beam_splitter_attention.3} parent=11 // pred_check_branch
        %164 = sbr.rel (%p162) target = $region16
      $region15: #{beam_splitter_attention.3} parent=11 // pred_region
        _
      $region16: #{beam_splitter_attention.3} parent=11 // pred_fallthru
        _
      // Predicated region
      $region17: #{beam_splitter_attention.3} parent=11 // pred_check
        %p165 = pneg %p79
      $region18: #{beam_splitter_attention.3} parent=11 // pred_check_branch
        %167 = sbr.rel (%p165) target = $region20
      $region19: #{beam_splitter_attention.3} parent=11 // pred_region
        _
      $region20: #{beam_splitter_attention.3} parent=11 // pred_fallthru
        _
      // Predicated region
      $region21: #{beam_splitter_attention.3} parent=11 // pred_check
        %p168 = pneg %p100
      $region22: #{beam_splitter_attention.3} parent=11 // pred_check_branch
        %170 = sbr.rel (%p168) target = $region24
      $region23: #{beam_splitter_attention.3} parent=11 // pred_region
        _
      $region24: #{beam_splitter_attention.3} parent=11 // pred_fallthru
        _
      // Predicated region
      $region25: #{beam_splitter_attention.3} parent=11 // pred_check
        %p171 = pneg %p121
      $region26: #{beam_splitter_attention.3} parent=11 // pred_check_branch
        %173 = sbr.rel (%p171) target = $region28
      $region27: #{beam_splitter_attention.3} parent=11 // pred_region
        _
      $region28: #{beam_splitter_attention.3} parent=11 // pred_fallthru
        _
    $region12: #{beam_splitter_attention.3} parent=5 // pred_fallthru
      _
    %p174 = scmp.lt.s32.totalorder %s11, 2
    // Predicated region
    $region29: #{beam_splitter_attention.3} parent=5 // pred_check
      %p175 = pneg %p174
    $region30: #{beam_splitter_attention.3} parent=5 // pred_check_branch
      %177 = sbr.rel (%p175) target = $region32
    $region31: #{beam_splitter_attention.3} parent=5 // pred_region
      // Predicated region
      $region33: #{beam_splitter_attention.3} parent=31 // pred_check
        %p178 = pneg %p31
      $region34: #{beam_splitter_attention.3} parent=31 // pred_check_branch
        %180 = sbr.rel (%p178) target = $region36
      $region35: #{beam_splitter_attention.3} parent=31 // pred_region
        %p181 = scmp.lt.s32.totalorder %s11, 1
        %s182 = scalar_select %p181, %s11, 1
        %s183 = smul.addr %s182, 8
        %s184 = smul.addr %s183, 8
        %s185 = scalar_lea.vmem %s0, %s184
      $region36: #{beam_splitter_attention.3} parent=31 // pred_fallthru
        _
    $region32: #{beam_splitter_attention.3} parent=5 // pred_fallthru
      _
    %p186 = scmp.le.s32.totalorder 1, %s11
    %p187 = scmp.lt.s32.totalorder %s11, 3
    %p188 = pnand %p186, %p187
    %p189 = pneg %p188
    // Predicated region
    $region37: #{beam_splitter_attention.3} parent=5 // pred_check
      _
    $region38: #{beam_splitter_attention.3} parent=5 // pred_check_branch
      %191 = sbr.rel (%p188) target = $region40
    $region39: #{beam_splitter_attention.3} parent=5 // pred_region
      %s192 = ssub.s32 %s11, 1
      %p193 = scmp.lt.s32.totalorder %s16, 1
      %s194 = scalar_select %p193, %s16, 1
      %s195 = smul.addr %s194, 8
      %s196 = smul.addr %s195, 8
      %s197 = scalar_lea.vmem %s0, %s196
      %p198 = pneg %p37
      %p199 = pneg %p34
      %p200 = pneg %p58
      %p201 = pneg %p55
      %p202 = pneg %p79
      %p203 = pneg %p76
      %p204 = pneg %p100
      %p205 = pneg %p97
      %p206 = pneg %p121
      %p207 = pneg %p118
      %p208 = pneg %p147
      %p209 = pneg %p144
      %p210 = scmp.lt.s32.totalorder %s16, 1
      %s211 = scalar_select %p210, %s16, 1
      %s212 = smul.addr %s211, 8
      %s213 = smul.addr %s212, 8
      %s214 = scalar_lea.vmem %s5, %s213
      %p215 = scmp.lt.s32.totalorder %s16, 1
      %s216 = scalar_select %p215, %s16, 1
      %s217 = smul.addr %s216, 8
      %s218 = smul.addr %s217, 8
      %s219 = scalar_lea.vmem %s0, %s218
      %p220 = scmp.lt.s32.totalorder %s16, 1
      %s221 = scalar_select %p220, %s16, 1
      %s222 = smul.addr %s221, 8
      %s223 = smul.addr %s222, 8
      %s224 = scalar_lea.vmem %s5, %s223
      %v225 = vld [vmem:[%s219] sm:$0xff]
      %v226 = vld [vmem:[%s219 + $0x8] sm:$0xff]
      %v227 = vld [vmem:[%s219 + $0x10] sm:$0xff]
      %v228 = vld [vmem:[%s219 + $0x18] sm:$0xff]
      %v229 = vld [vmem:[%s219 + $0x20] sm:$0xff]
      %v230 = vld [vmem:[%s219 + $0x28] sm:$0xff]
      %v231 = vld [vmem:[%s219 + $0x30] sm:$0xff]
      %v232 = vld [vmem:[%s219 + $0x38] sm:$0xff]
      %v233 = vld [vmem:[%s1] sm:$0xff]
      %v234 = vld [vmem:[%s1 + $0x8] sm:$0xff]
      %v235 = vld [vmem:[%s1 + $0x10] sm:$0xff]
      %v236 = vld [vmem:[%s1 + $0x18] sm:$0xff]
      %v237 = vld [vmem:[%s2] sm:$0x1]
      %v239 = vlaneseq
      %v240 = vshrl.u32 %v239, 7
      %v241 = vsub.s32 0, %v240
      %v242 = vrot.slane %v237, %v241
      %vm244 = vcmask 261120
      %v246 = vsel %vm244, %v225, 0
      %v249 = vsel %vm244, %v226, 0
      %v252 = vsel %vm244, %v227, 0
      %v255 = vsel %vm244, %v228, 0
      %v258 = vsel %vm244, %v229, 0
      %v261 = vsel %vm244, %v230, 0
      %v264 = vsel %vm244, %v231, 0
      %v267 = vsel %vm244, %v232, 0
      %269 = vmatprep.subr.mxu0 0.0
      %270 = vmatpush1.msra.mxu0 0.0
      %271 = vmatprep.subr.mxu0 0.0
      %272 = vmatpush1.msra.mxu0 0.0
      %273 = vmatprep.subr.mxu0 0.0
      %274 = vmatpush1.msra.mxu0 0.0
      %275 = vmatprep.subr.mxu0 0.0
      %276 = vmatpush1.msra.mxu0 0.0
      %277 = vmatprep.subr.mxu0 0.0
      %278 = vmatpush1.msra.mxu0 0.0
      %279 = vmatprep.subr.mxu0 0.0
      %280 = vmatpush1.msra.mxu0 0.0
      %281 = vmatprep.subr.mxu0 0.0
      %282 = vmatpush1.msra.mxu0 0.0
      %283 = vmatprep.subr.mxu0 0.0
      %284 = vmatpush1.msra.mxu0 0.0
      %285 = vmatprep.subr.mxu0 0.0
      %286 = vmatpush1.msra.mxu0 0.0
      %287 = vmatprep.subr.mxu0 0.0
      %288 = vmatpush1.msra.mxu0 0.0
      %289 = vmatprep.subr.mxu0 0.0
      %290 = vmatpush1.msra.mxu0 0.0
      %291 = vmatprep.subr.mxu0 0.0
      %292 = vmatpush1.msra.mxu0 0.0
      %293 = vmatprep.subr.mxu0 0.0
      %294 = vmatpush1.msra.mxu0 %v236
      %295 = vmatprep.subr.mxu0 0.0
      %296 = vmatpush1.msra.mxu0 %v235
      %297 = vmatprep.subr.mxu0 0.0
      %298 = vmatpush1.msra.mxu0 %v234
      %299 = vmatprep.subr.mxu0 0.0
      %300 = vmatpush1.msra.mxu0 %v233
      %301 = vmatprep.subr.mxu0 0.0
      %302 = vmatpush2.msra.mxu0 0.0
      %303 = vmatprep.subr.mxu0 0.0
      %304 = vmatpush2.msra.mxu0 0.0
      %305 = vmatprep.subr.mxu0 0.0
      %306 = vmatpush2.msra.mxu0 0.0
      %307 = vmatprep.subr.mxu0 0.0
      %308 = vmatpush2.msra.mxu0 0.0
      %309 = vmatprep.subr.mxu0 0.0
      %310 = vmatpush2.msra.mxu0 0.0
      %311 = vmatprep.subr.mxu0 0.0
      %312 = vmatpush2.msra.mxu0 0.0
      %313 = vmatprep.subr.mxu0 0.0
      %314 = vmatpush2.msra.mxu0 0.0
      %315 = vmatprep.subr.mxu0 0.0
      %316 = vmatpush2.msra.mxu0 0.0
      %317 = vmatprep.subr.mxu0 0.0
      %318 = vmatpush2.msra.mxu0 0.0
      %319 = vmatprep.subr.mxu0 0.0
      %320 = vmatpush2.msra.mxu0 0.0
      %321 = vmatprep.subr.mxu0 0.0
      %322 = vmatpush2.msra.mxu0 0.0
      %323 = vmatprep.subr.mxu0 0.0
      %324 = vmatpush2.msra.mxu0 0.0
      %325 = vmatprep.subr.mxu0 0.0
      %326 = vmatpush2.msra.mxu0 0.0
      %327 = vmatprep.subr.mxu0 0.0
      %328 = vmatpush2.msra.mxu0 0.0
      %329 = vmatprep.subr.mxu0 0.0
      %330 = vmatpush2.msra.mxu0 0.0
      %331 = vmatprep.subr.mxu0 0.0
      %332 = vmatpush2.msra.mxu0 0.0
      %333 = vmatprep.mubr.f32.mxu0 0.0
      %334 = vmatmul.mubr.f32.gmra.mxu0 %v246
      %v335 = vpop.f32.mrf.mxu0
      %v336 = vadd.f32 %v242, %v335
      %v337 = vpop.f32.mrf.mxu0
      %338 = vmatprep.mubr.f32.mxu0 0.0
      %339 = vmatmul.mubr.f32.gmra.mxu0 %v249
      %v340 = vpop.f32.mrf.mxu0
      %v341 = vadd.f32 %v242, %v340
      %v342 = vpop.f32.mrf.mxu0
      %343 = vmatprep.mubr.f32.mxu0 0.0
      %344 = vmatmul.mubr.f32.gmra.mxu0 %v252
      %v345 = vpop.f32.mrf.mxu0
      %v346 = vadd.f32 %v242, %v345
      %v347 = vpop.f32.mrf.mxu0
      %348 = vmatprep.mubr.f32.mxu0 0.0
      %349 = vmatmul.mubr.f32.gmra.mxu0 %v255
      %v350 = vpop.f32.mrf.mxu0
      %v351 = vadd.f32 %v242, %v350
      %v352 = vpop.f32.mrf.mxu0
      %353 = vmatprep.mubr.f32.mxu0 0.0
      %354 = vmatmul.mubr.f32.gmra.mxu0 %v258
      %v355 = vpop.f32.mrf.mxu0
      %v356 = vadd.f32 %v242, %v355
      %v357 = vpop.f32.mrf.mxu0
      %358 = vmatprep.mubr.f32.mxu0 0.0
      %359 = vmatmul.mubr.f32.gmra.mxu0 %v261
      %v360 = vpop.f32.mrf.mxu0
      %v361 = vadd.f32 %v242, %v360
      %v362 = vpop.f32.mrf.mxu0
      %363 = vmatprep.mubr.f32.mxu0 0.0
      %364 = vmatmul.mubr.f32.gmra.mxu0 %v264
      %v365 = vpop.f32.mrf.mxu0
      %v366 = vadd.f32 %v242, %v365
      %v367 = vpop.f32.mrf.mxu0
      %368 = vmatprep.mubr.f32.mxu0 0.0
      %369 = vmatmul.mubr.f32.gmra.mxu0 %v267
      %v370 = vpop.f32.mrf.mxu0
      %v371 = vadd.f32 %v242, %v370
      %v372 = vpop.f32.mrf.mxu0
      %373 = vdwg.mxu0
      %v374 = vld [vmem:[%s3] sm:$0xff]
      %v375 = vld [vmem:[%s3 + $0x8] sm:$0xff]
      %v376 = vld [vmem:[%s3 + $0x10] sm:$0xff]
      %v377 = vld [vmem:[%s3 + $0x18] sm:$0xff]
      %386 = vrot.lane.b32.xlu0 %v336, 96
      %v387 = vpop.permute.xlu0 %386
      %388 = vrot.lane.b32.xlu0 %v341, 96
      %v389 = vpop.permute.xlu0 %388
      %390 = vrot.lane.b32.xlu0 %v346, 96
      %v391 = vpop.permute.xlu0 %390
      %392 = vrot.lane.b32.xlu0 %v351, 96
      %v393 = vpop.permute.xlu0 %392
      %394 = vrot.lane.b32.xlu0 %v356, 96
      %v395 = vpop.permute.xlu0 %394
      %396 = vrot.lane.b32.xlu0 %v361, 96
      %v397 = vpop.permute.xlu0 %396
      %398 = vrot.lane.b32.xlu0 %v366, 96
      %v399 = vpop.permute.xlu0 %398
      %400 = vrot.lane.b32.xlu0 %v371, 96
      %v401 = vpop.permute.xlu0 %400
      %vm402 = vcmask 64512
      %v403 = vsel %vm402, %v336, 0
      %v405 = vsel %vm402, %v341, 0
      %v407 = vsel %vm402, %v346, 0
      %v409 = vsel %vm402, %v351, 0
      %v411 = vsel %vm402, %v356, 0
      %v413 = vsel %vm402, %v361, 0
      %v415 = vsel %vm402, %v366, 0
      %v417 = vsel %vm402, %v371, 0
      %v419 = vsel %vm402, %v387, 0
      %v421 = vsel %vm402, %v389, 0
      %v423 = vsel %vm402, %v391, 0
      %v425 = vsel %vm402, %v393, 0
      %v427 = vsel %vm402, %v395, 0
      %v429 = vsel %vm402, %v397, 0
      %v431 = vsel %vm402, %v399, 0
      %v433 = vsel %vm402, %v401, 0
      %435 = vmatprep.subr.mxu0 0.0
      %436 = vmatpush1.xpose.msra.mxu0 0.0
      %437 = vmatprep.subr.mxu0 0.0
      %438 = vmatpush1.xpose.msra.mxu0 0.0
      %439 = vmatprep.subr.mxu0 0.0
      %440 = vmatpush1.xpose.msra.mxu0 0.0
      %441 = vmatprep.subr.mxu0 0.0
      %442 = vmatpush1.xpose.msra.mxu0 0.0
      %443 = vmatprep.subr.mxu0 0.0
      %444 = vmatpush1.xpose.msra.mxu0 0.0
      %445 = vmatprep.subr.mxu0 0.0
      %446 = vmatpush1.xpose.msra.mxu0 0.0
      %447 = vmatprep.subr.mxu0 0.0
      %448 = vmatpush1.xpose.msra.mxu0 0.0
      %449 = vmatprep.subr.mxu0 0.0
      %450 = vmatpush1.xpose.msra.mxu0 0.0
      %451 = vmatprep.subr.mxu0 0.0
      %452 = vmatpush1.xpose.msra.mxu0 %v433
      %453 = vmatprep.subr.mxu0 0.0
      %454 = vmatpush1.xpose.msra.mxu0 %v431
      %455 = vmatprep.subr.mxu0 0.0
      %456 = vmatpush1.xpose.msra.mxu0 %v429
      %457 = vmatprep.subr.mxu0 0.0
      %458 = vmatpush1.xpose.msra.mxu0 %v427
      %459 = vmatprep.subr.mxu0 0.0
      %460 = vmatpush1.xpose.msra.mxu0 %v425
      %461 = vmatprep.subr.mxu0 0.0
      %462 = vmatpush1.xpose.msra.mxu0 %v423
      %463 = vmatprep.subr.mxu0 0.0
      %464 = vmatpush1.xpose.msra.mxu0 %v421
      %465 = vmatprep.subr.mxu0 0.0
      %466 = vmatpush1.xpose.msra.mxu0 %v419
      %467 = vmatprep.subr.mxu0 0.0
      %468 = vmatpush2.xpose.msra.mxu0 0.0
      %469 = vmatprep.subr.mxu0 0.0
      %470 = vmatpush2.xpose.msra.mxu0 0.0
      %471 = vmatprep.subr.mxu0 0.0
      %472 = vmatpush2.xpose.msra.mxu0 0.0
      %473 = vmatprep.subr.mxu0 0.0
      %474 = vmatpush2.xpose.msra.mxu0 0.0
      %475 = vmatprep.subr.mxu0 0.0
      %476 = vmatpush2.xpose.msra.mxu0 0.0
      %477 = vmatprep.subr.mxu0 0.0
      %478 = vmatpush2.xpose.msra.mxu0 0.0
      %479 = vmatprep.subr.mxu0 0.0
      %480 = vmatpush2.xpose.msra.mxu0 0.0
      %481 = vmatprep.subr.mxu0 0.0
      %482 = vmatpush2.xpose.msra.mxu0 0.0
      %483 = vmatprep.subr.mxu0 0.0
      %484 = vmatpush2.xpose.msra.mxu0 0.0
      %485 = vmatprep.subr.mxu0 0.0
      %486 = vmatpush2.xpose.msra.mxu0 0.0
      %487 = vmatprep.subr.mxu0 0.0
      %488 = vmatpush2.xpose.msra.mxu0 0.0
      %489 = vmatprep.subr.mxu0 0.0
      %490 = vmatpush2.xpose.msra.mxu0 0.0
      %491 = vmatprep.subr.mxu0 0.0
      %492 = vmatpush2.xpose.msra.mxu0 0.0
      %493 = vmatprep.subr.mxu0 0.0
      %494 = vmatpush2.xpose.msra.mxu0 0.0
      %495 = vmatprep.subr.mxu0 0.0
      %496 = vmatpush2.xpose.msra.mxu0 0.0
      %497 = vmatprep.subr.mxu0 0.0
      %498 = vmatpush2.xpose.msra.mxu0 0.0
      %499 = vmatprep.mubr.f32.mxu0 0.0
      %500 = vmatmul.mubr.f32.gmra.mxu0 %v403
      %v501 = vpop.f32.mrf.mxu0
      %v502 = vadd.f32 0.0, %v501
      %v503 = vpop.f32.mrf.mxu0
      %504 = vmatprep.mubr.f32.mxu0 0.0
      %505 = vmatmul.mubr.f32.gmra.mxu0 %v405
      %v506 = vpop.f32.mrf.mxu0
      %v507 = vadd.f32 0.0, %v506
      %v508 = vpop.f32.mrf.mxu0
      %509 = vmatprep.mubr.f32.mxu0 0.0
      %510 = vmatmul.mubr.f32.gmra.mxu0 %v407
      %v511 = vpop.f32.mrf.mxu0
      %v512 = vadd.f32 0.0, %v511
      %v513 = vpop.f32.mrf.mxu0
      %514 = vmatprep.mubr.f32.mxu0 0.0
      %515 = vmatmul.mubr.f32.gmra.mxu0 %v409
      %v516 = vpop.f32.mrf.mxu0
      %v517 = vadd.f32 0.0, %v516
      %v518 = vpop.f32.mrf.mxu0
      %519 = vmatprep.mubr.f32.mxu0 0.0
      %520 = vmatmul.mubr.f32.gmra.mxu0 %v411
      %v521 = vpop.f32.mrf.mxu0
      %v522 = vadd.f32 0.0, %v521
      %v523 = vpop.f32.mrf.mxu0
      %524 = vmatprep.mubr.f32.mxu0 0.0
      %525 = vmatmul.mubr.f32.gmra.mxu0 %v413
      %v526 = vpop.f32.mrf.mxu0
      %v527 = vadd.f32 0.0, %v526
      %v528 = vpop.f32.mrf.mxu0
      %529 = vmatprep.mubr.f32.mxu0 0.0
      %530 = vmatmul.mubr.f32.gmra.mxu0 %v415
      %v531 = vpop.f32.mrf.mxu0
      %v532 = vadd.f32 0.0, %v531
      %v533 = vpop.f32.mrf.mxu0
      %534 = vmatprep.mubr.f32.mxu0 0.0
      %535 = vmatmul.mubr.f32.gmra.mxu0 %v417
      %v536 = vpop.f32.mrf.mxu0
      %v537 = vadd.f32 0.0, %v536
      %v538 = vpop.f32.mrf.mxu0
      %539 = vdwg.mxu0
      %v540 = vmul.f32 %v502, 0.35355338
      %v541 = vmul.f32 %v507, 0.35355338
      %v542 = vmul.f32 %v512, 0.35355338
      %v543 = vmul.f32 %v517, 0.35355338
      %v544 = vmul.f32 %v522, 0.35355338
      %v545 = vmul.f32 %v527, 0.35355338
      %v546 = vmul.f32 %v532, 0.35355338
      %v547 = vmul.f32 %v537, 0.35355338
      %vm548 = vcmask 523264
      %v549 = vsel %vm548, %v540, -inf
      %550 = vmax.xlane.f32.xlu0 %v549
      %v551 = vpop.xlane.xlu0 %550
      %v552 = vsel %vm548, %v541, -inf
      %553 = vmax.xlane.f32.xlu0 %v552
      %v554 = vpop.xlane.xlu0 %553
      %v555 = vsel %vm548, %v542, -inf
      %556 = vmax.xlane.f32.xlu0 %v555
      %v557 = vpop.xlane.xlu0 %556
      %v558 = vsel %vm548, %v543, -inf
      %559 = vmax.xlane.f32.xlu0 %v558
      %v560 = vpop.xlane.xlu0 %559
      %v561 = vsel %vm548, %v544, -inf
      %562 = vmax.xlane.f32.xlu0 %v561
      %v563 = vpop.xlane.xlu0 %562
      %v564 = vsel %vm548, %v545, -inf
      %565 = vmax.xlane.f32.xlu0 %v564
      %v566 = vpop.xlane.xlu0 %565
      %v567 = vsel %vm548, %v546, -inf
      %568 = vmax.xlane.f32.xlu0 %v567
      %v569 = vpop.xlane.xlu0 %568
      %v570 = vsel %vm548, %v547, -inf
      %571 = vmax.xlane.f32.xlu0 %v570
      %v572 = vpop.xlane.xlu0 %571
      %v573 = vsub.f32 %v540, %v551
      %v574 = vsub.f32 %v541, %v554
      %v575 = vsub.f32 %v542, %v557
      %v576 = vsub.f32 %v543, %v560
      %v577 = vsub.f32 %v544, %v563
      %v578 = vsub.f32 %v545, %v566
      %v579 = vsub.f32 %v546, %v569
      %v580 = vsub.f32 %v547, %v572
      %v581 = vmul.f32 %v573, 1.442695
      %v582 = vpow.pop %v581
      %v583 = vmul.f32 %v574, 1.442695
      %v584 = vpow.pop %v583
      %v585 = vmul.f32 %v575, 1.442695
      %v586 = vpow.pop %v585
      %v587 = vmul.f32 %v576, 1.442695
      %v588 = vpow.pop %v587
      %v589 = vmul.f32 %v577, 1.442695
      %v590 = vpow.pop %v589
      %v591 = vmul.f32 %v578, 1.442695
      %v592 = vpow.pop %v591
      %v593 = vmul.f32 %v579, 1.442695
      %v594 = vpow.pop %v593
      %v595 = vmul.f32 %v580, 1.442695
      %v596 = vpow.pop %v595
      %v597 = vsel %vm548, %v582, 0.0
      %598 = vadd.xlane.f32.xlu0 %v597
      %v599 = vpop.xlane.xlu0 %598
      %v600 = vsel %vm548, %v584, 0.0
      %601 = vadd.xlane.f32.xlu0 %v600
      %v602 = vpop.xlane.xlu0 %601
      %v603 = vsel %vm548, %v586, 0.0
      %604 = vadd.xlane.f32.xlu0 %v603
      %v605 = vpop.xlane.xlu0 %604
      %v606 = vsel %vm548, %v588, 0.0
      %607 = vadd.xlane.f32.xlu0 %v606
      %v608 = vpop.xlane.xlu0 %607
      %v609 = vsel %vm548, %v590, 0.0
      %610 = vadd.xlane.f32.xlu0 %v609
      %v611 = vpop.xlane.xlu0 %610
      %v612 = vsel %vm548, %v592, 0.0
      %613 = vadd.xlane.f32.xlu0 %v612
      %v614 = vpop.xlane.xlu0 %613
      %v615 = vsel %vm548, %v594, 0.0
      %616 = vadd.xlane.f32.xlu0 %v615
      %v617 = vpop.xlane.xlu0 %616
      %v618 = vsel %vm548, %v596, 0.0
      %619 = vadd.xlane.f32.xlu0 %v618
      %v620 = vpop.xlane.xlu0 %619
      %v621 = vrcp.pop %v599
      %v622 = vrcp.pop %v602
      %v623 = vrcp.pop %v605
      %v624 = vrcp.pop %v608
      %v625 = vrcp.pop %v611
      %v626 = vrcp.pop %v614
      %v627 = vrcp.pop %v617
      %v628 = vrcp.pop %v620
      %v629 = vmul.f32 %v582, %v621
      %v630 = vmul.f32 %v584, %v622
      %v631 = vmul.f32 %v586, %v623
      %v632 = vmul.f32 %v588, %v624
      %v633 = vmul.f32 %v590, %v625
      %v634 = vmul.f32 %v592, %v626
      %v635 = vmul.f32 %v594, %v627
      %v636 = vmul.f32 %v596, %v628
      %637 = vrot.lane.b32.xlu0 %v336, 64
      %v638 = vpop.permute.xlu0 %637
      %639 = vrot.lane.b32.xlu0 %v341, 64
      %v640 = vpop.permute.xlu0 %639
      %641 = vrot.lane.b32.xlu0 %v346, 64
      %v642 = vpop.permute.xlu0 %641
      %643 = vrot.lane.b32.xlu0 %v351, 64
      %v644 = vpop.permute.xlu0 %643
      %645 = vrot.lane.b32.xlu0 %v356, 64
      %v646 = vpop.permute.xlu0 %645
      %647 = vrot.lane.b32.xlu0 %v361, 64
      %v648 = vpop.permute.xlu0 %647
      %649 = vrot.lane.b32.xlu0 %v366, 64
      %v650 = vpop.permute.xlu0 %649
      %651 = vrot.lane.b32.xlu0 %v371, 64
      %v652 = vpop.permute.xlu0 %651
      %v662 = vsel %vm548, %v629, 0
      %v665 = vsel %vm548, %v630, 0
      %v668 = vsel %vm548, %v631, 0
      %v671 = vsel %vm548, %v632, 0
      %v674 = vsel %vm548, %v633, 0
      %v677 = vsel %vm548, %v634, 0
      %v680 = vsel %vm548, %v635, 0
      %v683 = vsel %vm548, %v636, 0
      %685 = vmatprep.subr.mxu0 0.0
      %686 = vmatpush1.msra.mxu0 0.0
      %687 = vmatprep.subr.mxu0 0.0
      %688 = vmatpush1.msra.mxu0 0.0
      %689 = vmatprep.subr.mxu0 0.0
      %690 = vmatpush1.msra.mxu0 0.0
      %691 = vmatprep.subr.mxu0 0.0
      %692 = vmatpush1.msra.mxu0 0.0
      %693 = vmatprep.subr.mxu0 0.0
      %694 = vmatpush1.msra.mxu0 0.0
      %695 = vmatprep.subr.mxu0 0.0
      %696 = vmatpush1.msra.mxu0 0.0
      %697 = vmatprep.subr.mxu0 0.0
      %698 = vmatpush1.msra.mxu0 0.0
      %699 = vmatprep.subr.mxu0 0.0
      %700 = vmatpush1.msra.mxu0 0.0
      %701 = vmatprep.subr.mxu0 0.0
      %702 = vmatpush1.msra.mxu0 %v652
      %703 = vmatprep.subr.mxu0 0.0
      %704 = vmatpush1.msra.mxu0 %v650
      %705 = vmatprep.subr.mxu0 0.0
      %706 = vmatpush1.msra.mxu0 %v648
      %707 = vmatprep.subr.mxu0 0.0
      %708 = vmatpush1.msra.mxu0 %v646
      %709 = vmatprep.subr.mxu0 0.0
      %710 = vmatpush1.msra.mxu0 %v644
      %711 = vmatprep.subr.mxu0 0.0
      %712 = vmatpush1.msra.mxu0 %v642
      %713 = vmatprep.subr.mxu0 0.0
      %714 = vmatpush1.msra.mxu0 %v640
      %715 = vmatprep.subr.mxu0 0.0
      %716 = vmatpush1.msra.mxu0 %v638
      %717 = vmatprep.subr.mxu0 0.0
      %718 = vmatpush2.msra.mxu0 0.0
      %719 = vmatprep.subr.mxu0 0.0
      %720 = vmatpush2.msra.mxu0 0.0
      %721 = vmatprep.subr.mxu0 0.0
      %722 = vmatpush2.msra.mxu0 0.0
      %723 = vmatprep.subr.mxu0 0.0
      %724 = vmatpush2.msra.mxu0 0.0
      %725 = vmatprep.subr.mxu0 0.0
      %726 = vmatpush2.msra.mxu0 0.0
      %727 = vmatprep.subr.mxu0 0.0
      %728 = vmatpush2.msra.mxu0 0.0
      %729 = vmatprep.subr.mxu0 0.0
      %730 = vmatpush2.msra.mxu0 0.0
      %731 = vmatprep.subr.mxu0 0.0
      %732 = vmatpush2.msra.mxu0 0.0
      %733 = vmatprep.subr.mxu0 0.0
      %734 = vmatpush2.msra.mxu0 0.0
      %735 = vmatprep.subr.mxu0 0.0
      %736 = vmatpush2.msra.mxu0 0.0
      %737 = vmatprep.subr.mxu0 0.0
      %738 = vmatpush2.msra.mxu0 0.0
      %739 = vmatprep.subr.mxu0 0.0
      %740 = vmatpush2.msra.mxu0 0.0
      %741 = vmatprep.subr.mxu0 0.0
      %742 = vmatpush2.msra.mxu0 0.0
      %743 = vmatprep.subr.mxu0 0.0
      %744 = vmatpush2.msra.mxu0 0.0
      %745 = vmatprep.subr.mxu0 0.0
      %746 = vmatpush2.msra.mxu0 0.0
      %747 = vmatprep.subr.mxu0 0.0
      %748 = vmatpush2.msra.mxu0 0.0
      %749 = vmatprep.mubr.f32.mxu0 0.0
      %750 = vmatmul.mubr.f32.gmra.mxu0 %v662
      %v751 = vpop.f32.mrf.mxu0
      %v752 = vadd.f32 0.0, %v751
      %v753 = vpop.f32.mrf.mxu0
      %754 = vmatprep.mubr.f32.mxu0 0.0
      %755 = vmatmul.mubr.f32.gmra.mxu0 %v665
      %v756 = vpop.f32.mrf.mxu0
      %v757 = vadd.f32 0.0, %v756
      %v758 = vpop.f32.mrf.mxu0
      %759 = vmatprep.mubr.f32.mxu0 0.0
      %760 = vmatmul.mubr.f32.gmra.mxu0 %v668
      %v761 = vpop.f32.mrf.mxu0
      %v762 = vadd.f32 0.0, %v761
      %v763 = vpop.f32.mrf.mxu0
      %764 = vmatprep.mubr.f32.mxu0 0.0
      %765 = vmatmul.mubr.f32.gmra.mxu0 %v671
      %v766 = vpop.f32.mrf.mxu0
      %v767 = vadd.f32 0.0, %v766
      %v768 = vpop.f32.mrf.mxu0
      %769 = vmatprep.mubr.f32.mxu0 0.0
      %770 = vmatmul.mubr.f32.gmra.mxu0 %v674
      %v771 = vpop.f32.mrf.mxu0
      %v772 = vadd.f32 0.0, %v771
      %v773 = vpop.f32.mrf.mxu0
      %774 = vmatprep.mubr.f32.mxu0 0.0
      %775 = vmatmul.mubr.f32.gmra.mxu0 %v677
      %v776 = vpop.f32.mrf.mxu0
      %v777 = vadd.f32 0.0, %v776
      %v778 = vpop.f32.mrf.mxu0
      %779 = vmatprep.mubr.f32.mxu0 0.0
      %780 = vmatmul.mubr.f32.gmra.mxu0 %v680
      %v781 = vpop.f32.mrf.mxu0
      %v782 = vadd.f32 0.0, %v781
      %v783 = vpop.f32.mrf.mxu0
      %784 = vmatprep.mubr.f32.mxu0 0.0
      %785 = vmatmul.mubr.f32.gmra.mxu0 %v683
      %v786 = vpop.f32.mrf.mxu0
      %v787 = vadd.f32 0.0, %v786
      %v788 = vpop.f32.mrf.mxu0
      %789 = vdwg.mxu0
      %790 = vrot.lane.b32.xlu0 %v336, 120
      %v791 = vpop.permute.xlu0 %790
      %792 = vrot.lane.b32.xlu0 %v341, 120
      %v793 = vpop.permute.xlu0 %792
      %794 = vrot.lane.b32.xlu0 %v346, 120
      %v795 = vpop.permute.xlu0 %794
      %796 = vrot.lane.b32.xlu0 %v351, 120
      %v797 = vpop.permute.xlu0 %796
      %798 = vrot.lane.b32.xlu0 %v356, 120
      %v799 = vpop.permute.xlu0 %798
      %800 = vrot.lane.b32.xlu0 %v361, 120
      %v801 = vpop.permute.xlu0 %800
      %802 = vrot.lane.b32.xlu0 %v366, 120
      %v803 = vpop.permute.xlu0 %802
      %804 = vrot.lane.b32.xlu0 %v371, 120
      %v805 = vpop.permute.xlu0 %804
      %806 = vrot.lane.b32.xlu0 %v336, 88
      %v807 = vpop.permute.xlu0 %806
      %808 = vrot.lane.b32.xlu0 %v341, 88
      %v809 = vpop.permute.xlu0 %808
      %810 = vrot.lane.b32.xlu0 %v346, 88
      %v811 = vpop.permute.xlu0 %810
      %812 = vrot.lane.b32.xlu0 %v351, 88
      %v813 = vpop.permute.xlu0 %812
      %814 = vrot.lane.b32.xlu0 %v356, 88
      %v815 = vpop.permute.xlu0 %814
      %816 = vrot.lane.b32.xlu0 %v361, 88
      %v817 = vpop.permute.xlu0 %816
      %818 = vrot.lane.b32.xlu0 %v366, 88
      %v819 = vpop.permute.xlu0 %818
      %820 = vrot.lane.b32.xlu0 %v371, 88
      %v821 = vpop.permute.xlu0 %820
      %v822 = vsel %vm402, %v791, 0
      %v824 = vsel %vm402, %v793, 0
      %v826 = vsel %vm402, %v795, 0
      %v828 = vsel %vm402, %v797, 0
      %v830 = vsel %vm402, %v799, 0
      %v832 = vsel %vm402, %v801, 0
      %v834 = vsel %vm402, %v803, 0
      %v836 = vsel %vm402, %v805, 0
      %v838 = vsel %vm402, %v807, 0
      %v840 = vsel %vm402, %v809, 0
      %v842 = vsel %vm402, %v811, 0
      %v844 = vsel %vm402, %v813, 0
      %v846 = vsel %vm402, %v815, 0
      %v848 = vsel %vm402, %v817, 0
      %v850 = vsel %vm402, %v819, 0
      %v852 = vsel %vm402, %v821, 0
      %854 = vmatprep.subr.mxu0 0.0
      %855 = vmatpush1.xpose.msra.mxu0 0.0
      %856 = vmatprep.subr.mxu0 0.0
      %857 = vmatpush1.xpose.msra.mxu0 0.0
      %858 = vmatprep.subr.mxu0 0.0
      %859 = vmatpush1.xpose.msra.mxu0 0.0
      %860 = vmatprep.subr.mxu0 0.0
      %861 = vmatpush1.xpose.msra.mxu0 0.0
      %862 = vmatprep.subr.mxu0 0.0
      %863 = vmatpush1.xpose.msra.mxu0 0.0
      %864 = vmatprep.subr.mxu0 0.0
      %865 = vmatpush1.xpose.msra.mxu0 0.0
      %866 = vmatprep.subr.mxu0 0.0
      %867 = vmatpush1.xpose.msra.mxu0 0.0
      %868 = vmatprep.subr.mxu0 0.0
      %869 = vmatpush1.xpose.msra.mxu0 0.0
      %870 = vmatprep.subr.mxu0 0.0
      %871 = vmatpush1.xpose.msra.mxu0 %v852
      %872 = vmatprep.subr.mxu0 0.0
      %873 = vmatpush1.xpose.msra.mxu0 %v850
      %874 = vmatprep.subr.mxu0 0.0
      %875 = vmatpush1.xpose.msra.mxu0 %v848
      %876 = vmatprep.subr.mxu0 0.0
      %877 = vmatpush1.xpose.msra.mxu0 %v846
      %878 = vmatprep.subr.mxu0 0.0
      %879 = vmatpush1.xpose.msra.mxu0 %v844
      %880 = vmatprep.subr.mxu0 0.0
      %881 = vmatpush1.xpose.msra.mxu0 %v842
      %882 = vmatprep.subr.mxu0 0.0
      %883 = vmatpush1.xpose.msra.mxu0 %v840
      %884 = vmatprep.subr.mxu0 0.0
      %885 = vmatpush1.xpose.msra.mxu0 %v838
      %886 = vmatprep.subr.mxu0 0.0
      %887 = vmatpush2.xpose.msra.mxu0 0.0
      %888 = vmatprep.subr.mxu0 0.0
      %889 = vmatpush2.xpose.msra.mxu0 0.0
      %890 = vmatprep.subr.mxu0 0.0
      %891 = vmatpush2.xpose.msra.mxu0 0.0
      %892 = vmatprep.subr.mxu0 0.0
      %893 = vmatpush2.xpose.msra.mxu0 0.0
      %894 = vmatprep.subr.mxu0 0.0
      %895 = vmatpush2.xpose.msra.mxu0 0.0
      %896 = vmatprep.subr.mxu0 0.0
      %897 = vmatpush2.xpose.msra.mxu0 0.0
      %898 = vmatprep.subr.mxu0 0.0
      %899 = vmatpush2.xpose.msra.mxu0 0.0
      %900 = vmatprep.subr.mxu0 0.0
      %901 = vmatpush2.xpose.msra.mxu0 0.0
      %902 = vmatprep.subr.mxu0 0.0
      %903 = vmatpush2.xpose.msra.mxu0 0.0
      %904 = vmatprep.subr.mxu0 0.0
      %905 = vmatpush2.xpose.msra.mxu0 0.0
      %906 = vmatprep.subr.mxu0 0.0
      %907 = vmatpush2.xpose.msra.mxu0 0.0
      %908 = vmatprep.subr.mxu0 0.0
      %909 = vmatpush2.xpose.msra.mxu0 0.0
      %910 = vmatprep.subr.mxu0 0.0
      %911 = vmatpush2.xpose.msra.mxu0 0.0
      %912 = vmatprep.subr.mxu0 0.0
      %913 = vmatpush2.xpose.msra.mxu0 0.0
      %914 = vmatprep.subr.mxu0 0.0
      %915 = vmatpush2.xpose.msra.mxu0 0.0
      %916 = vmatprep.subr.mxu0 0.0
      %917 = vmatpush2.xpose.msra.mxu0 0.0
      %918 = vmatprep.mubr.f32.mxu0 0.0
      %919 = vmatmul.mubr.f32.gmra.mxu0 %v822
      %v920 = vpop.f32.mrf.mxu0
      %v921 = vadd.f32 0.0, %v920
      %v922 = vpop.f32.mrf.mxu0
      %923 = vmatprep.mubr.f32.mxu0 0.0
      %924 = vmatmul.mubr.f32.gmra.mxu0 %v824
      %v925 = vpop.f32.mrf.mxu0
      %v926 = vadd.f32 0.0, %v925
      %v927 = vpop.f32.mrf.mxu0
      %928 = vmatprep.mubr.f32.mxu0 0.0
      %929 = vmatmul.mubr.f32.gmra.mxu0 %v826
      %v930 = vpop.f32.mrf.mxu0
      %v931 = vadd.f32 0.0, %v930
      %v932 = vpop.f32.mrf.mxu0
      %933 = vmatprep.mubr.f32.mxu0 0.0
      %934 = vmatmul.mubr.f32.gmra.mxu0 %v828
      %v935 = vpop.f32.mrf.mxu0
      %v936 = vadd.f32 0.0, %v935
      %v937 = vpop.f32.mrf.mxu0
      %938 = vmatprep.mubr.f32.mxu0 0.0
      %939 = vmatmul.mubr.f32.gmra.mxu0 %v830
      %v940 = vpop.f32.mrf.mxu0
      %v941 = vadd.f32 0.0, %v940
      %v942 = vpop.f32.mrf.mxu0
      %943 = vmatprep.mubr.f32.mxu0 0.0
      %944 = vmatmul.mubr.f32.gmra.mxu0 %v832
      %v945 = vpop.f32.mrf.mxu0
      %v946 = vadd.f32 0.0, %v945
      %v947 = vpop.f32.mrf.mxu0
      %948 = vmatprep.mubr.f32.mxu0 0.0
      %949 = vmatmul.mubr.f32.gmra.mxu0 %v834
      %v950 = vpop.f32.mrf.mxu0
      %v951 = vadd.f32 0.0, %v950
      %v952 = vpop.f32.mrf.mxu0
      %953 = vmatprep.mubr.f32.mxu0 0.0
      %954 = vmatmul.mubr.f32.gmra.mxu0 %v836
      %v955 = vpop.f32.mrf.mxu0
      %v956 = vadd.f32 0.0, %v955
      %v957 = vpop.f32.mrf.mxu0
      %958 = vdwg.mxu0
      %v959 = vmul.f32 %v921, 0.35355338
      %v960 = vmul.f32 %v926, 0.35355338
      %v961 = vmul.f32 %v931, 0.35355338
      %v962 = vmul.f32 %v936, 0.35355338
      %v963 = vmul.f32 %v941, 0.35355338
      %v964 = vmul.f32 %v946, 0.35355338
      %v965 = vmul.f32 %v951, 0.35355338
      %v966 = vmul.f32 %v956, 0.35355338
      %v967 = vsel %vm548, %v959, -inf
      %968 = vmax.xlane.f32.xlu0 %v967
      %v969 = vpop.xlane.xlu0 %968
      %v970 = vsel %vm548, %v960, -inf
      %971 = vmax.xlane.f32.xlu0 %v970
      %v972 = vpop.xlane.xlu0 %971
      %v973 = vsel %vm548, %v961, -inf
      %974 = vmax.xlane.f32.xlu0 %v973
      %v975 = vpop.xlane.xlu0 %974
      %v976 = vsel %vm548, %v962, -inf
      %977 = vmax.xlane.f32.xlu0 %v976
      %v978 = vpop.xlane.xlu0 %977
      %v979 = vsel %vm548, %v963, -inf
      %980 = vmax.xlane.f32.xlu0 %v979
      %v981 = vpop.xlane.xlu0 %980
      %v982 = vsel %vm548, %v964, -inf
      %983 = vmax.xlane.f32.xlu0 %v982
      %v984 = vpop.xlane.xlu0 %983
      %v985 = vsel %vm548, %v965, -inf
      %986 = vmax.xlane.f32.xlu0 %v985
      %v987 = vpop.xlane.xlu0 %986
      %v988 = vsel %vm548, %v966, -inf
      %989 = vmax.xlane.f32.xlu0 %v988
      %v990 = vpop.xlane.xlu0 %989
      %v991 = vsub.f32 %v959, %v969
      %v992 = vsub.f32 %v960, %v972
      %v993 = vsub.f32 %v961, %v975
      %v994 = vsub.f32 %v962, %v978
      %v995 = vsub.f32 %v963, %v981
      %v996 = vsub.f32 %v964, %v984
      %v997 = vsub.f32 %v965, %v987
      %v998 = vsub.f32 %v966, %v990
      %v999 = vmul.f32 %v991, 1.442695
      %v1000 = vpow.pop %v999
      %v1001 = vmul.f32 %v992, 1.442695
      %v1002 = vpow.pop %v1001
      %v1003 = vmul.f32 %v993, 1.442695
      %v1004 = vpow.pop %v1003
      %v1005 = vmul.f32 %v994, 1.442695
      %v1006 = vpow.pop %v1005
      %v1007 = vmul.f32 %v995, 1.442695
      %v1008 = vpow.pop %v1007
      %v1009 = vmul.f32 %v996, 1.442695
      %v1010 = vpow.pop %v1009
      %v1011 = vmul.f32 %v997, 1.442695
      %v1012 = vpow.pop %v1011
      %v1013 = vmul.f32 %v998, 1.442695
      %v1014 = vpow.pop %v1013
      %v1015 = vsel %vm548, %v1000, 0.0
      %1016 = vadd.xlane.f32.xlu0 %v1015
      %v1017 = vpop.xlane.xlu0 %1016
      %v1018 = vsel %vm548, %v1002, 0.0
      %1019 = vadd.xlane.f32.xlu0 %v1018
      %v1020 = vpop.xlane.xlu0 %1019
      %v1021 = vsel %vm548, %v1004, 0.0
      %1022 = vadd.xlane.f32.xlu0 %v1021
      %v1023 = vpop.xlane.xlu0 %1022
      %v1024 = vsel %vm548, %v1006, 0.0
      %1025 = vadd.xlane.f32.xlu0 %v1024
      %v1026 = vpop.xlane.xlu0 %1025
      %v1027 = vsel %vm548, %v1008, 0.0
      %1028 = vadd.xlane.f32.xlu0 %v1027
      %v1029 = vpop.xlane.xlu0 %1028
      %v1030 = vsel %vm548, %v1010, 0.0
      %1031 = vadd.xlane.f32.xlu0 %v1030
      %v1032 = vpop.xlane.xlu0 %1031
      %v1033 = vsel %vm548, %v1012, 0.0
      %1034 = vadd.xlane.f32.xlu0 %v1033
      %v1035 = vpop.xlane.xlu0 %1034
      %v1036 = vsel %vm548, %v1014, 0.0
      %1037 = vadd.xlane.f32.xlu0 %v1036
      %v1038 = vpop.xlane.xlu0 %1037
      %v1039 = vrcp.pop %v1017
      %v1040 = vrcp.pop %v1020
      %v1041 = vrcp.pop %v1023
      %v1042 = vrcp.pop %v1026
      %v1043 = vrcp.pop %v1029
      %v1044 = vrcp.pop %v1032
      %v1045 = vrcp.pop %v1035
      %v1046 = vrcp.pop %v1038
      %v1047 = vmul.f32 %v1000, %v1039
      %v1048 = vmul.f32 %v1002, %v1040
      %v1049 = vmul.f32 %v1004, %v1041
      %v1050 = vmul.f32 %v1006, %v1042
      %v1051 = vmul.f32 %v1008, %v1043
      %v1052 = vmul.f32 %v1010, %v1044
      %v1053 = vmul.f32 %v1012, %v1045
      %v1054 = vmul.f32 %v1014, %v1046
      %1055 = vrot.lane.b32.xlu0 %v336, 56
      %v1056 = vpop.permute.xlu0 %1055
      %1057 = vrot.lane.b32.xlu0 %v341, 56
      %v1058 = vpop.permute.xlu0 %1057
      %1059 = vrot.lane.b32.xlu0 %v346, 56
      %v1060 = vpop.permute.xlu0 %1059
      %1061 = vrot.lane.b32.xlu0 %v351, 56
      %v1062 = vpop.permute.xlu0 %1061
      %1063 = vrot.lane.b32.xlu0 %v356, 56
      %v1064 = vpop.permute.xlu0 %1063
      %1065 = vrot.lane.b32.xlu0 %v361, 56
      %v1066 = vpop.permute.xlu0 %1065
      %1067 = vrot.lane.b32.xlu0 %v366, 56
      %v1068 = vpop.permute.xlu0 %1067
      %1069 = vrot.lane.b32.xlu0 %v371, 56
      %v1070 = vpop.permute.xlu0 %1069
      %v1080 = vsel %vm548, %v1047, 0
      %v1083 = vsel %vm548, %v1048, 0
      %v1086 = vsel %vm548, %v1049, 0
      %v1089 = vsel %vm548, %v1050, 0
      %v1092 = vsel %vm548, %v1051, 0
      %v1095 = vsel %vm548, %v1052, 0
      %v1098 = vsel %vm548, %v1053, 0
      %v1101 = vsel %vm548, %v1054, 0
      %1103 = vmatprep.subr.mxu0 0.0
      %1104 = vmatpush1.msra.mxu0 0.0
      %1105 = vmatprep.subr.mxu0 0.0
      %1106 = vmatpush1.msra.mxu0 0.0
      %1107 = vmatprep.subr.mxu0 0.0
      %1108 = vmatpush1.msra.mxu0 0.0
      %1109 = vmatprep.subr.mxu0 0.0
      %1110 = vmatpush1.msra.mxu0 0.0
      %1111 = vmatprep.subr.mxu0 0.0
      %1112 = vmatpush1.msra.mxu0 0.0
      %1113 = vmatprep.subr.mxu0 0.0
      %1114 = vmatpush1.msra.mxu0 0.0
      %1115 = vmatprep.subr.mxu0 0.0
      %1116 = vmatpush1.msra.mxu0 0.0
      %1117 = vmatprep.subr.mxu0 0.0
      %1118 = vmatpush1.msra.mxu0 0.0
      %1119 = vmatprep.subr.mxu0 0.0
      %1120 = vmatpush1.msra.mxu0 %v1070
      %1121 = vmatprep.subr.mxu0 0.0
      %1122 = vmatpush1.msra.mxu0 %v1068
      %1123 = vmatprep.subr.mxu0 0.0
      %1124 = vmatpush1.msra.mxu0 %v1066
      %1125 = vmatprep.subr.mxu0 0.0
      %1126 = vmatpush1.msra.mxu0 %v1064
      %1127 = vmatprep.subr.mxu0 0.0
      %1128 = vmatpush1.msra.mxu0 %v1062
      %1129 = vmatprep.subr.mxu0 0.0
      %1130 = vmatpush1.msra.mxu0 %v1060
      %1131 = vmatprep.subr.mxu0 0.0
      %1132 = vmatpush1.msra.mxu0 %v1058
      %1133 = vmatprep.subr.mxu0 0.0
      %1134 = vmatpush1.msra.mxu0 %v1056
      %1135 = vmatprep.subr.mxu0 0.0
      %1136 = vmatpush2.msra.mxu0 0.0
      %1137 = vmatprep.subr.mxu0 0.0
      %1138 = vmatpush2.msra.mxu0 0.0
      %1139 = vmatprep.subr.mxu0 0.0
      %1140 = vmatpush2.msra.mxu0 0.0
      %1141 = vmatprep.subr.mxu0 0.0
      %1142 = vmatpush2.msra.mxu0 0.0
      %1143 = vmatprep.subr.mxu0 0.0
      %1144 = vmatpush2.msra.mxu0 0.0
      %1145 = vmatprep.subr.mxu0 0.0
      %1146 = vmatpush2.msra.mxu0 0.0
      %1147 = vmatprep.subr.mxu0 0.0
      %1148 = vmatpush2.msra.mxu0 0.0
      %1149 = vmatprep.subr.mxu0 0.0
      %1150 = vmatpush2.msra.mxu0 0.0
      %1151 = vmatprep.subr.mxu0 0.0
      %1152 = vmatpush2.msra.mxu0 0.0
      %1153 = vmatprep.subr.mxu0 0.0
      %1154 = vmatpush2.msra.mxu0 0.0
      %1155 = vmatprep.subr.mxu0 0.0
      %1156 = vmatpush2.msra.mxu0 0.0
      %1157 = vmatprep.subr.mxu0 0.0
      %1158 = vmatpush2.msra.mxu0 0.0
      %1159 = vmatprep.subr.mxu0 0.0
      %1160 = vmatpush2.msra.mxu0 0.0
      %1161 = vmatprep.subr.mxu0 0.0
      %1162 = vmatpush2.msra.mxu0 0.0
      %1163 = vmatprep.subr.mxu0 0.0
      %1164 = vmatpush2.msra.mxu0 0.0
      %1165 = vmatprep.subr.mxu0 0.0
      %1166 = vmatpush2.msra.mxu0 0.0
      %1167 = vmatprep.mubr.f32.mxu0 0.0
      %1168 = vmatmul.mubr.f32.gmra.mxu0 %v1080
      %v1169 = vpop.f32.mrf.mxu0
      %v1170 = vadd.f32 0.0, %v1169
      %v1171 = vpop.f32.mrf.mxu0
      %1172 = vmatprep.mubr.f32.mxu0 0.0
      %1173 = vmatmul.mubr.f32.gmra.mxu0 %v1083
      %v1174 = vpop.f32.mrf.mxu0
      %v1175 = vadd.f32 0.0, %v1174
      %v1176 = vpop.f32.mrf.mxu0
      %1177 = vmatprep.mubr.f32.mxu0 0.0
      %1178 = vmatmul.mubr.f32.gmra.mxu0 %v1086
      %v1179 = vpop.f32.mrf.mxu0
      %v1180 = vadd.f32 0.0, %v1179
      %v1181 = vpop.f32.mrf.mxu0
      %1182 = vmatprep.mubr.f32.mxu0 0.0
      %1183 = vmatmul.mubr.f32.gmra.mxu0 %v1089
      %v1184 = vpop.f32.mrf.mxu0
      %v1185 = vadd.f32 0.0, %v1184
      %v1186 = vpop.f32.mrf.mxu0
      %1187 = vmatprep.mubr.f32.mxu0 0.0
      %1188 = vmatmul.mubr.f32.gmra.mxu0 %v1092
      %v1189 = vpop.f32.mrf.mxu0
      %v1190 = vadd.f32 0.0, %v1189
      %v1191 = vpop.f32.mrf.mxu0
      %1192 = vmatprep.mubr.f32.mxu0 0.0
      %1193 = vmatmul.mubr.f32.gmra.mxu0 %v1095
      %v1194 = vpop.f32.mrf.mxu0
      %v1195 = vadd.f32 0.0, %v1194
      %v1196 = vpop.f32.mrf.mxu0
      %1197 = vmatprep.mubr.f32.mxu0 0.0
      %1198 = vmatmul.mubr.f32.gmra.mxu0 %v1098
      %v1199 = vpop.f32.mrf.mxu0
      %v1200 = vadd.f32 0.0, %v1199
      %v1201 = vpop.f32.mrf.mxu0
      %1202 = vmatprep.mubr.f32.mxu0 0.0
      %1203 = vmatmul.mubr.f32.gmra.mxu0 %v1101
      %v1204 = vpop.f32.mrf.mxu0
      %v1205 = vadd.f32 0.0, %v1204
      %v1206 = vpop.f32.mrf.mxu0
      %1207 = vdwg.mxu0
      %v1209 = vsel %vm402, %v1170, 0
      %v1212 = vsel %vm402, %v1175, 0
      %v1215 = vsel %vm402, %v1180, 0
      %v1218 = vsel %vm402, %v1185, 0
      %v1221 = vsel %vm402, %v1190, 0
      %v1224 = vsel %vm402, %v1195, 0
      %v1227 = vsel %vm402, %v1200, 0
      %v1230 = vsel %vm402, %v1205, 0
      %1232 = vmatprep.subr.mxu0 0.0
      %1233 = vmatpush1.msra.mxu0 0.0
      %1234 = vmatprep.subr.mxu0 0.0
      %1235 = vmatpush1.msra.mxu0 0.0
      %1236 = vmatprep.subr.mxu0 0.0
      %1237 = vmatpush1.msra.mxu0 0.0
      %1238 = vmatprep.subr.mxu0 0.0
      %1239 = vmatpush1.msra.mxu0 0.0
      %1240 = vmatprep.subr.mxu0 0.0
      %1241 = vmatpush1.msra.mxu0 0.0
      %1242 = vmatprep.subr.mxu0 0.0
      %1243 = vmatpush1.msra.mxu0 0.0
      %1244 = vmatprep.subr.mxu0 0.0
      %1245 = vmatpush1.msra.mxu0 0.0
      %1246 = vmatprep.subr.mxu0 0.0
      %1247 = vmatpush1.msra.mxu0 0.0
      %1248 = vmatprep.subr.mxu0 0.0
      %1249 = vmatpush1.msra.mxu0 0.0
      %1250 = vmatprep.subr.mxu0 0.0
      %1251 = vmatpush1.msra.mxu0 0.0
      %1252 = vmatprep.subr.mxu0 0.0
      %1253 = vmatpush1.msra.mxu0 0.0
      %1254 = vmatprep.subr.mxu0 0.0
      %1255 = vmatpush1.msra.mxu0 0.0
      %1256 = vmatprep.subr.mxu0 0.0
      %1257 = vmatpush1.msra.mxu0 0.0
      %1258 = vmatprep.subr.mxu0 0.0
      %1259 = vmatpush1.msra.mxu0 0.0
      %1260 = vmatprep.subr.mxu0 0.0
      %1261 = vmatpush1.msra.mxu0 0.0
      %1262 = vmatprep.subr.mxu0 0.0
      %1263 = vmatpush1.msra.mxu0 %v375
      %1264 = vmatprep.subr.mxu0 0.0
      %1265 = vmatpush2.msra.mxu0 0.0
      %1266 = vmatprep.subr.mxu0 0.0
      %1267 = vmatpush2.msra.mxu0 0.0
      %1268 = vmatprep.subr.mxu0 0.0
      %1269 = vmatpush2.msra.mxu0 0.0
      %1270 = vmatprep.subr.mxu0 0.0
      %1271 = vmatpush2.msra.mxu0 0.0
      %1272 = vmatprep.subr.mxu0 0.0
      %1273 = vmatpush2.msra.mxu0 0.0
      %1274 = vmatprep.subr.mxu0 0.0
      %1275 = vmatpush2.msra.mxu0 0.0
      %1276 = vmatprep.subr.mxu0 0.0
      %1277 = vmatpush2.msra.mxu0 0.0
      %1278 = vmatprep.subr.mxu0 0.0
      %1279 = vmatpush2.msra.mxu0 0.0
      %1280 = vmatprep.subr.mxu0 0.0
      %1281 = vmatpush2.msra.mxu0 0.0
      %1282 = vmatprep.subr.mxu0 0.0
      %1283 = vmatpush2.msra.mxu0 0.0
      %1284 = vmatprep.subr.mxu0 0.0
      %1285 = vmatpush2.msra.mxu0 0.0
      %1286 = vmatprep.subr.mxu0 0.0
      %1287 = vmatpush2.msra.mxu0 0.0
      %1288 = vmatprep.subr.mxu0 0.0
      %1289 = vmatpush2.msra.mxu0 0.0
      %1290 = vmatprep.subr.mxu0 0.0
      %1291 = vmatpush2.msra.mxu0 0.0
      %1292 = vmatprep.subr.mxu0 0.0
      %1293 = vmatpush2.msra.mxu0 0.0
      %1294 = vmatprep.subr.mxu0 0.0
      %1295 = vmatpush2.msra.mxu0 0.0
      %1296 = vmatprep.mubr.f32.mxu0 0.0
      %1297 = vmatmul.mubr.f32.gmra.mxu0 %v1209
      %v1298 = vpop.f32.mrf.mxu0
      %v1299 = vadd.f32 0.0, %v1298
      %v1300 = vpop.f32.mrf.mxu0
      %1301 = vmatprep.mubr.f32.mxu0 0.0
      %1302 = vmatmul.mubr.f32.gmra.mxu0 %v1212
      %v1303 = vpop.f32.mrf.mxu0
      %v1304 = vadd.f32 0.0, %v1303
      %v1305 = vpop.f32.mrf.mxu0
      %1306 = vmatprep.mubr.f32.mxu0 0.0
      %1307 = vmatmul.mubr.f32.gmra.mxu0 %v1215
      %v1308 = vpop.f32.mrf.mxu0
      %v1309 = vadd.f32 0.0, %v1308
      %v1310 = vpop.f32.mrf.mxu0
      %1311 = vmatprep.mubr.f32.mxu0 0.0
      %1312 = vmatmul.mubr.f32.gmra.mxu0 %v1218
      %v1313 = vpop.f32.mrf.mxu0
      %v1314 = vadd.f32 0.0, %v1313
      %v1315 = vpop.f32.mrf.mxu0
      %1316 = vmatprep.mubr.f32.mxu0 0.0
      %1317 = vmatmul.mubr.f32.gmra.mxu0 %v1221
      %v1318 = vpop.f32.mrf.mxu0
      %v1319 = vadd.f32 0.0, %v1318
      %v1320 = vpop.f32.mrf.mxu0
      %1321 = vmatprep.mubr.f32.mxu0 0.0
      %1322 = vmatmul.mubr.f32.gmra.mxu0 %v1224
      %v1323 = vpop.f32.mrf.mxu0
      %v1324 = vadd.f32 0.0, %v1323
      %v1325 = vpop.f32.mrf.mxu0
      %1326 = vmatprep.mubr.f32.mxu0 0.0
      %1327 = vmatmul.mubr.f32.gmra.mxu0 %v1227
      %v1328 = vpop.f32.mrf.mxu0
      %v1329 = vadd.f32 0.0, %v1328
      %v1330 = vpop.f32.mrf.mxu0
      %1331 = vmatprep.mubr.f32.mxu0 0.0
      %1332 = vmatmul.mubr.f32.gmra.mxu0 %v1230
      %v1333 = vpop.f32.mrf.mxu0
      %v1334 = vadd.f32 0.0, %v1333
      %v1335 = vpop.f32.mrf.mxu0
      %1336 = vdwg.mxu0
      %v1338 = vsel %vm402, %v752, 0
      %v1341 = vsel %vm402, %v757, 0
      %v1344 = vsel %vm402, %v762, 0
      %v1347 = vsel %vm402, %v767, 0
      %v1350 = vsel %vm402, %v772, 0
      %v1353 = vsel %vm402, %v777, 0
      %v1356 = vsel %vm402, %v782, 0
      %v1359 = vsel %vm402, %v787, 0
      %1361 = vmatprep.subr.mxu0 0.0
      %1362 = vmatpush1.msra.mxu0 0.0
      %1363 = vmatprep.subr.mxu0 0.0
      %1364 = vmatpush1.msra.mxu0 0.0
      %1365 = vmatprep.subr.mxu0 0.0
      %1366 = vmatpush1.msra.mxu0 0.0
      %1367 = vmatprep.subr.mxu0 0.0
      %1368 = vmatpush1.msra.mxu0 0.0
      %1369 = vmatprep.subr.mxu0 0.0
      %1370 = vmatpush1.msra.mxu0 0.0
      %1371 = vmatprep.subr.mxu0 0.0
      %1372 = vmatpush1.msra.mxu0 0.0
      %1373 = vmatprep.subr.mxu0 0.0
      %1374 = vmatpush1.msra.mxu0 0.0
      %1375 = vmatprep.subr.mxu0 0.0
      %1376 = vmatpush1.msra.mxu0 0.0
      %1377 = vmatprep.subr.mxu0 0.0
      %1378 = vmatpush1.msra.mxu0 0.0
      %1379 = vmatprep.subr.mxu0 0.0
      %1380 = vmatpush1.msra.mxu0 0.0
      %1381 = vmatprep.subr.mxu0 0.0
      %1382 = vmatpush1.msra.mxu0 0.0
      %1383 = vmatprep.subr.mxu0 0.0
      %1384 = vmatpush1.msra.mxu0 0.0
      %1385 = vmatprep.subr.mxu0 0.0
      %1386 = vmatpush1.msra.mxu0 0.0
      %1387 = vmatprep.subr.mxu0 0.0
      %1388 = vmatpush1.msra.mxu0 0.0
      %1389 = vmatprep.subr.mxu0 0.0
      %1390 = vmatpush1.msra.mxu0 0.0
      %1391 = vmatprep.subr.mxu0 0.0
      %1392 = vmatpush1.msra.mxu0 %v374
      %1393 = vmatprep.subr.mxu0 0.0
      %1394 = vmatpush2.msra.mxu0 0.0
      %1395 = vmatprep.subr.mxu0 0.0
      %1396 = vmatpush2.msra.mxu0 0.0
      %1397 = vmatprep.subr.mxu0 0.0
      %1398 = vmatpush2.msra.mxu0 0.0
      %1399 = vmatprep.subr.mxu0 0.0
      %1400 = vmatpush2.msra.mxu0 0.0
      %1401 = vmatprep.subr.mxu0 0.0
      %1402 = vmatpush2.msra.mxu0 0.0
      %1403 = vmatprep.subr.mxu0 0.0
      %1404 = vmatpush2.msra.mxu0 0.0
      %1405 = vmatprep.subr.mxu0 0.0
      %1406 = vmatpush2.msra.mxu0 0.0
      %1407 = vmatprep.subr.mxu0 0.0
      %1408 = vmatpush2.msra.mxu0 0.0
      %1409 = vmatprep.subr.mxu0 0.0
      %1410 = vmatpush2.msra.mxu0 0.0
      %1411 = vmatprep.subr.mxu0 0.0
      %1412 = vmatpush2.msra.mxu0 0.0
      %1413 = vmatprep.subr.mxu0 0.0
      %1414 = vmatpush2.msra.mxu0 0.0
      %1415 = vmatprep.subr.mxu0 0.0
      %1416 = vmatpush2.msra.mxu0 0.0
      %1417 = vmatprep.subr.mxu0 0.0
      %1418 = vmatpush2.msra.mxu0 0.0
      %1419 = vmatprep.subr.mxu0 0.0
      %1420 = vmatpush2.msra.mxu0 0.0
      %1421 = vmatprep.subr.mxu0 0.0
      %1422 = vmatpush2.msra.mxu0 0.0
      %1423 = vmatprep.subr.mxu0 0.0
      %1424 = vmatpush2.msra.mxu0 0.0
      %1425 = vmatprep.mubr.f32.mxu0 0.0
      %1426 = vmatmul.mubr.f32.gmra.mxu0 %v1338
      %v1427 = vpop.f32.mrf.mxu0
      %v1428 = vadd.f32 %v1299, %v1427
      %v1429 = vpop.f32.mrf.mxu0
      %1430 = vmatprep.mubr.f32.mxu0 0.0
      %1431 = vmatmul.mubr.f32.gmra.mxu0 %v1341
      %v1432 = vpop.f32.mrf.mxu0
      %v1433 = vadd.f32 %v1304, %v1432
      %v1434 = vpop.f32.mrf.mxu0
      %1435 = vmatprep.mubr.f32.mxu0 0.0
      %1436 = vmatmul.mubr.f32.gmra.mxu0 %v1344
      %v1437 = vpop.f32.mrf.mxu0
      %v1438 = vadd.f32 %v1309, %v1437
      %v1439 = vpop.f32.mrf.mxu0
      %1440 = vmatprep.mubr.f32.mxu0 0.0
      %1441 = vmatmul.mubr.f32.gmra.mxu0 %v1347
      %v1442 = vpop.f32.mrf.mxu0
      %v1443 = vadd.f32 %v1314, %v1442
      %v1444 = vpop.f32.mrf.mxu0
      %1445 = vmatprep.mubr.f32.mxu0 0.0
      %1446 = vmatmul.mubr.f32.gmra.mxu0 %v1350
      %v1447 = vpop.f32.mrf.mxu0
      %v1448 = vadd.f32 %v1319, %v1447
      %v1449 = vpop.f32.mrf.mxu0
      %1450 = vmatprep.mubr.f32.mxu0 0.0
      %1451 = vmatmul.mubr.f32.gmra.mxu0 %v1353
      %v1452 = vpop.f32.mrf.mxu0
      %v1453 = vadd.f32 %v1324, %v1452
      %v1454 = vpop.f32.mrf.mxu0
      %1455 = vmatprep.mubr.f32.mxu0 0.0
      %1456 = vmatmul.mubr.f32.gmra.mxu0 %v1356
      %v1457 = vpop.f32.mrf.mxu0
      %v1458 = vadd.f32 %v1329, %v1457
      %v1459 = vpop.f32.mrf.mxu0
      %1460 = vmatprep.mubr.f32.mxu0 0.0
      %1461 = vmatmul.mubr.f32.gmra.mxu0 %v1359
      %v1462 = vpop.f32.mrf.mxu0
      %v1463 = vadd.f32 %v1334, %v1462
      %v1464 = vpop.f32.mrf.mxu0
      %1465 = vdwg.mxu0
      %1466 = vrot.lane.b32.xlu0 %v336, 112
      %v1467 = vpop.permute.xlu0 %1466
      %1468 = vrot.lane.b32.xlu0 %v341, 112
      %v1469 = vpop.permute.xlu0 %1468
      %1470 = vrot.lane.b32.xlu0 %v346, 112
      %v1471 = vpop.permute.xlu0 %1470
      %1472 = vrot.lane.b32.xlu0 %v351, 112
      %v1473 = vpop.permute.xlu0 %1472
      %1474 = vrot.lane.b32.xlu0 %v356, 112
      %v1475 = vpop.permute.xlu0 %1474
      %1476 = vrot.lane.b32.xlu0 %v361, 112
      %v1477 = vpop.permute.xlu0 %1476
      %1478 = vrot.lane.b32.xlu0 %v366, 112
      %v1479 = vpop.permute.xlu0 %1478
      %1480 = vrot.lane.b32.xlu0 %v371, 112
      %v1481 = vpop.permute.xlu0 %1480
      %1482 = vrot.lane.b32.xlu0 %v336, 80
      %v1483 = vpop.permute.xlu0 %1482
      %1484 = vrot.lane.b32.xlu0 %v341, 80
      %v1485 = vpop.permute.xlu0 %1484
      %1486 = vrot.lane.b32.xlu0 %v346, 80
      %v1487 = vpop.permute.xlu0 %1486
      %1488 = vrot.lane.b32.xlu0 %v351, 80
      %v1489 = vpop.permute.xlu0 %1488
      %1490 = vrot.lane.b32.xlu0 %v356, 80
      %v1491 = vpop.permute.xlu0 %1490
      %1492 = vrot.lane.b32.xlu0 %v361, 80
      %v1493 = vpop.permute.xlu0 %1492
      %1494 = vrot.lane.b32.xlu0 %v366, 80
      %v1495 = vpop.permute.xlu0 %1494
      %1496 = vrot.lane.b32.xlu0 %v371, 80
      %v1497 = vpop.permute.xlu0 %1496
      %v1498 = vsel %vm402, %v1467, 0
      %v1500 = vsel %vm402, %v1469, 0
      %v1502 = vsel %vm402, %v1471, 0
      %v1504 = vsel %vm402, %v1473, 0
      %v1506 = vsel %vm402, %v1475, 0
      %v1508 = vsel %vm402, %v1477, 0
      %v1510 = vsel %vm402, %v1479, 0
      %v1512 = vsel %vm402, %v1481, 0
      %v1514 = vsel %vm402, %v1483, 0
      %v1516 = vsel %vm402, %v1485, 0
      %v1518 = vsel %vm402, %v1487, 0
      %v1520 = vsel %vm402, %v1489, 0
      %v1522 = vsel %vm402, %v1491, 0
      %v1524 = vsel %vm402, %v1493, 0
      %v1526 = vsel %vm402, %v1495, 0
      %v1528 = vsel %vm402, %v1497, 0
      %1530 = vmatprep.subr.mxu0 0.0
      %1531 = vmatpush1.xpose.msra.mxu0 0.0
      %1532 = vmatprep.subr.mxu0 0.0
      %1533 = vmatpush1.xpose.msra.mxu0 0.0
      %1534 = vmatprep.subr.mxu0 0.0
      %1535 = vmatpush1.xpose.msra.mxu0 0.0
      %1536 = vmatprep.subr.mxu0 0.0
      %1537 = vmatpush1.xpose.msra.mxu0 0.0
      %1538 = vmatprep.subr.mxu0 0.0
      %1539 = vmatpush1.xpose.msra.mxu0 0.0
      %1540 = vmatprep.subr.mxu0 0.0
      %1541 = vmatpush1.xpose.msra.mxu0 0.0
      %1542 = vmatprep.subr.mxu0 0.0
      %1543 = vmatpush1.xpose.msra.mxu0 0.0
      %1544 = vmatprep.subr.mxu0 0.0
      %1545 = vmatpush1.xpose.msra.mxu0 0.0
      %1546 = vmatprep.subr.mxu0 0.0
      %1547 = vmatpush1.xpose.msra.mxu0 %v1528
      %1548 = vmatprep.subr.mxu0 0.0
      %1549 = vmatpush1.xpose.msra.mxu0 %v1526
      %1550 = vmatprep.subr.mxu0 0.0
      %1551 = vmatpush1.xpose.msra.mxu0 %v1524
      %1552 = vmatprep.subr.mxu0 0.0
      %1553 = vmatpush1.xpose.msra.mxu0 %v1522
      %1554 = vmatprep.subr.mxu0 0.0
      %1555 = vmatpush1.xpose.msra.mxu0 %v1520
      %1556 = vmatprep.subr.mxu0 0.0
      %1557 = vmatpush1.xpose.msra.mxu0 %v1518
      %1558 = vmatprep.subr.mxu0 0.0
      %1559 = vmatpush1.xpose.msra.mxu0 %v1516
      %1560 = vmatprep.subr.mxu0 0.0
      %1561 = vmatpush1.xpose.msra.mxu0 %v1514
      %1562 = vmatprep.subr.mxu0 0.0
      %1563 = vmatpush2.xpose.msra.mxu0 0.0
      %1564 = vmatprep.subr.mxu0 0.0
      %1565 = vmatpush2.xpose.msra.mxu0 0.0
      %1566 = vmatprep.subr.mxu0 0.0
      %1567 = vmatpush2.xpose.msra.mxu0 0.0
      %1568 = vmatprep.subr.mxu0 0.0
      %1569 = vmatpush2.xpose.msra.mxu0 0.0
      %1570 = vmatprep.subr.mxu0 0.0
      %1571 = vmatpush2.xpose.msra.mxu0 0.0
      %1572 = vmatprep.subr.mxu0 0.0
      %1573 = vmatpush2.xpose.msra.mxu0 0.0
      %1574 = vmatprep.subr.mxu0 0.0
      %1575 = vmatpush2.xpose.msra.mxu0 0.0
      %1576 = vmatprep.subr.mxu0 0.0
      %1577 = vmatpush2.xpose.msra.mxu0 0.0
      %1578 = vmatprep.subr.mxu0 0.0
      %1579 = vmatpush2.xpose.msra.mxu0 0.0
      %1580 = vmatprep.subr.mxu0 0.0
      %1581 = vmatpush2.xpose.msra.mxu0 0.0
      %1582 = vmatprep.subr.mxu0 0.0
      %1583 = vmatpush2.xpose.msra.mxu0 0.0
      %1584 = vmatprep.subr.mxu0 0.0
      %1585 = vmatpush2.xpose.msra.mxu0 0.0
      %1586 = vmatprep.subr.mxu0 0.0
      %1587 = vmatpush2.xpose.msra.mxu0 0.0
      %1588 = vmatprep.subr.mxu0 0.0
      %1589 = vmatpush2.xpose.msra.mxu0 0.0
      %1590 = vmatprep.subr.mxu0 0.0
      %1591 = vmatpush2.xpose.msra.mxu0 0.0
      %1592 = vmatprep.subr.mxu0 0.0
      %1593 = vmatpush2.xpose.msra.mxu0 0.0
      %1594 = vmatprep.mubr.f32.mxu0 0.0
      %1595 = vmatmul.mubr.f32.gmra.mxu0 %v1498
      %v1596 = vpop.f32.mrf.mxu0
      %v1597 = vadd.f32 0.0, %v1596
      %v1598 = vpop.f32.mrf.mxu0
      %1599 = vmatprep.mubr.f32.mxu0 0.0
      %1600 = vmatmul.mubr.f32.gmra.mxu0 %v1500
      %v1601 = vpop.f32.mrf.mxu0
      %v1602 = vadd.f32 0.0, %v1601
      %v1603 = vpop.f32.mrf.mxu0
      %1604 = vmatprep.mubr.f32.mxu0 0.0
      %1605 = vmatmul.mubr.f32.gmra.mxu0 %v1502
      %v1606 = vpop.f32.mrf.mxu0
      %v1607 = vadd.f32 0.0, %v1606
      %v1608 = vpop.f32.mrf.mxu0
      %1609 = vmatprep.mubr.f32.mxu0 0.0
      %1610 = vmatmul.mubr.f32.gmra.mxu0 %v1504
      %v1611 = vpop.f32.mrf.mxu0
      %v1612 = vadd.f32 0.0, %v1611
      %v1613 = vpop.f32.mrf.mxu0
      %1614 = vmatprep.mubr.f32.mxu0 0.0
      %1615 = vmatmul.mubr.f32.gmra.mxu0 %v1506
      %v1616 = vpop.f32.mrf.mxu0
      %v1617 = vadd.f32 0.0, %v1616
      %v1618 = vpop.f32.mrf.mxu0
      %1619 = vmatprep.mubr.f32.mxu0 0.0
      %1620 = vmatmul.mubr.f32.gmra.mxu0 %v1508
      %v1621 = vpop.f32.mrf.mxu0
      %v1622 = vadd.f32 0.0, %v1621
      %v1623 = vpop.f32.mrf.mxu0
      %1624 = vmatprep.mubr.f32.mxu0 0.0
      %1625 = vmatmul.mubr.f32.gmra.mxu0 %v1510
      %v1626 = vpop.f32.mrf.mxu0
      %v1627 = vadd.f32 0.0, %v1626
      %v1628 = vpop.f32.mrf.mxu0
      %1629 = vmatprep.mubr.f32.mxu0 0.0
      %1630 = vmatmul.mubr.f32.gmra.mxu0 %v1512
      %v1631 = vpop.f32.mrf.mxu0
      %v1632 = vadd.f32 0.0, %v1631
      %v1633 = vpop.f32.mrf.mxu0
      %1634 = vdwg.mxu0
      %v1635 = vmul.f32 %v1597, 0.35355338
      %v1636 = vmul.f32 %v1602, 0.35355338
      %v1637 = vmul.f32 %v1607, 0.35355338
      %v1638 = vmul.f32 %v1612, 0.35355338
      %v1639 = vmul.f32 %v1617, 0.35355338
      %v1640 = vmul.f32 %v1622, 0.35355338
      %v1641 = vmul.f32 %v1627, 0.35355338
      %v1642 = vmul.f32 %v1632, 0.35355338
      %v1643 = vsel %vm548, %v1635, -inf
      %1644 = vmax.xlane.f32.xlu0 %v1643
      %v1645 = vpop.xlane.xlu0 %1644
      %v1646 = vsel %vm548, %v1636, -inf
      %1647 = vmax.xlane.f32.xlu0 %v1646
      %v1648 = vpop.xlane.xlu0 %1647
      %v1649 = vsel %vm548, %v1637, -inf
      %1650 = vmax.xlane.f32.xlu0 %v1649
      %v1651 = vpop.xlane.xlu0 %1650
      %v1652 = vsel %vm548, %v1638, -inf
      %1653 = vmax.xlane.f32.xlu0 %v1652
      %v1654 = vpop.xlane.xlu0 %1653
      %v1655 = vsel %vm548, %v1639, -inf
      %1656 = vmax.xlane.f32.xlu0 %v1655
      %v1657 = vpop.xlane.xlu0 %1656
      %v1658 = vsel %vm548, %v1640, -inf
      %1659 = vmax.xlane.f32.xlu0 %v1658
      %v1660 = vpop.xlane.xlu0 %1659
      %v1661 = vsel %vm548, %v1641, -inf
      %1662 = vmax.xlane.f32.xlu0 %v1661
      %v1663 = vpop.xlane.xlu0 %1662
      %v1664 = vsel %vm548, %v1642, -inf
      %1665 = vmax.xlane.f32.xlu0 %v1664
      %v1666 = vpop.xlane.xlu0 %1665
      %v1667 = vsub.f32 %v1635, %v1645
      %v1668 = vsub.f32 %v1636, %v1648
      %v1669 = vsub.f32 %v1637, %v1651
      %v1670 = vsub.f32 %v1638, %v1654
      %v1671 = vsub.f32 %v1639, %v1657
      %v1672 = vsub.f32 %v1640, %v1660
      %v1673 = vsub.f32 %v1641, %v1663
      %v1674 = vsub.f32 %v1642, %v1666
      %v1675 = vmul.f32 %v1667, 1.442695
      %v1676 = vpow.pop %v1675
      %v1677 = vmul.f32 %v1668, 1.442695
      %v1678 = vpow.pop %v1677
      %v1679 = vmul.f32 %v1669, 1.442695
      %v1680 = vpow.pop %v1679
      %v1681 = vmul.f32 %v1670, 1.442695
      %v1682 = vpow.pop %v1681
      %v1683 = vmul.f32 %v1671, 1.442695
      %v1684 = vpow.pop %v1683
      %v1685 = vmul.f32 %v1672, 1.442695
      %v1686 = vpow.pop %v1685
      %v1687 = vmul.f32 %v1673, 1.442695
      %v1688 = vpow.pop %v1687
      %v1689 = vmul.f32 %v1674, 1.442695
      %v1690 = vpow.pop %v1689
      %v1691 = vsel %vm548, %v1676, 0.0
      %1692 = vadd.xlane.f32.xlu0 %v1691
      %v1693 = vpop.xlane.xlu0 %1692
      %v1694 = vsel %vm548, %v1678, 0.0
      %1695 = vadd.xlane.f32.xlu0 %v1694
      %v1696 = vpop.xlane.xlu0 %1695
      %v1697 = vsel %vm548, %v1680, 0.0
      %1698 = vadd.xlane.f32.xlu0 %v1697
      %v1699 = vpop.xlane.xlu0 %1698
      %v1700 = vsel %vm548, %v1682, 0.0
      %1701 = vadd.xlane.f32.xlu0 %v1700
      %v1702 = vpop.xlane.xlu0 %1701
      %v1703 = vsel %vm548, %v1684, 0.0
      %1704 = vadd.xlane.f32.xlu0 %v1703
      %v1705 = vpop.xlane.xlu0 %1704
      %v1706 = vsel %vm548, %v1686, 0.0
      %1707 = vadd.xlane.f32.xlu0 %v1706
      %v1708 = vpop.xlane.xlu0 %1707
      %v1709 = vsel %vm548, %v1688, 0.0
      %1710 = vadd.xlane.f32.xlu0 %v1709
      %v1711 = vpop.xlane.xlu0 %1710
      %v1712 = vsel %vm548, %v1690, 0.0
      %1713 = vadd.xlane.f32.xlu0 %v1712
      %v1714 = vpop.xlane.xlu0 %1713
      %v1715 = vrcp.pop %v1693
      %v1716 = vrcp.pop %v1696
      %v1717 = vrcp.pop %v1699
      %v1718 = vrcp.pop %v1702
      %v1719 = vrcp.pop %v1705
      %v1720 = vrcp.pop %v1708
      %v1721 = vrcp.pop %v1711
      %v1722 = vrcp.pop %v1714
      %v1723 = vmul.f32 %v1676, %v1715
      %v1724 = vmul.f32 %v1678, %v1716
      %v1725 = vmul.f32 %v1680, %v1717
      %v1726 = vmul.f32 %v1682, %v1718
      %v1727 = vmul.f32 %v1684, %v1719
      %v1728 = vmul.f32 %v1686, %v1720
      %v1729 = vmul.f32 %v1688, %v1721
      %v1730 = vmul.f32 %v1690, %v1722
      %1731 = vrot.lane.b32.xlu0 %v336, 48
      %v1732 = vpop.permute.xlu0 %1731
      %1733 = vrot.lane.b32.xlu0 %v341, 48
      %v1734 = vpop.permute.xlu0 %1733
      %1735 = vrot.lane.b32.xlu0 %v346, 48
      %v1736 = vpop.permute.xlu0 %1735
      %1737 = vrot.lane.b32.xlu0 %v351, 48
      %v1738 = vpop.permute.xlu0 %1737
      %1739 = vrot.lane.b32.xlu0 %v356, 48
      %v1740 = vpop.permute.xlu0 %1739
      %1741 = vrot.lane.b32.xlu0 %v361, 48
      %v1742 = vpop.permute.xlu0 %1741
      %1743 = vrot.lane.b32.xlu0 %v366, 48
      %v1744 = vpop.permute.xlu0 %1743
      %1745 = vrot.lane.b32.xlu0 %v371, 48
      %v1746 = vpop.permute.xlu0 %1745
      %v1756 = vsel %vm548, %v1723, 0
      %v1759 = vsel %vm548, %v1724, 0
      %v1762 = vsel %vm548, %v1725, 0
      %v1765 = vsel %vm548, %v1726, 0
      %v1768 = vsel %vm548, %v1727, 0
      %v1771 = vsel %vm548, %v1728, 0
      %v1774 = vsel %vm548, %v1729, 0
      %v1777 = vsel %vm548, %v1730, 0
      %1779 = vmatprep.subr.mxu0 0.0
      %1780 = vmatpush1.msra.mxu0 0.0
      %1781 = vmatprep.subr.mxu0 0.0
      %1782 = vmatpush1.msra.mxu0 0.0
      %1783 = vmatprep.subr.mxu0 0.0
      %1784 = vmatpush1.msra.mxu0 0.0
      %1785 = vmatprep.subr.mxu0 0.0
      %1786 = vmatpush1.msra.mxu0 0.0
      %1787 = vmatprep.subr.mxu0 0.0
      %1788 = vmatpush1.msra.mxu0 0.0
      %1789 = vmatprep.subr.mxu0 0.0
      %1790 = vmatpush1.msra.mxu0 0.0
      %1791 = vmatprep.subr.mxu0 0.0
      %1792 = vmatpush1.msra.mxu0 0.0
      %1793 = vmatprep.subr.mxu0 0.0
      %1794 = vmatpush1.msra.mxu0 0.0
      %1795 = vmatprep.subr.mxu0 0.0
      %1796 = vmatpush1.msra.mxu0 %v1746
      %1797 = vmatprep.subr.mxu0 0.0
      %1798 = vmatpush1.msra.mxu0 %v1744
      %1799 = vmatprep.subr.mxu0 0.0
      %1800 = vmatpush1.msra.mxu0 %v1742
      %1801 = vmatprep.subr.mxu0 0.0
      %1802 = vmatpush1.msra.mxu0 %v1740
      %1803 = vmatprep.subr.mxu0 0.0
      %1804 = vmatpush1.msra.mxu0 %v1738
      %1805 = vmatprep.subr.mxu0 0.0
      %1806 = vmatpush1.msra.mxu0 %v1736
      %1807 = vmatprep.subr.mxu0 0.0
      %1808 = vmatpush1.msra.mxu0 %v1734
      %1809 = vmatprep.subr.mxu0 0.0
      %1810 = vmatpush1.msra.mxu0 %v1732
      %1811 = vmatprep.subr.mxu0 0.0
      %1812 = vmatpush2.msra.mxu0 0.0
      %1813 = vmatprep.subr.mxu0 0.0
      %1814 = vmatpush2.msra.mxu0 0.0
      %1815 = vmatprep.subr.mxu0 0.0
      %1816 = vmatpush2.msra.mxu0 0.0
      %1817 = vmatprep.subr.mxu0 0.0
      %1818 = vmatpush2.msra.mxu0 0.0
      %1819 = vmatprep.subr.mxu0 0.0
      %1820 = vmatpush2.msra.mxu0 0.0
      %1821 = vmatprep.subr.mxu0 0.0
      %1822 = vmatpush2.msra.mxu0 0.0
      %1823 = vmatprep.subr.mxu0 0.0
      %1824 = vmatpush2.msra.mxu0 0.0
      %1825 = vmatprep.subr.mxu0 0.0
      %1826 = vmatpush2.msra.mxu0 0.0
      %1827 = vmatprep.subr.mxu0 0.0
      %1828 = vmatpush2.msra.mxu0 0.0
      %1829 = vmatprep.subr.mxu0 0.0
      %1830 = vmatpush2.msra.mxu0 0.0
      %1831 = vmatprep.subr.mxu0 0.0
      %1832 = vmatpush2.msra.mxu0 0.0
      %1833 = vmatprep.subr.mxu0 0.0
      %1834 = vmatpush2.msra.mxu0 0.0
      %1835 = vmatprep.subr.mxu0 0.0
      %1836 = vmatpush2.msra.mxu0 0.0
      %1837 = vmatprep.subr.mxu0 0.0
      %1838 = vmatpush2.msra.mxu0 0.0
      %1839 = vmatprep.subr.mxu0 0.0
      %1840 = vmatpush2.msra.mxu0 0.0
      %1841 = vmatprep.subr.mxu0 0.0
      %1842 = vmatpush2.msra.mxu0 0.0
      %1843 = vmatprep.mubr.f32.mxu0 0.0
      %1844 = vmatmul.mubr.f32.gmra.mxu0 %v1756
      %v1845 = vpop.f32.mrf.mxu0
      %v1846 = vadd.f32 0.0, %v1845
      %v1847 = vpop.f32.mrf.mxu0
      %1848 = vmatprep.mubr.f32.mxu0 0.0
      %1849 = vmatmul.mubr.f32.gmra.mxu0 %v1759
      %v1850 = vpop.f32.mrf.mxu0
      %v1851 = vadd.f32 0.0, %v1850
      %v1852 = vpop.f32.mrf.mxu0
      %1853 = vmatprep.mubr.f32.mxu0 0.0
      %1854 = vmatmul.mubr.f32.gmra.mxu0 %v1762
      %v1855 = vpop.f32.mrf.mxu0
      %v1856 = vadd.f32 0.0, %v1855
      %v1857 = vpop.f32.mrf.mxu0
      %1858 = vmatprep.mubr.f32.mxu0 0.0
      %1859 = vmatmul.mubr.f32.gmra.mxu0 %v1765
      %v1860 = vpop.f32.mrf.mxu0
      %v1861 = vadd.f32 0.0, %v1860
      %v1862 = vpop.f32.mrf.mxu0
      %1863 = vmatprep.mubr.f32.mxu0 0.0
      %1864 = vmatmul.mubr.f32.gmra.mxu0 %v1768
      %v1865 = vpop.f32.mrf.mxu0
      %v1866 = vadd.f32 0.0, %v1865
      %v1867 = vpop.f32.mrf.mxu0
      %1868 = vmatprep.mubr.f32.mxu0 0.0
      %1869 = vmatmul.mubr.f32.gmra.mxu0 %v1771
      %v1870 = vpop.f32.mrf.mxu0
      %v1871 = vadd.f32 0.0, %v1870
      %v1872 = vpop.f32.mrf.mxu0
      %1873 = vmatprep.mubr.f32.mxu0 0.0
      %1874 = vmatmul.mubr.f32.gmra.mxu0 %v1774
      %v1875 = vpop.f32.mrf.mxu0
      %v1876 = vadd.f32 0.0, %v1875
      %v1877 = vpop.f32.mrf.mxu0
      %1878 = vmatprep.mubr.f32.mxu0 0.0
      %1879 = vmatmul.mubr.f32.gmra.mxu0 %v1777
      %v1880 = vpop.f32.mrf.mxu0
      %v1881 = vadd.f32 0.0, %v1880
      %v1882 = vpop.f32.mrf.mxu0
      %1883 = vdwg.mxu0
      %v1885 = vsel %vm402, %v1846, 0
      %v1888 = vsel %vm402, %v1851, 0
      %v1891 = vsel %vm402, %v1856, 0
      %v1894 = vsel %vm402, %v1861, 0
      %v1897 = vsel %vm402, %v1866, 0
      %v1900 = vsel %vm402, %v1871, 0
      %v1903 = vsel %vm402, %v1876, 0
      %v1906 = vsel %vm402, %v1881, 0
      %1908 = vmatprep.subr.mxu0 0.0
      %1909 = vmatpush1.msra.mxu0 0.0
      %1910 = vmatprep.subr.mxu0 0.0
      %1911 = vmatpush1.msra.mxu0 0.0
      %1912 = vmatprep.subr.mxu0 0.0
      %1913 = vmatpush1.msra.mxu0 0.0
      %1914 = vmatprep.subr.mxu0 0.0
      %1915 = vmatpush1.msra.mxu0 0.0
      %1916 = vmatprep.subr.mxu0 0.0
      %1917 = vmatpush1.msra.mxu0 0.0
      %1918 = vmatprep.subr.mxu0 0.0
      %1919 = vmatpush1.msra.mxu0 0.0
      %1920 = vmatprep.subr.mxu0 0.0
      %1921 = vmatpush1.msra.mxu0 0.0
      %1922 = vmatprep.subr.mxu0 0.0
      %1923 = vmatpush1.msra.mxu0 0.0
      %1924 = vmatprep.subr.mxu0 0.0
      %1925 = vmatpush1.msra.mxu0 0.0
      %1926 = vmatprep.subr.mxu0 0.0
      %1927 = vmatpush1.msra.mxu0 0.0
      %1928 = vmatprep.subr.mxu0 0.0
      %1929 = vmatpush1.msra.mxu0 0.0
      %1930 = vmatprep.subr.mxu0 0.0
      %1931 = vmatpush1.msra.mxu0 0.0
      %1932 = vmatprep.subr.mxu0 0.0
      %1933 = vmatpush1.msra.mxu0 0.0
      %1934 = vmatprep.subr.mxu0 0.0
      %1935 = vmatpush1.msra.mxu0 0.0
      %1936 = vmatprep.subr.mxu0 0.0
      %1937 = vmatpush1.msra.mxu0 0.0
      %1938 = vmatprep.subr.mxu0 0.0
      %1939 = vmatpush1.msra.mxu0 %v376
      %1940 = vmatprep.subr.mxu0 0.0
      %1941 = vmatpush2.msra.mxu0 0.0
      %1942 = vmatprep.subr.mxu0 0.0
      %1943 = vmatpush2.msra.mxu0 0.0
      %1944 = vmatprep.subr.mxu0 0.0
      %1945 = vmatpush2.msra.mxu0 0.0
      %1946 = vmatprep.subr.mxu0 0.0
      %1947 = vmatpush2.msra.mxu0 0.0
      %1948 = vmatprep.subr.mxu0 0.0
      %1949 = vmatpush2.msra.mxu0 0.0
      %1950 = vmatprep.subr.mxu0 0.0
      %1951 = vmatpush2.msra.mxu0 0.0
      %1952 = vmatprep.subr.mxu0 0.0
      %1953 = vmatpush2.msra.mxu0 0.0
      %1954 = vmatprep.subr.mxu0 0.0
      %1955 = vmatpush2.msra.mxu0 0.0
      %1956 = vmatprep.subr.mxu0 0.0
      %1957 = vmatpush2.msra.mxu0 0.0
      %1958 = vmatprep.subr.mxu0 0.0
      %1959 = vmatpush2.msra.mxu0 0.0
      %1960 = vmatprep.subr.mxu0 0.0
      %1961 = vmatpush2.msra.mxu0 0.0
      %1962 = vmatprep.subr.mxu0 0.0
      %1963 = vmatpush2.msra.mxu0 0.0
      %1964 = vmatprep.subr.mxu0 0.0
      %1965 = vmatpush2.msra.mxu0 0.0
      %1966 = vmatprep.subr.mxu0 0.0
      %1967 = vmatpush2.msra.mxu0 0.0
      %1968 = vmatprep.subr.mxu0 0.0
      %1969 = vmatpush2.msra.mxu0 0.0
      %1970 = vmatprep.subr.mxu0 0.0
      %1971 = vmatpush2.msra.mxu0 0.0
      %1972 = vmatprep.mubr.f32.mxu0 0.0
      %1973 = vmatmul.mubr.f32.gmra.mxu0 %v1885
      %v1974 = vpop.f32.mrf.mxu0
      %v1975 = vadd.f32 0.0, %v1974
      %v1976 = vpop.f32.mrf.mxu0
      %1977 = vmatprep.mubr.f32.mxu0 0.0
      %1978 = vmatmul.mubr.f32.gmra.mxu0 %v1888
      %v1979 = vpop.f32.mrf.mxu0
      %v1980 = vadd.f32 0.0, %v1979
      %v1981 = vpop.f32.mrf.mxu0
      %1982 = vmatprep.mubr.f32.mxu0 0.0
      %1983 = vmatmul.mubr.f32.gmra.mxu0 %v1891
      %v1984 = vpop.f32.mrf.mxu0
      %v1985 = vadd.f32 0.0, %v1984
      %v1986 = vpop.f32.mrf.mxu0
      %1987 = vmatprep.mubr.f32.mxu0 0.0
      %1988 = vmatmul.mubr.f32.gmra.mxu0 %v1894
      %v1989 = vpop.f32.mrf.mxu0
      %v1990 = vadd.f32 0.0, %v1989
      %v1991 = vpop.f32.mrf.mxu0
      %1992 = vmatprep.mubr.f32.mxu0 0.0
      %1993 = vmatmul.mubr.f32.gmra.mxu0 %v1897
      %v1994 = vpop.f32.mrf.mxu0
      %v1995 = vadd.f32 0.0, %v1994
      %v1996 = vpop.f32.mrf.mxu0
      %1997 = vmatprep.mubr.f32.mxu0 0.0
      %1998 = vmatmul.mubr.f32.gmra.mxu0 %v1900
      %v1999 = vpop.f32.mrf.mxu0
      %v2000 = vadd.f32 0.0, %v1999
      %v2001 = vpop.f32.mrf.mxu0
      %2002 = vmatprep.mubr.f32.mxu0 0.0
      %2003 = vmatmul.mubr.f32.gmra.mxu0 %v1903
      %v2004 = vpop.f32.mrf.mxu0
      %v2005 = vadd.f32 0.0, %v2004
      %v2006 = vpop.f32.mrf.mxu0
      %2007 = vmatprep.mubr.f32.mxu0 0.0
      %2008 = vmatmul.mubr.f32.gmra.mxu0 %v1906
      %v2009 = vpop.f32.mrf.mxu0
      %v2010 = vadd.f32 0.0, %v2009
      %v2011 = vpop.f32.mrf.mxu0
      %2012 = vdwg.mxu0
      %v2013 = vadd.f32 %v1428, %v1975
      %v2014 = vadd.f32 %v1433, %v1980
      %v2015 = vadd.f32 %v1438, %v1985
      %v2016 = vadd.f32 %v1443, %v1990
      %v2017 = vadd.f32 %v1448, %v1995
      %v2018 = vadd.f32 %v1453, %v2000
      %v2019 = vadd.f32 %v1458, %v2005
      %v2020 = vadd.f32 %v1463, %v2010
      %2021 = vrot.lane.b32.xlu0 %v336, 104
      %v2022 = vpop.permute.xlu0 %2021
      %2023 = vrot.lane.b32.xlu0 %v341, 104
      %v2024 = vpop.permute.xlu0 %2023
      %2025 = vrot.lane.b32.xlu0 %v346, 104
      %v2026 = vpop.permute.xlu0 %2025
      %2027 = vrot.lane.b32.xlu0 %v351, 104
      %v2028 = vpop.permute.xlu0 %2027
      %2029 = vrot.lane.b32.xlu0 %v356, 104
      %v2030 = vpop.permute.xlu0 %2029
      %2031 = vrot.lane.b32.xlu0 %v361, 104
      %v2032 = vpop.permute.xlu0 %2031
      %2033 = vrot.lane.b32.xlu0 %v366, 104
      %v2034 = vpop.permute.xlu0 %2033
      %2035 = vrot.lane.b32.xlu0 %v371, 104
      %v2036 = vpop.permute.xlu0 %2035
      %2037 = vrot.lane.b32.xlu0 %v336, 72
      %v2038 = vpop.permute.xlu0 %2037
      %2039 = vrot.lane.b32.xlu0 %v341, 72
      %v2040 = vpop.permute.xlu0 %2039
      %2041 = vrot.lane.b32.xlu0 %v346, 72
      %v2042 = vpop.permute.xlu0 %2041
      %2043 = vrot.lane.b32.xlu0 %v351, 72
      %v2044 = vpop.permute.xlu0 %2043
      %2045 = vrot.lane.b32.xlu0 %v356, 72
      %v2046 = vpop.permute.xlu0 %2045
      %2047 = vrot.lane.b32.xlu0 %v361, 72
      %v2048 = vpop.permute.xlu0 %2047
      %2049 = vrot.lane.b32.xlu0 %v366, 72
      %v2050 = vpop.permute.xlu0 %2049
      %2051 = vrot.lane.b32.xlu0 %v371, 72
      %v2052 = vpop.permute.xlu0 %2051
      %v2053 = vsel %vm402, %v2022, 0
      %v2055 = vsel %vm402, %v2024, 0
      %v2057 = vsel %vm402, %v2026, 0
      %v2059 = vsel %vm402, %v2028, 0
      %v2061 = vsel %vm402, %v2030, 0
      %v2063 = vsel %vm402, %v2032, 0
      %v2065 = vsel %vm402, %v2034, 0
      %v2067 = vsel %vm402, %v2036, 0
      %v2069 = vsel %vm402, %v2038, 0
      %v2071 = vsel %vm402, %v2040, 0
      %v2073 = vsel %vm402, %v2042, 0
      %v2075 = vsel %vm402, %v2044, 0
      %v2077 = vsel %vm402, %v2046, 0
      %v2079 = vsel %vm402, %v2048, 0
      %v2081 = vsel %vm402, %v2050, 0
      %v2083 = vsel %vm402, %v2052, 0
      %2085 = vmatprep.subr.mxu0 0.0
      %2086 = vmatpush1.xpose.msra.mxu0 0.0
      %2087 = vmatprep.subr.mxu0 0.0
      %2088 = vmatpush1.xpose.msra.mxu0 0.0
      %2089 = vmatprep.subr.mxu0 0.0
      %2090 = vmatpush1.xpose.msra.mxu0 0.0
      %2091 = vmatprep.subr.mxu0 0.0
      %2092 = vmatpush1.xpose.msra.mxu0 0.0
      %2093 = vmatprep.subr.mxu0 0.0
      %2094 = vmatpush1.xpose.msra.mxu0 0.0
      %2095 = vmatprep.subr.mxu0 0.0
      %2096 = vmatpush1.xpose.msra.mxu0 0.0
      %2097 = vmatprep.subr.mxu0 0.0
      %2098 = vmatpush1.xpose.msra.mxu0 0.0
      %2099 = vmatprep.subr.mxu0 0.0
      %2100 = vmatpush1.xpose.msra.mxu0 0.0
      %2101 = vmatprep.subr.mxu0 0.0
      %2102 = vmatpush1.xpose.msra.mxu0 %v2083
      %2103 = vmatprep.subr.mxu0 0.0
      %2104 = vmatpush1.xpose.msra.mxu0 %v2081
      %2105 = vmatprep.subr.mxu0 0.0
      %2106 = vmatpush1.xpose.msra.mxu0 %v2079
      %2107 = vmatprep.subr.mxu0 0.0
      %2108 = vmatpush1.xpose.msra.mxu0 %v2077
      %2109 = vmatprep.subr.mxu0 0.0
      %2110 = vmatpush1.xpose.msra.mxu0 %v2075
      %2111 = vmatprep.subr.mxu0 0.0
      %2112 = vmatpush1.xpose.msra.mxu0 %v2073
      %2113 = vmatprep.subr.mxu0 0.0
      %2114 = vmatpush1.xpose.msra.mxu0 %v2071
      %2115 = vmatprep.subr.mxu0 0.0
      %2116 = vmatpush1.xpose.msra.mxu0 %v2069
      %2117 = vmatprep.subr.mxu0 0.0
      %2118 = vmatpush2.xpose.msra.mxu0 0.0
      %2119 = vmatprep.subr.mxu0 0.0
      %2120 = vmatpush2.xpose.msra.mxu0 0.0
      %2121 = vmatprep.subr.mxu0 0.0
      %2122 = vmatpush2.xpose.msra.mxu0 0.0
      %2123 = vmatprep.subr.mxu0 0.0
      %2124 = vmatpush2.xpose.msra.mxu0 0.0
      %2125 = vmatprep.subr.mxu0 0.0
      %2126 = vmatpush2.xpose.msra.mxu0 0.0
      %2127 = vmatprep.subr.mxu0 0.0
      %2128 = vmatpush2.xpose.msra.mxu0 0.0
      %2129 = vmatprep.subr.mxu0 0.0
      %2130 = vmatpush2.xpose.msra.mxu0 0.0
      %2131 = vmatprep.subr.mxu0 0.0
      %2132 = vmatpush2.xpose.msra.mxu0 0.0
      %2133 = vmatprep.subr.mxu0 0.0
      %2134 = vmatpush2.xpose.msra.mxu0 0.0
      %2135 = vmatprep.subr.mxu0 0.0
      %2136 = vmatpush2.xpose.msra.mxu0 0.0
      %2137 = vmatprep.subr.mxu0 0.0
      %2138 = vmatpush2.xpose.msra.mxu0 0.0
      %2139 = vmatprep.subr.mxu0 0.0
      %2140 = vmatpush2.xpose.msra.mxu0 0.0
      %2141 = vmatprep.subr.mxu0 0.0
      %2142 = vmatpush2.xpose.msra.mxu0 0.0
      %2143 = vmatprep.subr.mxu0 0.0
      %2144 = vmatpush2.xpose.msra.mxu0 0.0
      %2145 = vmatprep.subr.mxu0 0.0
      %2146 = vmatpush2.xpose.msra.mxu0 0.0
      %2147 = vmatprep.subr.mxu0 0.0
      %2148 = vmatpush2.xpose.msra.mxu0 0.0
      %2149 = vmatprep.mubr.f32.mxu0 0.0
      %2150 = vmatmul.mubr.f32.gmra.mxu0 %v2053
      %v2151 = vpop.f32.mrf.mxu0
      %v2152 = vadd.f32 0.0, %v2151
      %v2153 = vpop.f32.mrf.mxu0
      %2154 = vmatprep.mubr.f32.mxu0 0.0
      %2155 = vmatmul.mubr.f32.gmra.mxu0 %v2055
      %v2156 = vpop.f32.mrf.mxu0
      %v2157 = vadd.f32 0.0, %v2156
      %v2158 = vpop.f32.mrf.mxu0
      %2159 = vmatprep.mubr.f32.mxu0 0.0
      %2160 = vmatmul.mubr.f32.gmra.mxu0 %v2057
      %v2161 = vpop.f32.mrf.mxu0
      %v2162 = vadd.f32 0.0, %v2161
      %v2163 = vpop.f32.mrf.mxu0
      %2164 = vmatprep.mubr.f32.mxu0 0.0
      %2165 = vmatmul.mubr.f32.gmra.mxu0 %v2059
      %v2166 = vpop.f32.mrf.mxu0
      %v2167 = vadd.f32 0.0, %v2166
      %v2168 = vpop.f32.mrf.mxu0
      %2169 = vmatprep.mubr.f32.mxu0 0.0
      %2170 = vmatmul.mubr.f32.gmra.mxu0 %v2061
      %v2171 = vpop.f32.mrf.mxu0
      %v2172 = vadd.f32 0.0, %v2171
      %v2173 = vpop.f32.mrf.mxu0
      %2174 = vmatprep.mubr.f32.mxu0 0.0
      %2175 = vmatmul.mubr.f32.gmra.mxu0 %v2063
      %v2176 = vpop.f32.mrf.mxu0
      %v2177 = vadd.f32 0.0, %v2176
      %v2178 = vpop.f32.mrf.mxu0
      %2179 = vmatprep.mubr.f32.mxu0 0.0
      %2180 = vmatmul.mubr.f32.gmra.mxu0 %v2065
      %v2181 = vpop.f32.mrf.mxu0
      %v2182 = vadd.f32 0.0, %v2181
      %v2183 = vpop.f32.mrf.mxu0
      %2184 = vmatprep.mubr.f32.mxu0 0.0
      %2185 = vmatmul.mubr.f32.gmra.mxu0 %v2067
      %v2186 = vpop.f32.mrf.mxu0
      %v2187 = vadd.f32 0.0, %v2186
      %v2188 = vpop.f32.mrf.mxu0
      %2189 = vdwg.mxu0
      %v2190 = vmul.f32 %v2152, 0.35355338
      %v2191 = vmul.f32 %v2157, 0.35355338
      %v2192 = vmul.f32 %v2162, 0.35355338
      %v2193 = vmul.f32 %v2167, 0.35355338
      %v2194 = vmul.f32 %v2172, 0.35355338
      %v2195 = vmul.f32 %v2177, 0.35355338
      %v2196 = vmul.f32 %v2182, 0.35355338
      %v2197 = vmul.f32 %v2187, 0.35355338
      %v2198 = vsel %vm548, %v2190, -inf
      %2199 = vmax.xlane.f32.xlu0 %v2198
      %v2200 = vpop.xlane.xlu0 %2199
      %v2201 = vsel %vm548, %v2191, -inf
      %2202 = vmax.xlane.f32.xlu0 %v2201
      %v2203 = vpop.xlane.xlu0 %2202
      %v2204 = vsel %vm548, %v2192, -inf
      %2205 = vmax.xlane.f32.xlu0 %v2204
      %v2206 = vpop.xlane.xlu0 %2205
      %v2207 = vsel %vm548, %v2193, -inf
      %2208 = vmax.xlane.f32.xlu0 %v2207
      %v2209 = vpop.xlane.xlu0 %2208
      %v2210 = vsel %vm548, %v2194, -inf
      %2211 = vmax.xlane.f32.xlu0 %v2210
      %v2212 = vpop.xlane.xlu0 %2211
      %v2213 = vsel %vm548, %v2195, -inf
      %2214 = vmax.xlane.f32.xlu0 %v2213
      %v2215 = vpop.xlane.xlu0 %2214
      %v2216 = vsel %vm548, %v2196, -inf
      %2217 = vmax.xlane.f32.xlu0 %v2216
      %v2218 = vpop.xlane.xlu0 %2217
      %v2219 = vsel %vm548, %v2197, -inf
      %2220 = vmax.xlane.f32.xlu0 %v2219
      %v2221 = vpop.xlane.xlu0 %2220
      %v2222 = vsub.f32 %v2190, %v2200
      %v2223 = vsub.f32 %v2191, %v2203
      %v2224 = vsub.f32 %v2192, %v2206
      %v2225 = vsub.f32 %v2193, %v2209
      %v2226 = vsub.f32 %v2194, %v2212
      %v2227 = vsub.f32 %v2195, %v2215
      %v2228 = vsub.f32 %v2196, %v2218
      %v2229 = vsub.f32 %v2197, %v2221
      %v2230 = vmul.f32 %v2222, 1.442695
      %v2231 = vpow.pop %v2230
      %v2232 = vmul.f32 %v2223, 1.442695
      %v2233 = vpow.pop %v2232
      %v2234 = vmul.f32 %v2224, 1.442695
      %v2235 = vpow.pop %v2234
      %v2236 = vmul.f32 %v2225, 1.442695
      %v2237 = vpow.pop %v2236
      %v2238 = vmul.f32 %v2226, 1.442695
      %v2239 = vpow.pop %v2238
      %v2240 = vmul.f32 %v2227, 1.442695
      %v2241 = vpow.pop %v2240
      %v2242 = vmul.f32 %v2228, 1.442695
      %v2243 = vpow.pop %v2242
      %v2244 = vmul.f32 %v2229, 1.442695
      %v2245 = vpow.pop %v2244
      %v2246 = vsel %vm548, %v2231, 0.0
      %2247 = vadd.xlane.f32.xlu0 %v2246
      %v2248 = vpop.xlane.xlu0 %2247
      %v2249 = vsel %vm548, %v2233, 0.0
      %2250 = vadd.xlane.f32.xlu0 %v2249
      %v2251 = vpop.xlane.xlu0 %2250
      %v2252 = vsel %vm548, %v2235, 0.0
      %2253 = vadd.xlane.f32.xlu0 %v2252
      %v2254 = vpop.xlane.xlu0 %2253
      %v2255 = vsel %vm548, %v2237, 0.0
      %2256 = vadd.xlane.f32.xlu0 %v2255
      %v2257 = vpop.xlane.xlu0 %2256
      %v2258 = vsel %vm548, %v2239, 0.0
      %2259 = vadd.xlane.f32.xlu0 %v2258
      %v2260 = vpop.xlane.xlu0 %2259
      %v2261 = vsel %vm548, %v2241, 0.0
      %2262 = vadd.xlane.f32.xlu0 %v2261
      %v2263 = vpop.xlane.xlu0 %2262
      %v2264 = vsel %vm548, %v2243, 0.0
      %2265 = vadd.xlane.f32.xlu0 %v2264
      %v2266 = vpop.xlane.xlu0 %2265
      %v2267 = vsel %vm548, %v2245, 0.0
      %2268 = vadd.xlane.f32.xlu0 %v2267
      %v2269 = vpop.xlane.xlu0 %2268
      %v2270 = vrcp.pop %v2248
      %v2271 = vrcp.pop %v2251
      %v2272 = vrcp.pop %v2254
      %v2273 = vrcp.pop %v2257
      %v2274 = vrcp.pop %v2260
      %v2275 = vrcp.pop %v2263
      %v2276 = vrcp.pop %v2266
      %v2277 = vrcp.pop %v2269
      %v2278 = vmul.f32 %v2231, %v2270
      %v2279 = vmul.f32 %v2233, %v2271
      %v2280 = vmul.f32 %v2235, %v2272
      %v2281 = vmul.f32 %v2237, %v2273
      %v2282 = vmul.f32 %v2239, %v2274
      %v2283 = vmul.f32 %v2241, %v2275
      %v2284 = vmul.f32 %v2243, %v2276
      %v2285 = vmul.f32 %v2245, %v2277
      %2286 = vrot.lane.b32.xlu0 %v336, 40
      %v2287 = vpop.permute.xlu0 %2286
      %2288 = vrot.lane.b32.xlu0 %v341, 40
      %v2289 = vpop.permute.xlu0 %2288
      %2290 = vrot.lane.b32.xlu0 %v346, 40
      %v2291 = vpop.permute.xlu0 %2290
      %2292 = vrot.lane.b32.xlu0 %v351, 40
      %v2293 = vpop.permute.xlu0 %2292
      %2294 = vrot.lane.b32.xlu0 %v356, 40
      %v2295 = vpop.permute.xlu0 %2294
      %2296 = vrot.lane.b32.xlu0 %v361, 40
      %v2297 = vpop.permute.xlu0 %2296
      %2298 = vrot.lane.b32.xlu0 %v366, 40
      %v2299 = vpop.permute.xlu0 %2298
      %2300 = vrot.lane.b32.xlu0 %v371, 40
      %v2301 = vpop.permute.xlu0 %2300
      %v2311 = vsel %vm548, %v2278, 0
      %v2314 = vsel %vm548, %v2279, 0
      %v2317 = vsel %vm548, %v2280, 0
      %v2320 = vsel %vm548, %v2281, 0
      %v2323 = vsel %vm548, %v2282, 0
      %v2326 = vsel %vm548, %v2283, 0
      %v2329 = vsel %vm548, %v2284, 0
      %v2332 = vsel %vm548, %v2285, 0
      %2334 = vmatprep.subr.mxu0 0.0
      %2335 = vmatpush1.msra.mxu0 0.0
      %2336 = vmatprep.subr.mxu0 0.0
      %2337 = vmatpush1.msra.mxu0 0.0
      %2338 = vmatprep.subr.mxu0 0.0
      %2339 = vmatpush1.msra.mxu0 0.0
      %2340 = vmatprep.subr.mxu0 0.0
      %2341 = vmatpush1.msra.mxu0 0.0
      %2342 = vmatprep.subr.mxu0 0.0
      %2343 = vmatpush1.msra.mxu0 0.0
      %2344 = vmatprep.subr.mxu0 0.0
      %2345 = vmatpush1.msra.mxu0 0.0
      %2346 = vmatprep.subr.mxu0 0.0
      %2347 = vmatpush1.msra.mxu0 0.0
      %2348 = vmatprep.subr.mxu0 0.0
      %2349 = vmatpush1.msra.mxu0 0.0
      %2350 = vmatprep.subr.mxu0 0.0
      %2351 = vmatpush1.msra.mxu0 %v2301
      %2352 = vmatprep.subr.mxu0 0.0
      %2353 = vmatpush1.msra.mxu0 %v2299
      %2354 = vmatprep.subr.mxu0 0.0
      %2355 = vmatpush1.msra.mxu0 %v2297
      %2356 = vmatprep.subr.mxu0 0.0
      %2357 = vmatpush1.msra.mxu0 %v2295
      %2358 = vmatprep.subr.mxu0 0.0
      %2359 = vmatpush1.msra.mxu0 %v2293
      %2360 = vmatprep.subr.mxu0 0.0
      %2361 = vmatpush1.msra.mxu0 %v2291
      %2362 = vmatprep.subr.mxu0 0.0
      %2363 = vmatpush1.msra.mxu0 %v2289
      %2364 = vmatprep.subr.mxu0 0.0
      %2365 = vmatpush1.msra.mxu0 %v2287
      %2366 = vmatprep.subr.mxu0 0.0
      %2367 = vmatpush2.msra.mxu0 0.0
      %2368 = vmatprep.subr.mxu0 0.0
      %2369 = vmatpush2.msra.mxu0 0.0
      %2370 = vmatprep.subr.mxu0 0.0
      %2371 = vmatpush2.msra.mxu0 0.0
      %2372 = vmatprep.subr.mxu0 0.0
      %2373 = vmatpush2.msra.mxu0 0.0
      %2374 = vmatprep.subr.mxu0 0.0
      %2375 = vmatpush2.msra.mxu0 0.0
      %2376 = vmatprep.subr.mxu0 0.0
      %2377 = vmatpush2.msra.mxu0 0.0
      %2378 = vmatprep.subr.mxu0 0.0
      %2379 = vmatpush2.msra.mxu0 0.0
      %2380 = vmatprep.subr.mxu0 0.0
      %2381 = vmatpush2.msra.mxu0 0.0
      %2382 = vmatprep.subr.mxu0 0.0
      %2383 = vmatpush2.msra.mxu0 0.0
      %2384 = vmatprep.subr.mxu0 0.0
      %2385 = vmatpush2.msra.mxu0 0.0
      %2386 = vmatprep.subr.mxu0 0.0
      %2387 = vmatpush2.msra.mxu0 0.0
      %2388 = vmatprep.subr.mxu0 0.0
      %2389 = vmatpush2.msra.mxu0 0.0
      %2390 = vmatprep.subr.mxu0 0.0
      %2391 = vmatpush2.msra.mxu0 0.0
      %2392 = vmatprep.subr.mxu0 0.0
      %2393 = vmatpush2.msra.mxu0 0.0
      %2394 = vmatprep.subr.mxu0 0.0
      %2395 = vmatpush2.msra.mxu0 0.0
      %2396 = vmatprep.subr.mxu0 0.0
      %2397 = vmatpush2.msra.mxu0 0.0
      %2398 = vmatprep.mubr.f32.mxu0 0.0
      %2399 = vmatmul.mubr.f32.gmra.mxu0 %v2311
      %v2400 = vpop.f32.mrf.mxu0
      %v2401 = vadd.f32 0.0, %v2400
      %v2402 = vpop.f32.mrf.mxu0
      %2403 = vmatprep.mubr.f32.mxu0 0.0
      %2404 = vmatmul.mubr.f32.gmra.mxu0 %v2314
      %v2405 = vpop.f32.mrf.mxu0
      %v2406 = vadd.f32 0.0, %v2405
      %v2407 = vpop.f32.mrf.mxu0
      %2408 = vmatprep.mubr.f32.mxu0 0.0
      %2409 = vmatmul.mubr.f32.gmra.mxu0 %v2317
      %v2410 = vpop.f32.mrf.mxu0
      %v2411 = vadd.f32 0.0, %v2410
      %v2412 = vpop.f32.mrf.mxu0
      %2413 = vmatprep.mubr.f32.mxu0 0.0
      %2414 = vmatmul.mubr.f32.gmra.mxu0 %v2320
      %v2415 = vpop.f32.mrf.mxu0
      %v2416 = vadd.f32 0.0, %v2415
      %v2417 = vpop.f32.mrf.mxu0
      %2418 = vmatprep.mubr.f32.mxu0 0.0
      %2419 = vmatmul.mubr.f32.gmra.mxu0 %v2323
      %v2420 = vpop.f32.mrf.mxu0
      %v2421 = vadd.f32 0.0, %v2420
      %v2422 = vpop.f32.mrf.mxu0
      %2423 = vmatprep.mubr.f32.mxu0 0.0
      %2424 = vmatmul.mubr.f32.gmra.mxu0 %v2326
      %v2425 = vpop.f32.mrf.mxu0
      %v2426 = vadd.f32 0.0, %v2425
      %v2427 = vpop.f32.mrf.mxu0
      %2428 = vmatprep.mubr.f32.mxu0 0.0
      %2429 = vmatmul.mubr.f32.gmra.mxu0 %v2329
      %v2430 = vpop.f32.mrf.mxu0
      %v2431 = vadd.f32 0.0, %v2430
      %v2432 = vpop.f32.mrf.mxu0
      %2433 = vmatprep.mubr.f32.mxu0 0.0
      %2434 = vmatmul.mubr.f32.gmra.mxu0 %v2332
      %v2435 = vpop.f32.mrf.mxu0
      %v2436 = vadd.f32 0.0, %v2435
      %v2437 = vpop.f32.mrf.mxu0
      %2438 = vdwg.mxu0
      %v2440 = vsel %vm402, %v2401, 0
      %v2443 = vsel %vm402, %v2406, 0
      %v2446 = vsel %vm402, %v2411, 0
      %v2449 = vsel %vm402, %v2416, 0
      %v2452 = vsel %vm402, %v2421, 0
      %v2455 = vsel %vm402, %v2426, 0
      %v2458 = vsel %vm402, %v2431, 0
      %v2461 = vsel %vm402, %v2436, 0
      %2463 = vmatprep.subr.mxu0 0.0
      %2464 = vmatpush1.msra.mxu0 0.0
      %2465 = vmatprep.subr.mxu0 0.0
      %2466 = vmatpush1.msra.mxu0 0.0
      %2467 = vmatprep.subr.mxu0 0.0
      %2468 = vmatpush1.msra.mxu0 0.0
      %2469 = vmatprep.subr.mxu0 0.0
      %2470 = vmatpush1.msra.mxu0 0.0
      %2471 = vmatprep.subr.mxu0 0.0
      %2472 = vmatpush1.msra.mxu0 0.0
      %2473 = vmatprep.subr.mxu0 0.0
      %2474 = vmatpush1.msra.mxu0 0.0
      %2475 = vmatprep.subr.mxu0 0.0
      %2476 = vmatpush1.msra.mxu0 0.0
      %2477 = vmatprep.subr.mxu0 0.0
      %2478 = vmatpush1.msra.mxu0 0.0
      %2479 = vmatprep.subr.mxu0 0.0
      %2480 = vmatpush1.msra.mxu0 0.0
      %2481 = vmatprep.subr.mxu0 0.0
      %2482 = vmatpush1.msra.mxu0 0.0
      %2483 = vmatprep.subr.mxu0 0.0
      %2484 = vmatpush1.msra.mxu0 0.0
      %2485 = vmatprep.subr.mxu0 0.0
      %2486 = vmatpush1.msra.mxu0 0.0
      %2487 = vmatprep.subr.mxu0 0.0
      %2488 = vmatpush1.msra.mxu0 0.0
      %2489 = vmatprep.subr.mxu0 0.0
      %2490 = vmatpush1.msra.mxu0 0.0
      %2491 = vmatprep.subr.mxu0 0.0
      %2492 = vmatpush1.msra.mxu0 0.0
      %2493 = vmatprep.subr.mxu0 0.0
      %2494 = vmatpush1.msra.mxu0 %v377
      %2495 = vmatprep.subr.mxu0 0.0
      %2496 = vmatpush2.msra.mxu0 0.0
      %2497 = vmatprep.subr.mxu0 0.0
      %2498 = vmatpush2.msra.mxu0 0.0
      %2499 = vmatprep.subr.mxu0 0.0
      %2500 = vmatpush2.msra.mxu0 0.0
      %2501 = vmatprep.subr.mxu0 0.0
      %2502 = vmatpush2.msra.mxu0 0.0
      %2503 = vmatprep.subr.mxu0 0.0
      %2504 = vmatpush2.msra.mxu0 0.0
      %2505 = vmatprep.subr.mxu0 0.0
      %2506 = vmatpush2.msra.mxu0 0.0
      %2507 = vmatprep.subr.mxu0 0.0
      %2508 = vmatpush2.msra.mxu0 0.0
      %2509 = vmatprep.subr.mxu0 0.0
      %2510 = vmatpush2.msra.mxu0 0.0
      %2511 = vmatprep.subr.mxu0 0.0
      %2512 = vmatpush2.msra.mxu0 0.0
      %2513 = vmatprep.subr.mxu0 0.0
      %2514 = vmatpush2.msra.mxu0 0.0
      %2515 = vmatprep.subr.mxu0 0.0
      %2516 = vmatpush2.msra.mxu0 0.0
      %2517 = vmatprep.subr.mxu0 0.0
      %2518 = vmatpush2.msra.mxu0 0.0
      %2519 = vmatprep.subr.mxu0 0.0
      %2520 = vmatpush2.msra.mxu0 0.0
      %2521 = vmatprep.subr.mxu0 0.0
      %2522 = vmatpush2.msra.mxu0 0.0
      %2523 = vmatprep.subr.mxu0 0.0
      %2524 = vmatpush2.msra.mxu0 0.0
      %2525 = vmatprep.subr.mxu0 0.0
      %2526 = vmatpush2.msra.mxu0 0.0
      %2527 = vmatprep.mubr.f32.mxu0 0.0
      %2528 = vmatmul.mubr.f32.gmra.mxu0 %v2440
      %v2529 = vpop.f32.mrf.mxu0
      %v2530 = vadd.f32 0.0, %v2529
      %v2531 = vpop.f32.mrf.mxu0
      %2532 = vmatprep.mubr.f32.mxu0 0.0
      %2533 = vmatmul.mubr.f32.gmra.mxu0 %v2443
      %v2534 = vpop.f32.mrf.mxu0
      %v2535 = vadd.f32 0.0, %v2534
      %v2536 = vpop.f32.mrf.mxu0
      %2537 = vmatprep.mubr.f32.mxu0 0.0
      %2538 = vmatmul.mubr.f32.gmra.mxu0 %v2446
      %v2539 = vpop.f32.mrf.mxu0
      %v2540 = vadd.f32 0.0, %v2539
      %v2541 = vpop.f32.mrf.mxu0
      %2542 = vmatprep.mubr.f32.mxu0 0.0
      %2543 = vmatmul.mubr.f32.gmra.mxu0 %v2449
      %v2544 = vpop.f32.mrf.mxu0
      %v2545 = vadd.f32 0.0, %v2544
      %v2546 = vpop.f32.mrf.mxu0
      %2547 = vmatprep.mubr.f32.mxu0 0.0
      %2548 = vmatmul.mubr.f32.gmra.mxu0 %v2452
      %v2549 = vpop.f32.mrf.mxu0
      %v2550 = vadd.f32 0.0, %v2549
      %v2551 = vpop.f32.mrf.mxu0
      %2552 = vmatprep.mubr.f32.mxu0 0.0
      %2553 = vmatmul.mubr.f32.gmra.mxu0 %v2455
      %v2554 = vpop.f32.mrf.mxu0
      %v2555 = vadd.f32 0.0, %v2554
      %v2556 = vpop.f32.mrf.mxu0
      %2557 = vmatprep.mubr.f32.mxu0 0.0
      %2558 = vmatmul.mubr.f32.gmra.mxu0 %v2458
      %v2559 = vpop.f32.mrf.mxu0
      %v2560 = vadd.f32 0.0, %v2559
      %v2561 = vpop.f32.mrf.mxu0
      %2562 = vmatprep.mubr.f32.mxu0 0.0
      %2563 = vmatmul.mubr.f32.gmra.mxu0 %v2461
      %v2564 = vpop.f32.mrf.mxu0
      %v2565 = vadd.f32 0.0, %v2564
      %v2566 = vpop.f32.mrf.mxu0
      %2567 = vdwg.mxu0
      %v2568 = vadd.f32 %v2013, %v2530
      %v2569 = vadd.f32 %v2014, %v2535
      %v2570 = vadd.f32 %v2015, %v2540
      %v2571 = vadd.f32 %v2016, %v2545
      %v2572 = vadd.f32 %v2017, %v2550
      %v2573 = vadd.f32 %v2018, %v2555
      %v2574 = vadd.f32 %v2019, %v2560
      %v2575 = vadd.f32 %v2020, %v2565
      %v2576 = vld [vmem:[%s4] sm:$0x1]
      %v2578 = vlaneseq
      %v2579 = vshrl.u32 %v2578, 7
      %v2580 = vsub.s32 0, %v2579
      %v2581 = vrot.slane %v2576, %v2580
      %v2583 = vadd.f32 %v2568, %v2581
      %v2584 = vadd.f32 %v2569, %v2581
      %v2585 = vadd.f32 %v2570, %v2581
      %v2586 = vadd.f32 %v2571, %v2581
      %v2587 = vadd.f32 %v2572, %v2581
      %v2588 = vadd.f32 %v2573, %v2581
      %v2589 = vadd.f32 %v2574, %v2581
      %v2590 = vadd.f32 %v2575, %v2581
      %2591 = vst.msk [vmem:[%s224] sm:$0xff] %vm244, %v2583
      %2592 = vst.msk [vmem:[%s224 + $0x8] sm:$0xff] %vm244, %v2584
      %2593 = vst.msk [vmem:[%s224 + $0x10] sm:$0xff] %vm244, %v2585
      %2594 = vst.msk [vmem:[%s224 + $0x18] sm:$0xff] %vm244, %v2586
      %2595 = vst.msk [vmem:[%s224 + $0x20] sm:$0xff] %vm244, %v2587
      %2596 = vst.msk [vmem:[%s224 + $0x28] sm:$0xff] %vm244, %v2588
      %2597 = vst.msk [vmem:[%s224 + $0x30] sm:$0xff] %vm244, %v2589
      %2598 = vst.msk [vmem:[%s224 + $0x38] sm:$0xff] %vm244, %v2590
      %p2599 = scmp.lt.s32.totalorder %s16, 1
      %s2600 = scalar_select %p2599, %s16, 1
      %s2601 = smul.addr %s2600, 8
      %s2602 = smul.addr %s2601, 8
      %s2603 = scalar_lea.vmem %s5, %s2602
      // Predicated region
      $region41: #{beam_splitter_attention.3} parent=39 // pred_check
        %p2604 = pneg %p144
      $region42: #{beam_splitter_attention.3} parent=39 // pred_check_branch
        %2606 = sbr.rel (%p2604) target = $region44
      $region43: #{beam_splitter_attention.3} parent=39 // pred_region
        _
      $region44: #{beam_splitter_attention.3} parent=39 // pred_fallthru
        _
    $region40: #{beam_splitter_attention.3} parent=5 // pred_fallthru
      _
    %p2607 = scmp.le.s32.totalorder 2, %s11
    // Predicated region
    $region45: #{beam_splitter_attention.3} parent=5 // pred_check
      %p2608 = pneg %p2607
    $region46: #{beam_splitter_attention.3} parent=5 // pred_check_branch
      %2610 = sbr.rel (%p2608) target = $region48
    $region47: #{beam_splitter_attention.3} parent=5 // pred_region
      %s2611 = ssub.s32 %s11, 2
      // Predicated region
      $region49: #{beam_splitter_attention.3} parent=47 // pred_check
        %p2612 = pneg %p150
      $region50: #{beam_splitter_attention.3} parent=47 // pred_check_branch
        %2614 = sbr.rel (%p2612) target = $region52
      $region51: #{beam_splitter_attention.3} parent=47 // pred_region
        %p2615 = scmp.lt.s32.totalorder %s17, 1
        %s2616 = scalar_select %p2615, %s17, 1
        %s2617 = smul.addr %s2616, 8
        %s2618 = smul.addr %s2617, 8
        %s2619 = scalar_lea.vmem %s5, %s2618
      $region52: #{beam_splitter_attention.3} parent=47 // pred_fallthru
        _
    $region48: #{beam_splitter_attention.3} parent=5 // pred_fallthru
      _
  $region6: #{beam_splitter_attention.3} parent=0 // loop_footer
    %s15 = sadd.s32 1, %s11
  $region7: #{beam_splitter_attention.3} parent=0 // loop_footer_branch
    %10 = sbr.rel target = $region3
  $region8: #{beam_splitter_attention.3} parent=0 // loop_exit
    _

// kernel: beam_splitter_attention.2
$region0: #{beam_splitter_attention.2}
  #allocation0 [shape = 'u32[]', space=smem, size = 0x4, offset = 0x4, fixed_abs, tag = 'smem constant byte address 0x4 - core index']
  #allocation1 [shape = 'u32[144,128]{1,0:T(1,128)}', space=vmem, size = 0x12000, scoped, tag = 'internal scratch']
  %s0 = inlined_call_operand.vmem [shape: f32[16,8,32], index: 0, kind: input, shape index: {}]
  %s1 = inlined_call_operand.vmem [shape: f32[32,96], index: 1, kind: input, shape index: {}]
  %s2 = inlined_call_operand.vmem [shape: f32[1,96], index: 2, kind: input, shape index: {}]
  %s3 = inlined_call_operand.vmem [shape: f32[32,32], index: 3, kind: input, shape index: {}]
  %s4 = inlined_call_operand.vmem [shape: f32[1,32], index: 4, kind: input, shape index: {}]
  %s5 = inlined_call_operand.vmem [shape: f32[16,8,32], index: 5, kind: output, shape index: {}]
  %s6 = sld [smem:[#allocation0]]
  $region53: #{beam_splitter_attention.2} parent=0
    _
  %s8 = ssub.s32 1, %s6
  %s9 = scalar_select 0, %s8, %s6
  loop: start=0, step=1, limit=4
  $region2: #{beam_splitter_attention.2} parent=0 // loop_pre_header
    _
  $region3: #{beam_splitter_attention.2} parent=0 // loop_header
    %s11 = sphi 0, %s15
    %p12 = scmp.ge.s32.totalorder %s11, 4
    %s21 = sphi 0, %s23
    %s24 = sphi 0, %s21
    %s25 = sphi 0, %s24
    %s41 = sphi 0, %s25
    %s45 = sphi 0, %s45
    %s47 = sphi 0, %s45
    %s48 = sphi 0, %s47
    %s62 = sphi 0, %s48
    %s66 = sphi 0, %s66
    %s68 = sphi 0, %s66
    %s69 = sphi 0, %s68
    %s83 = sphi 0, %s69
    %s87 = sphi 0, %s87
    %s89 = sphi 0, %s87
    %s90 = sphi 0, %s89
    %s104 = sphi 0, %s90
    %s108 = sphi 0, %s108
    %s110 = sphi 0, %s108
    %s111 = sphi 0, %s110
    %s125 = sphi 0, %s111
    %s131 = sphi 0, %s133
    %s134 = sphi 0, %s131
    %s135 = sphi 0, %s134
    %s151 = sphi 0, %s135
  $region4: #{beam_splitter_attention.2} parent=0 // loop_header_branch
    %14 = sbr.rel (%p12) target = $region8
  $region5: #{beam_splitter_attention.2} parent=0 // loop_body
    %s16 = ssub.s32 %s11, 1
    %s17 = ssub.s32 %s11, 2
    %s18 = sadd.s32 %s11, 1
    %s19 = ssub.s32 %s11, %s18
    %p20 = scmp.eq.s32.totalorder %s19, 0
    %s22 = sadd.s32 %s21, 1
    %s23 = scalar_select %p20, %s21, %s22
    %p26 = pneg %p20
    %p27 = scmp.eq.s32.totalorder %s11, 1
    %p28 = por %p26, %p27
    %p29 = scmp.ne.s32.totalorder %s21, %s24
    %p30 = scmp.eq.s32.totalorder %s11, 0
    %p31 = por %p29, %p30
    %p32 = scmp.ne.s32.totalorder %s21, %s24
    %p33 = scmp.eq.s32.totalorder %s16, 1
    %p34 = por %p32, %p33
    %p35 = scmp.ne.s32.totalorder %s24, %s25
    %p36 = scmp.eq.s32.totalorder %s16, 0
    %p37 = por %p35, %p36
    %p38 = scmp.ne.s32.totalorder %s24, %s25
    %p39 = scmp.eq.s32.totalorder %s17, 1
    %p40 = por %p38, %p39
    %p42 = scmp.ne.s32.totalorder %s25, %s41
    %p43 = scmp.eq.s32.totalorder %s17, 0
    %p44 = por %p42, %p43
    %s46 = sadd.s32 %s45, 1
    %p49 = scmp.eq.s32.totalorder %s11, 1
    %p50 = scmp.ne.s32.totalorder %s45, %s47
    %p51 = scmp.eq.s32.totalorder %s11, 0
    %p52 = por %p50, %p51
    %p53 = scmp.ne.s32.totalorder %s45, %s47
    %p54 = scmp.eq.s32.totalorder %s16, 1
    %p55 = por %p53, %p54
    %p56 = scmp.ne.s32.totalorder %s47, %s48
    %p57 = scmp.eq.s32.totalorder %s16, 0
    %p58 = por %p56, %p57
    %p59 = scmp.ne.s32.totalorder %s47, %s48
    %p60 = scmp.eq.s32.totalorder %s17, 1
    %p61 = por %p59, %p60
    %p63 = scmp.ne.s32.totalorder %s48, %s62
    %p64 = scmp.eq.s32.totalorder %s17, 0
    %p65 = por %p63, %p64
    %s67 = sadd.s32 %s66, 1
    %p70 = scmp.eq.s32.totalorder %s11, 1
    %p71 = scmp.ne.s32.totalorder %s66, %s68
    %p72 = scmp.eq.s32.totalorder %s11, 0
    %p73 = por %p71, %p72
    %p74 = scmp.ne.s32.totalorder %s66, %s68
    %p75 = scmp.eq.s32.totalorder %s16, 1
    %p76 = por %p74, %p75
    %p77 = scmp.ne.s32.totalorder %s68, %s69
    %p78 = scmp.eq.s32.totalorder %s16, 0
    %p79 = por %p77, %p78
    %p80 = scmp.ne.s32.totalorder %s68, %s69
    %p81 = scmp.eq.s32.totalorder %s17, 1
    %p82 = por %p80, %p81
    %p84 = scmp.ne.s32.totalorder %s69, %s83
    %p85 = scmp.eq.s32.totalorder %s17, 0
    %p86 = por %p84, %p85
    %s88 = sadd.s32 %s87, 1
    %p91 = scmp.eq.s32.totalorder %s11, 1
    %p92 = scmp.ne.s32.totalorder %s87, %s89
    %p93 = scmp.eq.s32.totalorder %s11, 0
    %p94 = por %p92, %p93
    %p95 = scmp.ne.s32.totalorder %s87, %s89
    %p96 = scmp.eq.s32.totalorder %s16, 1
    %p97 = por %p95, %p96
    %p98 = scmp.ne.s32.totalorder %s89, %s90
    %p99 = scmp.eq.s32.totalorder %s16, 0
    %p100 = por %p98, %p99
    %p101 = scmp.ne.s32.totalorder %s89, %s90
    %p102 = scmp.eq.s32.totalorder %s17, 1
    %p103 = por %p101, %p102
    %p105 = scmp.ne.s32.totalorder %s90, %s104
    %p106 = scmp.eq.s32.totalorder %s17, 0
    %p107 = por %p105, %p106
    %s109 = sadd.s32 %s108, 1
    %p112 = scmp.eq.s32.totalorder %s11, 1
    %p113 = scmp.ne.s32.totalorder %s108, %s110
    %p114 = scmp.eq.s32.totalorder %s11, 0
    %p115 = por %p113, %p114
    %p116 = scmp.ne.s32.totalorder %s108, %s110
    %p117 = scmp.eq.s32.totalorder %s16, 1
    %p118 = por %p116, %p117
    %p119 = scmp.ne.s32.totalorder %s110, %s111
    %p120 = scmp.eq.s32.totalorder %s16, 0
    %p121 = por %p119, %p120
    %p122 = scmp.ne.s32.totalorder %s110, %s111
    %p123 = scmp.eq.s32.totalorder %s17, 1
    %p124 = por %p122, %p123
    %p126 = scmp.ne.s32.totalorder %s111, %s125
    %p127 = scmp.eq.s32.totalorder %s17, 0
    %p128 = por %p126, %p127
    %s129 = ssub.s32 %s11, %s18
    %p130 = scmp.eq.s32.totalorder %s129, 0
    %s132 = sadd.s32 %s131, 1
    %s133 = scalar_select %p130, %s131, %s132
    %p136 = pneg %p130
    %p137 = scmp.eq.s32.totalorder %s11, 1
    %p138 = por %p136, %p137
    %p139 = scmp.ne.s32.totalorder %s131, %s134
    %p140 = scmp.eq.s32.totalorder %s11, 0
    %p141 = por %p139, %p140
    %p142 = scmp.ne.s32.totalorder %s131, %s134
    %p143 = scmp.eq.s32.totalorder %s16, 1
    %p144 = por %p142, %p143
    %p145 = scmp.ne.s32.totalorder %s134, %s135
    %p146 = scmp.eq.s32.totalorder %s16, 0
    %p147 = por %p145, %p146
    %p148 = scmp.ne.s32.totalorder %s134, %s135
    %p149 = scmp.eq.s32.totalorder %s17, 1
    %p150 = por %p148, %p149
    %p152 = scmp.ne.s32.totalorder %s135, %s151
    %p153 = scmp.eq.s32.totalorder %s17, 0
    %p154 = por %p152, %p153
    %p155 = scmp.le.s32.totalorder 1, %s11
    %p156 = scmp.lt.s32.totalorder %s11, 3
    %p157 = pnand %p155, %p156
    %p158 = pneg %p157
    // Predicated region
    $region9: #{beam_splitter_attention.2} parent=5 // pred_check
      _
    $region10: #{beam_splitter_attention.2} parent=5 // pred_check_branch
      %160 = sbr.rel (%p157) target = $region12
    $region11: #{beam_splitter_attention.2} parent=5 // pred_region
      %s161 = ssub.s32 %s11, 1
      // Predicated region
      $region13: #{beam_splitter_attention.2} parent=11 // pred_check
        %p162 = pneg %p58
      $region14: #{beam_splitter_attention.2} parent=11 // pred_check_branch
        %164 = sbr.rel (%p162) target = $region16
      $region15: #{beam_splitter_attention.2} parent=11 // pred_region
        _
      $region16: #{beam_splitter_attention.2} parent=11 // pred_fallthru
        _
      // Predicated region
      $region17: #{beam_splitter_attention.2} parent=11 // pred_check
        %p165 = pneg %p79
      $region18: #{beam_splitter_attention.2} parent=11 // pred_check_branch
        %167 = sbr.rel (%p165) target = $region20
      $region19: #{beam_splitter_attention.2} parent=11 // pred_region
        _
      $region20: #{beam_splitter_attention.2} parent=11 // pred_fallthru
        _
      // Predicated region
      $region21: #{beam_splitter_attention.2} parent=11 // pred_check
        %p168 = pneg %p100
      $region22: #{beam_splitter_attention.2} parent=11 // pred_check_branch
        %170 = sbr.rel (%p168) target = $region24
      $region23: #{beam_splitter_attention.2} parent=11 // pred_region
        _
      $region24: #{beam_splitter_attention.2} parent=11 // pred_fallthru
        _
      // Predicated region
      $region25: #{beam_splitter_attention.2} parent=11 // pred_check
        %p171 = pneg %p121
      $region26: #{beam_splitter_attention.2} parent=11 // pred_check_branch
        %173 = sbr.rel (%p171) target = $region28
      $region27: #{beam_splitter_attention.2} parent=11 // pred_region
        _
      $region28: #{beam_splitter_attention.2} parent=11 // pred_fallthru
        _
    $region12: #{beam_splitter_attention.2} parent=5 // pred_fallthru
      _
    %p174 = scmp.lt.s32.totalorder %s11, 2
    // Predicated region
    $region29: #{beam_splitter_attention.2} parent=5 // pred_check
      %p175 = pneg %p174
    $region30: #{beam_splitter_attention.2} parent=5 // pred_check_branch
      %177 = sbr.rel (%p175) target = $region32
    $region31: #{beam_splitter_attention.2} parent=5 // pred_region
      // Predicated region
      $region33: #{beam_splitter_attention.2} parent=31 // pred_check
        %p178 = pneg %p31
      $region34: #{beam_splitter_attention.2} parent=31 // pred_check_branch
        %180 = sbr.rel (%p178) target = $region36
      $region35: #{beam_splitter_attention.2} parent=31 // pred_region
        %s181 = smul.u32 8, %s11
        %p182 = scmp.lt.s32.totalorder %s181, 15
        %s183 = scalar_select %p182, %s181, 15
        %s184 = smul.addr %s183, 8
        %s185 = scalar_lea.vmem %s0, %s184
        %s186 = smul.u32 8, %s11
      $region36: #{beam_splitter_attention.2} parent=31 // pred_fallthru
        _
    $region32: #{beam_splitter_attention.2} parent=5 // pred_fallthru
      _
    %p187 = scmp.le.s32.totalorder 1, %s11
    %p188 = scmp.lt.s32.totalorder %s11, 3
    %p189 = pnand %p187, %p188
    %p190 = pneg %p189
    // Predicated region
    $region37: #{beam_splitter_attention.2} parent=5 // pred_check
      _
    $region38: #{beam_splitter_attention.2} parent=5 // pred_check_branch
      %192 = sbr.rel (%p189) target = $region40
    $region39: #{beam_splitter_attention.2} parent=5 // pred_region
      %s193 = ssub.s32 %s11, 1
      %s194 = smul.u32 8, %s16
      %p195 = scmp.lt.s32.totalorder %s194, 15
      %s196 = scalar_select %p195, %s194, 15
      %s197 = smul.addr %s196, 8
      %s198 = scalar_lea.vmem %s0, %s197
      %p199 = pneg %p37
      %p200 = pneg %p34
      %p201 = pneg %p58
      %p202 = pneg %p55
      %p203 = pneg %p79
      %p204 = pneg %p76
      %p205 = pneg %p100
      %p206 = pneg %p97
      %p207 = pneg %p121
      %p208 = pneg %p118
      %p209 = pneg %p147
      %p210 = pneg %p144
      %s211 = smul.u32 8, %s16
      %p212 = scmp.lt.s32.totalorder %s211, 15
      %s213 = scalar_select %p212, %s211, 15
      %s214 = smul.addr %s213, 8
      %s215 = scalar_lea.vmem %s5, %s214
      %s216 = smul.u32 8, %s16
      %p217 = scmp.lt.s32.totalorder %s216, 15
      %s218 = scalar_select %p217, %s216, 15
      %s219 = smul.addr %s218, 8
      %s220 = scalar_lea.vmem %s0, %s219
      %s221 = smul.u32 8, %s16
      %s222 = smul.u32 8, %s16
      %p223 = scmp.lt.s32.totalorder %s222, 15
      %s224 = scalar_select %p223, %s222, 15
      %s225 = smul.addr %s224, 8
      %s226 = scalar_lea.vmem %s5, %s225
      %s227 = smul.u32 8, %s16
      %v228 = vld [vmem:[%s220] sm:$0xff]
      %v229 = vld [vmem:[%s220 + $0x8] sm:$0xff]
      %v230 = vld [vmem:[%s220 + $0x10] sm:$0xff]
      %v231 = vld [vmem:[%s220 + $0x18] sm:$0xff]
      %v232 = vld [vmem:[%s220 + $0x20] sm:$0xff]
      %v233 = vld [vmem:[%s220 + $0x28] sm:$0xff]
      %v234 = vld [vmem:[%s220 + $0x30] sm:$0xff]
      %v235 = vld [vmem:[%s220 + $0x38] sm:$0xff]
      %v236 = vld [vmem:[%s1] sm:$0xff]
      %v237 = vld [vmem:[%s1 + $0x8] sm:$0xff]
      %v238 = vld [vmem:[%s1 + $0x10] sm:$0xff]
      %v239 = vld [vmem:[%s1 + $0x18] sm:$0xff]
      %v240 = vld [vmem:[%s2] sm:$0x1]
      %v242 = vlaneseq
      %v243 = vshrl.u32 %v242, 7
      %v244 = vsub.s32 0, %v243
      %v245 = vrot.slane %v240, %v244
      %vm247 = vcmask 261120
      %v249 = vsel %vm247, %v228, 0
      %v252 = vsel %vm247, %v229, 0
      %v255 = vsel %vm247, %v230, 0
      %v258 = vsel %vm247, %v231, 0
      %v261 = vsel %vm247, %v232, 0
      %v264 = vsel %vm247, %v233, 0
      %v267 = vsel %vm247, %v234, 0
      %v270 = vsel %vm247, %v235, 0
      %272 = vmatprep.subr.mxu0 0.0
      %273 = vmatpush1.msra.mxu0 0.0
      %274 = vmatprep.subr.mxu0 0.0
      %275 = vmatpush1.msra.mxu0 0.0
      %276 = vmatprep.subr.mxu0 0.0
      %277 = vmatpush1.msra.mxu0 0.0
      %278 = vmatprep.subr.mxu0 0.0
      %279 = vmatpush1.msra.mxu0 0.0
      %280 = vmatprep.subr.mxu0 0.0
      %281 = vmatpush1.msra.mxu0 0.0
      %282 = vmatprep.subr.mxu0 0.0
      %283 = vmatpush1.msra.mxu0 0.0
      %284 = vmatprep.subr.mxu0 0.0
      %285 = vmatpush1.msra.mxu0 0.0
      %286 = vmatprep.subr.mxu0 0.0
      %287 = vmatpush1.msra.mxu0 0.0
      %288 = vmatprep.subr.mxu0 0.0
      %289 = vmatpush1.msra.mxu0 0.0
      %290 = vmatprep.subr.mxu0 0.0
      %291 = vmatpush1.msra.mxu0 0.0
      %292 = vmatprep.subr.mxu0 0.0
      %293 = vmatpush1.msra.mxu0 0.0
      %294 = vmatprep.subr.mxu0 0.0
      %295 = vmatpush1.msra.mxu0 0.0
      %296 = vmatprep.subr.mxu0 0.0
      %297 = vmatpush1.msra.mxu0 %v239
      %298 = vmatprep.subr.mxu0 0.0
      %299 = vmatpush1.msra.mxu0 %v238
      %300 = vmatprep.subr.mxu0 0.0
      %301 = vmatpush1.msra.mxu0 %v237
      %302 = vmatprep.subr.mxu0 0.0
      %303 = vmatpush1.msra.mxu0 %v236
      %304 = vmatprep.subr.mxu0 0.0
      %305 = vmatpush2.msra.mxu0 0.0
      %306 = vmatprep.subr.mxu0 0.0
      %307 = vmatpush2.msra.mxu0 0.0
      %308 = vmatprep.subr.mxu0 0.0
      %309 = vmatpush2.msra.mxu0 0.0
      %310 = vmatprep.subr.mxu0 0.0
      %311 = vmatpush2.msra.mxu0 0.0
      %312 = vmatprep.subr.mxu0 0.0
      %313 = vmatpush2.msra.mxu0 0.0
      %314 = vmatprep.subr.mxu0 0.0
      %315 = vmatpush2.msra.mxu0 0.0
      %316 = vmatprep.subr.mxu0 0.0
      %317 = vmatpush2.msra.mxu0 0.0
      %318 = vmatprep.subr.mxu0 0.0
      %319 = vmatpush2.msra.mxu0 0.0
      %320 = vmatprep.subr.mxu0 0.0
      %321 = vmatpush2.msra.mxu0 0.0
      %322 = vmatprep.subr.mxu0 0.0
      %323 = vmatpush2.msra.mxu0 0.0
      %324 = vmatprep.subr.mxu0 0.0
      %325 = vmatpush2.msra.mxu0 0.0
      %326 = vmatprep.subr.mxu0 0.0
      %327 = vmatpush2.msra.mxu0 0.0
      %328 = vmatprep.subr.mxu0 0.0
      %329 = vmatpush2.msra.mxu0 0.0
      %330 = vmatprep.subr.mxu0 0.0
      %331 = vmatpush2.msra.mxu0 0.0
      %332 = vmatprep.subr.mxu0 0.0
      %333 = vmatpush2.msra.mxu0 0.0
      %334 = vmatprep.subr.mxu0 0.0
      %335 = vmatpush2.msra.mxu0 0.0
      %336 = vmatprep.mubr.f32.mxu0 0.0
      %337 = vmatmul.mubr.f32.gmra.mxu0 %v249
      %v338 = vpop.f32.mrf.mxu0
      %v339 = vadd.f32 %v245, %v338
      %v340 = vpop.f32.mrf.mxu0
      %341 = vmatprep.mubr.f32.mxu0 0.0
      %342 = vmatmul.mubr.f32.gmra.mxu0 %v252
      %v343 = vpop.f32.mrf.mxu0
      %v344 = vadd.f32 %v245, %v343
      %v345 = vpop.f32.mrf.mxu0
      %346 = vmatprep.mubr.f32.mxu0 0.0
      %347 = vmatmul.mubr.f32.gmra.mxu0 %v255
      %v348 = vpop.f32.mrf.mxu0
      %v349 = vadd.f32 %v245, %v348
      %v350 = vpop.f32.mrf.mxu0
      %351 = vmatprep.mubr.f32.mxu0 0.0
      %352 = vmatmul.mubr.f32.gmra.mxu0 %v258
      %v353 = vpop.f32.mrf.mxu0
      %v354 = vadd.f32 %v245, %v353
      %v355 = vpop.f32.mrf.mxu0
      %356 = vmatprep.mubr.f32.mxu0 0.0
      %357 = vmatmul.mubr.f32.gmra.mxu0 %v261
      %v358 = vpop.f32.mrf.mxu0
      %v359 = vadd.f32 %v245, %v358
      %v360 = vpop.f32.mrf.mxu0
      %361 = vmatprep.mubr.f32.mxu0 0.0
      %362 = vmatmul.mubr.f32.gmra.mxu0 %v264
      %v363 = vpop.f32.mrf.mxu0
      %v364 = vadd.f32 %v245, %v363
      %v365 = vpop.f32.mrf.mxu0
      %366 = vmatprep.mubr.f32.mxu0 0.0
      %367 = vmatmul.mubr.f32.gmra.mxu0 %v267
      %v368 = vpop.f32.mrf.mxu0
      %v369 = vadd.f32 %v245, %v368
      %v370 = vpop.f32.mrf.mxu0
      %371 = vmatprep.mubr.f32.mxu0 0.0
      %372 = vmatmul.mubr.f32.gmra.mxu0 %v270
      %v373 = vpop.f32.mrf.mxu0
      %v374 = vadd.f32 %v245, %v373
      %v375 = vpop.f32.mrf.mxu0
      %376 = vdwg.mxu0
      %v377 = vld [vmem:[%s3] sm:$0xff]
      %v378 = vld [vmem:[%s3 + $0x8] sm:$0xff]
      %v379 = vld [vmem:[%s3 + $0x10] sm:$0xff]
      %v380 = vld [vmem:[%s3 + $0x18] sm:$0xff]
      %382 = vrot.lane.b32.xlu0 %v339, 96
      %v383 = vpop.permute.xlu0 %382
      %vm384 = vcmask 64512
      %v385 = vsel %vm384, %v339, 0
      %v387 = vsel %vm384, %v383, 0
      %389 = vmatprep.subr.mxu0 0.0
      %390 = vmatpush1.xpose.msra.mxu0 0.0
      %391 = vmatprep.subr.mxu0 0.0
      %392 = vmatpush1.xpose.msra.mxu0 0.0
      %393 = vmatprep.subr.mxu0 0.0
      %394 = vmatpush1.xpose.msra.mxu0 0.0
      %395 = vmatprep.subr.mxu0 0.0
      %396 = vmatpush1.xpose.msra.mxu0 0.0
      %397 = vmatprep.subr.mxu0 0.0
      %398 = vmatpush1.xpose.msra.mxu0 0.0
      %399 = vmatprep.subr.mxu0 0.0
      %400 = vmatpush1.xpose.msra.mxu0 0.0
      %401 = vmatprep.subr.mxu0 0.0
      %402 = vmatpush1.xpose.msra.mxu0 0.0
      %403 = vmatprep.subr.mxu0 0.0
      %404 = vmatpush1.xpose.msra.mxu0 0.0
      %405 = vmatprep.subr.mxu0 0.0
      %406 = vmatpush1.xpose.msra.mxu0 0.0
      %407 = vmatprep.subr.mxu0 0.0
      %408 = vmatpush1.xpose.msra.mxu0 0.0
      %409 = vmatprep.subr.mxu0 0.0
      %410 = vmatpush1.xpose.msra.mxu0 0.0
      %411 = vmatprep.subr.mxu0 0.0
      %412 = vmatpush1.xpose.msra.mxu0 0.0
      %413 = vmatprep.subr.mxu0 0.0
      %414 = vmatpush1.xpose.msra.mxu0 0.0
      %415 = vmatprep.subr.mxu0 0.0
      %416 = vmatpush1.xpose.msra.mxu0 0.0
      %417 = vmatprep.subr.mxu0 0.0
      %418 = vmatpush1.xpose.msra.mxu0 0.0
      %419 = vmatprep.subr.mxu0 0.0
      %420 = vmatpush1.xpose.msra.mxu0 %v387
      %421 = vmatprep.subr.mxu0 0.0
      %422 = vmatpush2.xpose.msra.mxu0 0.0
      %423 = vmatprep.subr.mxu0 0.0
      %424 = vmatpush2.xpose.msra.mxu0 0.0
      %425 = vmatprep.subr.mxu0 0.0
      %426 = vmatpush2.xpose.msra.mxu0 0.0
      %427 = vmatprep.subr.mxu0 0.0
      %428 = vmatpush2.xpose.msra.mxu0 0.0
      %429 = vmatprep.subr.mxu0 0.0
      %430 = vmatpush2.xpose.msra.mxu0 0.0
      %431 = vmatprep.subr.mxu0 0.0
      %432 = vmatpush2.xpose.msra.mxu0 0.0
      %433 = vmatprep.subr.mxu0 0.0
      %434 = vmatpush2.xpose.msra.mxu0 0.0
      %435 = vmatprep.subr.mxu0 0.0
      %436 = vmatpush2.xpose.msra.mxu0 0.0
      %437 = vmatprep.subr.mxu0 0.0
      %438 = vmatpush2.xpose.msra.mxu0 0.0
      %439 = vmatprep.subr.mxu0 0.0
      %440 = vmatpush2.xpose.msra.mxu0 0.0
      %441 = vmatprep.subr.mxu0 0.0
      %442 = vmatpush2.xpose.msra.mxu0 0.0
      %443 = vmatprep.subr.mxu0 0.0
      %444 = vmatpush2.xpose.msra.mxu0 0.0
      %445 = vmatprep.subr.mxu0 0.0
      %446 = vmatpush2.xpose.msra.mxu0 0.0
      %447 = vmatprep.subr.mxu0 0.0
      %448 = vmatpush2.xpose.msra.mxu0 0.0
      %449 = vmatprep.subr.mxu0 0.0
      %450 = vmatpush2.xpose.msra.mxu0 0.0
      %451 = vmatprep.subr.mxu0 0.0
      %452 = vmatpush2.xpose.msra.mxu0 0.0
      %453 = vmatprep.mubr.f32.mxu0 0.0
      %454 = vmatmul.mubr.f32.gmra.mxu0 %v385
      %v455 = vpop.f32.mrf.mxu0
      %v456 = vadd.f32 0.0, %v455
      %v457 = vpop.f32.mrf.mxu0
      %458 = vdwg.mxu0
      %460 = vrot.lane.b32.xlu0 %v344, 96
      %v461 = vpop.permute.xlu0 %460
      %v462 = vsel %vm384, %v344, 0
      %v464 = vsel %vm384, %v461, 0
      %466 = vmatprep.subr.mxu0 0.0
      %467 = vmatpush1.xpose.msra.mxu0 0.0
      %468 = vmatprep.subr.mxu0 0.0
      %469 = vmatpush1.xpose.msra.mxu0 0.0
      %470 = vmatprep.subr.mxu0 0.0
      %471 = vmatpush1.xpose.msra.mxu0 0.0
      %472 = vmatprep.subr.mxu0 0.0
      %473 = vmatpush1.xpose.msra.mxu0 0.0
      %474 = vmatprep.subr.mxu0 0.0
      %475 = vmatpush1.xpose.msra.mxu0 0.0
      %476 = vmatprep.subr.mxu0 0.0
      %477 = vmatpush1.xpose.msra.mxu0 0.0
      %478 = vmatprep.subr.mxu0 0.0
      %479 = vmatpush1.xpose.msra.mxu0 0.0
      %480 = vmatprep.subr.mxu0 0.0
      %481 = vmatpush1.xpose.msra.mxu0 0.0
      %482 = vmatprep.subr.mxu0 0.0
      %483 = vmatpush1.xpose.msra.mxu0 0.0
      %484 = vmatprep.subr.mxu0 0.0
      %485 = vmatpush1.xpose.msra.mxu0 0.0
      %486 = vmatprep.subr.mxu0 0.0
      %487 = vmatpush1.xpose.msra.mxu0 0.0
      %488 = vmatprep.subr.mxu0 0.0
      %489 = vmatpush1.xpose.msra.mxu0 0.0
      %490 = vmatprep.subr.mxu0 0.0
      %491 = vmatpush1.xpose.msra.mxu0 0.0
      %492 = vmatprep.subr.mxu0 0.0
      %493 = vmatpush1.xpose.msra.mxu0 0.0
      %494 = vmatprep.subr.mxu0 0.0
      %495 = vmatpush1.xpose.msra.mxu0 0.0
      %496 = vmatprep.subr.mxu0 0.0
      %497 = vmatpush1.xpose.msra.mxu0 %v464
      %498 = vmatprep.subr.mxu0 0.0
      %499 = vmatpush2.xpose.msra.mxu0 0.0
      %500 = vmatprep.subr.mxu0 0.0
      %501 = vmatpush2.xpose.msra.mxu0 0.0
      %502 = vmatprep.subr.mxu0 0.0
      %503 = vmatpush2.xpose.msra.mxu0 0.0
      %504 = vmatprep.subr.mxu0 0.0
      %505 = vmatpush2.xpose.msra.mxu0 0.0
      %506 = vmatprep.subr.mxu0 0.0
      %507 = vmatpush2.xpose.msra.mxu0 0.0
      %508 = vmatprep.subr.mxu0 0.0
      %509 = vmatpush2.xpose.msra.mxu0 0.0
      %510 = vmatprep.subr.mxu0 0.0
      %511 = vmatpush2.xpose.msra.mxu0 0.0
      %512 = vmatprep.subr.mxu0 0.0
      %513 = vmatpush2.xpose.msra.mxu0 0.0
      %514 = vmatprep.subr.mxu0 0.0
      %515 = vmatpush2.xpose.msra.mxu0 0.0
      %516 = vmatprep.subr.mxu0 0.0
      %517 = vmatpush2.xpose.msra.mxu0 0.0
      %518 = vmatprep.subr.mxu0 0.0
      %519 = vmatpush2.xpose.msra.mxu0 0.0
      %520 = vmatprep.subr.mxu0 0.0
      %521 = vmatpush2.xpose.msra.mxu0 0.0
      %522 = vmatprep.subr.mxu0 0.0
      %523 = vmatpush2.xpose.msra.mxu0 0.0
      %524 = vmatprep.subr.mxu0 0.0
      %525 = vmatpush2.xpose.msra.mxu0 0.0
      %526 = vmatprep.subr.mxu0 0.0
      %527 = vmatpush2.xpose.msra.mxu0 0.0
      %528 = vmatprep.subr.mxu0 0.0
      %529 = vmatpush2.xpose.msra.mxu0 0.0
      %530 = vmatprep.mubr.f32.mxu0 0.0
      %531 = vmatmul.mubr.f32.gmra.mxu0 %v462
      %v532 = vpop.f32.mrf.mxu0
      %v533 = vadd.f32 0.0, %v532
      %v534 = vpop.f32.mrf.mxu0
      %535 = vdwg.mxu0
      %537 = vrot.lane.b32.xlu0 %v349, 96
      %v538 = vpop.permute.xlu0 %537
      %v539 = vsel %vm384, %v349, 0
      %v541 = vsel %vm384, %v538, 0
      %543 = vmatprep.subr.mxu0 0.0
      %544 = vmatpush1.xpose.msra.mxu0 0.0
      %545 = vmatprep.subr.mxu0 0.0
      %546 = vmatpush1.xpose.msra.mxu0 0.0
      %547 = vmatprep.subr.mxu0 0.0
      %548 = vmatpush1.xpose.msra.mxu0 0.0
      %549 = vmatprep.subr.mxu0 0.0
      %550 = vmatpush1.xpose.msra.mxu0 0.0
      %551 = vmatprep.subr.mxu0 0.0
      %552 = vmatpush1.xpose.msra.mxu0 0.0
      %553 = vmatprep.subr.mxu0 0.0
      %554 = vmatpush1.xpose.msra.mxu0 0.0
      %555 = vmatprep.subr.mxu0 0.0
      %556 = vmatpush1.xpose.msra.mxu0 0.0
      %557 = vmatprep.subr.mxu0 0.0
      %558 = vmatpush1.xpose.msra.mxu0 0.0
      %559 = vmatprep.subr.mxu0 0.0
      %560 = vmatpush1.xpose.msra.mxu0 0.0
      %561 = vmatprep.subr.mxu0 0.0
      %562 = vmatpush1.xpose.msra.mxu0 0.0
      %563 = vmatprep.subr.mxu0 0.0
      %564 = vmatpush1.xpose.msra.mxu0 0.0
      %565 = vmatprep.subr.mxu0 0.0
      %566 = vmatpush1.xpose.msra.mxu0 0.0
      %567 = vmatprep.subr.mxu0 0.0
      %568 = vmatpush1.xpose.msra.mxu0 0.0
      %569 = vmatprep.subr.mxu0 0.0
      %570 = vmatpush1.xpose.msra.mxu0 0.0
      %571 = vmatprep.subr.mxu0 0.0
      %572 = vmatpush1.xpose.msra.mxu0 0.0
      %573 = vmatprep.subr.mxu0 0.0
      %574 = vmatpush1.xpose.msra.mxu0 %v541
      %575 = vmatprep.subr.mxu0 0.0
      %576 = vmatpush2.xpose.msra.mxu0 0.0
      %577 = vmatprep.subr.mxu0 0.0
      %578 = vmatpush2.xpose.msra.mxu0 0.0
      %579 = vmatprep.subr.mxu0 0.0
      %580 = vmatpush2.xpose.msra.mxu0 0.0
      %581 = vmatprep.subr.mxu0 0.0
      %582 = vmatpush2.xpose.msra.mxu0 0.0
      %583 = vmatprep.subr.mxu0 0.0
      %584 = vmatpush2.xpose.msra.mxu0 0.0
      %585 = vmatprep.subr.mxu0 0.0
      %586 = vmatpush2.xpose.msra.mxu0 0.0
      %587 = vmatprep.subr.mxu0 0.0
      %588 = vmatpush2.xpose.msra.mxu0 0.0
      %589 = vmatprep.subr.mxu0 0.0
      %590 = vmatpush2.xpose.msra.mxu0 0.0
      %591 = vmatprep.subr.mxu0 0.0
      %592 = vmatpush2.xpose.msra.mxu0 0.0
      %593 = vmatprep.subr.mxu0 0.0
      %594 = vmatpush2.xpose.msra.mxu0 0.0
      %595 = vmatprep.subr.mxu0 0.0
      %596 = vmatpush2.xpose.msra.mxu0 0.0
      %597 = vmatprep.subr.mxu0 0.0
      %598 = vmatpush2.xpose.msra.mxu0 0.0
      %599 = vmatprep.subr.mxu0 0.0
      %600 = vmatpush2.xpose.msra.mxu0 0.0
      %601 = vmatprep.subr.mxu0 0.0
      %602 = vmatpush2.xpose.msra.mxu0 0.0
      %603 = vmatprep.subr.mxu0 0.0
      %604 = vmatpush2.xpose.msra.mxu0 0.0
      %605 = vmatprep.subr.mxu0 0.0
      %606 = vmatpush2.xpose.msra.mxu0 0.0
      %607 = vmatprep.mubr.f32.mxu0 0.0
      %608 = vmatmul.mubr.f32.gmra.mxu0 %v539
      %v609 = vpop.f32.mrf.mxu0
      %v610 = vadd.f32 0.0, %v609
      %v611 = vpop.f32.mrf.mxu0
      %612 = vdwg.mxu0
      %614 = vrot.lane.b32.xlu0 %v354, 96
      %v615 = vpop.permute.xlu0 %614
      %v616 = vsel %vm384, %v354, 0
      %v618 = vsel %vm384, %v615, 0
      %620 = vmatprep.subr.mxu0 0.0
      %621 = vmatpush1.xpose.msra.mxu0 0.0
      %622 = vmatprep.subr.mxu0 0.0
      %623 = vmatpush1.xpose.msra.mxu0 0.0
      %624 = vmatprep.subr.mxu0 0.0
      %625 = vmatpush1.xpose.msra.mxu0 0.0
      %626 = vmatprep.subr.mxu0 0.0
      %627 = vmatpush1.xpose.msra.mxu0 0.0
      %628 = vmatprep.subr.mxu0 0.0
      %629 = vmatpush1.xpose.msra.mxu0 0.0
      %630 = vmatprep.subr.mxu0 0.0
      %631 = vmatpush1.xpose.msra.mxu0 0.0
      %632 = vmatprep.subr.mxu0 0.0
      %633 = vmatpush1.xpose.msra.mxu0 0.0
      %634 = vmatprep.subr.mxu0 0.0
      %635 = vmatpush1.xpose.msra.mxu0 0.0
      %636 = vmatprep.subr.mxu0 0.0
      %637 = vmatpush1.xpose.msra.mxu0 0.0
      %638 = vmatprep.subr.mxu0 0.0
      %639 = vmatpush1.xpose.msra.mxu0 0.0
      %640 = vmatprep.subr.mxu0 0.0
      %641 = vmatpush1.xpose.msra.mxu0 0.0
      %642 = vmatprep.subr.mxu0 0.0
      %643 = vmatpush1.xpose.msra.mxu0 0.0
      %644 = vmatprep.subr.mxu0 0.0
      %645 = vmatpush1.xpose.msra.mxu0 0.0
      %646 = vmatprep.subr.mxu0 0.0
      %647 = vmatpush1.xpose.msra.mxu0 0.0
      %648 = vmatprep.subr.mxu0 0.0
      %649 = vmatpush1.xpose.msra.mxu0 0.0
      %650 = vmatprep.subr.mxu0 0.0
      %651 = vmatpush1.xpose.msra.mxu0 %v618
      %652 = vmatprep.subr.mxu0 0.0
      %653 = vmatpush2.xpose.msra.mxu0 0.0
      %654 = vmatprep.subr.mxu0 0.0
      %655 = vmatpush2.xpose.msra.mxu0 0.0
      %656 = vmatprep.subr.mxu0 0.0
      %657 = vmatpush2.xpose.msra.mxu0 0.0
      %658 = vmatprep.subr.mxu0 0.0
      %659 = vmatpush2.xpose.msra.mxu0 0.0
      %660 = vmatprep.subr.mxu0 0.0
      %661 = vmatpush2.xpose.msra.mxu0 0.0
      %662 = vmatprep.subr.mxu0 0.0
      %663 = vmatpush2.xpose.msra.mxu0 0.0
      %664 = vmatprep.subr.mxu0 0.0
      %665 = vmatpush2.xpose.msra.mxu0 0.0
      %666 = vmatprep.subr.mxu0 0.0
      %667 = vmatpush2.xpose.msra.mxu0 0.0
      %668 = vmatprep.subr.mxu0 0.0
      %669 = vmatpush2.xpose.msra.mxu0 0.0
      %670 = vmatprep.subr.mxu0 0.0
      %671 = vmatpush2.xpose.msra.mxu0 0.0
      %672 = vmatprep.subr.mxu0 0.0
      %673 = vmatpush2.xpose.msra.mxu0 0.0
      %674 = vmatprep.subr.mxu0 0.0
      %675 = vmatpush2.xpose.msra.mxu0 0.0
      %676 = vmatprep.subr.mxu0 0.0
      %677 = vmatpush2.xpose.msra.mxu0 0.0
      %678 = vmatprep.subr.mxu0 0.0
      %679 = vmatpush2.xpose.msra.mxu0 0.0
      %680 = vmatprep.subr.mxu0 0.0
      %681 = vmatpush2.xpose.msra.mxu0 0.0
      %682 = vmatprep.subr.mxu0 0.0
      %683 = vmatpush2.xpose.msra.mxu0 0.0
      %684 = vmatprep.mubr.f32.mxu0 0.0
      %685 = vmatmul.mubr.f32.gmra.mxu0 %v616
      %v686 = vpop.f32.mrf.mxu0
      %v687 = vadd.f32 0.0, %v686
      %v688 = vpop.f32.mrf.mxu0
      %689 = vdwg.mxu0
      %691 = vrot.lane.b32.xlu0 %v359, 96
      %v692 = vpop.permute.xlu0 %691
      %v693 = vsel %vm384, %v359, 0
      %v695 = vsel %vm384, %v692, 0
      %697 = vmatprep.subr.mxu0 0.0
      %698 = vmatpush1.xpose.msra.mxu0 0.0
      %699 = vmatprep.subr.mxu0 0.0
      %700 = vmatpush1.xpose.msra.mxu0 0.0
      %701 = vmatprep.subr.mxu0 0.0
      %702 = vmatpush1.xpose.msra.mxu0 0.0
      %703 = vmatprep.subr.mxu0 0.0
      %704 = vmatpush1.xpose.msra.mxu0 0.0
      %705 = vmatprep.subr.mxu0 0.0
      %706 = vmatpush1.xpose.msra.mxu0 0.0
      %707 = vmatprep.subr.mxu0 0.0
      %708 = vmatpush1.xpose.msra.mxu0 0.0
      %709 = vmatprep.subr.mxu0 0.0
      %710 = vmatpush1.xpose.msra.mxu0 0.0
      %711 = vmatprep.subr.mxu0 0.0
      %712 = vmatpush1.xpose.msra.mxu0 0.0
      %713 = vmatprep.subr.mxu0 0.0
      %714 = vmatpush1.xpose.msra.mxu0 0.0
      %715 = vmatprep.subr.mxu0 0.0
      %716 = vmatpush1.xpose.msra.mxu0 0.0
      %717 = vmatprep.subr.mxu0 0.0
      %718 = vmatpush1.xpose.msra.mxu0 0.0
      %719 = vmatprep.subr.mxu0 0.0
      %720 = vmatpush1.xpose.msra.mxu0 0.0
      %721 = vmatprep.subr.mxu0 0.0
      %722 = vmatpush1.xpose.msra.mxu0 0.0
      %723 = vmatprep.subr.mxu0 0.0
      %724 = vmatpush1.xpose.msra.mxu0 0.0
      %725 = vmatprep.subr.mxu0 0.0
      %726 = vmatpush1.xpose.msra.mxu0 0.0
      %727 = vmatprep.subr.mxu0 0.0
      %728 = vmatpush1.xpose.msra.mxu0 %v695
      %729 = vmatprep.subr.mxu0 0.0
      %730 = vmatpush2.xpose.msra.mxu0 0.0
      %731 = vmatprep.subr.mxu0 0.0
      %732 = vmatpush2.xpose.msra.mxu0 0.0
      %733 = vmatprep.subr.mxu0 0.0
      %734 = vmatpush2.xpose.msra.mxu0 0.0
      %735 = vmatprep.subr.mxu0 0.0
      %736 = vmatpush2.xpose.msra.mxu0 0.0
      %737 = vmatprep.subr.mxu0 0.0
      %738 = vmatpush2.xpose.msra.mxu0 0.0
      %739 = vmatprep.subr.mxu0 0.0
      %740 = vmatpush2.xpose.msra.mxu0 0.0
      %741 = vmatprep.subr.mxu0 0.0
      %742 = vmatpush2.xpose.msra.mxu0 0.0
      %743 = vmatprep.subr.mxu0 0.0
      %744 = vmatpush2.xpose.msra.mxu0 0.0
      %745 = vmatprep.subr.mxu0 0.0
      %746 = vmatpush2.xpose.msra.mxu0 0.0
      %747 = vmatprep.subr.mxu0 0.0
      %748 = vmatpush2.xpose.msra.mxu0 0.0
      %749 = vmatprep.subr.mxu0 0.0
      %750 = vmatpush2.xpose.msra.mxu0 0.0
      %751 = vmatprep.subr.mxu0 0.0
      %752 = vmatpush2.xpose.msra.mxu0 0.0
      %753 = vmatprep.subr.mxu0 0.0
      %754 = vmatpush2.xpose.msra.mxu0 0.0
      %755 = vmatprep.subr.mxu0 0.0
      %756 = vmatpush2.xpose.msra.mxu0 0.0
      %757 = vmatprep.subr.mxu0 0.0
      %758 = vmatpush2.xpose.msra.mxu0 0.0
      %759 = vmatprep.subr.mxu0 0.0
      %760 = vmatpush2.xpose.msra.mxu0 0.0
      %761 = vmatprep.mubr.f32.mxu0 0.0
      %762 = vmatmul.mubr.f32.gmra.mxu0 %v693
      %v763 = vpop.f32.mrf.mxu0
      %v764 = vadd.f32 0.0, %v763
      %v765 = vpop.f32.mrf.mxu0
      %766 = vdwg.mxu0
      %768 = vrot.lane.b32.xlu0 %v364, 96
      %v769 = vpop.permute.xlu0 %768
      %v770 = vsel %vm384, %v364, 0
      %v772 = vsel %vm384, %v769, 0
      %774 = vmatprep.subr.mxu0 0.0
      %775 = vmatpush1.xpose.msra.mxu0 0.0
      %776 = vmatprep.subr.mxu0 0.0
      %777 = vmatpush1.xpose.msra.mxu0 0.0
      %778 = vmatprep.subr.mxu0 0.0
      %779 = vmatpush1.xpose.msra.mxu0 0.0
      %780 = vmatprep.subr.mxu0 0.0
      %781 = vmatpush1.xpose.msra.mxu0 0.0
      %782 = vmatprep.subr.mxu0 0.0
      %783 = vmatpush1.xpose.msra.mxu0 0.0
      %784 = vmatprep.subr.mxu0 0.0
      %785 = vmatpush1.xpose.msra.mxu0 0.0
      %786 = vmatprep.subr.mxu0 0.0
      %787 = vmatpush1.xpose.msra.mxu0 0.0
      %788 = vmatprep.subr.mxu0 0.0
      %789 = vmatpush1.xpose.msra.mxu0 0.0
      %790 = vmatprep.subr.mxu0 0.0
      %791 = vmatpush1.xpose.msra.mxu0 0.0
      %792 = vmatprep.subr.mxu0 0.0
      %793 = vmatpush1.xpose.msra.mxu0 0.0
      %794 = vmatprep.subr.mxu0 0.0
      %795 = vmatpush1.xpose.msra.mxu0 0.0
      %796 = vmatprep.subr.mxu0 0.0
      %797 = vmatpush1.xpose.msra.mxu0 0.0
      %798 = vmatprep.subr.mxu0 0.0
      %799 = vmatpush1.xpose.msra.mxu0 0.0
      %800 = vmatprep.subr.mxu0 0.0
      %801 = vmatpush1.xpose.msra.mxu0 0.0
      %802 = vmatprep.subr.mxu0 0.0
      %803 = vmatpush1.xpose.msra.mxu0 0.0
      %804 = vmatprep.subr.mxu0 0.0
      %805 = vmatpush1.xpose.msra.mxu0 %v772
      %806 = vmatprep.subr.mxu0 0.0
      %807 = vmatpush2.xpose.msra.mxu0 0.0
      %808 = vmatprep.subr.mxu0 0.0
      %809 = vmatpush2.xpose.msra.mxu0 0.0
      %810 = vmatprep.subr.mxu0 0.0
      %811 = vmatpush2.xpose.msra.mxu0 0.0
      %812 = vmatprep.subr.mxu0 0.0
      %813 = vmatpush2.xpose.msra.mxu0 0.0
      %814 = vmatprep.subr.mxu0 0.0
      %815 = vmatpush2.xpose.msra.mxu0 0.0
      %816 = vmatprep.subr.mxu0 0.0
      %817 = vmatpush2.xpose.msra.mxu0 0.0
      %818 = vmatprep.subr.mxu0 0.0
      %819 = vmatpush2.xpose.msra.mxu0 0.0
      %820 = vmatprep.subr.mxu0 0.0
      %821 = vmatpush2.xpose.msra.mxu0 0.0
      %822 = vmatprep.subr.mxu0 0.0
      %823 = vmatpush2.xpose.msra.mxu0 0.0
      %824 = vmatprep.subr.mxu0 0.0
      %825 = vmatpush2.xpose.msra.mxu0 0.0
      %826 = vmatprep.subr.mxu0 0.0
      %827 = vmatpush2.xpose.msra.mxu0 0.0
      %828 = vmatprep.subr.mxu0 0.0
      %829 = vmatpush2.xpose.msra.mxu0 0.0
      %830 = vmatprep.subr.mxu0 0.0
      %831 = vmatpush2.xpose.msra.mxu0 0.0
      %832 = vmatprep.subr.mxu0 0.0
      %833 = vmatpush2.xpose.msra.mxu0 0.0
      %834 = vmatprep.subr.mxu0 0.0
      %835 = vmatpush2.xpose.msra.mxu0 0.0
      %836 = vmatprep.subr.mxu0 0.0
      %837 = vmatpush2.xpose.msra.mxu0 0.0
      %838 = vmatprep.mubr.f32.mxu0 0.0
      %839 = vmatmul.mubr.f32.gmra.mxu0 %v770
      %v840 = vpop.f32.mrf.mxu0
      %v841 = vadd.f32 0.0, %v840
      %v842 = vpop.f32.mrf.mxu0
      %843 = vdwg.mxu0
      %845 = vrot.lane.b32.xlu0 %v369, 96
      %v846 = vpop.permute.xlu0 %845
      %v847 = vsel %vm384, %v369, 0
      %v849 = vsel %vm384, %v846, 0
      %851 = vmatprep.subr.mxu0 0.0
      %852 = vmatpush1.xpose.msra.mxu0 0.0
      %853 = vmatprep.subr.mxu0 0.0
      %854 = vmatpush1.xpose.msra.mxu0 0.0
      %855 = vmatprep.subr.mxu0 0.0
      %856 = vmatpush1.xpose.msra.mxu0 0.0
      %857 = vmatprep.subr.mxu0 0.0
      %858 = vmatpush1.xpose.msra.mxu0 0.0
      %859 = vmatprep.subr.mxu0 0.0
      %860 = vmatpush1.xpose.msra.mxu0 0.0
      %861 = vmatprep.subr.mxu0 0.0
      %862 = vmatpush1.xpose.msra.mxu0 0.0
      %863 = vmatprep.subr.mxu0 0.0
      %864 = vmatpush1.xpose.msra.mxu0 0.0
      %865 = vmatprep.subr.mxu0 0.0
      %866 = vmatpush1.xpose.msra.mxu0 0.0
      %867 = vmatprep.subr.mxu0 0.0
      %868 = vmatpush1.xpose.msra.mxu0 0.0
      %869 = vmatprep.subr.mxu0 0.0
      %870 = vmatpush1.xpose.msra.mxu0 0.0
      %871 = vmatprep.subr.mxu0 0.0
      %872 = vmatpush1.xpose.msra.mxu0 0.0
      %873 = vmatprep.subr.mxu0 0.0
      %874 = vmatpush1.xpose.msra.mxu0 0.0
      %875 = vmatprep.subr.mxu0 0.0
      %876 = vmatpush1.xpose.msra.mxu0 0.0
      %877 = vmatprep.subr.mxu0 0.0
      %878 = vmatpush1.xpose.msra.mxu0 0.0
      %879 = vmatprep.subr.mxu0 0.0
      %880 = vmatpush1.xpose.msra.mxu0 0.0
      %881 = vmatprep.subr.mxu0 0.0
      %882 = vmatpush1.xpose.msra.mxu0 %v849
      %883 = vmatprep.subr.mxu0 0.0
      %884 = vmatpush2.xpose.msra.mxu0 0.0
      %885 = vmatprep.subr.mxu0 0.0
      %886 = vmatpush2.xpose.msra.mxu0 0.0
      %887 = vmatprep.subr.mxu0 0.0
      %888 = vmatpush2.xpose.msra.mxu0 0.0
      %889 = vmatprep.subr.mxu0 0.0
      %890 = vmatpush2.xpose.msra.mxu0 0.0
      %891 = vmatprep.subr.mxu0 0.0
      %892 = vmatpush2.xpose.msra.mxu0 0.0
      %893 = vmatprep.subr.mxu0 0.0
      %894 = vmatpush2.xpose.msra.mxu0 0.0
      %895 = vmatprep.subr.mxu0 0.0
      %896 = vmatpush2.xpose.msra.mxu0 0.0
      %897 = vmatprep.subr.mxu0 0.0
      %898 = vmatpush2.xpose.msra.mxu0 0.0
      %899 = vmatprep.subr.mxu0 0.0
      %900 = vmatpush2.xpose.msra.mxu0 0.0
      %901 = vmatprep.subr.mxu0 0.0
      %902 = vmatpush2.xpose.msra.mxu0 0.0
      %903 = vmatprep.subr.mxu0 0.0
      %904 = vmatpush2.xpose.msra.mxu0 0.0
      %905 = vmatprep.subr.mxu0 0.0
      %906 = vmatpush2.xpose.msra.mxu0 0.0
      %907 = vmatprep.subr.mxu0 0.0
      %908 = vmatpush2.xpose.msra.mxu0 0.0
      %909 = vmatprep.subr.mxu0 0.0
      %910 = vmatpush2.xpose.msra.mxu0 0.0
      %911 = vmatprep.subr.mxu0 0.0
      %912 = vmatpush2.xpose.msra.mxu0 0.0
      %913 = vmatprep.subr.mxu0 0.0
      %914 = vmatpush2.xpose.msra.mxu0 0.0
      %915 = vmatprep.mubr.f32.mxu0 0.0
      %916 = vmatmul.mubr.f32.gmra.mxu0 %v847
      %v917 = vpop.f32.mrf.mxu0
      %v918 = vadd.f32 0.0, %v917
      %v919 = vpop.f32.mrf.mxu0
      %920 = vdwg.mxu0
      %922 = vrot.lane.b32.xlu0 %v374, 96
      %v923 = vpop.permute.xlu0 %922
      %v924 = vsel %vm384, %v374, 0
      %v926 = vsel %vm384, %v923, 0
      %928 = vmatprep.subr.mxu0 0.0
      %929 = vmatpush1.xpose.msra.mxu0 0.0
      %930 = vmatprep.subr.mxu0 0.0
      %931 = vmatpush1.xpose.msra.mxu0 0.0
      %932 = vmatprep.subr.mxu0 0.0
      %933 = vmatpush1.xpose.msra.mxu0 0.0
      %934 = vmatprep.subr.mxu0 0.0
      %935 = vmatpush1.xpose.msra.mxu0 0.0
      %936 = vmatprep.subr.mxu0 0.0
      %937 = vmatpush1.xpose.msra.mxu0 0.0
      %938 = vmatprep.subr.mxu0 0.0
      %939 = vmatpush1.xpose.msra.mxu0 0.0
      %940 = vmatprep.subr.mxu0 0.0
      %941 = vmatpush1.xpose.msra.mxu0 0.0
      %942 = vmatprep.subr.mxu0 0.0
      %943 = vmatpush1.xpose.msra.mxu0 0.0
      %944 = vmatprep.subr.mxu0 0.0
      %945 = vmatpush1.xpose.msra.mxu0 0.0
      %946 = vmatprep.subr.mxu0 0.0
      %947 = vmatpush1.xpose.msra.mxu0 0.0
      %948 = vmatprep.subr.mxu0 0.0
      %949 = vmatpush1.xpose.msra.mxu0 0.0
      %950 = vmatprep.subr.mxu0 0.0
      %951 = vmatpush1.xpose.msra.mxu0 0.0
      %952 = vmatprep.subr.mxu0 0.0
      %953 = vmatpush1.xpose.msra.mxu0 0.0
      %954 = vmatprep.subr.mxu0 0.0
      %955 = vmatpush1.xpose.msra.mxu0 0.0
      %956 = vmatprep.subr.mxu0 0.0
      %957 = vmatpush1.xpose.msra.mxu0 0.0
      %958 = vmatprep.subr.mxu0 0.0
      %959 = vmatpush1.xpose.msra.mxu0 %v926
      %960 = vmatprep.subr.mxu0 0.0
      %961 = vmatpush2.xpose.msra.mxu0 0.0
      %962 = vmatprep.subr.mxu0 0.0
      %963 = vmatpush2.xpose.msra.mxu0 0.0
      %964 = vmatprep.subr.mxu0 0.0
      %965 = vmatpush2.xpose.msra.mxu0 0.0
      %966 = vmatprep.subr.mxu0 0.0
      %967 = vmatpush2.xpose.msra.mxu0 0.0
      %968 = vmatprep.subr.mxu0 0.0
      %969 = vmatpush2.xpose.msra.mxu0 0.0
      %970 = vmatprep.subr.mxu0 0.0
      %971 = vmatpush2.xpose.msra.mxu0 0.0
      %972 = vmatprep.subr.mxu0 0.0
      %973 = vmatpush2.xpose.msra.mxu0 0.0
      %974 = vmatprep.subr.mxu0 0.0
      %975 = vmatpush2.xpose.msra.mxu0 0.0
      %976 = vmatprep.subr.mxu0 0.0
      %977 = vmatpush2.xpose.msra.mxu0 0.0
      %978 = vmatprep.subr.mxu0 0.0
      %979 = vmatpush2.xpose.msra.mxu0 0.0
      %980 = vmatprep.subr.mxu0 0.0
      %981 = vmatpush2.xpose.msra.mxu0 0.0
      %982 = vmatprep.subr.mxu0 0.0
      %983 = vmatpush2.xpose.msra.mxu0 0.0
      %984 = vmatprep.subr.mxu0 0.0
      %985 = vmatpush2.xpose.msra.mxu0 0.0
      %986 = vmatprep.subr.mxu0 0.0
      %987 = vmatpush2.xpose.msra.mxu0 0.0
      %988 = vmatprep.subr.mxu0 0.0
      %989 = vmatpush2.xpose.msra.mxu0 0.0
      %990 = vmatprep.subr.mxu0 0.0
      %991 = vmatpush2.xpose.msra.mxu0 0.0
      %992 = vmatprep.mubr.f32.mxu0 0.0
      %993 = vmatmul.mubr.f32.gmra.mxu0 %v924
      %v994 = vpop.f32.mrf.mxu0
      %v995 = vadd.f32 0.0, %v994
      %v996 = vpop.f32.mrf.mxu0
      %997 = vdwg.mxu0
      %v998 = vmul.f32 %v456, 0.35355338
      %v999 = vmul.f32 %v533, 0.35355338
      %v1000 = vmul.f32 %v610, 0.35355338
      %v1001 = vmul.f32 %v687, 0.35355338
      %v1002 = vmul.f32 %v764, 0.35355338
      %v1003 = vmul.f32 %v841, 0.35355338
      %v1004 = vmul.f32 %v918, 0.35355338
      %v1005 = vmul.f32 %v995, 0.35355338
      %v1006 = vsel %vm384, %v998, -inf
      %1007 = vmax.xlane.f32.xlu0 %v1006
      %v1008 = vpop.xlane.xlu0 %1007
      %v1009 = vsel %vm384, %v999, -inf
      %1010 = vmax.xlane.f32.xlu0 %v1009
      %v1011 = vpop.xlane.xlu0 %1010
      %v1012 = vsel %vm384, %v1000, -inf
      %1013 = vmax.xlane.f32.xlu0 %v1012
      %v1014 = vpop.xlane.xlu0 %1013
      %v1015 = vsel %vm384, %v1001, -inf
      %1016 = vmax.xlane.f32.xlu0 %v1015
      %v1017 = vpop.xlane.xlu0 %1016
      %v1018 = vsel %vm384, %v1002, -inf
      %1019 = vmax.xlane.f32.xlu0 %v1018
      %v1020 = vpop.xlane.xlu0 %1019
      %v1021 = vsel %vm384, %v1003, -inf
      %1022 = vmax.xlane.f32.xlu0 %v1021
      %v1023 = vpop.xlane.xlu0 %1022
      %v1024 = vsel %vm384, %v1004, -inf
      %1025 = vmax.xlane.f32.xlu0 %v1024
      %v1026 = vpop.xlane.xlu0 %1025
      %v1027 = vsel %vm384, %v1005, -inf
      %1028 = vmax.xlane.f32.xlu0 %v1027
      %v1029 = vpop.xlane.xlu0 %1028
      %v1030 = vsub.f32 %v998, %v1008
      %v1031 = vsub.f32 %v999, %v1011
      %v1032 = vsub.f32 %v1000, %v1014
      %v1033 = vsub.f32 %v1001, %v1017
      %v1034 = vsub.f32 %v1002, %v1020
      %v1035 = vsub.f32 %v1003, %v1023
      %v1036 = vsub.f32 %v1004, %v1026
      %v1037 = vsub.f32 %v1005, %v1029
      %v1038 = vmul.f32 %v1030, 1.442695
      %v1039 = vpow.pop %v1038
      %v1040 = vmul.f32 %v1031, 1.442695
      %v1041 = vpow.pop %v1040
      %v1042 = vmul.f32 %v1032, 1.442695
      %v1043 = vpow.pop %v1042
      %v1044 = vmul.f32 %v1033, 1.442695
      %v1045 = vpow.pop %v1044
      %v1046 = vmul.f32 %v1034, 1.442695
      %v1047 = vpow.pop %v1046
      %v1048 = vmul.f32 %v1035, 1.442695
      %v1049 = vpow.pop %v1048
      %v1050 = vmul.f32 %v1036, 1.442695
      %v1051 = vpow.pop %v1050
      %v1052 = vmul.f32 %v1037, 1.442695
      %v1053 = vpow.pop %v1052
      %v1054 = vsel %vm384, %v1039, 0.0
      %1055 = vadd.xlane.f32.xlu0 %v1054
      %v1056 = vpop.xlane.xlu0 %1055
      %v1057 = vsel %vm384, %v1041, 0.0
      %1058 = vadd.xlane.f32.xlu0 %v1057
      %v1059 = vpop.xlane.xlu0 %1058
      %v1060 = vsel %vm384, %v1043, 0.0
      %1061 = vadd.xlane.f32.xlu0 %v1060
      %v1062 = vpop.xlane.xlu0 %1061
      %v1063 = vsel %vm384, %v1045, 0.0
      %1064 = vadd.xlane.f32.xlu0 %v1063
      %v1065 = vpop.xlane.xlu0 %1064
      %v1066 = vsel %vm384, %v1047, 0.0
      %1067 = vadd.xlane.f32.xlu0 %v1066
      %v1068 = vpop.xlane.xlu0 %1067
      %v1069 = vsel %vm384, %v1049, 0.0
      %1070 = vadd.xlane.f32.xlu0 %v1069
      %v1071 = vpop.xlane.xlu0 %1070
      %v1072 = vsel %vm384, %v1051, 0.0
      %1073 = vadd.xlane.f32.xlu0 %v1072
      %v1074 = vpop.xlane.xlu0 %1073
      %v1075 = vsel %vm384, %v1053, 0.0
      %1076 = vadd.xlane.f32.xlu0 %v1075
      %v1077 = vpop.xlane.xlu0 %1076
      %v1078 = vrcp.pop %v1056
      %v1079 = vrcp.pop %v1059
      %v1080 = vrcp.pop %v1062
      %v1081 = vrcp.pop %v1065
      %v1082 = vrcp.pop %v1068
      %v1083 = vrcp.pop %v1071
      %v1084 = vrcp.pop %v1074
      %v1085 = vrcp.pop %v1077
      %v1086 = vmul.f32 %v1039, %v1078
      %v1087 = vmul.f32 %v1041, %v1079
      %v1088 = vmul.f32 %v1043, %v1080
      %v1089 = vmul.f32 %v1045, %v1081
      %v1090 = vmul.f32 %v1047, %v1082
      %v1091 = vmul.f32 %v1049, %v1083
      %v1092 = vmul.f32 %v1051, %v1084
      %v1093 = vmul.f32 %v1053, %v1085
      %1094 = vrot.lane.b32.xlu0 %v339, 64
      %v1095 = vpop.permute.xlu0 %1094
      %v1098 = vsel %vm384, %v1086, 0
      %1100 = vmatprep.subr.mxu0 0.0
      %1101 = vmatpush1.msra.mxu0 0.0
      %1102 = vmatprep.subr.mxu0 0.0
      %1103 = vmatpush1.msra.mxu0 0.0
      %1104 = vmatprep.subr.mxu0 0.0
      %1105 = vmatpush1.msra.mxu0 0.0
      %1106 = vmatprep.subr.mxu0 0.0
      %1107 = vmatpush1.msra.mxu0 0.0
      %1108 = vmatprep.subr.mxu0 0.0
      %1109 = vmatpush1.msra.mxu0 0.0
      %1110 = vmatprep.subr.mxu0 0.0
      %1111 = vmatpush1.msra.mxu0 0.0
      %1112 = vmatprep.subr.mxu0 0.0
      %1113 = vmatpush1.msra.mxu0 0.0
      %1114 = vmatprep.subr.mxu0 0.0
      %1115 = vmatpush1.msra.mxu0 0.0
      %1116 = vmatprep.subr.mxu0 0.0
      %1117 = vmatpush1.msra.mxu0 0.0
      %1118 = vmatprep.subr.mxu0 0.0
      %1119 = vmatpush1.msra.mxu0 0.0
      %1120 = vmatprep.subr.mxu0 0.0
      %1121 = vmatpush1.msra.mxu0 0.0
      %1122 = vmatprep.subr.mxu0 0.0
      %1123 = vmatpush1.msra.mxu0 0.0
      %1124 = vmatprep.subr.mxu0 0.0
      %1125 = vmatpush1.msra.mxu0 0.0
      %1126 = vmatprep.subr.mxu0 0.0
      %1127 = vmatpush1.msra.mxu0 0.0
      %1128 = vmatprep.subr.mxu0 0.0
      %1129 = vmatpush1.msra.mxu0 0.0
      %1130 = vmatprep.subr.mxu0 0.0
      %1131 = vmatpush1.msra.mxu0 %v1095
      %1132 = vmatprep.subr.mxu0 0.0
      %1133 = vmatpush2.msra.mxu0 0.0
      %1134 = vmatprep.subr.mxu0 0.0
      %1135 = vmatpush2.msra.mxu0 0.0
      %1136 = vmatprep.subr.mxu0 0.0
      %1137 = vmatpush2.msra.mxu0 0.0
      %1138 = vmatprep.subr.mxu0 0.0
      %1139 = vmatpush2.msra.mxu0 0.0
      %1140 = vmatprep.subr.mxu0 0.0
      %1141 = vmatpush2.msra.mxu0 0.0
      %1142 = vmatprep.subr.mxu0 0.0
      %1143 = vmatpush2.msra.mxu0 0.0
      %1144 = vmatprep.subr.mxu0 0.0
      %1145 = vmatpush2.msra.mxu0 0.0
      %1146 = vmatprep.subr.mxu0 0.0
      %1147 = vmatpush2.msra.mxu0 0.0
      %1148 = vmatprep.subr.mxu0 0.0
      %1149 = vmatpush2.msra.mxu0 0.0
      %1150 = vmatprep.subr.mxu0 0.0
      %1151 = vmatpush2.msra.mxu0 0.0
      %1152 = vmatprep.subr.mxu0 0.0
      %1153 = vmatpush2.msra.mxu0 0.0
      %1154 = vmatprep.subr.mxu0 0.0
      %1155 = vmatpush2.msra.mxu0 0.0
      %1156 = vmatprep.subr.mxu0 0.0
      %1157 = vmatpush2.msra.mxu0 0.0
      %1158 = vmatprep.subr.mxu0 0.0
      %1159 = vmatpush2.msra.mxu0 0.0
      %1160 = vmatprep.subr.mxu0 0.0
      %1161 = vmatpush2.msra.mxu0 0.0
      %1162 = vmatprep.subr.mxu0 0.0
      %1163 = vmatpush2.msra.mxu0 0.0
      %1164 = vmatprep.mubr.f32.mxu0 0.0
      %1165 = vmatmul.mubr.f32.gmra.mxu0 %v1098
      %v1166 = vpop.f32.mrf.mxu0
      %v1167 = vadd.f32 0.0, %v1166
      %v1168 = vpop.f32.mrf.mxu0
      %1169 = vdwg.mxu0
      %1170 = vrot.lane.b32.xlu0 %v344, 64
      %v1171 = vpop.permute.xlu0 %1170
      %v1174 = vsel %vm384, %v1087, 0
      %1176 = vmatprep.subr.mxu0 0.0
      %1177 = vmatpush1.msra.mxu0 0.0
      %1178 = vmatprep.subr.mxu0 0.0
      %1179 = vmatpush1.msra.mxu0 0.0
      %1180 = vmatprep.subr.mxu0 0.0
      %1181 = vmatpush1.msra.mxu0 0.0
      %1182 = vmatprep.subr.mxu0 0.0
      %1183 = vmatpush1.msra.mxu0 0.0
      %1184 = vmatprep.subr.mxu0 0.0
      %1185 = vmatpush1.msra.mxu0 0.0
      %1186 = vmatprep.subr.mxu0 0.0
      %1187 = vmatpush1.msra.mxu0 0.0
      %1188 = vmatprep.subr.mxu0 0.0
      %1189 = vmatpush1.msra.mxu0 0.0
      %1190 = vmatprep.subr.mxu0 0.0
      %1191 = vmatpush1.msra.mxu0 0.0
      %1192 = vmatprep.subr.mxu0 0.0
      %1193 = vmatpush1.msra.mxu0 0.0
      %1194 = vmatprep.subr.mxu0 0.0
      %1195 = vmatpush1.msra.mxu0 0.0
      %1196 = vmatprep.subr.mxu0 0.0
      %1197 = vmatpush1.msra.mxu0 0.0
      %1198 = vmatprep.subr.mxu0 0.0
      %1199 = vmatpush1.msra.mxu0 0.0
      %1200 = vmatprep.subr.mxu0 0.0
      %1201 = vmatpush1.msra.mxu0 0.0
      %1202 = vmatprep.subr.mxu0 0.0
      %1203 = vmatpush1.msra.mxu0 0.0
      %1204 = vmatprep.subr.mxu0 0.0
      %1205 = vmatpush1.msra.mxu0 0.0
      %1206 = vmatprep.subr.mxu0 0.0
      %1207 = vmatpush1.msra.mxu0 %v1171
      %1208 = vmatprep.subr.mxu0 0.0
      %1209 = vmatpush2.msra.mxu0 0.0
      %1210 = vmatprep.subr.mxu0 0.0
      %1211 = vmatpush2.msra.mxu0 0.0
      %1212 = vmatprep.subr.mxu0 0.0
      %1213 = vmatpush2.msra.mxu0 0.0
      %1214 = vmatprep.subr.mxu0 0.0
      %1215 = vmatpush2.msra.mxu0 0.0
      %1216 = vmatprep.subr.mxu0 0.0
      %1217 = vmatpush2.msra.mxu0 0.0
      %1218 = vmatprep.subr.mxu0 0.0
      %1219 = vmatpush2.msra.mxu0 0.0
      %1220 = vmatprep.subr.mxu0 0.0
      %1221 = vmatpush2.msra.mxu0 0.0
      %1222 = vmatprep.subr.mxu0 0.0
      %1223 = vmatpush2.msra.mxu0 0.0
      %1224 = vmatprep.subr.mxu0 0.0
      %1225 = vmatpush2.msra.mxu0 0.0
      %1226 = vmatprep.subr.mxu0 0.0
      %1227 = vmatpush2.msra.mxu0 0.0
      %1228 = vmatprep.subr.mxu0 0.0
      %1229 = vmatpush2.msra.mxu0 0.0
      %1230 = vmatprep.subr.mxu0 0.0
      %1231 = vmatpush2.msra.mxu0 0.0
      %1232 = vmatprep.subr.mxu0 0.0
      %1233 = vmatpush2.msra.mxu0 0.0
      %1234 = vmatprep.subr.mxu0 0.0
      %1235 = vmatpush2.msra.mxu0 0.0
      %1236 = vmatprep.subr.mxu0 0.0
      %1237 = vmatpush2.msra.mxu0 0.0
      %1238 = vmatprep.subr.mxu0 0.0
      %1239 = vmatpush2.msra.mxu0 0.0
      %1240 = vmatprep.mubr.f32.mxu0 0.0
      %1241 = vmatmul.mubr.f32.gmra.mxu0 %v1174
      %v1242 = vpop.f32.mrf.mxu0
      %v1243 = vadd.f32 0.0, %v1242
      %v1244 = vpop.f32.mrf.mxu0
      %1245 = vdwg.mxu0
      %1246 = vrot.lane.b32.xlu0 %v349, 64
      %v1247 = vpop.permute.xlu0 %1246
      %v1250 = vsel %vm384, %v1088, 0
      %1252 = vmatprep.subr.mxu0 0.0
      %1253 = vmatpush1.msra.mxu0 0.0
      %1254 = vmatprep.subr.mxu0 0.0
      %1255 = vmatpush1.msra.mxu0 0.0
      %1256 = vmatprep.subr.mxu0 0.0
      %1257 = vmatpush1.msra.mxu0 0.0
      %1258 = vmatprep.subr.mxu0 0.0
      %1259 = vmatpush1.msra.mxu0 0.0
      %1260 = vmatprep.subr.mxu0 0.0
      %1261 = vmatpush1.msra.mxu0 0.0
      %1262 = vmatprep.subr.mxu0 0.0
      %1263 = vmatpush1.msra.mxu0 0.0
      %1264 = vmatprep.subr.mxu0 0.0
      %1265 = vmatpush1.msra.mxu0 0.0
      %1266 = vmatprep.subr.mxu0 0.0
      %1267 = vmatpush1.msra.mxu0 0.0
      %1268 = vmatprep.subr.mxu0 0.0
      %1269 = vmatpush1.msra.mxu0 0.0
      %1270 = vmatprep.subr.mxu0 0.0
      %1271 = vmatpush1.msra.mxu0 0.0
      %1272 = vmatprep.subr.mxu0 0.0
      %1273 = vmatpush1.msra.mxu0 0.0
      %1274 = vmatprep.subr.mxu0 0.0
      %1275 = vmatpush1.msra.mxu0 0.0
      %1276 = vmatprep.subr.mxu0 0.0
      %1277 = vmatpush1.msra.mxu0 0.0
      %1278 = vmatprep.subr.mxu0 0.0
      %1279 = vmatpush1.msra.mxu0 0.0
      %1280 = vmatprep.subr.mxu0 0.0
      %1281 = vmatpush1.msra.mxu0 0.0
      %1282 = vmatprep.subr.mxu0 0.0
      %1283 = vmatpush1.msra.mxu0 %v1247
      %1284 = vmatprep.subr.mxu0 0.0
      %1285 = vmatpush2.msra.mxu0 0.0
      %1286 = vmatprep.subr.mxu0 0.0
      %1287 = vmatpush2.msra.mxu0 0.0
      %1288 = vmatprep.subr.mxu0 0.0
      %1289 = vmatpush2.msra.mxu0 0.0
      %1290 = vmatprep.subr.mxu0 0.0
      %1291 = vmatpush2.msra.mxu0 0.0
      %1292 = vmatprep.subr.mxu0 0.0
      %1293 = vmatpush2.msra.mxu0 0.0
      %1294 = vmatprep.subr.mxu0 0.0
      %1295 = vmatpush2.msra.mxu0 0.0
      %1296 = vmatprep.subr.mxu0 0.0
      %1297 = vmatpush2.msra.mxu0 0.0
      %1298 = vmatprep.subr.mxu0 0.0
      %1299 = vmatpush2.msra.mxu0 0.0
      %1300 = vmatprep.subr.mxu0 0.0
      %1301 = vmatpush2.msra.mxu0 0.0
      %1302 = vmatprep.subr.mxu0 0.0
      %1303 = vmatpush2.msra.mxu0 0.0
      %1304 = vmatprep.subr.mxu0 0.0
      %1305 = vmatpush2.msra.mxu0 0.0
      %1306 = vmatprep.subr.mxu0 0.0
      %1307 = vmatpush2.msra.mxu0 0.0
      %1308 = vmatprep.subr.mxu0 0.0
      %1309 = vmatpush2.msra.mxu0 0.0
      %1310 = vmatprep.subr.mxu0 0.0
      %1311 = vmatpush2.msra.mxu0 0.0
      %1312 = vmatprep.subr.mxu0 0.0
      %1313 = vmatpush2.msra.mxu0 0.0
      %1314 = vmatprep.subr.mxu0 0.0
      %1315 = vmatpush2.msra.mxu0 0.0
      %1316 = vmatprep.mubr.f32.mxu0 0.0
      %1317 = vmatmul.mubr.f32.gmra.mxu0 %v1250
      %v1318 = vpop.f32.mrf.mxu0
      %v1319 = vadd.f32 0.0, %v1318
      %v1320 = vpop.f32.mrf.mxu0
      %1321 = vdwg.mxu0
      %1322 = vrot.lane.b32.xlu0 %v354, 64
      %v1323 = vpop.permute.xlu0 %1322
      %v1326 = vsel %vm384, %v1089, 0
      %1328 = vmatprep.subr.mxu0 0.0
      %1329 = vmatpush1.msra.mxu0 0.0
      %1330 = vmatprep.subr.mxu0 0.0
      %1331 = vmatpush1.msra.mxu0 0.0
      %1332 = vmatprep.subr.mxu0 0.0
      %1333 = vmatpush1.msra.mxu0 0.0
      %1334 = vmatprep.subr.mxu0 0.0
      %1335 = vmatpush1.msra.mxu0 0.0
      %1336 = vmatprep.subr.mxu0 0.0
      %1337 = vmatpush1.msra.mxu0 0.0
      %1338 = vmatprep.subr.mxu0 0.0
      %1339 = vmatpush1.msra.mxu0 0.0
      %1340 = vmatprep.subr.mxu0 0.0
      %1341 = vmatpush1.msra.mxu0 0.0
      %1342 = vmatprep.subr.mxu0 0.0
      %1343 = vmatpush1.msra.mxu0 0.0
      %1344 = vmatprep.subr.mxu0 0.0
      %1345 = vmatpush1.msra.mxu0 0.0
      %1346 = vmatprep.subr.mxu0 0.0
      %1347 = vmatpush1.msra.mxu0 0.0
      %1348 = vmatprep.subr.mxu0 0.0
      %1349 = vmatpush1.msra.mxu0 0.0
      %1350 = vmatprep.subr.mxu0 0.0
      %1351 = vmatpush1.msra.mxu0 0.0
      %1352 = vmatprep.subr.mxu0 0.0
      %1353 = vmatpush1.msra.mxu0 0.0
      %1354 = vmatprep.subr.mxu0 0.0
      %1355 = vmatpush1.msra.mxu0 0.0
      %1356 = vmatprep.subr.mxu0 0.0
      %1357 = vmatpush1.msra.mxu0 0.0
      %1358 = vmatprep.subr.mxu0 0.0
      %1359 = vmatpush1.msra.mxu0 %v1323
      %1360 = vmatprep.subr.mxu0 0.0
      %1361 = vmatpush2.msra.mxu0 0.0
      %1362 = vmatprep.subr.mxu0 0.0
      %1363 = vmatpush2.msra.mxu0 0.0
      %1364 = vmatprep.subr.mxu0 0.0
      %1365 = vmatpush2.msra.mxu0 0.0
      %1366 = vmatprep.subr.mxu0 0.0
      %1367 = vmatpush2.msra.mxu0 0.0
      %1368 = vmatprep.subr.mxu0 0.0
      %1369 = vmatpush2.msra.mxu0 0.0
      %1370 = vmatprep.subr.mxu0 0.0
      %1371 = vmatpush2.msra.mxu0 0.0
      %1372 = vmatprep.subr.mxu0 0.0
      %1373 = vmatpush2.msra.mxu0 0.0
      %1374 = vmatprep.subr.mxu0 0.0
      %1375 = vmatpush2.msra.mxu0 0.0
      %1376 = vmatprep.subr.mxu0 0.0
      %1377 = vmatpush2.msra.mxu0 0.0
      %1378 = vmatprep.subr.mxu0 0.0
      %1379 = vmatpush2.msra.mxu0 0.0
      %1380 = vmatprep.subr.mxu0 0.0
      %1381 = vmatpush2.msra.mxu0 0.0
      %1382 = vmatprep.subr.mxu0 0.0
      %1383 = vmatpush2.msra.mxu0 0.0
      %1384 = vmatprep.subr.mxu0 0.0
      %1385 = vmatpush2.msra.mxu0 0.0
      %1386 = vmatprep.subr.mxu0 0.0
      %1387 = vmatpush2.msra.mxu0 0.0
      %1388 = vmatprep.subr.mxu0 0.0
      %1389 = vmatpush2.msra.mxu0 0.0
      %1390 = vmatprep.subr.mxu0 0.0
      %1391 = vmatpush2.msra.mxu0 0.0
      %1392 = vmatprep.mubr.f32.mxu0 0.0
      %1393 = vmatmul.mubr.f32.gmra.mxu0 %v1326
      %v1394 = vpop.f32.mrf.mxu0
      %v1395 = vadd.f32 0.0, %v1394
      %v1396 = vpop.f32.mrf.mxu0
      %1397 = vdwg.mxu0
      %1398 = vrot.lane.b32.xlu0 %v359, 64
      %v1399 = vpop.permute.xlu0 %1398
      %v1402 = vsel %vm384, %v1090, 0
      %1404 = vmatprep.subr.mxu0 0.0
      %1405 = vmatpush1.msra.mxu0 0.0
      %1406 = vmatprep.subr.mxu0 0.0
      %1407 = vmatpush1.msra.mxu0 0.0
      %1408 = vmatprep.subr.mxu0 0.0
      %1409 = vmatpush1.msra.mxu0 0.0
      %1410 = vmatprep.subr.mxu0 0.0
      %1411 = vmatpush1.msra.mxu0 0.0
      %1412 = vmatprep.subr.mxu0 0.0
      %1413 = vmatpush1.msra.mxu0 0.0
      %1414 = vmatprep.subr.mxu0 0.0
      %1415 = vmatpush1.msra.mxu0 0.0
      %1416 = vmatprep.subr.mxu0 0.0
      %1417 = vmatpush1.msra.mxu0 0.0
      %1418 = vmatprep.subr.mxu0 0.0
      %1419 = vmatpush1.msra.mxu0 0.0
      %1420 = vmatprep.subr.mxu0 0.0
      %1421 = vmatpush1.msra.mxu0 0.0
      %1422 = vmatprep.subr.mxu0 0.0
      %1423 = vmatpush1.msra.mxu0 0.0
      %1424 = vmatprep.subr.mxu0 0.0
      %1425 = vmatpush1.msra.mxu0 0.0
      %1426 = vmatprep.subr.mxu0 0.0
      %1427 = vmatpush1.msra.mxu0 0.0
      %1428 = vmatprep.subr.mxu0 0.0
      %1429 = vmatpush1.msra.mxu0 0.0
      %1430 = vmatprep.subr.mxu0 0.0
      %1431 = vmatpush1.msra.mxu0 0.0
      %1432 = vmatprep.subr.mxu0 0.0
      %1433 = vmatpush1.msra.mxu0 0.0
      %1434 = vmatprep.subr.mxu0 0.0
      %1435 = vmatpush1.msra.mxu0 %v1399
      %1436 = vmatprep.subr.mxu0 0.0
      %1437 = vmatpush2.msra.mxu0 0.0
      %1438 = vmatprep.subr.mxu0 0.0
      %1439 = vmatpush2.msra.mxu0 0.0
      %1440 = vmatprep.subr.mxu0 0.0
      %1441 = vmatpush2.msra.mxu0 0.0
      %1442 = vmatprep.subr.mxu0 0.0
      %1443 = vmatpush2.msra.mxu0 0.0
      %1444 = vmatprep.subr.mxu0 0.0
      %1445 = vmatpush2.msra.mxu0 0.0
      %1446 = vmatprep.subr.mxu0 0.0
      %1447 = vmatpush2.msra.mxu0 0.0
      %1448 = vmatprep.subr.mxu0 0.0
      %1449 = vmatpush2.msra.mxu0 0.0
      %1450 = vmatprep.subr.mxu0 0.0
      %1451 = vmatpush2.msra.mxu0 0.0
      %1452 = vmatprep.subr.mxu0 0.0
      %1453 = vmatpush2.msra.mxu0 0.0
      %1454 = vmatprep.subr.mxu0 0.0
      %1455 = vmatpush2.msra.mxu0 0.0
      %1456 = vmatprep.subr.mxu0 0.0
      %1457 = vmatpush2.msra.mxu0 0.0
      %1458 = vmatprep.subr.mxu0 0.0
      %1459 = vmatpush2.msra.mxu0 0.0
      %1460 = vmatprep.subr.mxu0 0.0
      %1461 = vmatpush2.msra.mxu0 0.0
      %1462 = vmatprep.subr.mxu0 0.0
      %1463 = vmatpush2.msra.mxu0 0.0
      %1464 = vmatprep.subr.mxu0 0.0
      %1465 = vmatpush2.msra.mxu0 0.0
      %1466 = vmatprep.subr.mxu0 0.0
      %1467 = vmatpush2.msra.mxu0 0.0
      %1468 = vmatprep.mubr.f32.mxu0 0.0
      %1469 = vmatmul.mubr.f32.gmra.mxu0 %v1402
      %v1470 = vpop.f32.mrf.mxu0
      %v1471 = vadd.f32 0.0, %v1470
      %v1472 = vpop.f32.mrf.mxu0
      %1473 = vdwg.mxu0
      %1474 = vrot.lane.b32.xlu0 %v364, 64
      %v1475 = vpop.permute.xlu0 %1474
      %v1478 = vsel %vm384, %v1091, 0
      %1480 = vmatprep.subr.mxu0 0.0
      %1481 = vmatpush1.msra.mxu0 0.0
      %1482 = vmatprep.subr.mxu0 0.0
      %1483 = vmatpush1.msra.mxu0 0.0
      %1484 = vmatprep.subr.mxu0 0.0
      %1485 = vmatpush1.msra.mxu0 0.0
      %1486 = vmatprep.subr.mxu0 0.0
      %1487 = vmatpush1.msra.mxu0 0.0
      %1488 = vmatprep.subr.mxu0 0.0
      %1489 = vmatpush1.msra.mxu0 0.0
      %1490 = vmatprep.subr.mxu0 0.0
      %1491 = vmatpush1.msra.mxu0 0.0
      %1492 = vmatprep.subr.mxu0 0.0
      %1493 = vmatpush1.msra.mxu0 0.0
      %1494 = vmatprep.subr.mxu0 0.0
      %1495 = vmatpush1.msra.mxu0 0.0
      %1496 = vmatprep.subr.mxu0 0.0
      %1497 = vmatpush1.msra.mxu0 0.0
      %1498 = vmatprep.subr.mxu0 0.0
      %1499 = vmatpush1.msra.mxu0 0.0
      %1500 = vmatprep.subr.mxu0 0.0
      %1501 = vmatpush1.msra.mxu0 0.0
      %1502 = vmatprep.subr.mxu0 0.0
      %1503 = vmatpush1.msra.mxu0 0.0
      %1504 = vmatprep.subr.mxu0 0.0
      %1505 = vmatpush1.msra.mxu0 0.0
      %1506 = vmatprep.subr.mxu0 0.0
      %1507 = vmatpush1.msra.mxu0 0.0
      %1508 = vmatprep.subr.mxu0 0.0
      %1509 = vmatpush1.msra.mxu0 0.0
      %1510 = vmatprep.subr.mxu0 0.0
      %1511 = vmatpush1.msra.mxu0 %v1475
      %1512 = vmatprep.subr.mxu0 0.0
      %1513 = vmatpush2.msra.mxu0 0.0
      %1514 = vmatprep.subr.mxu0 0.0
      %1515 = vmatpush2.msra.mxu0 0.0
      %1516 = vmatprep.subr.mxu0 0.0
      %1517 = vmatpush2.msra.mxu0 0.0
      %1518 = vmatprep.subr.mxu0 0.0
      %1519 = vmatpush2.msra.mxu0 0.0
      %1520 = vmatprep.subr.mxu0 0.0
      %1521 = vmatpush2.msra.mxu0 0.0
      %1522 = vmatprep.subr.mxu0 0.0
      %1523 = vmatpush2.msra.mxu0 0.0
      %1524 = vmatprep.subr.mxu0 0.0
      %1525 = vmatpush2.msra.mxu0 0.0
      %1526 = vmatprep.subr.mxu0 0.0
      %1527 = vmatpush2.msra.mxu0 0.0
      %1528 = vmatprep.subr.mxu0 0.0
      %1529 = vmatpush2.msra.mxu0 0.0
      %1530 = vmatprep.subr.mxu0 0.0
      %1531 = vmatpush2.msra.mxu0 0.0
      %1532 = vmatprep.subr.mxu0 0.0
      %1533 = vmatpush2.msra.mxu0 0.0
      %1534 = vmatprep.subr.mxu0 0.0
      %1535 = vmatpush2.msra.mxu0 0.0
      %1536 = vmatprep.subr.mxu0 0.0
      %1537 = vmatpush2.msra.mxu0 0.0
      %1538 = vmatprep.subr.mxu0 0.0
      %1539 = vmatpush2.msra.mxu0 0.0
      %1540 = vmatprep.subr.mxu0 0.0
      %1541 = vmatpush2.msra.mxu0 0.0
      %1542 = vmatprep.subr.mxu0 0.0
      %1543 = vmatpush2.msra.mxu0 0.0
      %1544 = vmatprep.mubr.f32.mxu0 0.0
      %1545 = vmatmul.mubr.f32.gmra.mxu0 %v1478
      %v1546 = vpop.f32.mrf.mxu0
      %v1547 = vadd.f32 0.0, %v1546
      %v1548 = vpop.f32.mrf.mxu0
      %1549 = vdwg.mxu0
      %1550 = vrot.lane.b32.xlu0 %v369, 64
      %v1551 = vpop.permute.xlu0 %1550
      %v1554 = vsel %vm384, %v1092, 0
      %1556 = vmatprep.subr.mxu0 0.0
      %1557 = vmatpush1.msra.mxu0 0.0
      %1558 = vmatprep.subr.mxu0 0.0
      %1559 = vmatpush1.msra.mxu0 0.0
      %1560 = vmatprep.subr.mxu0 0.0
      %1561 = vmatpush1.msra.mxu0 0.0
      %1562 = vmatprep.subr.mxu0 0.0
      %1563 = vmatpush1.msra.mxu0 0.0
      %1564 = vmatprep.subr.mxu0 0.0
      %1565 = vmatpush1.msra.mxu0 0.0
      %1566 = vmatprep.subr.mxu0 0.0
      %1567 = vmatpush1.msra.mxu0 0.0
      %1568 = vmatprep.subr.mxu0 0.0
      %1569 = vmatpush1.msra.mxu0 0.0
      %1570 = vmatprep.subr.mxu0 0.0
      %1571 = vmatpush1.msra.mxu0 0.0
      %1572 = vmatprep.subr.mxu0 0.0
      %1573 = vmatpush1.msra.mxu0 0.0
      %1574 = vmatprep.subr.mxu0 0.0
      %1575 = vmatpush1.msra.mxu0 0.0
      %1576 = vmatprep.subr.mxu0 0.0
      %1577 = vmatpush1.msra.mxu0 0.0
      %1578 = vmatprep.subr.mxu0 0.0
      %1579 = vmatpush1.msra.mxu0 0.0
      %1580 = vmatprep.subr.mxu0 0.0
      %1581 = vmatpush1.msra.mxu0 0.0
      %1582 = vmatprep.subr.mxu0 0.0
      %1583 = vmatpush1.msra.mxu0 0.0
      %1584 = vmatprep.subr.mxu0 0.0
      %1585 = vmatpush1.msra.mxu0 0.0
      %1586 = vmatprep.subr.mxu0 0.0
      %1587 = vmatpush1.msra.mxu0 %v1551
      %1588 = vmatprep.subr.mxu0 0.0
      %1589 = vmatpush2.msra.mxu0 0.0
      %1590 = vmatprep.subr.mxu0 0.0
      %1591 = vmatpush2.msra.mxu0 0.0
      %1592 = vmatprep.subr.mxu0 0.0
      %1593 = vmatpush2.msra.mxu0 0.0
      %1594 = vmatprep.subr.mxu0 0.0
      %1595 = vmatpush2.msra.mxu0 0.0
      %1596 = vmatprep.subr.mxu0 0.0
      %1597 = vmatpush2.msra.mxu0 0.0
      %1598 = vmatprep.subr.mxu0 0.0
      %1599 = vmatpush2.msra.mxu0 0.0
      %1600 = vmatprep.subr.mxu0 0.0
      %1601 = vmatpush2.msra.mxu0 0.0
      %1602 = vmatprep.subr.mxu0 0.0
      %1603 = vmatpush2.msra.mxu0 0.0
      %1604 = vmatprep.subr.mxu0 0.0
      %1605 = vmatpush2.msra.mxu0 0.0
      %1606 = vmatprep.subr.mxu0 0.0
      %1607 = vmatpush2.msra.mxu0 0.0
      %1608 = vmatprep.subr.mxu0 0.0
      %1609 = vmatpush2.msra.mxu0 0.0
      %1610 = vmatprep.subr.mxu0 0.0
      %1611 = vmatpush2.msra.mxu0 0.0
      %1612 = vmatprep.subr.mxu0 0.0
      %1613 = vmatpush2.msra.mxu0 0.0
      %1614 = vmatprep.subr.mxu0 0.0
      %1615 = vmatpush2.msra.mxu0 0.0
      %1616 = vmatprep.subr.mxu0 0.0
      %1617 = vmatpush2.msra.mxu0 0.0
      %1618 = vmatprep.subr.mxu0 0.0
      %1619 = vmatpush2.msra.mxu0 0.0
      %1620 = vmatprep.mubr.f32.mxu0 0.0
      %1621 = vmatmul.mubr.f32.gmra.mxu0 %v1554
      %v1622 = vpop.f32.mrf.mxu0
      %v1623 = vadd.f32 0.0, %v1622
      %v1624 = vpop.f32.mrf.mxu0
      %1625 = vdwg.mxu0
      %1626 = vrot.lane.b32.xlu0 %v374, 64
      %v1627 = vpop.permute.xlu0 %1626
      %v1630 = vsel %vm384, %v1093, 0
      %1632 = vmatprep.subr.mxu0 0.0
      %1633 = vmatpush1.msra.mxu0 0.0
      %1634 = vmatprep.subr.mxu0 0.0
      %1635 = vmatpush1.msra.mxu0 0.0
      %1636 = vmatprep.subr.mxu0 0.0
      %1637 = vmatpush1.msra.mxu0 0.0
      %1638 = vmatprep.subr.mxu0 0.0
      %1639 = vmatpush1.msra.mxu0 0.0
      %1640 = vmatprep.subr.mxu0 0.0
      %1641 = vmatpush1.msra.mxu0 0.0
      %1642 = vmatprep.subr.mxu0 0.0
      %1643 = vmatpush1.msra.mxu0 0.0
      %1644 = vmatprep.subr.mxu0 0.0
      %1645 = vmatpush1.msra.mxu0 0.0
      %1646 = vmatprep.subr.mxu0 0.0
      %1647 = vmatpush1.msra.mxu0 0.0
      %1648 = vmatprep.subr.mxu0 0.0
      %1649 = vmatpush1.msra.mxu0 0.0
      %1650 = vmatprep.subr.mxu0 0.0
      %1651 = vmatpush1.msra.mxu0 0.0
      %1652 = vmatprep.subr.mxu0 0.0
      %1653 = vmatpush1.msra.mxu0 0.0
      %1654 = vmatprep.subr.mxu0 0.0
      %1655 = vmatpush1.msra.mxu0 0.0
      %1656 = vmatprep.subr.mxu0 0.0
      %1657 = vmatpush1.msra.mxu0 0.0
      %1658 = vmatprep.subr.mxu0 0.0
      %1659 = vmatpush1.msra.mxu0 0.0
      %1660 = vmatprep.subr.mxu0 0.0
      %1661 = vmatpush1.msra.mxu0 0.0
      %1662 = vmatprep.subr.mxu0 0.0
      %1663 = vmatpush1.msra.mxu0 %v1627
      %1664 = vmatprep.subr.mxu0 0.0
      %1665 = vmatpush2.msra.mxu0 0.0
      %1666 = vmatprep.subr.mxu0 0.0
      %1667 = vmatpush2.msra.mxu0 0.0
      %1668 = vmatprep.subr.mxu0 0.0
      %1669 = vmatpush2.msra.mxu0 0.0
      %1670 = vmatprep.subr.mxu0 0.0
      %1671 = vmatpush2.msra.mxu0 0.0
      %1672 = vmatprep.subr.mxu0 0.0
      %1673 = vmatpush2.msra.mxu0 0.0
      %1674 = vmatprep.subr.mxu0 0.0
      %1675 = vmatpush2.msra.mxu0 0.0
      %1676 = vmatprep.subr.mxu0 0.0
      %1677 = vmatpush2.msra.mxu0 0.0
      %1678 = vmatprep.subr.mxu0 0.0
      %1679 = vmatpush2.msra.mxu0 0.0
      %1680 = vmatprep.subr.mxu0 0.0
      %1681 = vmatpush2.msra.mxu0 0.0
      %1682 = vmatprep.subr.mxu0 0.0
      %1683 = vmatpush2.msra.mxu0 0.0
      %1684 = vmatprep.subr.mxu0 0.0
      %1685 = vmatpush2.msra.mxu0 0.0
      %1686 = vmatprep.subr.mxu0 0.0
      %1687 = vmatpush2.msra.mxu0 0.0
      %1688 = vmatprep.subr.mxu0 0.0
      %1689 = vmatpush2.msra.mxu0 0.0
      %1690 = vmatprep.subr.mxu0 0.0
      %1691 = vmatpush2.msra.mxu0 0.0
      %1692 = vmatprep.subr.mxu0 0.0
      %1693 = vmatpush2.msra.mxu0 0.0
      %1694 = vmatprep.subr.mxu0 0.0
      %1695 = vmatpush2.msra.mxu0 0.0
      %1696 = vmatprep.mubr.f32.mxu0 0.0
      %1697 = vmatmul.mubr.f32.gmra.mxu0 %v1630
      %v1698 = vpop.f32.mrf.mxu0
      %v1699 = vadd.f32 0.0, %v1698
      %v1700 = vpop.f32.mrf.mxu0
      %1701 = vdwg.mxu0
      %1702 = vrot.lane.b32.xlu0 %v339, 120
      %v1703 = vpop.permute.xlu0 %1702
      %1704 = vrot.lane.b32.xlu0 %v339, 88
      %v1705 = vpop.permute.xlu0 %1704
      %v1706 = vsel %vm384, %v1703, 0
      %v1708 = vsel %vm384, %v1705, 0
      %1710 = vmatprep.subr.mxu0 0.0
      %1711 = vmatpush1.xpose.msra.mxu0 0.0
      %1712 = vmatprep.subr.mxu0 0.0
      %1713 = vmatpush1.xpose.msra.mxu0 0.0
      %1714 = vmatprep.subr.mxu0 0.0
      %1715 = vmatpush1.xpose.msra.mxu0 0.0
      %1716 = vmatprep.subr.mxu0 0.0
      %1717 = vmatpush1.xpose.msra.mxu0 0.0
      %1718 = vmatprep.subr.mxu0 0.0
      %1719 = vmatpush1.xpose.msra.mxu0 0.0
      %1720 = vmatprep.subr.mxu0 0.0
      %1721 = vmatpush1.xpose.msra.mxu0 0.0
      %1722 = vmatprep.subr.mxu0 0.0
      %1723 = vmatpush1.xpose.msra.mxu0 0.0
      %1724 = vmatprep.subr.mxu0 0.0
      %1725 = vmatpush1.xpose.msra.mxu0 0.0
      %1726 = vmatprep.subr.mxu0 0.0
      %1727 = vmatpush1.xpose.msra.mxu0 0.0
      %1728 = vmatprep.subr.mxu0 0.0
      %1729 = vmatpush1.xpose.msra.mxu0 0.0
      %1730 = vmatprep.subr.mxu0 0.0
      %1731 = vmatpush1.xpose.msra.mxu0 0.0
      %1732 = vmatprep.subr.mxu0 0.0
      %1733 = vmatpush1.xpose.msra.mxu0 0.0
      %1734 = vmatprep.subr.mxu0 0.0
      %1735 = vmatpush1.xpose.msra.mxu0 0.0
      %1736 = vmatprep.subr.mxu0 0.0
      %1737 = vmatpush1.xpose.msra.mxu0 0.0
      %1738 = vmatprep.subr.mxu0 0.0
      %1739 = vmatpush1.xpose.msra.mxu0 0.0
      %1740 = vmatprep.subr.mxu0 0.0
      %1741 = vmatpush1.xpose.msra.mxu0 %v1708
      %1742 = vmatprep.subr.mxu0 0.0
      %1743 = vmatpush2.xpose.msra.mxu0 0.0
      %1744 = vmatprep.subr.mxu0 0.0
      %1745 = vmatpush2.xpose.msra.mxu0 0.0
      %1746 = vmatprep.subr.mxu0 0.0
      %1747 = vmatpush2.xpose.msra.mxu0 0.0
      %1748 = vmatprep.subr.mxu0 0.0
      %1749 = vmatpush2.xpose.msra.mxu0 0.0
      %1750 = vmatprep.subr.mxu0 0.0
      %1751 = vmatpush2.xpose.msra.mxu0 0.0
      %1752 = vmatprep.subr.mxu0 0.0
      %1753 = vmatpush2.xpose.msra.mxu0 0.0
      %1754 = vmatprep.subr.mxu0 0.0
      %1755 = vmatpush2.xpose.msra.mxu0 0.0
      %1756 = vmatprep.subr.mxu0 0.0
      %1757 = vmatpush2.xpose.msra.mxu0 0.0
      %1758 = vmatprep.subr.mxu0 0.0
      %1759 = vmatpush2.xpose.msra.mxu0 0.0
      %1760 = vmatprep.subr.mxu0 0.0
      %1761 = vmatpush2.xpose.msra.mxu0 0.0
      %1762 = vmatprep.subr.mxu0 0.0
      %1763 = vmatpush2.xpose.msra.mxu0 0.0
      %1764 = vmatprep.subr.mxu0 0.0
      %1765 = vmatpush2.xpose.msra.mxu0 0.0
      %1766 = vmatprep.subr.mxu0 0.0
      %1767 = vmatpush2.xpose.msra.mxu0 0.0
      %1768 = vmatprep.subr.mxu0 0.0
      %1769 = vmatpush2.xpose.msra.mxu0 0.0
      %1770 = vmatprep.subr.mxu0 0.0
      %1771 = vmatpush2.xpose.msra.mxu0 0.0
      %1772 = vmatprep.subr.mxu0 0.0
      %1773 = vmatpush2.xpose.msra.mxu0 0.0
      %1774 = vmatprep.mubr.f32.mxu0 0.0
      %1775 = vmatmul.mubr.f32.gmra.mxu0 %v1706
      %v1776 = vpop.f32.mrf.mxu0
      %v1777 = vadd.f32 0.0, %v1776
      %v1778 = vpop.f32.mrf.mxu0
      %1779 = vdwg.mxu0
      %1780 = vrot.lane.b32.xlu0 %v344, 120
      %v1781 = vpop.permute.xlu0 %1780
      %1782 = vrot.lane.b32.xlu0 %v344, 88
      %v1783 = vpop.permute.xlu0 %1782
      %v1784 = vsel %vm384, %v1781, 0
      %v1786 = vsel %vm384, %v1783, 0
      %1788 = vmatprep.subr.mxu0 0.0
      %1789 = vmatpush1.xpose.msra.mxu0 0.0
      %1790 = vmatprep.subr.mxu0 0.0
      %1791 = vmatpush1.xpose.msra.mxu0 0.0
      %1792 = vmatprep.subr.mxu0 0.0
      %1793 = vmatpush1.xpose.msra.mxu0 0.0
      %1794 = vmatprep.subr.mxu0 0.0
      %1795 = vmatpush1.xpose.msra.mxu0 0.0
      %1796 = vmatprep.subr.mxu0 0.0
      %1797 = vmatpush1.xpose.msra.mxu0 0.0
      %1798 = vmatprep.subr.mxu0 0.0
      %1799 = vmatpush1.xpose.msra.mxu0 0.0
      %1800 = vmatprep.subr.mxu0 0.0
      %1801 = vmatpush1.xpose.msra.mxu0 0.0
      %1802 = vmatprep.subr.mxu0 0.0
      %1803 = vmatpush1.xpose.msra.mxu0 0.0
      %1804 = vmatprep.subr.mxu0 0.0
      %1805 = vmatpush1.xpose.msra.mxu0 0.0
      %1806 = vmatprep.subr.mxu0 0.0
      %1807 = vmatpush1.xpose.msra.mxu0 0.0
      %1808 = vmatprep.subr.mxu0 0.0
      %1809 = vmatpush1.xpose.msra.mxu0 0.0
      %1810 = vmatprep.subr.mxu0 0.0
      %1811 = vmatpush1.xpose.msra.mxu0 0.0
      %1812 = vmatprep.subr.mxu0 0.0
      %1813 = vmatpush1.xpose.msra.mxu0 0.0
      %1814 = vmatprep.subr.mxu0 0.0
      %1815 = vmatpush1.xpose.msra.mxu0 0.0
      %1816 = vmatprep.subr.mxu0 0.0
      %1817 = vmatpush1.xpose.msra.mxu0 0.0
      %1818 = vmatprep.subr.mxu0 0.0
      %1819 = vmatpush1.xpose.msra.mxu0 %v1786
      %1820 = vmatprep.subr.mxu0 0.0
      %1821 = vmatpush2.xpose.msra.mxu0 0.0
      %1822 = vmatprep.subr.mxu0 0.0
      %1823 = vmatpush2.xpose.msra.mxu0 0.0
      %1824 = vmatprep.subr.mxu0 0.0
      %1825 = vmatpush2.xpose.msra.mxu0 0.0
      %1826 = vmatprep.subr.mxu0 0.0
      %1827 = vmatpush2.xpose.msra.mxu0 0.0
      %1828 = vmatprep.subr.mxu0 0.0
      %1829 = vmatpush2.xpose.msra.mxu0 0.0
      %1830 = vmatprep.subr.mxu0 0.0
      %1831 = vmatpush2.xpose.msra.mxu0 0.0
      %1832 = vmatprep.subr.mxu0 0.0
      %1833 = vmatpush2.xpose.msra.mxu0 0.0
      %1834 = vmatprep.subr.mxu0 0.0
      %1835 = vmatpush2.xpose.msra.mxu0 0.0
      %1836 = vmatprep.subr.mxu0 0.0
      %1837 = vmatpush2.xpose.msra.mxu0 0.0
      %1838 = vmatprep.subr.mxu0 0.0
      %1839 = vmatpush2.xpose.msra.mxu0 0.0
      %1840 = vmatprep.subr.mxu0 0.0
      %1841 = vmatpush2.xpose.msra.mxu0 0.0
      %1842 = vmatprep.subr.mxu0 0.0
      %1843 = vmatpush2.xpose.msra.mxu0 0.0
      %1844 = vmatprep.subr.mxu0 0.0
      %1845 = vmatpush2.xpose.msra.mxu0 0.0
      %1846 = vmatprep.subr.mxu0 0.0
      %1847 = vmatpush2.xpose.msra.mxu0 0.0
      %1848 = vmatprep.subr.mxu0 0.0
      %1849 = vmatpush2.xpose.msra.mxu0 0.0
      %1850 = vmatprep.subr.mxu0 0.0
      %1851 = vmatpush2.xpose.msra.mxu0 0.0
      %1852 = vmatprep.mubr.f32.mxu0 0.0
      %1853 = vmatmul.mubr.f32.gmra.mxu0 %v1784
      %v1854 = vpop.f32.mrf.mxu0
      %v1855 = vadd.f32 0.0, %v1854
      %v1856 = vpop.f32.mrf.mxu0
      %1857 = vdwg.mxu0
      %1858 = vrot.lane.b32.xlu0 %v349, 120
      %v1859 = vpop.permute.xlu0 %1858
      %1860 = vrot.lane.b32.xlu0 %v349, 88
      %v1861 = vpop.permute.xlu0 %1860
      %v1862 = vsel %vm384, %v1859, 0
      %v1864 = vsel %vm384, %v1861, 0
      %1866 = vmatprep.subr.mxu0 0.0
      %1867 = vmatpush1.xpose.msra.mxu0 0.0
      %1868 = vmatprep.subr.mxu0 0.0
      %1869 = vmatpush1.xpose.msra.mxu0 0.0
      %1870 = vmatprep.subr.mxu0 0.0
      %1871 = vmatpush1.xpose.msra.mxu0 0.0
      %1872 = vmatprep.subr.mxu0 0.0
      %1873 = vmatpush1.xpose.msra.mxu0 0.0
      %1874 = vmatprep.subr.mxu0 0.0
      %1875 = vmatpush1.xpose.msra.mxu0 0.0
      %1876 = vmatprep.subr.mxu0 0.0
      %1877 = vmatpush1.xpose.msra.mxu0 0.0
      %1878 = vmatprep.subr.mxu0 0.0
      %1879 = vmatpush1.xpose.msra.mxu0 0.0
      %1880 = vmatprep.subr.mxu0 0.0
      %1881 = vmatpush1.xpose.msra.mxu0 0.0
      %1882 = vmatprep.subr.mxu0 0.0
      %1883 = vmatpush1.xpose.msra.mxu0 0.0
      %1884 = vmatprep.subr.mxu0 0.0
      %1885 = vmatpush1.xpose.msra.mxu0 0.0
      %1886 = vmatprep.subr.mxu0 0.0
      %1887 = vmatpush1.xpose.msra.mxu0 0.0
      %1888 = vmatprep.subr.mxu0 0.0
      %1889 = vmatpush1.xpose.msra.mxu0 0.0
      %1890 = vmatprep.subr.mxu0 0.0
      %1891 = vmatpush1.xpose.msra.mxu0 0.0
      %1892 = vmatprep.subr.mxu0 0.0
      %1893 = vmatpush1.xpose.msra.mxu0 0.0
      %1894 = vmatprep.subr.mxu0 0.0
      %1895 = vmatpush1.xpose.msra.mxu0 0.0
      %1896 = vmatprep.subr.mxu0 0.0
      %1897 = vmatpush1.xpose.msra.mxu0 %v1864
      %1898 = vmatprep.subr.mxu0 0.0
      %1899 = vmatpush2.xpose.msra.mxu0 0.0
      %1900 = vmatprep.subr.mxu0 0.0
      %1901 = vmatpush2.xpose.msra.mxu0 0.0
      %1902 = vmatprep.subr.mxu0 0.0
      %1903 = vmatpush2.xpose.msra.mxu0 0.0
      %1904 = vmatprep.subr.mxu0 0.0
      %1905 = vmatpush2.xpose.msra.mxu0 0.0
      %1906 = vmatprep.subr.mxu0 0.0
      %1907 = vmatpush2.xpose.msra.mxu0 0.0
      %1908 = vmatprep.subr.mxu0 0.0
      %1909 = vmatpush2.xpose.msra.mxu0 0.0
      %1910 = vmatprep.subr.mxu0 0.0
      %1911 = vmatpush2.xpose.msra.mxu0 0.0
      %1912 = vmatprep.subr.mxu0 0.0
      %1913 = vmatpush2.xpose.msra.mxu0 0.0
      %1914 = vmatprep.subr.mxu0 0.0
      %1915 = vmatpush2.xpose.msra.mxu0 0.0
      %1916 = vmatprep.subr.mxu0 0.0
      %1917 = vmatpush2.xpose.msra.mxu0 0.0
      %1918 = vmatprep.subr.mxu0 0.0
      %1919 = vmatpush2.xpose.msra.mxu0 0.0
      %1920 = vmatprep.subr.mxu0 0.0
      %1921 = vmatpush2.xpose.msra.mxu0 0.0
      %1922 = vmatprep.subr.mxu0 0.0
      %1923 = vmatpush2.xpose.msra.mxu0 0.0
      %1924 = vmatprep.subr.mxu0 0.0
      %1925 = vmatpush2.xpose.msra.mxu0 0.0
      %1926 = vmatprep.subr.mxu0 0.0
      %1927 = vmatpush2.xpose.msra.mxu0 0.0
      %1928 = vmatprep.subr.mxu0 0.0
      %1929 = vmatpush2.xpose.msra.mxu0 0.0
      %1930 = vmatprep.mubr.f32.mxu0 0.0
      %1931 = vmatmul.mubr.f32.gmra.mxu0 %v1862
      %v1932 = vpop.f32.mrf.mxu0
      %v1933 = vadd.f32 0.0, %v1932
      %v1934 = vpop.f32.mrf.mxu0
      %1935 = vdwg.mxu0
      %1936 = vrot.lane.b32.xlu0 %v354, 120
      %v1937 = vpop.permute.xlu0 %1936
      %1938 = vrot.lane.b32.xlu0 %v354, 88
      %v1939 = vpop.permute.xlu0 %1938
      %v1940 = vsel %vm384, %v1937, 0
      %v1942 = vsel %vm384, %v1939, 0
      %1944 = vmatprep.subr.mxu0 0.0
      %1945 = vmatpush1.xpose.msra.mxu0 0.0
      %1946 = vmatprep.subr.mxu0 0.0
      %1947 = vmatpush1.xpose.msra.mxu0 0.0
      %1948 = vmatprep.subr.mxu0 0.0
      %1949 = vmatpush1.xpose.msra.mxu0 0.0
      %1950 = vmatprep.subr.mxu0 0.0
      %1951 = vmatpush1.xpose.msra.mxu0 0.0
      %1952 = vmatprep.subr.mxu0 0.0
      %1953 = vmatpush1.xpose.msra.mxu0 0.0
      %1954 = vmatprep.subr.mxu0 0.0
      %1955 = vmatpush1.xpose.msra.mxu0 0.0
      %1956 = vmatprep.subr.mxu0 0.0
      %1957 = vmatpush1.xpose.msra.mxu0 0.0
      %1958 = vmatprep.subr.mxu0 0.0
      %1959 = vmatpush1.xpose.msra.mxu0 0.0
      %1960 = vmatprep.subr.mxu0 0.0
      %1961 = vmatpush1.xpose.msra.mxu0 0.0
      %1962 = vmatprep.subr.mxu0 0.0
      %1963 = vmatpush1.xpose.msra.mxu0 0.0
      %1964 = vmatprep.subr.mxu0 0.0
      %1965 = vmatpush1.xpose.msra.mxu0 0.0
      %1966 = vmatprep.subr.mxu0 0.0
      %1967 = vmatpush1.xpose.msra.mxu0 0.0
      %1968 = vmatprep.subr.mxu0 0.0
      %1969 = vmatpush1.xpose.msra.mxu0 0.0
      %1970 = vmatprep.subr.mxu0 0.0
      %1971 = vmatpush1.xpose.msra.mxu0 0.0
      %1972 = vmatprep.subr.mxu0 0.0
      %1973 = vmatpush1.xpose.msra.mxu0 0.0
      %1974 = vmatprep.subr.mxu0 0.0
      %1975 = vmatpush1.xpose.msra.mxu0 %v1942
      %1976 = vmatprep.subr.mxu0 0.0
      %1977 = vmatpush2.xpose.msra.mxu0 0.0
      %1978 = vmatprep.subr.mxu0 0.0
      %1979 = vmatpush2.xpose.msra.mxu0 0.0
      %1980 = vmatprep.subr.mxu0 0.0
      %1981 = vmatpush2.xpose.msra.mxu0 0.0
      %1982 = vmatprep.subr.mxu0 0.0
      %1983 = vmatpush2.xpose.msra.mxu0 0.0
      %1984 = vmatprep.subr.mxu0 0.0
      %1985 = vmatpush2.xpose.msra.mxu0 0.0
      %1986 = vmatprep.subr.mxu0 0.0
      %1987 = vmatpush2.xpose.msra.mxu0 0.0
      %1988 = vmatprep.subr.mxu0 0.0
      %1989 = vmatpush2.xpose.msra.mxu0 0.0
      %1990 = vmatprep.subr.mxu0 0.0
      %1991 = vmatpush2.xpose.msra.mxu0 0.0
      %1992 = vmatprep.subr.mxu0 0.0
      %1993 = vmatpush2.xpose.msra.mxu0 0.0
      %1994 = vmatprep.subr.mxu0 0.0
      %1995 = vmatpush2.xpose.msra.mxu0 0.0
      %1996 = vmatprep.subr.mxu0 0.0
      %1997 = vmatpush2.xpose.msra.mxu0 0.0
      %1998 = vmatprep.subr.mxu0 0.0
      %1999 = vmatpush2.xpose.msra.mxu0 0.0
      %2000 = vmatprep.subr.mxu0 0.0
      %2001 = vmatpush2.xpose.msra.mxu0 0.0
      %2002 = vmatprep.subr.mxu0 0.0
      %2003 = vmatpush2.xpose.msra.mxu0 0.0
      %2004 = vmatprep.subr.mxu0 0.0
      %2005 = vmatpush2.xpose.msra.mxu0 0.0
      %2006 = vmatprep.subr.mxu0 0.0
      %2007 = vmatpush2.xpose.msra.mxu0 0.0
      %2008 = vmatprep.mubr.f32.mxu0 0.0
      %2009 = vmatmul.mubr.f32.gmra.mxu0 %v1940
      %v2010 = vpop.f32.mrf.mxu0
      %v2011 = vadd.f32 0.0, %v2010
      %v2012 = vpop.f32.mrf.mxu0
      %2013 = vdwg.mxu0
      %2014 = vrot.lane.b32.xlu0 %v359, 120
      %v2015 = vpop.permute.xlu0 %2014
      %2016 = vrot.lane.b32.xlu0 %v359, 88
      %v2017 = vpop.permute.xlu0 %2016
      %v2018 = vsel %vm384, %v2015, 0
      %v2020 = vsel %vm384, %v2017, 0
      %2022 = vmatprep.subr.mxu0 0.0
      %2023 = vmatpush1.xpose.msra.mxu0 0.0
      %2024 = vmatprep.subr.mxu0 0.0
      %2025 = vmatpush1.xpose.msra.mxu0 0.0
      %2026 = vmatprep.subr.mxu0 0.0
      %2027 = vmatpush1.xpose.msra.mxu0 0.0
      %2028 = vmatprep.subr.mxu0 0.0
      %2029 = vmatpush1.xpose.msra.mxu0 0.0
      %2030 = vmatprep.subr.mxu0 0.0
      %2031 = vmatpush1.xpose.msra.mxu0 0.0
      %2032 = vmatprep.subr.mxu0 0.0
      %2033 = vmatpush1.xpose.msra.mxu0 0.0
      %2034 = vmatprep.subr.mxu0 0.0
      %2035 = vmatpush1.xpose.msra.mxu0 0.0
      %2036 = vmatprep.subr.mxu0 0.0
      %2037 = vmatpush1.xpose.msra.mxu0 0.0
      %2038 = vmatprep.subr.mxu0 0.0
      %2039 = vmatpush1.xpose.msra.mxu0 0.0
      %2040 = vmatprep.subr.mxu0 0.0
      %2041 = vmatpush1.xpose.msra.mxu0 0.0
      %2042 = vmatprep.subr.mxu0 0.0
      %2043 = vmatpush1.xpose.msra.mxu0 0.0
      %2044 = vmatprep.subr.mxu0 0.0
      %2045 = vmatpush1.xpose.msra.mxu0 0.0
      %2046 = vmatprep.subr.mxu0 0.0
      %2047 = vmatpush1.xpose.msra.mxu0 0.0
      %2048 = vmatprep.subr.mxu0 0.0
      %2049 = vmatpush1.xpose.msra.mxu0 0.0
      %2050 = vmatprep.subr.mxu0 0.0
      %2051 = vmatpush1.xpose.msra.mxu0 0.0
      %2052 = vmatprep.subr.mxu0 0.0
      %2053 = vmatpush1.xpose.msra.mxu0 %v2020
      %2054 = vmatprep.subr.mxu0 0.0
      %2055 = vmatpush2.xpose.msra.mxu0 0.0
      %2056 = vmatprep.subr.mxu0 0.0
      %2057 = vmatpush2.xpose.msra.mxu0 0.0
      %2058 = vmatprep.subr.mxu0 0.0
      %2059 = vmatpush2.xpose.msra.mxu0 0.0
      %2060 = vmatprep.subr.mxu0 0.0
      %2061 = vmatpush2.xpose.msra.mxu0 0.0
      %2062 = vmatprep.subr.mxu0 0.0
      %2063 = vmatpush2.xpose.msra.mxu0 0.0
      %2064 = vmatprep.subr.mxu0 0.0
      %2065 = vmatpush2.xpose.msra.mxu0 0.0
      %2066 = vmatprep.subr.mxu0 0.0
      %2067 = vmatpush2.xpose.msra.mxu0 0.0
      %2068 = vmatprep.subr.mxu0 0.0
      %2069 = vmatpush2.xpose.msra.mxu0 0.0
      %2070 = vmatprep.subr.mxu0 0.0
      %2071 = vmatpush2.xpose.msra.mxu0 0.0
      %2072 = vmatprep.subr.mxu0 0.0
      %2073 = vmatpush2.xpose.msra.mxu0 0.0
      %2074 = vmatprep.subr.mxu0 0.0
      %2075 = vmatpush2.xpose.msra.mxu0 0.0
      %2076 = vmatprep.subr.mxu0 0.0
      %2077 = vmatpush2.xpose.msra.mxu0 0.0
      %2078 = vmatprep.subr.mxu0 0.0
      %2079 = vmatpush2.xpose.msra.mxu0 0.0
      %2080 = vmatprep.subr.mxu0 0.0
      %2081 = vmatpush2.xpose.msra.mxu0 0.0
      %2082 = vmatprep.subr.mxu0 0.0
      %2083 = vmatpush2.xpose.msra.mxu0 0.0
      %2084 = vmatprep.subr.mxu0 0.0
      %2085 = vmatpush2.xpose.msra.mxu0 0.0
      %2086 = vmatprep.mubr.f32.mxu0 0.0
      %2087 = vmatmul.mubr.f32.gmra.mxu0 %v2018
      %v2088 = vpop.f32.mrf.mxu0
      %v2089 = vadd.f32 0.0, %v2088
      %v2090 = vpop.f32.mrf.mxu0
      %2091 = vdwg.mxu0
      %2092 = vrot.lane.b32.xlu0 %v364, 120
      %v2093 = vpop.permute.xlu0 %2092
      %2094 = vrot.lane.b32.xlu0 %v364, 88
      %v2095 = vpop.permute.xlu0 %2094
      %v2096 = vsel %vm384, %v2093, 0
      %v2098 = vsel %vm384, %v2095, 0
      %2100 = vmatprep.subr.mxu0 0.0
      %2101 = vmatpush1.xpose.msra.mxu0 0.0
      %2102 = vmatprep.subr.mxu0 0.0
      %2103 = vmatpush1.xpose.msra.mxu0 0.0
      %2104 = vmatprep.subr.mxu0 0.0
      %2105 = vmatpush1.xpose.msra.mxu0 0.0
      %2106 = vmatprep.subr.mxu0 0.0
      %2107 = vmatpush1.xpose.msra.mxu0 0.0
      %2108 = vmatprep.subr.mxu0 0.0
      %2109 = vmatpush1.xpose.msra.mxu0 0.0
      %2110 = vmatprep.subr.mxu0 0.0
      %2111 = vmatpush1.xpose.msra.mxu0 0.0
      %2112 = vmatprep.subr.mxu0 0.0
      %2113 = vmatpush1.xpose.msra.mxu0 0.0
      %2114 = vmatprep.subr.mxu0 0.0
      %2115 = vmatpush1.xpose.msra.mxu0 0.0
      %2116 = vmatprep.subr.mxu0 0.0
      %2117 = vmatpush1.xpose.msra.mxu0 0.0
      %2118 = vmatprep.subr.mxu0 0.0
      %2119 = vmatpush1.xpose.msra.mxu0 0.0
      %2120 = vmatprep.subr.mxu0 0.0
      %2121 = vmatpush1.xpose.msra.mxu0 0.0
      %2122 = vmatprep.subr.mxu0 0.0
      %2123 = vmatpush1.xpose.msra.mxu0 0.0
      %2124 = vmatprep.subr.mxu0 0.0
      %2125 = vmatpush1.xpose.msra.mxu0 0.0
      %2126 = vmatprep.subr.mxu0 0.0
      %2127 = vmatpush1.xpose.msra.mxu0 0.0
      %2128 = vmatprep.subr.mxu0 0.0
      %2129 = vmatpush1.xpose.msra.mxu0 0.0
      %2130 = vmatprep.subr.mxu0 0.0
      %2131 = vmatpush1.xpose.msra.mxu0 %v2098
      %2132 = vmatprep.subr.mxu0 0.0
      %2133 = vmatpush2.xpose.msra.mxu0 0.0
      %2134 = vmatprep.subr.mxu0 0.0
      %2135 = vmatpush2.xpose.msra.mxu0 0.0
      %2136 = vmatprep.subr.mxu0 0.0
      %2137 = vmatpush2.xpose.msra.mxu0 0.0
      %2138 = vmatprep.subr.mxu0 0.0
      %2139 = vmatpush2.xpose.msra.mxu0 0.0
      %2140 = vmatprep.subr.mxu0 0.0
      %2141 = vmatpush2.xpose.msra.mxu0 0.0
      %2142 = vmatprep.subr.mxu0 0.0
      %2143 = vmatpush2.xpose.msra.mxu0 0.0
      %2144 = vmatprep.subr.mxu0 0.0
      %2145 = vmatpush2.xpose.msra.mxu0 0.0
      %2146 = vmatprep.subr.mxu0 0.0
      %2147 = vmatpush2.xpose.msra.mxu0 0.0
      %2148 = vmatprep.subr.mxu0 0.0
      %2149 = vmatpush2.xpose.msra.mxu0 0.0
      %2150 = vmatprep.subr.mxu0 0.0
      %2151 = vmatpush2.xpose.msra.mxu0 0.0
      %2152 = vmatprep.subr.mxu0 0.0
      %2153 = vmatpush2.xpose.msra.mxu0 0.0
      %2154 = vmatprep.subr.mxu0 0.0
      %2155 = vmatpush2.xpose.msra.mxu0 0.0
      %2156 = vmatprep.subr.mxu0 0.0
      %2157 = vmatpush2.xpose.msra.mxu0 0.0
      %2158 = vmatprep.subr.mxu0 0.0
      %2159 = vmatpush2.xpose.msra.mxu0 0.0
      %2160 = vmatprep.subr.mxu0 0.0
      %2161 = vmatpush2.xpose.msra.mxu0 0.0
      %2162 = vmatprep.subr.mxu0 0.0
      %2163 = vmatpush2.xpose.msra.mxu0 0.0
      %2164 = vmatprep.mubr.f32.mxu0 0.0
      %2165 = vmatmul.mubr.f32.gmra.mxu0 %v2096
      %v2166 = vpop.f32.mrf.mxu0
      %v2167 = vadd.f32 0.0, %v2166
      %v2168 = vpop.f32.mrf.mxu0
      %2169 = vdwg.mxu0
      %2170 = vrot.lane.b32.xlu0 %v369, 120
      %v2171 = vpop.permute.xlu0 %2170
      %2172 = vrot.lane.b32.xlu0 %v369, 88
      %v2173 = vpop.permute.xlu0 %2172
      %v2174 = vsel %vm384, %v2171, 0
      %v2176 = vsel %vm384, %v2173, 0
      %2178 = vmatprep.subr.mxu0 0.0
      %2179 = vmatpush1.xpose.msra.mxu0 0.0
      %2180 = vmatprep.subr.mxu0 0.0
      %2181 = vmatpush1.xpose.msra.mxu0 0.0
      %2182 = vmatprep.subr.mxu0 0.0
      %2183 = vmatpush1.xpose.msra.mxu0 0.0
      %2184 = vmatprep.subr.mxu0 0.0
      %2185 = vmatpush1.xpose.msra.mxu0 0.0
      %2186 = vmatprep.subr.mxu0 0.0
      %2187 = vmatpush1.xpose.msra.mxu0 0.0
      %2188 = vmatprep.subr.mxu0 0.0
      %2189 = vmatpush1.xpose.msra.mxu0 0.0
      %2190 = vmatprep.subr.mxu0 0.0
      %2191 = vmatpush1.xpose.msra.mxu0 0.0
      %2192 = vmatprep.subr.mxu0 0.0
      %2193 = vmatpush1.xpose.msra.mxu0 0.0
      %2194 = vmatprep.subr.mxu0 0.0
      %2195 = vmatpush1.xpose.msra.mxu0 0.0
      %2196 = vmatprep.subr.mxu0 0.0
      %2197 = vmatpush1.xpose.msra.mxu0 0.0
      %2198 = vmatprep.subr.mxu0 0.0
      %2199 = vmatpush1.xpose.msra.mxu0 0.0
      %2200 = vmatprep.subr.mxu0 0.0
      %2201 = vmatpush1.xpose.msra.mxu0 0.0
      %2202 = vmatprep.subr.mxu0 0.0
      %2203 = vmatpush1.xpose.msra.mxu0 0.0
      %2204 = vmatprep.subr.mxu0 0.0
      %2205 = vmatpush1.xpose.msra.mxu0 0.0
      %2206 = vmatprep.subr.mxu0 0.0
      %2207 = vmatpush1.xpose.msra.mxu0 0.0
      %2208 = vmatprep.subr.mxu0 0.0
      %2209 = vmatpush1.xpose.msra.mxu0 %v2176
      %2210 = vmatprep.subr.mxu0 0.0
      %2211 = vmatpush2.xpose.msra.mxu0 0.0
      %2212 = vmatprep.subr.mxu0 0.0
      %2213 = vmatpush2.xpose.msra.mxu0 0.0
      %2214 = vmatprep.subr.mxu0 0.0
      %2215 = vmatpush2.xpose.msra.mxu0 0.0
      %2216 = vmatprep.subr.mxu0 0.0
      %2217 = vmatpush2.xpose.msra.mxu0 0.0
      %2218 = vmatprep.subr.mxu0 0.0
      %2219 = vmatpush2.xpose.msra.mxu0 0.0
      %2220 = vmatprep.subr.mxu0 0.0
      %2221 = vmatpush2.xpose.msra.mxu0 0.0
      %2222 = vmatprep.subr.mxu0 0.0
      %2223 = vmatpush2.xpose.msra.mxu0 0.0
      %2224 = vmatprep.subr.mxu0 0.0
      %2225 = vmatpush2.xpose.msra.mxu0 0.0
      %2226 = vmatprep.subr.mxu0 0.0
      %2227 = vmatpush2.xpose.msra.mxu0 0.0
      %2228 = vmatprep.subr.mxu0 0.0
      %2229 = vmatpush2.xpose.msra.mxu0 0.0
      %2230 = vmatprep.subr.mxu0 0.0
      %2231 = vmatpush2.xpose.msra.mxu0 0.0
      %2232 = vmatprep.subr.mxu0 0.0
      %2233 = vmatpush2.xpose.msra.mxu0 0.0
      %2234 = vmatprep.subr.mxu0 0.0
      %2235 = vmatpush2.xpose.msra.mxu0 0.0
      %2236 = vmatprep.subr.mxu0 0.0
      %2237 = vmatpush2.xpose.msra.mxu0 0.0
      %2238 = vmatprep.subr.mxu0 0.0
      %2239 = vmatpush2.xpose.msra.mxu0 0.0
      %2240 = vmatprep.subr.mxu0 0.0
      %2241 = vmatpush2.xpose.msra.mxu0 0.0
      %2242 = vmatprep.mubr.f32.mxu0 0.0
      %2243 = vmatmul.mubr.f32.gmra.mxu0 %v2174
      %v2244 = vpop.f32.mrf.mxu0
      %v2245 = vadd.f32 0.0, %v2244
      %v2246 = vpop.f32.mrf.mxu0
      %2247 = vdwg.mxu0
      %2248 = vrot.lane.b32.xlu0 %v374, 120
      %v2249 = vpop.permute.xlu0 %2248
      %2250 = vrot.lane.b32.xlu0 %v374, 88
      %v2251 = vpop.permute.xlu0 %2250
      %v2252 = vsel %vm384, %v2249, 0
      %v2254 = vsel %vm384, %v2251, 0
      %2256 = vmatprep.subr.mxu0 0.0
      %2257 = vmatpush1.xpose.msra.mxu0 0.0
      %2258 = vmatprep.subr.mxu0 0.0
      %2259 = vmatpush1.xpose.msra.mxu0 0.0
      %2260 = vmatprep.subr.mxu0 0.0
      %2261 = vmatpush1.xpose.msra.mxu0 0.0
      %2262 = vmatprep.subr.mxu0 0.0
      %2263 = vmatpush1.xpose.msra.mxu0 0.0
      %2264 = vmatprep.subr.mxu0 0.0
      %2265 = vmatpush1.xpose.msra.mxu0 0.0
      %2266 = vmatprep.subr.mxu0 0.0
      %2267 = vmatpush1.xpose.msra.mxu0 0.0
      %2268 = vmatprep.subr.mxu0 0.0
      %2269 = vmatpush1.xpose.msra.mxu0 0.0
      %2270 = vmatprep.subr.mxu0 0.0
      %2271 = vmatpush1.xpose.msra.mxu0 0.0
      %2272 = vmatprep.subr.mxu0 0.0
      %2273 = vmatpush1.xpose.msra.mxu0 0.0
      %2274 = vmatprep.subr.mxu0 0.0
      %2275 = vmatpush1.xpose.msra.mxu0 0.0
      %2276 = vmatprep.subr.mxu0 0.0
      %2277 = vmatpush1.xpose.msra.mxu0 0.0
      %2278 = vmatprep.subr.mxu0 0.0
      %2279 = vmatpush1.xpose.msra.mxu0 0.0
      %2280 = vmatprep.subr.mxu0 0.0
      %2281 = vmatpush1.xpose.msra.mxu0 0.0
      %2282 = vmatprep.subr.mxu0 0.0
      %2283 = vmatpush1.xpose.msra.mxu0 0.0
      %2284 = vmatprep.subr.mxu0 0.0
      %2285 = vmatpush1.xpose.msra.mxu0 0.0
      %2286 = vmatprep.subr.mxu0 0.0
      %2287 = vmatpush1.xpose.msra.mxu0 %v2254
      %2288 = vmatprep.subr.mxu0 0.0
      %2289 = vmatpush2.xpose.msra.mxu0 0.0
      %2290 = vmatprep.subr.mxu0 0.0
      %2291 = vmatpush2.xpose.msra.mxu0 0.0
      %2292 = vmatprep.subr.mxu0 0.0
      %2293 = vmatpush2.xpose.msra.mxu0 0.0
      %2294 = vmatprep.subr.mxu0 0.0
      %2295 = vmatpush2.xpose.msra.mxu0 0.0
      %2296 = vmatprep.subr.mxu0 0.0
      %2297 = vmatpush2.xpose.msra.mxu0 0.0
      %2298 = vmatprep.subr.mxu0 0.0
      %2299 = vmatpush2.xpose.msra.mxu0 0.0
      %2300 = vmatprep.subr.mxu0 0.0
      %2301 = vmatpush2.xpose.msra.mxu0 0.0
      %2302 = vmatprep.subr.mxu0 0.0
      %2303 = vmatpush2.xpose.msra.mxu0 0.0
      %2304 = vmatprep.subr.mxu0 0.0
      %2305 = vmatpush2.xpose.msra.mxu0 0.0
      %2306 = vmatprep.subr.mxu0 0.0
      %2307 = vmatpush2.xpose.msra.mxu0 0.0
      %2308 = vmatprep.subr.mxu0 0.0
      %2309 = vmatpush2.xpose.msra.mxu0 0.0
      %2310 = vmatprep.subr.mxu0 0.0
      %2311 = vmatpush2.xpose.msra.mxu0 0.0
      %2312 = vmatprep.subr.mxu0 0.0
      %2313 = vmatpush2.xpose.msra.mxu0 0.0
      %2314 = vmatprep.subr.mxu0 0.0
      %2315 = vmatpush2.xpose.msra.mxu0 0.0
      %2316 = vmatprep.subr.mxu0 0.0
      %2317 = vmatpush2.xpose.msra.mxu0 0.0
      %2318 = vmatprep.subr.mxu0 0.0
      %2319 = vmatpush2.xpose.msra.mxu0 0.0
      %2320 = vmatprep.mubr.f32.mxu0 0.0
      %2321 = vmatmul.mubr.f32.gmra.mxu0 %v2252
      %v2322 = vpop.f32.mrf.mxu0
      %v2323 = vadd.f32 0.0, %v2322
      %v2324 = vpop.f32.mrf.mxu0
      %2325 = vdwg.mxu0
      %v2326 = vmul.f32 %v1777, 0.35355338
      %v2327 = vmul.f32 %v1855, 0.35355338
      %v2328 = vmul.f32 %v1933, 0.35355338
      %v2329 = vmul.f32 %v2011, 0.35355338
      %v2330 = vmul.f32 %v2089, 0.35355338
      %v2331 = vmul.f32 %v2167, 0.35355338
      %v2332 = vmul.f32 %v2245, 0.35355338
      %v2333 = vmul.f32 %v2323, 0.35355338
      %v2334 = vsel %vm384, %v2326, -inf
      %2335 = vmax.xlane.f32.xlu0 %v2334
      %v2336 = vpop.xlane.xlu0 %2335
      %v2337 = vsel %vm384, %v2327, -inf
      %2338 = vmax.xlane.f32.xlu0 %v2337
      %v2339 = vpop.xlane.xlu0 %2338
      %v2340 = vsel %vm384, %v2328, -inf
      %2341 = vmax.xlane.f32.xlu0 %v2340
      %v2342 = vpop.xlane.xlu0 %2341
      %v2343 = vsel %vm384, %v2329, -inf
      %2344 = vmax.xlane.f32.xlu0 %v2343
      %v2345 = vpop.xlane.xlu0 %2344
      %v2346 = vsel %vm384, %v2330, -inf
      %2347 = vmax.xlane.f32.xlu0 %v2346
      %v2348 = vpop.xlane.xlu0 %2347
      %v2349 = vsel %vm384, %v2331, -inf
      %2350 = vmax.xlane.f32.xlu0 %v2349
      %v2351 = vpop.xlane.xlu0 %2350
      %v2352 = vsel %vm384, %v2332, -inf
      %2353 = vmax.xlane.f32.xlu0 %v2352
      %v2354 = vpop.xlane.xlu0 %2353
      %v2355 = vsel %vm384, %v2333, -inf
      %2356 = vmax.xlane.f32.xlu0 %v2355
      %v2357 = vpop.xlane.xlu0 %2356
      %v2358 = vsub.f32 %v2326, %v2336
      %v2359 = vsub.f32 %v2327, %v2339
      %v2360 = vsub.f32 %v2328, %v2342
      %v2361 = vsub.f32 %v2329, %v2345
      %v2362 = vsub.f32 %v2330, %v2348
      %v2363 = vsub.f32 %v2331, %v2351
      %v2364 = vsub.f32 %v2332, %v2354
      %v2365 = vsub.f32 %v2333, %v2357
      %v2366 = vmul.f32 %v2358, 1.442695
      %v2367 = vpow.pop %v2366
      %v2368 = vmul.f32 %v2359, 1.442695
      %v2369 = vpow.pop %v2368
      %v2370 = vmul.f32 %v2360, 1.442695
      %v2371 = vpow.pop %v2370
      %v2372 = vmul.f32 %v2361, 1.442695
      %v2373 = vpow.pop %v2372
      %v2374 = vmul.f32 %v2362, 1.442695
      %v2375 = vpow.pop %v2374
      %v2376 = vmul.f32 %v2363, 1.442695
      %v2377 = vpow.pop %v2376
      %v2378 = vmul.f32 %v2364, 1.442695
      %v2379 = vpow.pop %v2378
      %v2380 = vmul.f32 %v2365, 1.442695
      %v2381 = vpow.pop %v2380
      %v2382 = vsel %vm384, %v2367, 0.0
      %2383 = vadd.xlane.f32.xlu0 %v2382
      %v2384 = vpop.xlane.xlu0 %2383
      %v2385 = vsel %vm384, %v2369, 0.0
      %2386 = vadd.xlane.f32.xlu0 %v2385
      %v2387 = vpop.xlane.xlu0 %2386
      %v2388 = vsel %vm384, %v2371, 0.0
      %2389 = vadd.xlane.f32.xlu0 %v2388
      %v2390 = vpop.xlane.xlu0 %2389
      %v2391 = vsel %vm384, %v2373, 0.0
      %2392 = vadd.xlane.f32.xlu0 %v2391
      %v2393 = vpop.xlane.xlu0 %2392
      %v2394 = vsel %vm384, %v2375, 0.0
      %2395 = vadd.xlane.f32.xlu0 %v2394
      %v2396 = vpop.xlane.xlu0 %2395
      %v2397 = vsel %vm384, %v2377, 0.0
      %2398 = vadd.xlane.f32.xlu0 %v2397
      %v2399 = vpop.xlane.xlu0 %2398
      %v2400 = vsel %vm384, %v2379, 0.0
      %2401 = vadd.xlane.f32.xlu0 %v2400
      %v2402 = vpop.xlane.xlu0 %2401
      %v2403 = vsel %vm384, %v2381, 0.0
      %2404 = vadd.xlane.f32.xlu0 %v2403
      %v2405 = vpop.xlane.xlu0 %2404
      %v2406 = vrcp.pop %v2384
      %v2407 = vrcp.pop %v2387
      %v2408 = vrcp.pop %v2390
      %v2409 = vrcp.pop %v2393
      %v2410 = vrcp.pop %v2396
      %v2411 = vrcp.pop %v2399
      %v2412 = vrcp.pop %v2402
      %v2413 = vrcp.pop %v2405
      %v2414 = vmul.f32 %v2367, %v2406
      %v2415 = vmul.f32 %v2369, %v2407
      %v2416 = vmul.f32 %v2371, %v2408
      %v2417 = vmul.f32 %v2373, %v2409
      %v2418 = vmul.f32 %v2375, %v2410
      %v2419 = vmul.f32 %v2377, %v2411
      %v2420 = vmul.f32 %v2379, %v2412
      %v2421 = vmul.f32 %v2381, %v2413
      %2422 = vrot.lane.b32.xlu0 %v339, 56
      %v2423 = vpop.permute.xlu0 %2422
      %v2426 = vsel %vm384, %v2414, 0
      %2428 = vmatprep.subr.mxu0 0.0
      %2429 = vmatpush1.msra.mxu0 0.0
      %2430 = vmatprep.subr.mxu0 0.0
      %2431 = vmatpush1.msra.mxu0 0.0
      %2432 = vmatprep.subr.mxu0 0.0
      %2433 = vmatpush1.msra.mxu0 0.0
      %2434 = vmatprep.subr.mxu0 0.0
      %2435 = vmatpush1.msra.mxu0 0.0
      %2436 = vmatprep.subr.mxu0 0.0
      %2437 = vmatpush1.msra.mxu0 0.0
      %2438 = vmatprep.subr.mxu0 0.0
      %2439 = vmatpush1.msra.mxu0 0.0
      %2440 = vmatprep.subr.mxu0 0.0
      %2441 = vmatpush1.msra.mxu0 0.0
      %2442 = vmatprep.subr.mxu0 0.0
      %2443 = vmatpush1.msra.mxu0 0.0
      %2444 = vmatprep.subr.mxu0 0.0
      %2445 = vmatpush1.msra.mxu0 0.0
      %2446 = vmatprep.subr.mxu0 0.0
      %2447 = vmatpush1.msra.mxu0 0.0
      %2448 = vmatprep.subr.mxu0 0.0
      %2449 = vmatpush1.msra.mxu0 0.0
      %2450 = vmatprep.subr.mxu0 0.0
      %2451 = vmatpush1.msra.mxu0 0.0
      %2452 = vmatprep.subr.mxu0 0.0
      %2453 = vmatpush1.msra.mxu0 0.0
      %2454 = vmatprep.subr.mxu0 0.0
      %2455 = vmatpush1.msra.mxu0 0.0
      %2456 = vmatprep.subr.mxu0 0.0
      %2457 = vmatpush1.msra.mxu0 0.0
      %2458 = vmatprep.subr.mxu0 0.0
      %2459 = vmatpush1.msra.mxu0 %v2423
      %2460 = vmatprep.subr.mxu0 0.0
      %2461 = vmatpush2.msra.mxu0 0.0
      %2462 = vmatprep.subr.mxu0 0.0
      %2463 = vmatpush2.msra.mxu0 0.0
      %2464 = vmatprep.subr.mxu0 0.0
      %2465 = vmatpush2.msra.mxu0 0.0
      %2466 = vmatprep.subr.mxu0 0.0
      %2467 = vmatpush2.msra.mxu0 0.0
      %2468 = vmatprep.subr.mxu0 0.0
      %2469 = vmatpush2.msra.mxu0 0.0
      %2470 = vmatprep.subr.mxu0 0.0
      %2471 = vmatpush2.msra.mxu0 0.0
      %2472 = vmatprep.subr.mxu0 0.0
      %2473 = vmatpush2.msra.mxu0 0.0
      %2474 = vmatprep.subr.mxu0 0.0
      %2475 = vmatpush2.msra.mxu0 0.0
      %2476 = vmatprep.subr.mxu0 0.0
      %2477 = vmatpush2.msra.mxu0 0.0
      %2478 = vmatprep.subr.mxu0 0.0
      %2479 = vmatpush2.msra.mxu0 0.0
      %2480 = vmatprep.subr.mxu0 0.0
      %2481 = vmatpush2.msra.mxu0 0.0
      %2482 = vmatprep.subr.mxu0 0.0
      %2483 = vmatpush2.msra.mxu0 0.0
      %2484 = vmatprep.subr.mxu0 0.0
      %2485 = vmatpush2.msra.mxu0 0.0
      %2486 = vmatprep.subr.mxu0 0.0
      %2487 = vmatpush2.msra.mxu0 0.0
      %2488 = vmatprep.subr.mxu0 0.0
      %2489 = vmatpush2.msra.mxu0 0.0
      %2490 = vmatprep.subr.mxu0 0.0
      %2491 = vmatpush2.msra.mxu0 0.0
      %2492 = vmatprep.mubr.f32.mxu0 0.0
      %2493 = vmatmul.mubr.f32.gmra.mxu0 %v2426
      %v2494 = vpop.f32.mrf.mxu0
      %v2495 = vadd.f32 0.0, %v2494
      %v2496 = vpop.f32.mrf.mxu0
      %2497 = vdwg.mxu0
      %2498 = vrot.lane.b32.xlu0 %v344, 56
      %v2499 = vpop.permute.xlu0 %2498
      %v2502 = vsel %vm384, %v2415, 0
      %2504 = vmatprep.subr.mxu0 0.0
      %2505 = vmatpush1.msra.mxu0 0.0
      %2506 = vmatprep.subr.mxu0 0.0
      %2507 = vmatpush1.msra.mxu0 0.0
      %2508 = vmatprep.subr.mxu0 0.0
      %2509 = vmatpush1.msra.mxu0 0.0
      %2510 = vmatprep.subr.mxu0 0.0
      %2511 = vmatpush1.msra.mxu0 0.0
      %2512 = vmatprep.subr.mxu0 0.0
      %2513 = vmatpush1.msra.mxu0 0.0
      %2514 = vmatprep.subr.mxu0 0.0
      %2515 = vmatpush1.msra.mxu0 0.0
      %2516 = vmatprep.subr.mxu0 0.0
      %2517 = vmatpush1.msra.mxu0 0.0
      %2518 = vmatprep.subr.mxu0 0.0
      %2519 = vmatpush1.msra.mxu0 0.0
      %2520 = vmatprep.subr.mxu0 0.0
      %2521 = vmatpush1.msra.mxu0 0.0
      %2522 = vmatprep.subr.mxu0 0.0
      %2523 = vmatpush1.msra.mxu0 0.0
      %2524 = vmatprep.subr.mxu0 0.0
      %2525 = vmatpush1.msra.mxu0 0.0
      %2526 = vmatprep.subr.mxu0 0.0
      %2527 = vmatpush1.msra.mxu0 0.0
      %2528 = vmatprep.subr.mxu0 0.0
      %2529 = vmatpush1.msra.mxu0 0.0
      %2530 = vmatprep.subr.mxu0 0.0
      %2531 = vmatpush1.msra.mxu0 0.0
      %2532 = vmatprep.subr.mxu0 0.0
      %2533 = vmatpush1.msra.mxu0 0.0
      %2534 = vmatprep.subr.mxu0 0.0
      %2535 = vmatpush1.msra.mxu0 %v2499
      %2536 = vmatprep.subr.mxu0 0.0
      %2537 = vmatpush2.msra.mxu0 0.0
      %2538 = vmatprep.subr.mxu0 0.0
      %2539 = vmatpush2.msra.mxu0 0.0
      %2540 = vmatprep.subr.mxu0 0.0
      %2541 = vmatpush2.msra.mxu0 0.0
      %2542 = vmatprep.subr.mxu0 0.0
      %2543 = vmatpush2.msra.mxu0 0.0
      %2544 = vmatprep.subr.mxu0 0.0
      %2545 = vmatpush2.msra.mxu0 0.0
      %2546 = vmatprep.subr.mxu0 0.0
      %2547 = vmatpush2.msra.mxu0 0.0
      %2548 = vmatprep.subr.mxu0 0.0
      %2549 = vmatpush2.msra.mxu0 0.0
      %2550 = vmatprep.subr.mxu0 0.0
      %2551 = vmatpush2.msra.mxu0 0.0
      %2552 = vmatprep.subr.mxu0 0.0
      %2553 = vmatpush2.msra.mxu0 0.0
      %2554 = vmatprep.subr.mxu0 0.0
      %2555 = vmatpush2.msra.mxu0 0.0
      %2556 = vmatprep.subr.mxu0 0.0
      %2557 = vmatpush2.msra.mxu0 0.0
      %2558 = vmatprep.subr.mxu0 0.0
      %2559 = vmatpush2.msra.mxu0 0.0
      %2560 = vmatprep.subr.mxu0 0.0
      %2561 = vmatpush2.msra.mxu0 0.0
      %2562 = vmatprep.subr.mxu0 0.0
      %2563 = vmatpush2.msra.mxu0 0.0
      %2564 = vmatprep.subr.mxu0 0.0
      %2565 = vmatpush2.msra.mxu0 0.0
      %2566 = vmatprep.subr.mxu0 0.0
      %2567 = vmatpush2.msra.mxu0 0.0
      %2568 = vmatprep.mubr.f32.mxu0 0.0
      %2569 = vmatmul.mubr.f32.gmra.mxu0 %v2502
      %v2570 = vpop.f32.mrf.mxu0
      %v2571 = vadd.f32 0.0, %v2570
      %v2572 = vpop.f32.mrf.mxu0
      %2573 = vdwg.mxu0
      %2574 = vrot.lane.b32.xlu0 %v349, 56
      %v2575 = vpop.permute.xlu0 %2574
      %v2578 = vsel %vm384, %v2416, 0
      %2580 = vmatprep.subr.mxu0 0.0
      %2581 = vmatpush1.msra.mxu0 0.0
      %2582 = vmatprep.subr.mxu0 0.0
      %2583 = vmatpush1.msra.mxu0 0.0
      %2584 = vmatprep.subr.mxu0 0.0
      %2585 = vmatpush1.msra.mxu0 0.0
      %2586 = vmatprep.subr.mxu0 0.0
      %2587 = vmatpush1.msra.mxu0 0.0
      %2588 = vmatprep.subr.mxu0 0.0
      %2589 = vmatpush1.msra.mxu0 0.0
      %2590 = vmatprep.subr.mxu0 0.0
      %2591 = vmatpush1.msra.mxu0 0.0
      %2592 = vmatprep.subr.mxu0 0.0
      %2593 = vmatpush1.msra.mxu0 0.0
      %2594 = vmatprep.subr.mxu0 0.0
      %2595 = vmatpush1.msra.mxu0 0.0
      %2596 = vmatprep.subr.mxu0 0.0
      %2597 = vmatpush1.msra.mxu0 0.0
      %2598 = vmatprep.subr.mxu0 0.0
      %2599 = vmatpush1.msra.mxu0 0.0
      %2600 = vmatprep.subr.mxu0 0.0
      %2601 = vmatpush1.msra.mxu0 0.0
      %2602 = vmatprep.subr.mxu0 0.0
      %2603 = vmatpush1.msra.mxu0 0.0
      %2604 = vmatprep.subr.mxu0 0.0
      %2605 = vmatpush1.msra.mxu0 0.0
      %2606 = vmatprep.subr.mxu0 0.0
      %2607 = vmatpush1.msra.mxu0 0.0
      %2608 = vmatprep.subr.mxu0 0.0
      %2609 = vmatpush1.msra.mxu0 0.0
      %2610 = vmatprep.subr.mxu0 0.0
      %2611 = vmatpush1.msra.mxu0 %v2575
      %2612 = vmatprep.subr.mxu0 0.0
      %2613 = vmatpush2.msra.mxu0 0.0
      %2614 = vmatprep.subr.mxu0 0.0
      %2615 = vmatpush2.msra.mxu0 0.0
      %2616 = vmatprep.subr.mxu0 0.0
      %2617 = vmatpush2.msra.mxu0 0.0
      %2618 = vmatprep.subr.mxu0 0.0
      %2619 = vmatpush2.msra.mxu0 0.0
      %2620 = vmatprep.subr.mxu0 0.0
      %2621 = vmatpush2.msra.mxu0 0.0
      %2622 = vmatprep.subr.mxu0 0.0
      %2623 = vmatpush2.msra.mxu0 0.0
      %2624 = vmatprep.subr.mxu0 0.0
      %2625 = vmatpush2.msra.mxu0 0.0
      %2626 = vmatprep.subr.mxu0 0.0
      %2627 = vmatpush2.msra.mxu0 0.0
      %2628 = vmatprep.subr.mxu0 0.0
      %2629 = vmatpush2.msra.mxu0 0.0
      %2630 = vmatprep.subr.mxu0 0.0
      %2631 = vmatpush2.msra.mxu0 0.0
      %2632 = vmatprep.subr.mxu0 0.0
      %2633 = vmatpush2.msra.mxu0 0.0
      %2634 = vmatprep.subr.mxu0 0.0
      %2635 = vmatpush2.msra.mxu0 0.0
      %2636 = vmatprep.subr.mxu0 0.0
      %2637 = vmatpush2.msra.mxu0 0.0
      %2638 = vmatprep.subr.mxu0 0.0
      %2639 = vmatpush2.msra.mxu0 0.0
      %2640 = vmatprep.subr.mxu0 0.0
      %2641 = vmatpush2.msra.mxu0 0.0
      %2642 = vmatprep.subr.mxu0 0.0
      %2643 = vmatpush2.msra.mxu0 0.0
      %2644 = vmatprep.mubr.f32.mxu0 0.0
      %2645 = vmatmul.mubr.f32.gmra.mxu0 %v2578
      %v2646 = vpop.f32.mrf.mxu0
      %v2647 = vadd.f32 0.0, %v2646
      %v2648 = vpop.f32.mrf.mxu0
      %2649 = vdwg.mxu0
      %2650 = vrot.lane.b32.xlu0 %v354, 56
      %v2651 = vpop.permute.xlu0 %2650
      %v2654 = vsel %vm384, %v2417, 0
      %2656 = vmatprep.subr.mxu0 0.0
      %2657 = vmatpush1.msra.mxu0 0.0
      %2658 = vmatprep.subr.mxu0 0.0
      %2659 = vmatpush1.msra.mxu0 0.0
      %2660 = vmatprep.subr.mxu0 0.0
      %2661 = vmatpush1.msra.mxu0 0.0
      %2662 = vmatprep.subr.mxu0 0.0
      %2663 = vmatpush1.msra.mxu0 0.0
      %2664 = vmatprep.subr.mxu0 0.0
      %2665 = vmatpush1.msra.mxu0 0.0
      %2666 = vmatprep.subr.mxu0 0.0
      %2667 = vmatpush1.msra.mxu0 0.0
      %2668 = vmatprep.subr.mxu0 0.0
      %2669 = vmatpush1.msra.mxu0 0.0
      %2670 = vmatprep.subr.mxu0 0.0
      %2671 = vmatpush1.msra.mxu0 0.0
      %2672 = vmatprep.subr.mxu0 0.0
      %2673 = vmatpush1.msra.mxu0 0.0
      %2674 = vmatprep.subr.mxu0 0.0
      %2675 = vmatpush1.msra.mxu0 0.0
      %2676 = vmatprep.subr.mxu0 0.0
      %2677 = vmatpush1.msra.mxu0 0.0
      %2678 = vmatprep.subr.mxu0 0.0
      %2679 = vmatpush1.msra.mxu0 0.0
      %2680 = vmatprep.subr.mxu0 0.0
      %2681 = vmatpush1.msra.mxu0 0.0
      %2682 = vmatprep.subr.mxu0 0.0
      %2683 = vmatpush1.msra.mxu0 0.0
      %2684 = vmatprep.subr.mxu0 0.0
      %2685 = vmatpush1.msra.mxu0 0.0
      %2686 = vmatprep.subr.mxu0 0.0
      %2687 = vmatpush1.msra.mxu0 %v2651
      %2688 = vmatprep.subr.mxu0 0.0
      %2689 = vmatpush2.msra.mxu0 0.0
      %2690 = vmatprep.subr.mxu0 0.0
      %2691 = vmatpush2.msra.mxu0 0.0
      %2692 = vmatprep.subr.mxu0 0.0
      %2693 = vmatpush2.msra.mxu0 0.0
      %2694 = vmatprep.subr.mxu0 0.0
      %2695 = vmatpush2.msra.mxu0 0.0
      %2696 = vmatprep.subr.mxu0 0.0
      %2697 = vmatpush2.msra.mxu0 0.0
      %2698 = vmatprep.subr.mxu0 0.0
      %2699 = vmatpush2.msra.mxu0 0.0
      %2700 = vmatprep.subr.mxu0 0.0
      %2701 = vmatpush2.msra.mxu0 0.0
      %2702 = vmatprep.subr.mxu0 0.0
      %2703 = vmatpush2.msra.mxu0 0.0
      %2704 = vmatprep.subr.mxu0 0.0
      %2705 = vmatpush2.msra.mxu0 0.0
      %2706 = vmatprep.subr.mxu0 0.0
      %2707 = vmatpush2.msra.mxu0 0.0
      %2708 = vmatprep.subr.mxu0 0.0
      %2709 = vmatpush2.msra.mxu0 0.0
      %2710 = vmatprep.subr.mxu0 0.0
      %2711 = vmatpush2.msra.mxu0 0.0
      %2712 = vmatprep.subr.mxu0 0.0
      %2713 = vmatpush2.msra.mxu0 0.0
      %2714 = vmatprep.subr.mxu0 0.0
      %2715 = vmatpush2.msra.mxu0 0.0
      %2716 = vmatprep.subr.mxu0 0.0
      %2717 = vmatpush2.msra.mxu0 0.0
      %2718 = vmatprep.subr.mxu0 0.0
      %2719 = vmatpush2.msra.mxu0 0.0
      %2720 = vmatprep.mubr.f32.mxu0 0.0
      %2721 = vmatmul.mubr.f32.gmra.mxu0 %v2654
      %v2722 = vpop.f32.mrf.mxu0
      %v2723 = vadd.f32 0.0, %v2722
      %v2724 = vpop.f32.mrf.mxu0
      %2725 = vdwg.mxu0
      %2726 = vrot.lane.b32.xlu0 %v359, 56
      %v2727 = vpop.permute.xlu0 %2726
      %v2730 = vsel %vm384, %v2418, 0
      %2732 = vmatprep.subr.mxu0 0.0
      %2733 = vmatpush1.msra.mxu0 0.0
      %2734 = vmatprep.subr.mxu0 0.0
      %2735 = vmatpush1.msra.mxu0 0.0
      %2736 = vmatprep.subr.mxu0 0.0
      %2737 = vmatpush1.msra.mxu0 0.0
      %2738 = vmatprep.subr.mxu0 0.0
      %2739 = vmatpush1.msra.mxu0 0.0
      %2740 = vmatprep.subr.mxu0 0.0
      %2741 = vmatpush1.msra.mxu0 0.0
      %2742 = vmatprep.subr.mxu0 0.0
      %2743 = vmatpush1.msra.mxu0 0.0
      %2744 = vmatprep.subr.mxu0 0.0
      %2745 = vmatpush1.msra.mxu0 0.0
      %2746 = vmatprep.subr.mxu0 0.0
      %2747 = vmatpush1.msra.mxu0 0.0
      %2748 = vmatprep.subr.mxu0 0.0
      %2749 = vmatpush1.msra.mxu0 0.0
      %2750 = vmatprep.subr.mxu0 0.0
      %2751 = vmatpush1.msra.mxu0 0.0
      %2752 = vmatprep.subr.mxu0 0.0
      %2753 = vmatpush1.msra.mxu0 0.0
      %2754 = vmatprep.subr.mxu0 0.0
      %2755 = vmatpush1.msra.mxu0 0.0
      %2756 = vmatprep.subr.mxu0 0.0
      %2757 = vmatpush1.msra.mxu0 0.0
      %2758 = vmatprep.subr.mxu0 0.0
      %2759 = vmatpush1.msra.mxu0 0.0
      %2760 = vmatprep.subr.mxu0 0.0
      %2761 = vmatpush1.msra.mxu0 0.0
      %2762 = vmatprep.subr.mxu0 0.0
      %2763 = vmatpush1.msra.mxu0 %v2727
      %2764 = vmatprep.subr.mxu0 0.0
      %2765 = vmatpush2.msra.mxu0 0.0
      %2766 = vmatprep.subr.mxu0 0.0
      %2767 = vmatpush2.msra.mxu0 0.0
      %2768 = vmatprep.subr.mxu0 0.0
      %2769 = vmatpush2.msra.mxu0 0.0
      %2770 = vmatprep.subr.mxu0 0.0
      %2771 = vmatpush2.msra.mxu0 0.0
      %2772 = vmatprep.subr.mxu0 0.0
      %2773 = vmatpush2.msra.mxu0 0.0
      %2774 = vmatprep.subr.mxu0 0.0
      %2775 = vmatpush2.msra.mxu0 0.0
      %2776 = vmatprep.subr.mxu0 0.0
      %2777 = vmatpush2.msra.mxu0 0.0
      %2778 = vmatprep.subr.mxu0 0.0
      %2779 = vmatpush2.msra.mxu0 0.0
      %2780 = vmatprep.subr.mxu0 0.0
      %2781 = vmatpush2.msra.mxu0 0.0
      %2782 = vmatprep.subr.mxu0 0.0
      %2783 = vmatpush2.msra.mxu0 0.0
      %2784 = vmatprep.subr.mxu0 0.0
      %2785 = vmatpush2.msra.mxu0 0.0
      %2786 = vmatprep.subr.mxu0 0.0
      %2787 = vmatpush2.msra.mxu0 0.0
      %2788 = vmatprep.subr.mxu0 0.0
      %2789 = vmatpush2.msra.mxu0 0.0
      %2790 = vmatprep.subr.mxu0 0.0
      %2791 = vmatpush2.msra.mxu0 0.0
      %2792 = vmatprep.subr.mxu0 0.0
      %2793 = vmatpush2.msra.mxu0 0.0
      %2794 = vmatprep.subr.mxu0 0.0
      %2795 = vmatpush2.msra.mxu0 0.0
      %2796 = vmatprep.mubr.f32.mxu0 0.0
      %2797 = vmatmul.mubr.f32.gmra.mxu0 %v2730
      %v2798 = vpop.f32.mrf.mxu0
      %v2799 = vadd.f32 0.0, %v2798
      %v2800 = vpop.f32.mrf.mxu0
      %2801 = vdwg.mxu0
      %2802 = vrot.lane.b32.xlu0 %v364, 56
      %v2803 = vpop.permute.xlu0 %2802
      %v2806 = vsel %vm384, %v2419, 0
      %2808 = vmatprep.subr.mxu0 0.0
      %2809 = vmatpush1.msra.mxu0 0.0
      %2810 = vmatprep.subr.mxu0 0.0
      %2811 = vmatpush1.msra.mxu0 0.0
      %2812 = vmatprep.subr.mxu0 0.0
      %2813 = vmatpush1.msra.mxu0 0.0
      %2814 = vmatprep.subr.mxu0 0.0
      %2815 = vmatpush1.msra.mxu0 0.0
      %2816 = vmatprep.subr.mxu0 0.0
      %2817 = vmatpush1.msra.mxu0 0.0
      %2818 = vmatprep.subr.mxu0 0.0
      %2819 = vmatpush1.msra.mxu0 0.0
      %2820 = vmatprep.subr.mxu0 0.0
      %2821 = vmatpush1.msra.mxu0 0.0
      %2822 = vmatprep.subr.mxu0 0.0
      %2823 = vmatpush1.msra.mxu0 0.0
      %2824 = vmatprep.subr.mxu0 0.0
      %2825 = vmatpush1.msra.mxu0 0.0
      %2826 = vmatprep.subr.mxu0 0.0
      %2827 = vmatpush1.msra.mxu0 0.0
      %2828 = vmatprep.subr.mxu0 0.0
      %2829 = vmatpush1.msra.mxu0 0.0
      %2830 = vmatprep.subr.mxu0 0.0
      %2831 = vmatpush1.msra.mxu0 0.0
      %2832 = vmatprep.subr.mxu0 0.0
      %2833 = vmatpush1.msra.mxu0 0.0
      %2834 = vmatprep.subr.mxu0 0.0
      %2835 = vmatpush1.msra.mxu0 0.0
      %2836 = vmatprep.subr.mxu0 0.0
      %2837 = vmatpush1.msra.mxu0 0.0
      %2838 = vmatprep.subr.mxu0 0.0
      %2839 = vmatpush1.msra.mxu0 %v2803
      %2840 = vmatprep.subr.mxu0 0.0
      %2841 = vmatpush2.msra.mxu0 0.0
      %2842 = vmatprep.subr.mxu0 0.0
      %2843 = vmatpush2.msra.mxu0 0.0
      %2844 = vmatprep.subr.mxu0 0.0
      %2845 = vmatpush2.msra.mxu0 0.0
      %2846 = vmatprep.subr.mxu0 0.0
      %2847 = vmatpush2.msra.mxu0 0.0
      %2848 = vmatprep.subr.mxu0 0.0
      %2849 = vmatpush2.msra.mxu0 0.0
      %2850 = vmatprep.subr.mxu0 0.0
      %2851 = vmatpush2.msra.mxu0 0.0
      %2852 = vmatprep.subr.mxu0 0.0
      %2853 = vmatpush2.msra.mxu0 0.0
      %2854 = vmatprep.subr.mxu0 0.0
      %2855 = vmatpush2.msra.mxu0 0.0
      %2856 = vmatprep.subr.mxu0 0.0
      %2857 = vmatpush2.msra.mxu0 0.0
      %2858 = vmatprep.subr.mxu0 0.0
      %2859 = vmatpush2.msra.mxu0 0.0
      %2860 = vmatprep.subr.mxu0 0.0
      %2861 = vmatpush2.msra.mxu0 0.0
      %2862 = vmatprep.subr.mxu0 0.0
      %2863 = vmatpush2.msra.mxu0 0.0
      %2864 = vmatprep.subr.mxu0 0.0
      %2865 = vmatpush2.msra.mxu0 0.0
      %2866 = vmatprep.subr.mxu0 0.0
      %2867 = vmatpush2.msra.mxu0 0.0
      %2868 = vmatprep.subr.mxu0 0.0
      %2869 = vmatpush2.msra.mxu0 0.0
      %2870 = vmatprep.subr.mxu0 0.0
      %2871 = vmatpush2.msra.mxu0 0.0
      %2872 = vmatprep.mubr.f32.mxu0 0.0
      %2873 = vmatmul.mubr.f32.gmra.mxu0 %v2806
      %v2874 = vpop.f32.mrf.mxu0
      %v2875 = vadd.f32 0.0, %v2874
      %v2876 = vpop.f32.mrf.mxu0
      %2877 = vdwg.mxu0
      %2878 = vrot.lane.b32.xlu0 %v369, 56
      %v2879 = vpop.permute.xlu0 %2878
      %v2882 = vsel %vm384, %v2420, 0
      %2884 = vmatprep.subr.mxu0 0.0
      %2885 = vmatpush1.msra.mxu0 0.0
      %2886 = vmatprep.subr.mxu0 0.0
      %2887 = vmatpush1.msra.mxu0 0.0
      %2888 = vmatprep.subr.mxu0 0.0
      %2889 = vmatpush1.msra.mxu0 0.0
      %2890 = vmatprep.subr.mxu0 0.0
      %2891 = vmatpush1.msra.mxu0 0.0
      %2892 = vmatprep.subr.mxu0 0.0
      %2893 = vmatpush1.msra.mxu0 0.0
      %2894 = vmatprep.subr.mxu0 0.0
      %2895 = vmatpush1.msra.mxu0 0.0
      %2896 = vmatprep.subr.mxu0 0.0
      %2897 = vmatpush1.msra.mxu0 0.0
      %2898 = vmatprep.subr.mxu0 0.0
      %2899 = vmatpush1.msra.mxu0 0.0
      %2900 = vmatprep.subr.mxu0 0.0
      %2901 = vmatpush1.msra.mxu0 0.0
      %2902 = vmatprep.subr.mxu0 0.0
      %2903 = vmatpush1.msra.mxu0 0.0
      %2904 = vmatprep.subr.mxu0 0.0
      %2905 = vmatpush1.msra.mxu0 0.0
      %2906 = vmatprep.subr.mxu0 0.0
      %2907 = vmatpush1.msra.mxu0 0.0
      %2908 = vmatprep.subr.mxu0 0.0
      %2909 = vmatpush1.msra.mxu0 0.0
      %2910 = vmatprep.subr.mxu0 0.0
      %2911 = vmatpush1.msra.mxu0 0.0
      %2912 = vmatprep.subr.mxu0 0.0
      %2913 = vmatpush1.msra.mxu0 0.0
      %2914 = vmatprep.subr.mxu0 0.0
      %2915 = vmatpush1.msra.mxu0 %v2879
      %2916 = vmatprep.subr.mxu0 0.0
      %2917 = vmatpush2.msra.mxu0 0.0
      %2918 = vmatprep.subr.mxu0 0.0
      %2919 = vmatpush2.msra.mxu0 0.0
      %2920 = vmatprep.subr.mxu0 0.0
      %2921 = vmatpush2.msra.mxu0 0.0
      %2922 = vmatprep.subr.mxu0 0.0
      %2923 = vmatpush2.msra.mxu0 0.0
      %2924 = vmatprep.subr.mxu0 0.0
      %2925 = vmatpush2.msra.mxu0 0.0
      %2926 = vmatprep.subr.mxu0 0.0
      %2927 = vmatpush2.msra.mxu0 0.0
      %2928 = vmatprep.subr.mxu0 0.0
      %2929 = vmatpush2.msra.mxu0 0.0
      %2930 = vmatprep.subr.mxu0 0.0
      %2931 = vmatpush2.msra.mxu0 0.0
      %2932 = vmatprep.subr.mxu0 0.0
      %2933 = vmatpush2.msra.mxu0 0.0
      %2934 = vmatprep.subr.mxu0 0.0
      %2935 = vmatpush2.msra.mxu0 0.0
      %2936 = vmatprep.subr.mxu0 0.0
      %2937 = vmatpush2.msra.mxu0 0.0
      %2938 = vmatprep.subr.mxu0 0.0
      %2939 = vmatpush2.msra.mxu0 0.0
      %2940 = vmatprep.subr.mxu0 0.0
      %2941 = vmatpush2.msra.mxu0 0.0
      %2942 = vmatprep.subr.mxu0 0.0
      %2943 = vmatpush2.msra.mxu0 0.0
      %2944 = vmatprep.subr.mxu0 0.0
      %2945 = vmatpush2.msra.mxu0 0.0
      %2946 = vmatprep.subr.mxu0 0.0
      %2947 = vmatpush2.msra.mxu0 0.0
      %2948 = vmatprep.mubr.f32.mxu0 0.0
      %2949 = vmatmul.mubr.f32.gmra.mxu0 %v2882
      %v2950 = vpop.f32.mrf.mxu0
      %v2951 = vadd.f32 0.0, %v2950
      %v2952 = vpop.f32.mrf.mxu0
      %2953 = vdwg.mxu0
      %2954 = vrot.lane.b32.xlu0 %v374, 56
      %v2955 = vpop.permute.xlu0 %2954
      %v2958 = vsel %vm384, %v2421, 0
      %2960 = vmatprep.subr.mxu0 0.0
      %2961 = vmatpush1.msra.mxu0 0.0
      %2962 = vmatprep.subr.mxu0 0.0
      %2963 = vmatpush1.msra.mxu0 0.0
      %2964 = vmatprep.subr.mxu0 0.0
      %2965 = vmatpush1.msra.mxu0 0.0
      %2966 = vmatprep.subr.mxu0 0.0
      %2967 = vmatpush1.msra.mxu0 0.0
      %2968 = vmatprep.subr.mxu0 0.0
      %2969 = vmatpush1.msra.mxu0 0.0
      %2970 = vmatprep.subr.mxu0 0.0
      %2971 = vmatpush1.msra.mxu0 0.0
      %2972 = vmatprep.subr.mxu0 0.0
      %2973 = vmatpush1.msra.mxu0 0.0
      %2974 = vmatprep.subr.mxu0 0.0
      %2975 = vmatpush1.msra.mxu0 0.0
      %2976 = vmatprep.subr.mxu0 0.0
      %2977 = vmatpush1.msra.mxu0 0.0
      %2978 = vmatprep.subr.mxu0 0.0
      %2979 = vmatpush1.msra.mxu0 0.0
      %2980 = vmatprep.subr.mxu0 0.0
      %2981 = vmatpush1.msra.mxu0 0.0
      %2982 = vmatprep.subr.mxu0 0.0
      %2983 = vmatpush1.msra.mxu0 0.0
      %2984 = vmatprep.subr.mxu0 0.0
      %2985 = vmatpush1.msra.mxu0 0.0
      %2986 = vmatprep.subr.mxu0 0.0
      %2987 = vmatpush1.msra.mxu0 0.0
      %2988 = vmatprep.subr.mxu0 0.0
      %2989 = vmatpush1.msra.mxu0 0.0
      %2990 = vmatprep.subr.mxu0 0.0
      %2991 = vmatpush1.msra.mxu0 %v2955
      %2992 = vmatprep.subr.mxu0 0.0
      %2993 = vmatpush2.msra.mxu0 0.0
      %2994 = vmatprep.subr.mxu0 0.0
      %2995 = vmatpush2.msra.mxu0 0.0
      %2996 = vmatprep.subr.mxu0 0.0
      %2997 = vmatpush2.msra.mxu0 0.0
      %2998 = vmatprep.subr.mxu0 0.0
      %2999 = vmatpush2.msra.mxu0 0.0
      %3000 = vmatprep.subr.mxu0 0.0
      %3001 = vmatpush2.msra.mxu0 0.0
      %3002 = vmatprep.subr.mxu0 0.0
      %3003 = vmatpush2.msra.mxu0 0.0
      %3004 = vmatprep.subr.mxu0 0.0
      %3005 = vmatpush2.msra.mxu0 0.0
      %3006 = vmatprep.subr.mxu0 0.0
      %3007 = vmatpush2.msra.mxu0 0.0
      %3008 = vmatprep.subr.mxu0 0.0
      %3009 = vmatpush2.msra.mxu0 0.0
      %3010 = vmatprep.subr.mxu0 0.0
      %3011 = vmatpush2.msra.mxu0 0.0
      %3012 = vmatprep.subr.mxu0 0.0
      %3013 = vmatpush2.msra.mxu0 0.0
      %3014 = vmatprep.subr.mxu0 0.0
      %3015 = vmatpush2.msra.mxu0 0.0
      %3016 = vmatprep.subr.mxu0 0.0
      %3017 = vmatpush2.msra.mxu0 0.0
      %3018 = vmatprep.subr.mxu0 0.0
      %3019 = vmatpush2.msra.mxu0 0.0
      %3020 = vmatprep.subr.mxu0 0.0
      %3021 = vmatpush2.msra.mxu0 0.0
      %3022 = vmatprep.subr.mxu0 0.0
      %3023 = vmatpush2.msra.mxu0 0.0
      %3024 = vmatprep.mubr.f32.mxu0 0.0
      %3025 = vmatmul.mubr.f32.gmra.mxu0 %v2958
      %v3026 = vpop.f32.mrf.mxu0
      %v3027 = vadd.f32 0.0, %v3026
      %v3028 = vpop.f32.mrf.mxu0
      %3029 = vdwg.mxu0
      %v3031 = vsel %vm384, %v2495, 0
      %v3034 = vsel %vm384, %v2571, 0
      %v3037 = vsel %vm384, %v2647, 0
      %v3040 = vsel %vm384, %v2723, 0
      %v3043 = vsel %vm384, %v2799, 0
      %v3046 = vsel %vm384, %v2875, 0
      %v3049 = vsel %vm384, %v2951, 0
      %v3052 = vsel %vm384, %v3027, 0
      %3054 = vmatprep.subr.mxu0 0.0
      %3055 = vmatpush1.msra.mxu0 0.0
      %3056 = vmatprep.subr.mxu0 0.0
      %3057 = vmatpush1.msra.mxu0 0.0
      %3058 = vmatprep.subr.mxu0 0.0
      %3059 = vmatpush1.msra.mxu0 0.0
      %3060 = vmatprep.subr.mxu0 0.0
      %3061 = vmatpush1.msra.mxu0 0.0
      %3062 = vmatprep.subr.mxu0 0.0
      %3063 = vmatpush1.msra.mxu0 0.0
      %3064 = vmatprep.subr.mxu0 0.0
      %3065 = vmatpush1.msra.mxu0 0.0
      %3066 = vmatprep.subr.mxu0 0.0
      %3067 = vmatpush1.msra.mxu0 0.0
      %3068 = vmatprep.subr.mxu0 0.0
      %3069 = vmatpush1.msra.mxu0 0.0
      %3070 = vmatprep.subr.mxu0 0.0
      %3071 = vmatpush1.msra.mxu0 0.0
      %3072 = vmatprep.subr.mxu0 0.0
      %3073 = vmatpush1.msra.mxu0 0.0
      %3074 = vmatprep.subr.mxu0 0.0
      %3075 = vmatpush1.msra.mxu0 0.0
      %3076 = vmatprep.subr.mxu0 0.0
      %3077 = vmatpush1.msra.mxu0 0.0
      %3078 = vmatprep.subr.mxu0 0.0
      %3079 = vmatpush1.msra.mxu0 0.0
      %3080 = vmatprep.subr.mxu0 0.0
      %3081 = vmatpush1.msra.mxu0 0.0
      %3082 = vmatprep.subr.mxu0 0.0
      %3083 = vmatpush1.msra.mxu0 0.0
      %3084 = vmatprep.subr.mxu0 0.0
      %3085 = vmatpush1.msra.mxu0 %v378
      %3086 = vmatprep.subr.mxu0 0.0
      %3087 = vmatpush2.msra.mxu0 0.0
      %3088 = vmatprep.subr.mxu0 0.0
      %3089 = vmatpush2.msra.mxu0 0.0
      %3090 = vmatprep.subr.mxu0 0.0
      %3091 = vmatpush2.msra.mxu0 0.0
      %3092 = vmatprep.subr.mxu0 0.0
      %3093 = vmatpush2.msra.mxu0 0.0
      %3094 = vmatprep.subr.mxu0 0.0
      %3095 = vmatpush2.msra.mxu0 0.0
      %3096 = vmatprep.subr.mxu0 0.0
      %3097 = vmatpush2.msra.mxu0 0.0
      %3098 = vmatprep.subr.mxu0 0.0
      %3099 = vmatpush2.msra.mxu0 0.0
      %3100 = vmatprep.subr.mxu0 0.0
      %3101 = vmatpush2.msra.mxu0 0.0
      %3102 = vmatprep.subr.mxu0 0.0
      %3103 = vmatpush2.msra.mxu0 0.0
      %3104 = vmatprep.subr.mxu0 0.0
      %3105 = vmatpush2.msra.mxu0 0.0
      %3106 = vmatprep.subr.mxu0 0.0
      %3107 = vmatpush2.msra.mxu0 0.0
      %3108 = vmatprep.subr.mxu0 0.0
      %3109 = vmatpush2.msra.mxu0 0.0
      %3110 = vmatprep.subr.mxu0 0.0
      %3111 = vmatpush2.msra.mxu0 0.0
      %3112 = vmatprep.subr.mxu0 0.0
      %3113 = vmatpush2.msra.mxu0 0.0
      %3114 = vmatprep.subr.mxu0 0.0
      %3115 = vmatpush2.msra.mxu0 0.0
      %3116 = vmatprep.subr.mxu0 0.0
      %3117 = vmatpush2.msra.mxu0 0.0
      %3118 = vmatprep.mubr.f32.mxu0 0.0
      %3119 = vmatmul.mubr.f32.gmra.mxu0 %v3031
      %v3120 = vpop.f32.mrf.mxu0
      %v3121 = vadd.f32 0.0, %v3120
      %v3122 = vpop.f32.mrf.mxu0
      %3123 = vmatprep.mubr.f32.mxu0 0.0
      %3124 = vmatmul.mubr.f32.gmra.mxu0 %v3034
      %v3125 = vpop.f32.mrf.mxu0
      %v3126 = vadd.f32 0.0, %v3125
      %v3127 = vpop.f32.mrf.mxu0
      %3128 = vmatprep.mubr.f32.mxu0 0.0
      %3129 = vmatmul.mubr.f32.gmra.mxu0 %v3037
      %v3130 = vpop.f32.mrf.mxu0
      %v3131 = vadd.f32 0.0, %v3130
      %v3132 = vpop.f32.mrf.mxu0
      %3133 = vmatprep.mubr.f32.mxu0 0.0
      %3134 = vmatmul.mubr.f32.gmra.mxu0 %v3040
      %v3135 = vpop.f32.mrf.mxu0
      %v3136 = vadd.f32 0.0, %v3135
      %v3137 = vpop.f32.mrf.mxu0
      %3138 = vmatprep.mubr.f32.mxu0 0.0
      %3139 = vmatmul.mubr.f32.gmra.mxu0 %v3043
      %v3140 = vpop.f32.mrf.mxu0
      %v3141 = vadd.f32 0.0, %v3140
      %v3142 = vpop.f32.mrf.mxu0
      %3143 = vmatprep.mubr.f32.mxu0 0.0
      %3144 = vmatmul.mubr.f32.gmra.mxu0 %v3046
      %v3145 = vpop.f32.mrf.mxu0
      %v3146 = vadd.f32 0.0, %v3145
      %v3147 = vpop.f32.mrf.mxu0
      %3148 = vmatprep.mubr.f32.mxu0 0.0
      %3149 = vmatmul.mubr.f32.gmra.mxu0 %v3049
      %v3150 = vpop.f32.mrf.mxu0
      %v3151 = vadd.f32 0.0, %v3150
      %v3152 = vpop.f32.mrf.mxu0
      %3153 = vmatprep.mubr.f32.mxu0 0.0
      %3154 = vmatmul.mubr.f32.gmra.mxu0 %v3052
      %v3155 = vpop.f32.mrf.mxu0
      %v3156 = vadd.f32 0.0, %v3155
      %v3157 = vpop.f32.mrf.mxu0
      %3158 = vdwg.mxu0
      %v3160 = vsel %vm384, %v1167, 0
      %v3163 = vsel %vm384, %v1243, 0
      %v3166 = vsel %vm384, %v1319, 0
      %v3169 = vsel %vm384, %v1395, 0
      %v3172 = vsel %vm384, %v1471, 0
      %v3175 = vsel %vm384, %v1547, 0
      %v3178 = vsel %vm384, %v1623, 0
      %v3181 = vsel %vm384, %v1699, 0
      %3183 = vmatprep.subr.mxu0 0.0
      %3184 = vmatpush1.msra.mxu0 0.0
      %3185 = vmatprep.subr.mxu0 0.0
      %3186 = vmatpush1.msra.mxu0 0.0
      %3187 = vmatprep.subr.mxu0 0.0
      %3188 = vmatpush1.msra.mxu0 0.0
      %3189 = vmatprep.subr.mxu0 0.0
      %3190 = vmatpush1.msra.mxu0 0.0
      %3191 = vmatprep.subr.mxu0 0.0
      %3192 = vmatpush1.msra.mxu0 0.0
      %3193 = vmatprep.subr.mxu0 0.0
      %3194 = vmatpush1.msra.mxu0 0.0
      %3195 = vmatprep.subr.mxu0 0.0
      %3196 = vmatpush1.msra.mxu0 0.0
      %3197 = vmatprep.subr.mxu0 0.0
      %3198 = vmatpush1.msra.mxu0 0.0
      %3199 = vmatprep.subr.mxu0 0.0
      %3200 = vmatpush1.msra.mxu0 0.0
      %3201 = vmatprep.subr.mxu0 0.0
      %3202 = vmatpush1.msra.mxu0 0.0
      %3203 = vmatprep.subr.mxu0 0.0
      %3204 = vmatpush1.msra.mxu0 0.0
      %3205 = vmatprep.subr.mxu0 0.0
      %3206 = vmatpush1.msra.mxu0 0.0
      %3207 = vmatprep.subr.mxu0 0.0
      %3208 = vmatpush1.msra.mxu0 0.0
      %3209 = vmatprep.subr.mxu0 0.0
      %3210 = vmatpush1.msra.mxu0 0.0
      %3211 = vmatprep.subr.mxu0 0.0
      %3212 = vmatpush1.msra.mxu0 0.0
      %3213 = vmatprep.subr.mxu0 0.0
      %3214 = vmatpush1.msra.mxu0 %v377
      %3215 = vmatprep.subr.mxu0 0.0
      %3216 = vmatpush2.msra.mxu0 0.0
      %3217 = vmatprep.subr.mxu0 0.0
      %3218 = vmatpush2.msra.mxu0 0.0
      %3219 = vmatprep.subr.mxu0 0.0
      %3220 = vmatpush2.msra.mxu0 0.0
      %3221 = vmatprep.subr.mxu0 0.0
      %3222 = vmatpush2.msra.mxu0 0.0
      %3223 = vmatprep.subr.mxu0 0.0
      %3224 = vmatpush2.msra.mxu0 0.0
      %3225 = vmatprep.subr.mxu0 0.0
      %3226 = vmatpush2.msra.mxu0 0.0
      %3227 = vmatprep.subr.mxu0 0.0
      %3228 = vmatpush2.msra.mxu0 0.0
      %3229 = vmatprep.subr.mxu0 0.0
      %3230 = vmatpush2.msra.mxu0 0.0
      %3231 = vmatprep.subr.mxu0 0.0
      %3232 = vmatpush2.msra.mxu0 0.0
      %3233 = vmatprep.subr.mxu0 0.0
      %3234 = vmatpush2.msra.mxu0 0.0
      %3235 = vmatprep.subr.mxu0 0.0
      %3236 = vmatpush2.msra.mxu0 0.0
      %3237 = vmatprep.subr.mxu0 0.0
      %3238 = vmatpush2.msra.mxu0 0.0
      %3239 = vmatprep.subr.mxu0 0.0
      %3240 = vmatpush2.msra.mxu0 0.0
      %3241 = vmatprep.subr.mxu0 0.0
      %3242 = vmatpush2.msra.mxu0 0.0
      %3243 = vmatprep.subr.mxu0 0.0
      %3244 = vmatpush2.msra.mxu0 0.0
      %3245 = vmatprep.subr.mxu0 0.0
      %3246 = vmatpush2.msra.mxu0 0.0
      %3247 = vmatprep.mubr.f32.mxu0 0.0
      %3248 = vmatmul.mubr.f32.gmra.mxu0 %v3160
      %v3249 = vpop.f32.mrf.mxu0
      %v3250 = vadd.f32 %v3121, %v3249
      %v3251 = vpop.f32.mrf.mxu0
      %3252 = vmatprep.mubr.f32.mxu0 0.0
      %3253 = vmatmul.mubr.f32.gmra.mxu0 %v3163
      %v3254 = vpop.f32.mrf.mxu0
      %v3255 = vadd.f32 %v3126, %v3254
      %v3256 = vpop.f32.mrf.mxu0
      %3257 = vmatprep.mubr.f32.mxu0 0.0
      %3258 = vmatmul.mubr.f32.gmra.mxu0 %v3166
      %v3259 = vpop.f32.mrf.mxu0
      %v3260 = vadd.f32 %v3131, %v3259
      %v3261 = vpop.f32.mrf.mxu0
      %3262 = vmatprep.mubr.f32.mxu0 0.0
      %3263 = vmatmul.mubr.f32.gmra.mxu0 %v3169
      %v3264 = vpop.f32.mrf.mxu0
      %v3265 = vadd.f32 %v3136, %v3264
      %v3266 = vpop.f32.mrf.mxu0
      %3267 = vmatprep.mubr.f32.mxu0 0.0
      %3268 = vmatmul.mubr.f32.gmra.mxu0 %v3172
      %v3269 = vpop.f32.mrf.mxu0
      %v3270 = vadd.f32 %v3141, %v3269
      %v3271 = vpop.f32.mrf.mxu0
      %3272 = vmatprep.mubr.f32.mxu0 0.0
      %3273 = vmatmul.mubr.f32.gmra.mxu0 %v3175
      %v3274 = vpop.f32.mrf.mxu0
      %v3275 = vadd.f32 %v3146, %v3274
      %v3276 = vpop.f32.mrf.mxu0
      %3277 = vmatprep.mubr.f32.mxu0 0.0
      %3278 = vmatmul.mubr.f32.gmra.mxu0 %v3178
      %v3279 = vpop.f32.mrf.mxu0
      %v3280 = vadd.f32 %v3151, %v3279
      %v3281 = vpop.f32.mrf.mxu0
      %3282 = vmatprep.mubr.f32.mxu0 0.0
      %3283 = vmatmul.mubr.f32.gmra.mxu0 %v3181
      %v3284 = vpop.f32.mrf.mxu0
      %v3285 = vadd.f32 %v3156, %v3284
      %v3286 = vpop.f32.mrf.mxu0
      %3287 = vdwg.mxu0
      %3288 = vrot.lane.b32.xlu0 %v339, 112
      %v3289 = vpop.permute.xlu0 %3288
      %3290 = vrot.lane.b32.xlu0 %v339, 80
      %v3291 = vpop.permute.xlu0 %3290
      %v3292 = vsel %vm384, %v3289, 0
      %v3294 = vsel %vm384, %v3291, 0
      %3296 = vmatprep.subr.mxu0 0.0
      %3297 = vmatpush1.xpose.msra.mxu0 0.0
      %3298 = vmatprep.subr.mxu0 0.0
      %3299 = vmatpush1.xpose.msra.mxu0 0.0
      %3300 = vmatprep.subr.mxu0 0.0
      %3301 = vmatpush1.xpose.msra.mxu0 0.0
      %3302 = vmatprep.subr.mxu0 0.0
      %3303 = vmatpush1.xpose.msra.mxu0 0.0
      %3304 = vmatprep.subr.mxu0 0.0
      %3305 = vmatpush1.xpose.msra.mxu0 0.0
      %3306 = vmatprep.subr.mxu0 0.0
      %3307 = vmatpush1.xpose.msra.mxu0 0.0
      %3308 = vmatprep.subr.mxu0 0.0
      %3309 = vmatpush1.xpose.msra.mxu0 0.0
      %3310 = vmatprep.subr.mxu0 0.0
      %3311 = vmatpush1.xpose.msra.mxu0 0.0
      %3312 = vmatprep.subr.mxu0 0.0
      %3313 = vmatpush1.xpose.msra.mxu0 0.0
      %3314 = vmatprep.subr.mxu0 0.0
      %3315 = vmatpush1.xpose.msra.mxu0 0.0
      %3316 = vmatprep.subr.mxu0 0.0
      %3317 = vmatpush1.xpose.msra.mxu0 0.0
      %3318 = vmatprep.subr.mxu0 0.0
      %3319 = vmatpush1.xpose.msra.mxu0 0.0
      %3320 = vmatprep.subr.mxu0 0.0
      %3321 = vmatpush1.xpose.msra.mxu0 0.0
      %3322 = vmatprep.subr.mxu0 0.0
      %3323 = vmatpush1.xpose.msra.mxu0 0.0
      %3324 = vmatprep.subr.mxu0 0.0
      %3325 = vmatpush1.xpose.msra.mxu0 0.0
      %3326 = vmatprep.subr.mxu0 0.0
      %3327 = vmatpush1.xpose.msra.mxu0 %v3294
      %3328 = vmatprep.subr.mxu0 0.0
      %3329 = vmatpush2.xpose.msra.mxu0 0.0
      %3330 = vmatprep.subr.mxu0 0.0
      %3331 = vmatpush2.xpose.msra.mxu0 0.0
      %3332 = vmatprep.subr.mxu0 0.0
      %3333 = vmatpush2.xpose.msra.mxu0 0.0
      %3334 = vmatprep.subr.mxu0 0.0
      %3335 = vmatpush2.xpose.msra.mxu0 0.0
      %3336 = vmatprep.subr.mxu0 0.0
      %3337 = vmatpush2.xpose.msra.mxu0 0.0
      %3338 = vmatprep.subr.mxu0 0.0
      %3339 = vmatpush2.xpose.msra.mxu0 0.0
      %3340 = vmatprep.subr.mxu0 0.0
      %3341 = vmatpush2.xpose.msra.mxu0 0.0
      %3342 = vmatprep.subr.mxu0 0.0
      %3343 = vmatpush2.xpose.msra.mxu0 0.0
      %3344 = vmatprep.subr.mxu0 0.0
      %3345 = vmatpush2.xpose.msra.mxu0 0.0
      %3346 = vmatprep.subr.mxu0 0.0
      %3347 = vmatpush2.xpose.msra.mxu0 0.0
      %3348 = vmatprep.subr.mxu0 0.0
      %3349 = vmatpush2.xpose.msra.mxu0 0.0
      %3350 = vmatprep.subr.mxu0 0.0
      %3351 = vmatpush2.xpose.msra.mxu0 0.0
      %3352 = vmatprep.subr.mxu0 0.0
      %3353 = vmatpush2.xpose.msra.mxu0 0.0
      %3354 = vmatprep.subr.mxu0 0.0
      %3355 = vmatpush2.xpose.msra.mxu0 0.0
      %3356 = vmatprep.subr.mxu0 0.0
      %3357 = vmatpush2.xpose.msra.mxu0 0.0
      %3358 = vmatprep.subr.mxu0 0.0
      %3359 = vmatpush2.xpose.msra.mxu0 0.0
      %3360 = vmatprep.mubr.f32.mxu0 0.0
      %3361 = vmatmul.mubr.f32.gmra.mxu0 %v3292
      %v3362 = vpop.f32.mrf.mxu0
      %v3363 = vadd.f32 0.0, %v3362
      %v3364 = vpop.f32.mrf.mxu0
      %3365 = vdwg.mxu0
      %3366 = vrot.lane.b32.xlu0 %v344, 112
      %v3367 = vpop.permute.xlu0 %3366
      %3368 = vrot.lane.b32.xlu0 %v344, 80
      %v3369 = vpop.permute.xlu0 %3368
      %v3370 = vsel %vm384, %v3367, 0
      %v3372 = vsel %vm384, %v3369, 0
      %3374 = vmatprep.subr.mxu0 0.0
      %3375 = vmatpush1.xpose.msra.mxu0 0.0
      %3376 = vmatprep.subr.mxu0 0.0
      %3377 = vmatpush1.xpose.msra.mxu0 0.0
      %3378 = vmatprep.subr.mxu0 0.0
      %3379 = vmatpush1.xpose.msra.mxu0 0.0
      %3380 = vmatprep.subr.mxu0 0.0
      %3381 = vmatpush1.xpose.msra.mxu0 0.0
      %3382 = vmatprep.subr.mxu0 0.0
      %3383 = vmatpush1.xpose.msra.mxu0 0.0
      %3384 = vmatprep.subr.mxu0 0.0
      %3385 = vmatpush1.xpose.msra.mxu0 0.0
      %3386 = vmatprep.subr.mxu0 0.0
      %3387 = vmatpush1.xpose.msra.mxu0 0.0
      %3388 = vmatprep.subr.mxu0 0.0
      %3389 = vmatpush1.xpose.msra.mxu0 0.0
      %3390 = vmatprep.subr.mxu0 0.0
      %3391 = vmatpush1.xpose.msra.mxu0 0.0
      %3392 = vmatprep.subr.mxu0 0.0
      %3393 = vmatpush1.xpose.msra.mxu0 0.0
      %3394 = vmatprep.subr.mxu0 0.0
      %3395 = vmatpush1.xpose.msra.mxu0 0.0
      %3396 = vmatprep.subr.mxu0 0.0
      %3397 = vmatpush1.xpose.msra.mxu0 0.0
      %3398 = vmatprep.subr.mxu0 0.0
      %3399 = vmatpush1.xpose.msra.mxu0 0.0
      %3400 = vmatprep.subr.mxu0 0.0
      %3401 = vmatpush1.xpose.msra.mxu0 0.0
      %3402 = vmatprep.subr.mxu0 0.0
      %3403 = vmatpush1.xpose.msra.mxu0 0.0
      %3404 = vmatprep.subr.mxu0 0.0
      %3405 = vmatpush1.xpose.msra.mxu0 %v3372
      %3406 = vmatprep.subr.mxu0 0.0
      %3407 = vmatpush2.xpose.msra.mxu0 0.0
      %3408 = vmatprep.subr.mxu0 0.0
      %3409 = vmatpush2.xpose.msra.mxu0 0.0
      %3410 = vmatprep.subr.mxu0 0.0
      %3411 = vmatpush2.xpose.msra.mxu0 0.0
      %3412 = vmatprep.subr.mxu0 0.0
      %3413 = vmatpush2.xpose.msra.mxu0 0.0
      %3414 = vmatprep.subr.mxu0 0.0
      %3415 = vmatpush2.xpose.msra.mxu0 0.0
      %3416 = vmatprep.subr.mxu0 0.0
      %3417 = vmatpush2.xpose.msra.mxu0 0.0
      %3418 = vmatprep.subr.mxu0 0.0
      %3419 = vmatpush2.xpose.msra.mxu0 0.0
      %3420 = vmatprep.subr.mxu0 0.0
      %3421 = vmatpush2.xpose.msra.mxu0 0.0
      %3422 = vmatprep.subr.mxu0 0.0
      %3423 = vmatpush2.xpose.msra.mxu0 0.0
      %3424 = vmatprep.subr.mxu0 0.0
      %3425 = vmatpush2.xpose.msra.mxu0 0.0
      %3426 = vmatprep.subr.mxu0 0.0
      %3427 = vmatpush2.xpose.msra.mxu0 0.0
      %3428 = vmatprep.subr.mxu0 0.0
      %3429 = vmatpush2.xpose.msra.mxu0 0.0
      %3430 = vmatprep.subr.mxu0 0.0
      %3431 = vmatpush2.xpose.msra.mxu0 0.0
      %3432 = vmatprep.subr.mxu0 0.0
      %3433 = vmatpush2.xpose.msra.mxu0 0.0
      %3434 = vmatprep.subr.mxu0 0.0
      %3435 = vmatpush2.xpose.msra.mxu0 0.0
      %3436 = vmatprep.subr.mxu0 0.0
      %3437 = vmatpush2.xpose.msra.mxu0 0.0
      %3438 = vmatprep.mubr.f32.mxu0 0.0
      %3439 = vmatmul.mubr.f32.gmra.mxu0 %v3370
      %v3440 = vpop.f32.mrf.mxu0
      %v3441 = vadd.f32 0.0, %v3440
      %v3442 = vpop.f32.mrf.mxu0
      %3443 = vdwg.mxu0
      %3444 = vrot.lane.b32.xlu0 %v349, 112
      %v3445 = vpop.permute.xlu0 %3444
      %3446 = vrot.lane.b32.xlu0 %v349, 80
      %v3447 = vpop.permute.xlu0 %3446
      %v3448 = vsel %vm384, %v3445, 0
      %v3450 = vsel %vm384, %v3447, 0
      %3452 = vmatprep.subr.mxu0 0.0
      %3453 = vmatpush1.xpose.msra.mxu0 0.0
      %3454 = vmatprep.subr.mxu0 0.0
      %3455 = vmatpush1.xpose.msra.mxu0 0.0
      %3456 = vmatprep.subr.mxu0 0.0
      %3457 = vmatpush1.xpose.msra.mxu0 0.0
      %3458 = vmatprep.subr.mxu0 0.0
      %3459 = vmatpush1.xpose.msra.mxu0 0.0
      %3460 = vmatprep.subr.mxu0 0.0
      %3461 = vmatpush1.xpose.msra.mxu0 0.0
      %3462 = vmatprep.subr.mxu0 0.0
      %3463 = vmatpush1.xpose.msra.mxu0 0.0
      %3464 = vmatprep.subr.mxu0 0.0
      %3465 = vmatpush1.xpose.msra.mxu0 0.0
      %3466 = vmatprep.subr.mxu0 0.0
      %3467 = vmatpush1.xpose.msra.mxu0 0.0
      %3468 = vmatprep.subr.mxu0 0.0
      %3469 = vmatpush1.xpose.msra.mxu0 0.0
      %3470 = vmatprep.subr.mxu0 0.0
      %3471 = vmatpush1.xpose.msra.mxu0 0.0
      %3472 = vmatprep.subr.mxu0 0.0
      %3473 = vmatpush1.xpose.msra.mxu0 0.0
      %3474 = vmatprep.subr.mxu0 0.0
      %3475 = vmatpush1.xpose.msra.mxu0 0.0
      %3476 = vmatprep.subr.mxu0 0.0
      %3477 = vmatpush1.xpose.msra.mxu0 0.0
      %3478 = vmatprep.subr.mxu0 0.0
      %3479 = vmatpush1.xpose.msra.mxu0 0.0
      %3480 = vmatprep.subr.mxu0 0.0
      %3481 = vmatpush1.xpose.msra.mxu0 0.0
      %3482 = vmatprep.subr.mxu0 0.0
      %3483 = vmatpush1.xpose.msra.mxu0 %v3450
      %3484 = vmatprep.subr.mxu0 0.0
      %3485 = vmatpush2.xpose.msra.mxu0 0.0
      %3486 = vmatprep.subr.mxu0 0.0
      %3487 = vmatpush2.xpose.msra.mxu0 0.0
      %3488 = vmatprep.subr.mxu0 0.0
      %3489 = vmatpush2.xpose.msra.mxu0 0.0
      %3490 = vmatprep.subr.mxu0 0.0
      %3491 = vmatpush2.xpose.msra.mxu0 0.0
      %3492 = vmatprep.subr.mxu0 0.0
      %3493 = vmatpush2.xpose.msra.mxu0 0.0
      %3494 = vmatprep.subr.mxu0 0.0
      %3495 = vmatpush2.xpose.msra.mxu0 0.0
      %3496 = vmatprep.subr.mxu0 0.0
      %3497 = vmatpush2.xpose.msra.mxu0 0.0
      %3498 = vmatprep.subr.mxu0 0.0
      %3499 = vmatpush2.xpose.msra.mxu0 0.0
      %3500 = vmatprep.subr.mxu0 0.0
      %3501 = vmatpush2.xpose.msra.mxu0 0.0
      %3502 = vmatprep.subr.mxu0 0.0
      %3503 = vmatpush2.xpose.msra.mxu0 0.0
      %3504 = vmatprep.subr.mxu0 0.0
      %3505 = vmatpush2.xpose.msra.mxu0 0.0
      %3506 = vmatprep.subr.mxu0 0.0
      %3507 = vmatpush2.xpose.msra.mxu0 0.0
      %3508 = vmatprep.subr.mxu0 0.0
      %3509 = vmatpush2.xpose.msra.mxu0 0.0
      %3510 = vmatprep.subr.mxu0 0.0
      %3511 = vmatpush2.xpose.msra.mxu0 0.0
      %3512 = vmatprep.subr.mxu0 0.0
      %3513 = vmatpush2.xpose.msra.mxu0 0.0
      %3514 = vmatprep.subr.mxu0 0.0
      %3515 = vmatpush2.xpose.msra.mxu0 0.0
      %3516 = vmatprep.mubr.f32.mxu0 0.0
      %3517 = vmatmul.mubr.f32.gmra.mxu0 %v3448
      %v3518 = vpop.f32.mrf.mxu0
      %v3519 = vadd.f32 0.0, %v3518
      %v3520 = vpop.f32.mrf.mxu0
      %3521 = vdwg.mxu0
      %3522 = vrot.lane.b32.xlu0 %v354, 112
      %v3523 = vpop.permute.xlu0 %3522
      %3524 = vrot.lane.b32.xlu0 %v354, 80
      %v3525 = vpop.permute.xlu0 %3524
      %v3526 = vsel %vm384, %v3523, 0
      %v3528 = vsel %vm384, %v3525, 0
      %3530 = vmatprep.subr.mxu0 0.0
      %3531 = vmatpush1.xpose.msra.mxu0 0.0
      %3532 = vmatprep.subr.mxu0 0.0
      %3533 = vmatpush1.xpose.msra.mxu0 0.0
      %3534 = vmatprep.subr.mxu0 0.0
      %3535 = vmatpush1.xpose.msra.mxu0 0.0
      %3536 = vmatprep.subr.mxu0 0.0
      %3537 = vmatpush1.xpose.msra.mxu0 0.0
      %3538 = vmatprep.subr.mxu0 0.0
      %3539 = vmatpush1.xpose.msra.mxu0 0.0
      %3540 = vmatprep.subr.mxu0 0.0
      %3541 = vmatpush1.xpose.msra.mxu0 0.0
      %3542 = vmatprep.subr.mxu0 0.0
      %3543 = vmatpush1.xpose.msra.mxu0 0.0
      %3544 = vmatprep.subr.mxu0 0.0
      %3545 = vmatpush1.xpose.msra.mxu0 0.0
      %3546 = vmatprep.subr.mxu0 0.0
      %3547 = vmatpush1.xpose.msra.mxu0 0.0
      %3548 = vmatprep.subr.mxu0 0.0
      %3549 = vmatpush1.xpose.msra.mxu0 0.0
      %3550 = vmatprep.subr.mxu0 0.0
      %3551 = vmatpush1.xpose.msra.mxu0 0.0
      %3552 = vmatprep.subr.mxu0 0.0
      %3553 = vmatpush1.xpose.msra.mxu0 0.0
      %3554 = vmatprep.subr.mxu0 0.0
      %3555 = vmatpush1.xpose.msra.mxu0 0.0
      %3556 = vmatprep.subr.mxu0 0.0
      %3557 = vmatpush1.xpose.msra.mxu0 0.0
      %3558 = vmatprep.subr.mxu0 0.0
      %3559 = vmatpush1.xpose.msra.mxu0 0.0
      %3560 = vmatprep.subr.mxu0 0.0
      %3561 = vmatpush1.xpose.msra.mxu0 %v3528
      %3562 = vmatprep.subr.mxu0 0.0
      %3563 = vmatpush2.xpose.msra.mxu0 0.0
      %3564 = vmatprep.subr.mxu0 0.0
      %3565 = vmatpush2.xpose.msra.mxu0 0.0
      %3566 = vmatprep.subr.mxu0 0.0
      %3567 = vmatpush2.xpose.msra.mxu0 0.0
      %3568 = vmatprep.subr.mxu0 0.0
      %3569 = vmatpush2.xpose.msra.mxu0 0.0
      %3570 = vmatprep.subr.mxu0 0.0
      %3571 = vmatpush2.xpose.msra.mxu0 0.0
      %3572 = vmatprep.subr.mxu0 0.0
      %3573 = vmatpush2.xpose.msra.mxu0 0.0
      %3574 = vmatprep.subr.mxu0 0.0
      %3575 = vmatpush2.xpose.msra.mxu0 0.0
      %3576 = vmatprep.subr.mxu0 0.0
      %3577 = vmatpush2.xpose.msra.mxu0 0.0
      %3578 = vmatprep.subr.mxu0 0.0
      %3579 = vmatpush2.xpose.msra.mxu0 0.0
      %3580 = vmatprep.subr.mxu0 0.0
      %3581 = vmatpush2.xpose.msra.mxu0 0.0
      %3582 = vmatprep.subr.mxu0 0.0
      %3583 = vmatpush2.xpose.msra.mxu0 0.0
      %3584 = vmatprep.subr.mxu0 0.0
      %3585 = vmatpush2.xpose.msra.mxu0 0.0
      %3586 = vmatprep.subr.mxu0 0.0
      %3587 = vmatpush2.xpose.msra.mxu0 0.0
      %3588 = vmatprep.subr.mxu0 0.0
      %3589 = vmatpush2.xpose.msra.mxu0 0.0
      %3590 = vmatprep.subr.mxu0 0.0
      %3591 = vmatpush2.xpose.msra.mxu0 0.0
      %3592 = vmatprep.subr.mxu0 0.0
      %3593 = vmatpush2.xpose.msra.mxu0 0.0
      %3594 = vmatprep.mubr.f32.mxu0 0.0
      %3595 = vmatmul.mubr.f32.gmra.mxu0 %v3526
      %v3596 = vpop.f32.mrf.mxu0
      %v3597 = vadd.f32 0.0, %v3596
      %v3598 = vpop.f32.mrf.mxu0
      %3599 = vdwg.mxu0
      %3600 = vrot.lane.b32.xlu0 %v359, 112
      %v3601 = vpop.permute.xlu0 %3600
      %3602 = vrot.lane.b32.xlu0 %v359, 80
      %v3603 = vpop.permute.xlu0 %3602
      %v3604 = vsel %vm384, %v3601, 0
      %v3606 = vsel %vm384, %v3603, 0
      %3608 = vmatprep.subr.mxu0 0.0
      %3609 = vmatpush1.xpose.msra.mxu0 0.0
      %3610 = vmatprep.subr.mxu0 0.0
      %3611 = vmatpush1.xpose.msra.mxu0 0.0
      %3612 = vmatprep.subr.mxu0 0.0
      %3613 = vmatpush1.xpose.msra.mxu0 0.0
      %3614 = vmatprep.subr.mxu0 0.0
      %3615 = vmatpush1.xpose.msra.mxu0 0.0
      %3616 = vmatprep.subr.mxu0 0.0
      %3617 = vmatpush1.xpose.msra.mxu0 0.0
      %3618 = vmatprep.subr.mxu0 0.0
      %3619 = vmatpush1.xpose.msra.mxu0 0.0
      %3620 = vmatprep.subr.mxu0 0.0
      %3621 = vmatpush1.xpose.msra.mxu0 0.0
      %3622 = vmatprep.subr.mxu0 0.0
      %3623 = vmatpush1.xpose.msra.mxu0 0.0
      %3624 = vmatprep.subr.mxu0 0.0
      %3625 = vmatpush1.xpose.msra.mxu0 0.0
      %3626 = vmatprep.subr.mxu0 0.0
      %3627 = vmatpush1.xpose.msra.mxu0 0.0
      %3628 = vmatprep.subr.mxu0 0.0
      %3629 = vmatpush1.xpose.msra.mxu0 0.0
      %3630 = vmatprep.subr.mxu0 0.0
      %3631 = vmatpush1.xpose.msra.mxu0 0.0
      %3632 = vmatprep.subr.mxu0 0.0
      %3633 = vmatpush1.xpose.msra.mxu0 0.0
      %3634 = vmatprep.subr.mxu0 0.0
      %3635 = vmatpush1.xpose.msra.mxu0 0.0
      %3636 = vmatprep.subr.mxu0 0.0
      %3637 = vmatpush1.xpose.msra.mxu0 0.0
      %3638 = vmatprep.subr.mxu0 0.0
      %3639 = vmatpush1.xpose.msra.mxu0 %v3606
      %3640 = vmatprep.subr.mxu0 0.0
      %3641 = vmatpush2.xpose.msra.mxu0 0.0
      %3642 = vmatprep.subr.mxu0 0.0
      %3643 = vmatpush2.xpose.msra.mxu0 0.0
      %3644 = vmatprep.subr.mxu0 0.0
      %3645 = vmatpush2.xpose.msra.mxu0 0.0
      %3646 = vmatprep.subr.mxu0 0.0
      %3647 = vmatpush2.xpose.msra.mxu0 0.0
      %3648 = vmatprep.subr.mxu0 0.0
      %3649 = vmatpush2.xpose.msra.mxu0 0.0
      %3650 = vmatprep.subr.mxu0 0.0
      %3651 = vmatpush2.xpose.msra.mxu0 0.0
      %3652 = vmatprep.subr.mxu0 0.0
      %3653 = vmatpush2.xpose.msra.mxu0 0.0
      %3654 = vmatprep.subr.mxu0 0.0
      %3655 = vmatpush2.xpose.msra.mxu0 0.0
      %3656 = vmatprep.subr.mxu0 0.0
      %3657 = vmatpush2.xpose.msra.mxu0 0.0
      %3658 = vmatprep.subr.mxu0 0.0
      %3659 = vmatpush2.xpose.msra.mxu0 0.0
      %3660 = vmatprep.subr.mxu0 0.0
      %3661 = vmatpush2.xpose.msra.mxu0 0.0
      %3662 = vmatprep.subr.mxu0 0.0
      %3663 = vmatpush2.xpose.msra.mxu0 0.0
      %3664 = vmatprep.subr.mxu0 0.0
      %3665 = vmatpush2.xpose.msra.mxu0 0.0
      %3666 = vmatprep.subr.mxu0 0.0
      %3667 = vmatpush2.xpose.msra.mxu0 0.0
      %3668 = vmatprep.subr.mxu0 0.0
      %3669 = vmatpush2.xpose.msra.mxu0 0.0
      %3670 = vmatprep.subr.mxu0 0.0
      %3671 = vmatpush2.xpose.msra.mxu0 0.0
      %3672 = vmatprep.mubr.f32.mxu0 0.0
      %3673 = vmatmul.mubr.f32.gmra.mxu0 %v3604
      %v3674 = vpop.f32.mrf.mxu0
      %v3675 = vadd.f32 0.0, %v3674
      %v3676 = vpop.f32.mrf.mxu0
      %3677 = vdwg.mxu0
      %3678 = vrot.lane.b32.xlu0 %v364, 112
      %v3679 = vpop.permute.xlu0 %3678
      %3680 = vrot.lane.b32.xlu0 %v364, 80
      %v3681 = vpop.permute.xlu0 %3680
      %v3682 = vsel %vm384, %v3679, 0
      %v3684 = vsel %vm384, %v3681, 0
      %3686 = vmatprep.subr.mxu0 0.0
      %3687 = vmatpush1.xpose.msra.mxu0 0.0
      %3688 = vmatprep.subr.mxu0 0.0
      %3689 = vmatpush1.xpose.msra.mxu0 0.0
      %3690 = vmatprep.subr.mxu0 0.0
      %3691 = vmatpush1.xpose.msra.mxu0 0.0
      %3692 = vmatprep.subr.mxu0 0.0
      %3693 = vmatpush1.xpose.msra.mxu0 0.0
      %3694 = vmatprep.subr.mxu0 0.0
      %3695 = vmatpush1.xpose.msra.mxu0 0.0
      %3696 = vmatprep.subr.mxu0 0.0
      %3697 = vmatpush1.xpose.msra.mxu0 0.0
      %3698 = vmatprep.subr.mxu0 0.0
      %3699 = vmatpush1.xpose.msra.mxu0 0.0
      %3700 = vmatprep.subr.mxu0 0.0
      %3701 = vmatpush1.xpose.msra.mxu0 0.0
      %3702 = vmatprep.subr.mxu0 0.0
      %3703 = vmatpush1.xpose.msra.mxu0 0.0
      %3704 = vmatprep.subr.mxu0 0.0
      %3705 = vmatpush1.xpose.msra.mxu0 0.0
      %3706 = vmatprep.subr.mxu0 0.0
      %3707 = vmatpush1.xpose.msra.mxu0 0.0
      %3708 = vmatprep.subr.mxu0 0.0
      %3709 = vmatpush1.xpose.msra.mxu0 0.0
      %3710 = vmatprep.subr.mxu0 0.0
      %3711 = vmatpush1.xpose.msra.mxu0 0.0
      %3712 = vmatprep.subr.mxu0 0.0
      %3713 = vmatpush1.xpose.msra.mxu0 0.0
      %3714 = vmatprep.subr.mxu0 0.0
      %3715 = vmatpush1.xpose.msra.mxu0 0.0
      %3716 = vmatprep.subr.mxu0 0.0
      %3717 = vmatpush1.xpose.msra.mxu0 %v3684
      %3718 = vmatprep.subr.mxu0 0.0
      %3719 = vmatpush2.xpose.msra.mxu0 0.0
      %3720 = vmatprep.subr.mxu0 0.0
      %3721 = vmatpush2.xpose.msra.mxu0 0.0
      %3722 = vmatprep.subr.mxu0 0.0
      %3723 = vmatpush2.xpose.msra.mxu0 0.0
      %3724 = vmatprep.subr.mxu0 0.0
      %3725 = vmatpush2.xpose.msra.mxu0 0.0
      %3726 = vmatprep.subr.mxu0 0.0
      %3727 = vmatpush2.xpose.msra.mxu0 0.0
      %3728 = vmatprep.subr.mxu0 0.0
      %3729 = vmatpush2.xpose.msra.mxu0 0.0
      %3730 = vmatprep.subr.mxu0 0.0
      %3731 = vmatpush2.xpose.msra.mxu0 0.0
      %3732 = vmatprep.subr.mxu0 0.0
      %3733 = vmatpush2.xpose.msra.mxu0 0.0
      %3734 = vmatprep.subr.mxu0 0.0
      %3735 = vmatpush2.xpose.msra.mxu0 0.0
      %3736 = vmatprep.subr.mxu0 0.0
      %3737 = vmatpush2.xpose.msra.mxu0 0.0
      %3738 = vmatprep.subr.mxu0 0.0
      %3739 = vmatpush2.xpose.msra.mxu0 0.0
      %3740 = vmatprep.subr.mxu0 0.0
      %3741 = vmatpush2.xpose.msra.mxu0 0.0
      %3742 = vmatprep.subr.mxu0 0.0
      %3743 = vmatpush2.xpose.msra.mxu0 0.0
      %3744 = vmatprep.subr.mxu0 0.0
      %3745 = vmatpush2.xpose.msra.mxu0 0.0
      %3746 = vmatprep.subr.mxu0 0.0
      %3747 = vmatpush2.xpose.msra.mxu0 0.0
      %3748 = vmatprep.subr.mxu0 0.0
      %3749 = vmatpush2.xpose.msra.mxu0 0.0
      %3750 = vmatprep.mubr.f32.mxu0 0.0
      %3751 = vmatmul.mubr.f32.gmra.mxu0 %v3682
      %v3752 = vpop.f32.mrf.mxu0
      %v3753 = vadd.f32 0.0, %v3752
      %v3754 = vpop.f32.mrf.mxu0
      %3755 = vdwg.mxu0
      %3756 = vrot.lane.b32.xlu0 %v369, 112
      %v3757 = vpop.permute.xlu0 %3756
      %3758 = vrot.lane.b32.xlu0 %v369, 80
      %v3759 = vpop.permute.xlu0 %3758
      %v3760 = vsel %vm384, %v3757, 0
      %v3762 = vsel %vm384, %v3759, 0
      %3764 = vmatprep.subr.mxu0 0.0
      %3765 = vmatpush1.xpose.msra.mxu0 0.0
      %3766 = vmatprep.subr.mxu0 0.0
      %3767 = vmatpush1.xpose.msra.mxu0 0.0
      %3768 = vmatprep.subr.mxu0 0.0
      %3769 = vmatpush1.xpose.msra.mxu0 0.0
      %3770 = vmatprep.subr.mxu0 0.0
      %3771 = vmatpush1.xpose.msra.mxu0 0.0
      %3772 = vmatprep.subr.mxu0 0.0
      %3773 = vmatpush1.xpose.msra.mxu0 0.0
      %3774 = vmatprep.subr.mxu0 0.0
      %3775 = vmatpush1.xpose.msra.mxu0 0.0
      %3776 = vmatprep.subr.mxu0 0.0
      %3777 = vmatpush1.xpose.msra.mxu0 0.0
      %3778 = vmatprep.subr.mxu0 0.0
      %3779 = vmatpush1.xpose.msra.mxu0 0.0
      %3780 = vmatprep.subr.mxu0 0.0
      %3781 = vmatpush1.xpose.msra.mxu0 0.0
      %3782 = vmatprep.subr.mxu0 0.0
      %3783 = vmatpush1.xpose.msra.mxu0 0.0
      %3784 = vmatprep.subr.mxu0 0.0
      %3785 = vmatpush1.xpose.msra.mxu0 0.0
      %3786 = vmatprep.subr.mxu0 0.0
      %3787 = vmatpush1.xpose.msra.mxu0 0.0
      %3788 = vmatprep.subr.mxu0 0.0
      %3789 = vmatpush1.xpose.msra.mxu0 0.0
      %3790 = vmatprep.subr.mxu0 0.0
      %3791 = vmatpush1.xpose.msra.mxu0 0.0
      %3792 = vmatprep.subr.mxu0 0.0
      %3793 = vmatpush1.xpose.msra.mxu0 0.0
      %3794 = vmatprep.subr.mxu0 0.0
      %3795 = vmatpush1.xpose.msra.mxu0 %v3762
      %3796 = vmatprep.subr.mxu0 0.0
      %3797 = vmatpush2.xpose.msra.mxu0 0.0
      %3798 = vmatprep.subr.mxu0 0.0
      %3799 = vmatpush2.xpose.msra.mxu0 0.0
      %3800 = vmatprep.subr.mxu0 0.0
      %3801 = vmatpush2.xpose.msra.mxu0 0.0
      %3802 = vmatprep.subr.mxu0 0.0
      %3803 = vmatpush2.xpose.msra.mxu0 0.0
      %3804 = vmatprep.subr.mxu0 0.0
      %3805 = vmatpush2.xpose.msra.mxu0 0.0
      %3806 = vmatprep.subr.mxu0 0.0
      %3807 = vmatpush2.xpose.msra.mxu0 0.0
      %3808 = vmatprep.subr.mxu0 0.0
      %3809 = vmatpush2.xpose.msra.mxu0 0.0
      %3810 = vmatprep.subr.mxu0 0.0
      %3811 = vmatpush2.xpose.msra.mxu0 0.0
      %3812 = vmatprep.subr.mxu0 0.0
      %3813 = vmatpush2.xpose.msra.mxu0 0.0
      %3814 = vmatprep.subr.mxu0 0.0
      %3815 = vmatpush2.xpose.msra.mxu0 0.0
      %3816 = vmatprep.subr.mxu0 0.0
      %3817 = vmatpush2.xpose.msra.mxu0 0.0
      %3818 = vmatprep.subr.mxu0 0.0
      %3819 = vmatpush2.xpose.msra.mxu0 0.0
      %3820 = vmatprep.subr.mxu0 0.0
      %3821 = vmatpush2.xpose.msra.mxu0 0.0
      %3822 = vmatprep.subr.mxu0 0.0
      %3823 = vmatpush2.xpose.msra.mxu0 0.0
      %3824 = vmatprep.subr.mxu0 0.0
      %3825 = vmatpush2.xpose.msra.mxu0 0.0
      %3826 = vmatprep.subr.mxu0 0.0
      %3827 = vmatpush2.xpose.msra.mxu0 0.0
      %3828 = vmatprep.mubr.f32.mxu0 0.0
      %3829 = vmatmul.mubr.f32.gmra.mxu0 %v3760
      %v3830 = vpop.f32.mrf.mxu0
      %v3831 = vadd.f32 0.0, %v3830
      %v3832 = vpop.f32.mrf.mxu0
      %3833 = vdwg.mxu0
      %3834 = vrot.lane.b32.xlu0 %v374, 112
      %v3835 = vpop.permute.xlu0 %3834
      %3836 = vrot.lane.b32.xlu0 %v374, 80
      %v3837 = vpop.permute.xlu0 %3836
      %v3838 = vsel %vm384, %v3835, 0
      %v3840 = vsel %vm384, %v3837, 0
      %3842 = vmatprep.subr.mxu0 0.0
      %3843 = vmatpush1.xpose.msra.mxu0 0.0
      %3844 = vmatprep.subr.mxu0 0.0
      %3845 = vmatpush1.xpose.msra.mxu0 0.0
      %3846 = vmatprep.subr.mxu0 0.0
      %3847 = vmatpush1.xpose.msra.mxu0 0.0
      %3848 = vmatprep.subr.mxu0 0.0
      %3849 = vmatpush1.xpose.msra.mxu0 0.0
      %3850 = vmatprep.subr.mxu0 0.0
      %3851 = vmatpush1.xpose.msra.mxu0 0.0
      %3852 = vmatprep.subr.mxu0 0.0
      %3853 = vmatpush1.xpose.msra.mxu0 0.0
      %3854 = vmatprep.subr.mxu0 0.0
      %3855 = vmatpush1.xpose.msra.mxu0 0.0
      %3856 = vmatprep.subr.mxu0 0.0
      %3857 = vmatpush1.xpose.msra.mxu0 0.0
      %3858 = vmatprep.subr.mxu0 0.0
      %3859 = vmatpush1.xpose.msra.mxu0 0.0
      %3860 = vmatprep.subr.mxu0 0.0
      %3861 = vmatpush1.xpose.msra.mxu0 0.0
      %3862 = vmatprep.subr.mxu0 0.0
      %3863 = vmatpush1.xpose.msra.mxu0 0.0
      %3864 = vmatprep.subr.mxu0 0.0
      %3865 = vmatpush1.xpose.msra.mxu0 0.0
      %3866 = vmatprep.subr.mxu0 0.0
      %3867 = vmatpush1.xpose.msra.mxu0 0.0
      %3868 = vmatprep.subr.mxu0 0.0
      %3869 = vmatpush1.xpose.msra.mxu0 0.0
      %3870 = vmatprep.subr.mxu0 0.0
      %3871 = vmatpush1.xpose.msra.mxu0 0.0
      %3872 = vmatprep.subr.mxu0 0.0
      %3873 = vmatpush1.xpose.msra.mxu0 %v3840
      %3874 = vmatprep.subr.mxu0 0.0
      %3875 = vmatpush2.xpose.msra.mxu0 0.0
      %3876 = vmatprep.subr.mxu0 0.0
      %3877 = vmatpush2.xpose.msra.mxu0 0.0
      %3878 = vmatprep.subr.mxu0 0.0
      %3879 = vmatpush2.xpose.msra.mxu0 0.0
      %3880 = vmatprep.subr.mxu0 0.0
      %3881 = vmatpush2.xpose.msra.mxu0 0.0
      %3882 = vmatprep.subr.mxu0 0.0
      %3883 = vmatpush2.xpose.msra.mxu0 0.0
      %3884 = vmatprep.subr.mxu0 0.0
      %3885 = vmatpush2.xpose.msra.mxu0 0.0
      %3886 = vmatprep.subr.mxu0 0.0
      %3887 = vmatpush2.xpose.msra.mxu0 0.0
      %3888 = vmatprep.subr.mxu0 0.0
      %3889 = vmatpush2.xpose.msra.mxu0 0.0
      %3890 = vmatprep.subr.mxu0 0.0
      %3891 = vmatpush2.xpose.msra.mxu0 0.0
      %3892 = vmatprep.subr.mxu0 0.0
      %3893 = vmatpush2.xpose.msra.mxu0 0.0
      %3894 = vmatprep.subr.mxu0 0.0
      %3895 = vmatpush2.xpose.msra.mxu0 0.0
      %3896 = vmatprep.subr.mxu0 0.0
      %3897 = vmatpush2.xpose.msra.mxu0 0.0
      %3898 = vmatprep.subr.mxu0 0.0
      %3899 = vmatpush2.xpose.msra.mxu0 0.0
      %3900 = vmatprep.subr.mxu0 0.0
      %3901 = vmatpush2.xpose.msra.mxu0 0.0
      %3902 = vmatprep.subr.mxu0 0.0
      %3903 = vmatpush2.xpose.msra.mxu0 0.0
      %3904 = vmatprep.subr.mxu0 0.0
      %3905 = vmatpush2.xpose.msra.mxu0 0.0
      %3906 = vmatprep.mubr.f32.mxu0 0.0
      %3907 = vmatmul.mubr.f32.gmra.mxu0 %v3838
      %v3908 = vpop.f32.mrf.mxu0
      %v3909 = vadd.f32 0.0, %v3908
      %v3910 = vpop.f32.mrf.mxu0
      %3911 = vdwg.mxu0
      %v3912 = vmul.f32 %v3363, 0.35355338
      %v3913 = vmul.f32 %v3441, 0.35355338
      %v3914 = vmul.f32 %v3519, 0.35355338
      %v3915 = vmul.f32 %v3597, 0.35355338
      %v3916 = vmul.f32 %v3675, 0.35355338
      %v3917 = vmul.f32 %v3753, 0.35355338
      %v3918 = vmul.f32 %v3831, 0.35355338
      %v3919 = vmul.f32 %v3909, 0.35355338
      %v3920 = vsel %vm384, %v3912, -inf
      %3921 = vmax.xlane.f32.xlu0 %v3920
      %v3922 = vpop.xlane.xlu0 %3921
      %v3923 = vsel %vm384, %v3913, -inf
      %3924 = vmax.xlane.f32.xlu0 %v3923
      %v3925 = vpop.xlane.xlu0 %3924
      %v3926 = vsel %vm384, %v3914, -inf
      %3927 = vmax.xlane.f32.xlu0 %v3926
      %v3928 = vpop.xlane.xlu0 %3927
      %v3929 = vsel %vm384, %v3915, -inf
      %3930 = vmax.xlane.f32.xlu0 %v3929
      %v3931 = vpop.xlane.xlu0 %3930
      %v3932 = vsel %vm384, %v3916, -inf
      %3933 = vmax.xlane.f32.xlu0 %v3932
      %v3934 = vpop.xlane.xlu0 %3933
      %v3935 = vsel %vm384, %v3917, -inf
      %3936 = vmax.xlane.f32.xlu0 %v3935
      %v3937 = vpop.xlane.xlu0 %3936
      %v3938 = vsel %vm384, %v3918, -inf
      %3939 = vmax.xlane.f32.xlu0 %v3938
      %v3940 = vpop.xlane.xlu0 %3939
      %v3941 = vsel %vm384, %v3919, -inf
      %3942 = vmax.xlane.f32.xlu0 %v3941
      %v3943 = vpop.xlane.xlu0 %3942
      %v3944 = vsub.f32 %v3912, %v3922
      %v3945 = vsub.f32 %v3913, %v3925
      %v3946 = vsub.f32 %v3914, %v3928
      %v3947 = vsub.f32 %v3915, %v3931
      %v3948 = vsub.f32 %v3916, %v3934
      %v3949 = vsub.f32 %v3917, %v3937
      %v3950 = vsub.f32 %v3918, %v3940
      %v3951 = vsub.f32 %v3919, %v3943
      %v3952 = vmul.f32 %v3944, 1.442695
      %v3953 = vpow.pop %v3952
      %v3954 = vmul.f32 %v3945, 1.442695
      %v3955 = vpow.pop %v3954
      %v3956 = vmul.f32 %v3946, 1.442695
      %v3957 = vpow.pop %v3956
      %v3958 = vmul.f32 %v3947, 1.442695
      %v3959 = vpow.pop %v3958
      %v3960 = vmul.f32 %v3948, 1.442695
      %v3961 = vpow.pop %v3960
      %v3962 = vmul.f32 %v3949, 1.442695
      %v3963 = vpow.pop %v3962
      %v3964 = vmul.f32 %v3950, 1.442695
      %v3965 = vpow.pop %v3964
      %v3966 = vmul.f32 %v3951, 1.442695
      %v3967 = vpow.pop %v3966
      %v3968 = vsel %vm384, %v3953, 0.0
      %3969 = vadd.xlane.f32.xlu0 %v3968
      %v3970 = vpop.xlane.xlu0 %3969
      %v3971 = vsel %vm384, %v3955, 0.0
      %3972 = vadd.xlane.f32.xlu0 %v3971
      %v3973 = vpop.xlane.xlu0 %3972
      %v3974 = vsel %vm384, %v3957, 0.0
      %3975 = vadd.xlane.f32.xlu0 %v3974
      %v3976 = vpop.xlane.xlu0 %3975
      %v3977 = vsel %vm384, %v3959, 0.0
      %3978 = vadd.xlane.f32.xlu0 %v3977
      %v3979 = vpop.xlane.xlu0 %3978
      %v3980 = vsel %vm384, %v3961, 0.0
      %3981 = vadd.xlane.f32.xlu0 %v3980
      %v3982 = vpop.xlane.xlu0 %3981
      %v3983 = vsel %vm384, %v3963, 0.0
      %3984 = vadd.xlane.f32.xlu0 %v3983
      %v3985 = vpop.xlane.xlu0 %3984
      %v3986 = vsel %vm384, %v3965, 0.0
      %3987 = vadd.xlane.f32.xlu0 %v3986
      %v3988 = vpop.xlane.xlu0 %3987
      %v3989 = vsel %vm384, %v3967, 0.0
      %3990 = vadd.xlane.f32.xlu0 %v3989
      %v3991 = vpop.xlane.xlu0 %3990
      %v3992 = vrcp.pop %v3970
      %v3993 = vrcp.pop %v3973
      %v3994 = vrcp.pop %v3976
      %v3995 = vrcp.pop %v3979
      %v3996 = vrcp.pop %v3982
      %v3997 = vrcp.pop %v3985
      %v3998 = vrcp.pop %v3988
      %v3999 = vrcp.pop %v3991
      %v4000 = vmul.f32 %v3953, %v3992
      %v4001 = vmul.f32 %v3955, %v3993
      %v4002 = vmul.f32 %v3957, %v3994
      %v4003 = vmul.f32 %v3959, %v3995
      %v4004 = vmul.f32 %v3961, %v3996
      %v4005 = vmul.f32 %v3963, %v3997
      %v4006 = vmul.f32 %v3965, %v3998
      %v4007 = vmul.f32 %v3967, %v3999
      %4008 = vrot.lane.b32.xlu0 %v339, 48
      %v4009 = vpop.permute.xlu0 %4008
      %v4012 = vsel %vm384, %v4000, 0
      %4014 = vmatprep.subr.mxu0 0.0
      %4015 = vmatpush1.msra.mxu0 0.0
      %4016 = vmatprep.subr.mxu0 0.0
      %4017 = vmatpush1.msra.mxu0 0.0
      %4018 = vmatprep.subr.mxu0 0.0
      %4019 = vmatpush1.msra.mxu0 0.0
      %4020 = vmatprep.subr.mxu0 0.0
      %4021 = vmatpush1.msra.mxu0 0.0
      %4022 = vmatprep.subr.mxu0 0.0
      %4023 = vmatpush1.msra.mxu0 0.0
      %4024 = vmatprep.subr.mxu0 0.0
      %4025 = vmatpush1.msra.mxu0 0.0
      %4026 = vmatprep.subr.mxu0 0.0
      %4027 = vmatpush1.msra.mxu0 0.0
      %4028 = vmatprep.subr.mxu0 0.0
      %4029 = vmatpush1.msra.mxu0 0.0
      %4030 = vmatprep.subr.mxu0 0.0
      %4031 = vmatpush1.msra.mxu0 0.0
      %4032 = vmatprep.subr.mxu0 0.0
      %4033 = vmatpush1.msra.mxu0 0.0
      %4034 = vmatprep.subr.mxu0 0.0
      %4035 = vmatpush1.msra.mxu0 0.0
      %4036 = vmatprep.subr.mxu0 0.0
      %4037 = vmatpush1.msra.mxu0 0.0
      %4038 = vmatprep.subr.mxu0 0.0
      %4039 = vmatpush1.msra.mxu0 0.0
      %4040 = vmatprep.subr.mxu0 0.0
      %4041 = vmatpush1.msra.mxu0 0.0
      %4042 = vmatprep.subr.mxu0 0.0
      %4043 = vmatpush1.msra.mxu0 0.0
      %4044 = vmatprep.subr.mxu0 0.0
      %4045 = vmatpush1.msra.mxu0 %v4009
      %4046 = vmatprep.subr.mxu0 0.0
      %4047 = vmatpush2.msra.mxu0 0.0
      %4048 = vmatprep.subr.mxu0 0.0
      %4049 = vmatpush2.msra.mxu0 0.0
      %4050 = vmatprep.subr.mxu0 0.0
      %4051 = vmatpush2.msra.mxu0 0.0
      %4052 = vmatprep.subr.mxu0 0.0
      %4053 = vmatpush2.msra.mxu0 0.0
      %4054 = vmatprep.subr.mxu0 0.0
      %4055 = vmatpush2.msra.mxu0 0.0
      %4056 = vmatprep.subr.mxu0 0.0
      %4057 = vmatpush2.msra.mxu0 0.0
      %4058 = vmatprep.subr.mxu0 0.0
      %4059 = vmatpush2.msra.mxu0 0.0
      %4060 = vmatprep.subr.mxu0 0.0
      %4061 = vmatpush2.msra.mxu0 0.0
      %4062 = vmatprep.subr.mxu0 0.0
      %4063 = vmatpush2.msra.mxu0 0.0
      %4064 = vmatprep.subr.mxu0 0.0
      %4065 = vmatpush2.msra.mxu0 0.0
      %4066 = vmatprep.subr.mxu0 0.0
      %4067 = vmatpush2.msra.mxu0 0.0
      %4068 = vmatprep.subr.mxu0 0.0
      %4069 = vmatpush2.msra.mxu0 0.0
      %4070 = vmatprep.subr.mxu0 0.0
      %4071 = vmatpush2.msra.mxu0 0.0
      %4072 = vmatprep.subr.mxu0 0.0
      %4073 = vmatpush2.msra.mxu0 0.0
      %4074 = vmatprep.subr.mxu0 0.0
      %4075 = vmatpush2.msra.mxu0 0.0
      %4076 = vmatprep.subr.mxu0 0.0
      %4077 = vmatpush2.msra.mxu0 0.0
      %4078 = vmatprep.mubr.f32.mxu0 0.0
      %4079 = vmatmul.mubr.f32.gmra.mxu0 %v4012
      %v4080 = vpop.f32.mrf.mxu0
      %v4081 = vadd.f32 0.0, %v4080
      %v4082 = vpop.f32.mrf.mxu0
      %4083 = vdwg.mxu0
      %4084 = vrot.lane.b32.xlu0 %v344, 48
      %v4085 = vpop.permute.xlu0 %4084
      %v4088 = vsel %vm384, %v4001, 0
      %4090 = vmatprep.subr.mxu0 0.0
      %4091 = vmatpush1.msra.mxu0 0.0
      %4092 = vmatprep.subr.mxu0 0.0
      %4093 = vmatpush1.msra.mxu0 0.0
      %4094 = vmatprep.subr.mxu0 0.0
      %4095 = vmatpush1.msra.mxu0 0.0
      %4096 = vmatprep.subr.mxu0 0.0
      %4097 = vmatpush1.msra.mxu0 0.0
      %4098 = vmatprep.subr.mxu0 0.0
      %4099 = vmatpush1.msra.mxu0 0.0
      %4100 = vmatprep.subr.mxu0 0.0
      %4101 = vmatpush1.msra.mxu0 0.0
      %4102 = vmatprep.subr.mxu0 0.0
      %4103 = vmatpush1.msra.mxu0 0.0
      %4104 = vmatprep.subr.mxu0 0.0
      %4105 = vmatpush1.msra.mxu0 0.0
      %4106 = vmatprep.subr.mxu0 0.0
      %4107 = vmatpush1.msra.mxu0 0.0
      %4108 = vmatprep.subr.mxu0 0.0
      %4109 = vmatpush1.msra.mxu0 0.0
      %4110 = vmatprep.subr.mxu0 0.0
      %4111 = vmatpush1.msra.mxu0 0.0
      %4112 = vmatprep.subr.mxu0 0.0
      %4113 = vmatpush1.msra.mxu0 0.0
      %4114 = vmatprep.subr.mxu0 0.0
      %4115 = vmatpush1.msra.mxu0 0.0
      %4116 = vmatprep.subr.mxu0 0.0
      %4117 = vmatpush1.msra.mxu0 0.0
      %4118 = vmatprep.subr.mxu0 0.0
      %4119 = vmatpush1.msra.mxu0 0.0
      %4120 = vmatprep.subr.mxu0 0.0
      %4121 = vmatpush1.msra.mxu0 %v4085
      %4122 = vmatprep.subr.mxu0 0.0
      %4123 = vmatpush2.msra.mxu0 0.0
      %4124 = vmatprep.subr.mxu0 0.0
      %4125 = vmatpush2.msra.mxu0 0.0
      %4126 = vmatprep.subr.mxu0 0.0
      %4127 = vmatpush2.msra.mxu0 0.0
      %4128 = vmatprep.subr.mxu0 0.0
      %4129 = vmatpush2.msra.mxu0 0.0
      %4130 = vmatprep.subr.mxu0 0.0
      %4131 = vmatpush2.msra.mxu0 0.0
      %4132 = vmatprep.subr.mxu0 0.0
      %4133 = vmatpush2.msra.mxu0 0.0
      %4134 = vmatprep.subr.mxu0 0.0
      %4135 = vmatpush2.msra.mxu0 0.0
      %4136 = vmatprep.subr.mxu0 0.0
      %4137 = vmatpush2.msra.mxu0 0.0
      %4138 = vmatprep.subr.mxu0 0.0
      %4139 = vmatpush2.msra.mxu0 0.0
      %4140 = vmatprep.subr.mxu0 0.0
      %4141 = vmatpush2.msra.mxu0 0.0
      %4142 = vmatprep.subr.mxu0 0.0
      %4143 = vmatpush2.msra.mxu0 0.0
      %4144 = vmatprep.subr.mxu0 0.0
      %4145 = vmatpush2.msra.mxu0 0.0
      %4146 = vmatprep.subr.mxu0 0.0
      %4147 = vmatpush2.msra.mxu0 0.0
      %4148 = vmatprep.subr.mxu0 0.0
      %4149 = vmatpush2.msra.mxu0 0.0
      %4150 = vmatprep.subr.mxu0 0.0
      %4151 = vmatpush2.msra.mxu0 0.0
      %4152 = vmatprep.subr.mxu0 0.0
      %4153 = vmatpush2.msra.mxu0 0.0
      %4154 = vmatprep.mubr.f32.mxu0 0.0
      %4155 = vmatmul.mubr.f32.gmra.mxu0 %v4088
      %v4156 = vpop.f32.mrf.mxu0
      %v4157 = vadd.f32 0.0, %v4156
      %v4158 = vpop.f32.mrf.mxu0
      %4159 = vdwg.mxu0
      %4160 = vrot.lane.b32.xlu0 %v349, 48
      %v4161 = vpop.permute.xlu0 %4160
      %v4164 = vsel %vm384, %v4002, 0
      %4166 = vmatprep.subr.mxu0 0.0
      %4167 = vmatpush1.msra.mxu0 0.0
      %4168 = vmatprep.subr.mxu0 0.0
      %4169 = vmatpush1.msra.mxu0 0.0
      %4170 = vmatprep.subr.mxu0 0.0
      %4171 = vmatpush1.msra.mxu0 0.0
      %4172 = vmatprep.subr.mxu0 0.0
      %4173 = vmatpush1.msra.mxu0 0.0
      %4174 = vmatprep.subr.mxu0 0.0
      %4175 = vmatpush1.msra.mxu0 0.0
      %4176 = vmatprep.subr.mxu0 0.0
      %4177 = vmatpush1.msra.mxu0 0.0
      %4178 = vmatprep.subr.mxu0 0.0
      %4179 = vmatpush1.msra.mxu0 0.0
      %4180 = vmatprep.subr.mxu0 0.0
      %4181 = vmatpush1.msra.mxu0 0.0
      %4182 = vmatprep.subr.mxu0 0.0
      %4183 = vmatpush1.msra.mxu0 0.0
      %4184 = vmatprep.subr.mxu0 0.0
      %4185 = vmatpush1.msra.mxu0 0.0
      %4186 = vmatprep.subr.mxu0 0.0
      %4187 = vmatpush1.msra.mxu0 0.0
      %4188 = vmatprep.subr.mxu0 0.0
      %4189 = vmatpush1.msra.mxu0 0.0
      %4190 = vmatprep.subr.mxu0 0.0
      %4191 = vmatpush1.msra.mxu0 0.0
      %4192 = vmatprep.subr.mxu0 0.0
      %4193 = vmatpush1.msra.mxu0 0.0
      %4194 = vmatprep.subr.mxu0 0.0
      %4195 = vmatpush1.msra.mxu0 0.0
      %4196 = vmatprep.subr.mxu0 0.0
      %4197 = vmatpush1.msra.mxu0 %v4161
      %4198 = vmatprep.subr.mxu0 0.0
      %4199 = vmatpush2.msra.mxu0 0.0
      %4200 = vmatprep.subr.mxu0 0.0
      %4201 = vmatpush2.msra.mxu0 0.0
      %4202 = vmatprep.subr.mxu0 0.0
      %4203 = vmatpush2.msra.mxu0 0.0
      %4204 = vmatprep.subr.mxu0 0.0
      %4205 = vmatpush2.msra.mxu0 0.0
      %4206 = vmatprep.subr.mxu0 0.0
      %4207 = vmatpush2.msra.mxu0 0.0
      %4208 = vmatprep.subr.mxu0 0.0
      %4209 = vmatpush2.msra.mxu0 0.0
      %4210 = vmatprep.subr.mxu0 0.0
      %4211 = vmatpush2.msra.mxu0 0.0
      %4212 = vmatprep.subr.mxu0 0.0
      %4213 = vmatpush2.msra.mxu0 0.0
      %4214 = vmatprep.subr.mxu0 0.0
      %4215 = vmatpush2.msra.mxu0 0.0
      %4216 = vmatprep.subr.mxu0 0.0
      %4217 = vmatpush2.msra.mxu0 0.0
      %4218 = vmatprep.subr.mxu0 0.0
      %4219 = vmatpush2.msra.mxu0 0.0
      %4220 = vmatprep.subr.mxu0 0.0
      %4221 = vmatpush2.msra.mxu0 0.0
      %4222 = vmatprep.subr.mxu0 0.0
      %4223 = vmatpush2.msra.mxu0 0.0
      %4224 = vmatprep.subr.mxu0 0.0
      %4225 = vmatpush2.msra.mxu0 0.0
      %4226 = vmatprep.subr.mxu0 0.0
      %4227 = vmatpush2.msra.mxu0 0.0
      %4228 = vmatprep.subr.mxu0 0.0
      %4229 = vmatpush2.msra.mxu0 0.0
      %4230 = vmatprep.mubr.f32.mxu0 0.0
      %4231 = vmatmul.mubr.f32.gmra.mxu0 %v4164
      %v4232 = vpop.f32.mrf.mxu0
      %v4233 = vadd.f32 0.0, %v4232
      %v4234 = vpop.f32.mrf.mxu0
      %4235 = vdwg.mxu0
      %4236 = vrot.lane.b32.xlu0 %v354, 48
      %v4237 = vpop.permute.xlu0 %4236
      %v4240 = vsel %vm384, %v4003, 0
      %4242 = vmatprep.subr.mxu0 0.0
      %4243 = vmatpush1.msra.mxu0 0.0
      %4244 = vmatprep.subr.mxu0 0.0
      %4245 = vmatpush1.msra.mxu0 0.0
      %4246 = vmatprep.subr.mxu0 0.0
      %4247 = vmatpush1.msra.mxu0 0.0
      %4248 = vmatprep.subr.mxu0 0.0
      %4249 = vmatpush1.msra.mxu0 0.0
      %4250 = vmatprep.subr.mxu0 0.0
      %4251 = vmatpush1.msra.mxu0 0.0
      %4252 = vmatprep.subr.mxu0 0.0
      %4253 = vmatpush1.msra.mxu0 0.0
      %4254 = vmatprep.subr.mxu0 0.0
      %4255 = vmatpush1.msra.mxu0 0.0
      %4256 = vmatprep.subr.mxu0 0.0
      %4257 = vmatpush1.msra.mxu0 0.0
      %4258 = vmatprep.subr.mxu0 0.0
      %4259 = vmatpush1.msra.mxu0 0.0
      %4260 = vmatprep.subr.mxu0 0.0
      %4261 = vmatpush1.msra.mxu0 0.0
      %4262 = vmatprep.subr.mxu0 0.0
      %4263 = vmatpush1.msra.mxu0 0.0
      %4264 = vmatprep.subr.mxu0 0.0
      %4265 = vmatpush1.msra.mxu0 0.0
      %4266 = vmatprep.subr.mxu0 0.0
      %4267 = vmatpush1.msra.mxu0 0.0
      %4268 = vmatprep.subr.mxu0 0.0
      %4269 = vmatpush1.msra.mxu0 0.0
      %4270 = vmatprep.subr.mxu0 0.0
      %4271 = vmatpush1.msra.mxu0 0.0
      %4272 = vmatprep.subr.mxu0 0.0
      %4273 = vmatpush1.msra.mxu0 %v4237
      %4274 = vmatprep.subr.mxu0 0.0
      %4275 = vmatpush2.msra.mxu0 0.0
      %4276 = vmatprep.subr.mxu0 0.0
      %4277 = vmatpush2.msra.mxu0 0.0
      %4278 = vmatprep.subr.mxu0 0.0
      %4279 = vmatpush2.msra.mxu0 0.0
      %4280 = vmatprep.subr.mxu0 0.0
      %4281 = vmatpush2.msra.mxu0 0.0
      %4282 = vmatprep.subr.mxu0 0.0
      %4283 = vmatpush2.msra.mxu0 0.0
      %4284 = vmatprep.subr.mxu0 0.0
      %4285 = vmatpush2.msra.mxu0 0.0
      %4286 = vmatprep.subr.mxu0 0.0
      %4287 = vmatpush2.msra.mxu0 0.0
      %4288 = vmatprep.subr.mxu0 0.0
      %4289 = vmatpush2.msra.mxu0 0.0
      %4290 = vmatprep.subr.mxu0 0.0
      %4291 = vmatpush2.msra.mxu0 0.0
      %4292 = vmatprep.subr.mxu0 0.0
      %4293 = vmatpush2.msra.mxu0 0.0
      %4294 = vmatprep.subr.mxu0 0.0
      %4295 = vmatpush2.msra.mxu0 0.0
      %4296 = vmatprep.subr.mxu0 0.0
      %4297 = vmatpush2.msra.mxu0 0.0
      %4298 = vmatprep.subr.mxu0 0.0
      %4299 = vmatpush2.msra.mxu0 0.0
      %4300 = vmatprep.subr.mxu0 0.0
      %4301 = vmatpush2.msra.mxu0 0.0
      %4302 = vmatprep.subr.mxu0 0.0
      %4303 = vmatpush2.msra.mxu0 0.0
      %4304 = vmatprep.subr.mxu0 0.0
      %4305 = vmatpush2.msra.mxu0 0.0
      %4306 = vmatprep.mubr.f32.mxu0 0.0
      %4307 = vmatmul.mubr.f32.gmra.mxu0 %v4240
      %v4308 = vpop.f32.mrf.mxu0
      %v4309 = vadd.f32 0.0, %v4308
      %v4310 = vpop.f32.mrf.mxu0
      %4311 = vdwg.mxu0
      %4312 = vrot.lane.b32.xlu0 %v359, 48
      %v4313 = vpop.permute.xlu0 %4312
      %v4316 = vsel %vm384, %v4004, 0
      %4318 = vmatprep.subr.mxu0 0.0
      %4319 = vmatpush1.msra.mxu0 0.0
      %4320 = vmatprep.subr.mxu0 0.0
      %4321 = vmatpush1.msra.mxu0 0.0
      %4322 = vmatprep.subr.mxu0 0.0
      %4323 = vmatpush1.msra.mxu0 0.0
      %4324 = vmatprep.subr.mxu0 0.0
      %4325 = vmatpush1.msra.mxu0 0.0
      %4326 = vmatprep.subr.mxu0 0.0
      %4327 = vmatpush1.msra.mxu0 0.0
      %4328 = vmatprep.subr.mxu0 0.0
      %4329 = vmatpush1.msra.mxu0 0.0
      %4330 = vmatprep.subr.mxu0 0.0
      %4331 = vmatpush1.msra.mxu0 0.0
      %4332 = vmatprep.subr.mxu0 0.0
      %4333 = vmatpush1.msra.mxu0 0.0
      %4334 = vmatprep.subr.mxu0 0.0
      %4335 = vmatpush1.msra.mxu0 0.0
      %4336 = vmatprep.subr.mxu0 0.0
      %4337 = vmatpush1.msra.mxu0 0.0
      %4338 = vmatprep.subr.mxu0 0.0
      %4339 = vmatpush1.msra.mxu0 0.0
      %4340 = vmatprep.subr.mxu0 0.0
      %4341 = vmatpush1.msra.mxu0 0.0
      %4342 = vmatprep.subr.mxu0 0.0
      %4343 = vmatpush1.msra.mxu0 0.0
      %4344 = vmatprep.subr.mxu0 0.0
      %4345 = vmatpush1.msra.mxu0 0.0
      %4346 = vmatprep.subr.mxu0 0.0
      %4347 = vmatpush1.msra.mxu0 0.0
      %4348 = vmatprep.subr.mxu0 0.0
      %4349 = vmatpush1.msra.mxu0 %v4313
      %4350 = vmatprep.subr.mxu0 0.0
      %4351 = vmatpush2.msra.mxu0 0.0
      %4352 = vmatprep.subr.mxu0 0.0
      %4353 = vmatpush2.msra.mxu0 0.0
      %4354 = vmatprep.subr.mxu0 0.0
      %4355 = vmatpush2.msra.mxu0 0.0
      %4356 = vmatprep.subr.mxu0 0.0
      %4357 = vmatpush2.msra.mxu0 0.0
      %4358 = vmatprep.subr.mxu0 0.0
      %4359 = vmatpush2.msra.mxu0 0.0
      %4360 = vmatprep.subr.mxu0 0.0
      %4361 = vmatpush2.msra.mxu0 0.0
      %4362 = vmatprep.subr.mxu0 0.0
      %4363 = vmatpush2.msra.mxu0 0.0
      %4364 = vmatprep.subr.mxu0 0.0
      %4365 = vmatpush2.msra.mxu0 0.0
      %4366 = vmatprep.subr.mxu0 0.0
      %4367 = vmatpush2.msra.mxu0 0.0
      %4368 = vmatprep.subr.mxu0 0.0
      %4369 = vmatpush2.msra.mxu0 0.0
      %4370 = vmatprep.subr.mxu0 0.0
      %4371 = vmatpush2.msra.mxu0 0.0
      %4372 = vmatprep.subr.mxu0 0.0
      %4373 = vmatpush2.msra.mxu0 0.0
      %4374 = vmatprep.subr.mxu0 0.0
      %4375 = vmatpush2.msra.mxu0 0.0
      %4376 = vmatprep.subr.mxu0 0.0
      %4377 = vmatpush2.msra.mxu0 0.0
      %4378 = vmatprep.subr.mxu0 0.0
      %4379 = vmatpush2.msra.mxu0 0.0
      %4380 = vmatprep.subr.mxu0 0.0
      %4381 = vmatpush2.msra.mxu0 0.0
      %4382 = vmatprep.mubr.f32.mxu0 0.0
      %4383 = vmatmul.mubr.f32.gmra.mxu0 %v4316
      %v4384 = vpop.f32.mrf.mxu0
      %v4385 = vadd.f32 0.0, %v4384
      %v4386 = vpop.f32.mrf.mxu0
      %4387 = vdwg.mxu0
      %4388 = vrot.lane.b32.xlu0 %v364, 48
      %v4389 = vpop.permute.xlu0 %4388
      %v4392 = vsel %vm384, %v4005, 0
      %4394 = vmatprep.subr.mxu0 0.0
      %4395 = vmatpush1.msra.mxu0 0.0
      %4396 = vmatprep.subr.mxu0 0.0
      %4397 = vmatpush1.msra.mxu0 0.0
      %4398 = vmatprep.subr.mxu0 0.0
      %4399 = vmatpush1.msra.mxu0 0.0
      %4400 = vmatprep.subr.mxu0 0.0
      %4401 = vmatpush1.msra.mxu0 0.0
      %4402 = vmatprep.subr.mxu0 0.0
      %4403 = vmatpush1.msra.mxu0 0.0
      %4404 = vmatprep.subr.mxu0 0.0
      %4405 = vmatpush1.msra.mxu0 0.0
      %4406 = vmatprep.subr.mxu0 0.0
      %4407 = vmatpush1.msra.mxu0 0.0
      %4408 = vmatprep.subr.mxu0 0.0
      %4409 = vmatpush1.msra.mxu0 0.0
      %4410 = vmatprep.subr.mxu0 0.0
      %4411 = vmatpush1.msra.mxu0 0.0
      %4412 = vmatprep.subr.mxu0 0.0
      %4413 = vmatpush1.msra.mxu0 0.0
      %4414 = vmatprep.subr.mxu0 0.0
      %4415 = vmatpush1.msra.mxu0 0.0
      %4416 = vmatprep.subr.mxu0 0.0
      %4417 = vmatpush1.msra.mxu0 0.0
      %4418 = vmatprep.subr.mxu0 0.0
      %4419 = vmatpush1.msra.mxu0 0.0
      %4420 = vmatprep.subr.mxu0 0.0
      %4421 = vmatpush1.msra.mxu0 0.0
      %4422 = vmatprep.subr.mxu0 0.0
      %4423 = vmatpush1.msra.mxu0 0.0
      %4424 = vmatprep.subr.mxu0 0.0
      %4425 = vmatpush1.msra.mxu0 %v4389
      %4426 = vmatprep.subr.mxu0 0.0
      %4427 = vmatpush2.msra.mxu0 0.0
      %4428 = vmatprep.subr.mxu0 0.0
      %4429 = vmatpush2.msra.mxu0 0.0
      %4430 = vmatprep.subr.mxu0 0.0
      %4431 = vmatpush2.msra.mxu0 0.0
      %4432 = vmatprep.subr.mxu0 0.0
      %4433 = vmatpush2.msra.mxu0 0.0
      %4434 = vmatprep.subr.mxu0 0.0
      %4435 = vmatpush2.msra.mxu0 0.0
      %4436 = vmatprep.subr.mxu0 0.0
      %4437 = vmatpush2.msra.mxu0 0.0
      %4438 = vmatprep.subr.mxu0 0.0
      %4439 = vmatpush2.msra.mxu0 0.0
      %4440 = vmatprep.subr.mxu0 0.0
      %4441 = vmatpush2.msra.mxu0 0.0
      %4442 = vmatprep.subr.mxu0 0.0
      %4443 = vmatpush2.msra.mxu0 0.0
      %4444 = vmatprep.subr.mxu0 0.0
      %4445 = vmatpush2.msra.mxu0 0.0
      %4446 = vmatprep.subr.mxu0 0.0
      %4447 = vmatpush2.msra.mxu0 0.0
      %4448 = vmatprep.subr.mxu0 0.0
      %4449 = vmatpush2.msra.mxu0 0.0
      %4450 = vmatprep.subr.mxu0 0.0
      %4451 = vmatpush2.msra.mxu0 0.0
      %4452 = vmatprep.subr.mxu0 0.0
      %4453 = vmatpush2.msra.mxu0 0.0
      %4454 = vmatprep.subr.mxu0 0.0
      %4455 = vmatpush2.msra.mxu0 0.0
      %4456 = vmatprep.subr.mxu0 0.0
      %4457 = vmatpush2.msra.mxu0 0.0
      %4458 = vmatprep.mubr.f32.mxu0 0.0
      %4459 = vmatmul.mubr.f32.gmra.mxu0 %v4392
      %v4460 = vpop.f32.mrf.mxu0
      %v4461 = vadd.f32 0.0, %v4460
      %v4462 = vpop.f32.mrf.mxu0
      %4463 = vdwg.mxu0
      %4464 = vrot.lane.b32.xlu0 %v369, 48
      %v4465 = vpop.permute.xlu0 %4464
      %v4468 = vsel %vm384, %v4006, 0
      %4470 = vmatprep.subr.mxu0 0.0
      %4471 = vmatpush1.msra.mxu0 0.0
      %4472 = vmatprep.subr.mxu0 0.0
      %4473 = vmatpush1.msra.mxu0 0.0
      %4474 = vmatprep.subr.mxu0 0.0
      %4475 = vmatpush1.msra.mxu0 0.0
      %4476 = vmatprep.subr.mxu0 0.0
      %4477 = vmatpush1.msra.mxu0 0.0
      %4478 = vmatprep.subr.mxu0 0.0
      %4479 = vmatpush1.msra.mxu0 0.0
      %4480 = vmatprep.subr.mxu0 0.0
      %4481 = vmatpush1.msra.mxu0 0.0
      %4482 = vmatprep.subr.mxu0 0.0
      %4483 = vmatpush1.msra.mxu0 0.0
      %4484 = vmatprep.subr.mxu0 0.0
      %4485 = vmatpush1.msra.mxu0 0.0
      %4486 = vmatprep.subr.mxu0 0.0
      %4487 = vmatpush1.msra.mxu0 0.0
      %4488 = vmatprep.subr.mxu0 0.0
      %4489 = vmatpush1.msra.mxu0 0.0
      %4490 = vmatprep.subr.mxu0 0.0
      %4491 = vmatpush1.msra.mxu0 0.0
      %4492 = vmatprep.subr.mxu0 0.0
      %4493 = vmatpush1.msra.mxu0 0.0
      %4494 = vmatprep.subr.mxu0 0.0
      %4495 = vmatpush1.msra.mxu0 0.0
      %4496 = vmatprep.subr.mxu0 0.0
      %4497 = vmatpush1.msra.mxu0 0.0
      %4498 = vmatprep.subr.mxu0 0.0
      %4499 = vmatpush1.msra.mxu0 0.0
      %4500 = vmatprep.subr.mxu0 0.0
      %4501 = vmatpush1.msra.mxu0 %v4465
      %4502 = vmatprep.subr.mxu0 0.0
      %4503 = vmatpush2.msra.mxu0 0.0
      %4504 = vmatprep.subr.mxu0 0.0
      %4505 = vmatpush2.msra.mxu0 0.0
      %4506 = vmatprep.subr.mxu0 0.0
      %4507 = vmatpush2.msra.mxu0 0.0
      %4508 = vmatprep.subr.mxu0 0.0
      %4509 = vmatpush2.msra.mxu0 0.0
      %4510 = vmatprep.subr.mxu0 0.0
      %4511 = vmatpush2.msra.mxu0 0.0
      %4512 = vmatprep.subr.mxu0 0.0
      %4513 = vmatpush2.msra.mxu0 0.0
      %4514 = vmatprep.subr.mxu0 0.0
      %4515 = vmatpush2.msra.mxu0 0.0
      %4516 = vmatprep.subr.mxu0 0.0
      %4517 = vmatpush2.msra.mxu0 0.0
      %4518 = vmatprep.subr.mxu0 0.0
      %4519 = vmatpush2.msra.mxu0 0.0
      %4520 = vmatprep.subr.mxu0 0.0
      %4521 = vmatpush2.msra.mxu0 0.0
      %4522 = vmatprep.subr.mxu0 0.0
      %4523 = vmatpush2.msra.mxu0 0.0
      %4524 = vmatprep.subr.mxu0 0.0
      %4525 = vmatpush2.msra.mxu0 0.0
      %4526 = vmatprep.subr.mxu0 0.0
      %4527 = vmatpush2.msra.mxu0 0.0
      %4528 = vmatprep.subr.mxu0 0.0
      %4529 = vmatpush2.msra.mxu0 0.0
      %4530 = vmatprep.subr.mxu0 0.0
      %4531 = vmatpush2.msra.mxu0 0.0
      %4532 = vmatprep.subr.mxu0 0.0
      %4533 = vmatpush2.msra.mxu0 0.0
      %4534 = vmatprep.mubr.f32.mxu0 0.0
      %4535 = vmatmul.mubr.f32.gmra.mxu0 %v4468
      %v4536 = vpop.f32.mrf.mxu0
      %v4537 = vadd.f32 0.0, %v4536
      %v4538 = vpop.f32.mrf.mxu0
      %4539 = vdwg.mxu0
      %4540 = vrot.lane.b32.xlu0 %v374, 48
      %v4541 = vpop.permute.xlu0 %4540
      %v4544 = vsel %vm384, %v4007, 0
      %4546 = vmatprep.subr.mxu0 0.0
      %4547 = vmatpush1.msra.mxu0 0.0
      %4548 = vmatprep.subr.mxu0 0.0
      %4549 = vmatpush1.msra.mxu0 0.0
      %4550 = vmatprep.subr.mxu0 0.0
      %4551 = vmatpush1.msra.mxu0 0.0
      %4552 = vmatprep.subr.mxu0 0.0
      %4553 = vmatpush1.msra.mxu0 0.0
      %4554 = vmatprep.subr.mxu0 0.0
      %4555 = vmatpush1.msra.mxu0 0.0
      %4556 = vmatprep.subr.mxu0 0.0
      %4557 = vmatpush1.msra.mxu0 0.0
      %4558 = vmatprep.subr.mxu0 0.0
      %4559 = vmatpush1.msra.mxu0 0.0
      %4560 = vmatprep.subr.mxu0 0.0
      %4561 = vmatpush1.msra.mxu0 0.0
      %4562 = vmatprep.subr.mxu0 0.0
      %4563 = vmatpush1.msra.mxu0 0.0
      %4564 = vmatprep.subr.mxu0 0.0
      %4565 = vmatpush1.msra.mxu0 0.0
      %4566 = vmatprep.subr.mxu0 0.0
      %4567 = vmatpush1.msra.mxu0 0.0
      %4568 = vmatprep.subr.mxu0 0.0
      %4569 = vmatpush1.msra.mxu0 0.0
      %4570 = vmatprep.subr.mxu0 0.0
      %4571 = vmatpush1.msra.mxu0 0.0
      %4572 = vmatprep.subr.mxu0 0.0
      %4573 = vmatpush1.msra.mxu0 0.0
      %4574 = vmatprep.subr.mxu0 0.0
      %4575 = vmatpush1.msra.mxu0 0.0
      %4576 = vmatprep.subr.mxu0 0.0
      %4577 = vmatpush1.msra.mxu0 %v4541
      %4578 = vmatprep.subr.mxu0 0.0
      %4579 = vmatpush2.msra.mxu0 0.0
      %4580 = vmatprep.subr.mxu0 0.0
      %4581 = vmatpush2.msra.mxu0 0.0
      %4582 = vmatprep.subr.mxu0 0.0
      %4583 = vmatpush2.msra.mxu0 0.0
      %4584 = vmatprep.subr.mxu0 0.0
      %4585 = vmatpush2.msra.mxu0 0.0
      %4586 = vmatprep.subr.mxu0 0.0
      %4587 = vmatpush2.msra.mxu0 0.0
      %4588 = vmatprep.subr.mxu0 0.0
      %4589 = vmatpush2.msra.mxu0 0.0
      %4590 = vmatprep.subr.mxu0 0.0
      %4591 = vmatpush2.msra.mxu0 0.0
      %4592 = vmatprep.subr.mxu0 0.0
      %4593 = vmatpush2.msra.mxu0 0.0
      %4594 = vmatprep.subr.mxu0 0.0
      %4595 = vmatpush2.msra.mxu0 0.0
      %4596 = vmatprep.subr.mxu0 0.0
      %4597 = vmatpush2.msra.mxu0 0.0
      %4598 = vmatprep.subr.mxu0 0.0
      %4599 = vmatpush2.msra.mxu0 0.0
      %4600 = vmatprep.subr.mxu0 0.0
      %4601 = vmatpush2.msra.mxu0 0.0
      %4602 = vmatprep.subr.mxu0 0.0
      %4603 = vmatpush2.msra.mxu0 0.0
      %4604 = vmatprep.subr.mxu0 0.0
      %4605 = vmatpush2.msra.mxu0 0.0
      %4606 = vmatprep.subr.mxu0 0.0
      %4607 = vmatpush2.msra.mxu0 0.0
      %4608 = vmatprep.subr.mxu0 0.0
      %4609 = vmatpush2.msra.mxu0 0.0
      %4610 = vmatprep.mubr.f32.mxu0 0.0
      %4611 = vmatmul.mubr.f32.gmra.mxu0 %v4544
      %v4612 = vpop.f32.mrf.mxu0
      %v4613 = vadd.f32 0.0, %v4612
      %v4614 = vpop.f32.mrf.mxu0
      %4615 = vdwg.mxu0
      %v4617 = vsel %vm384, %v4081, 0
      %v4620 = vsel %vm384, %v4157, 0
      %v4623 = vsel %vm384, %v4233, 0
      %v4626 = vsel %vm384, %v4309, 0
      %v4629 = vsel %vm384, %v4385, 0
      %v4632 = vsel %vm384, %v4461, 0
      %v4635 = vsel %vm384, %v4537, 0
      %v4638 = vsel %vm384, %v4613, 0
      %4640 = vmatprep.subr.mxu0 0.0
      %4641 = vmatpush1.msra.mxu0 0.0
      %4642 = vmatprep.subr.mxu0 0.0
      %4643 = vmatpush1.msra.mxu0 0.0
      %4644 = vmatprep.subr.mxu0 0.0
      %4645 = vmatpush1.msra.mxu0 0.0
      %4646 = vmatprep.subr.mxu0 0.0
      %4647 = vmatpush1.msra.mxu0 0.0
      %4648 = vmatprep.subr.mxu0 0.0
      %4649 = vmatpush1.msra.mxu0 0.0
      %4650 = vmatprep.subr.mxu0 0.0
      %4651 = vmatpush1.msra.mxu0 0.0
      %4652 = vmatprep.subr.mxu0 0.0
      %4653 = vmatpush1.msra.mxu0 0.0
      %4654 = vmatprep.subr.mxu0 0.0
      %4655 = vmatpush1.msra.mxu0 0.0
      %4656 = vmatprep.subr.mxu0 0.0
      %4657 = vmatpush1.msra.mxu0 0.0
      %4658 = vmatprep.subr.mxu0 0.0
      %4659 = vmatpush1.msra.mxu0 0.0
      %4660 = vmatprep.subr.mxu0 0.0
      %4661 = vmatpush1.msra.mxu0 0.0
      %4662 = vmatprep.subr.mxu0 0.0
      %4663 = vmatpush1.msra.mxu0 0.0
      %4664 = vmatprep.subr.mxu0 0.0
      %4665 = vmatpush1.msra.mxu0 0.0
      %4666 = vmatprep.subr.mxu0 0.0
      %4667 = vmatpush1.msra.mxu0 0.0
      %4668 = vmatprep.subr.mxu0 0.0
      %4669 = vmatpush1.msra.mxu0 0.0
      %4670 = vmatprep.subr.mxu0 0.0
      %4671 = vmatpush1.msra.mxu0 %v379
      %4672 = vmatprep.subr.mxu0 0.0
      %4673 = vmatpush2.msra.mxu0 0.0
      %4674 = vmatprep.subr.mxu0 0.0
      %4675 = vmatpush2.msra.mxu0 0.0
      %4676 = vmatprep.subr.mxu0 0.0
      %4677 = vmatpush2.msra.mxu0 0.0
      %4678 = vmatprep.subr.mxu0 0.0
      %4679 = vmatpush2.msra.mxu0 0.0
      %4680 = vmatprep.subr.mxu0 0.0
      %4681 = vmatpush2.msra.mxu0 0.0
      %4682 = vmatprep.subr.mxu0 0.0
      %4683 = vmatpush2.msra.mxu0 0.0
      %4684 = vmatprep.subr.mxu0 0.0
      %4685 = vmatpush2.msra.mxu0 0.0
      %4686 = vmatprep.subr.mxu0 0.0
      %4687 = vmatpush2.msra.mxu0 0.0
      %4688 = vmatprep.subr.mxu0 0.0
      %4689 = vmatpush2.msra.mxu0 0.0
      %4690 = vmatprep.subr.mxu0 0.0
      %4691 = vmatpush2.msra.mxu0 0.0
      %4692 = vmatprep.subr.mxu0 0.0
      %4693 = vmatpush2.msra.mxu0 0.0
      %4694 = vmatprep.subr.mxu0 0.0
      %4695 = vmatpush2.msra.mxu0 0.0
      %4696 = vmatprep.subr.mxu0 0.0
      %4697 = vmatpush2.msra.mxu0 0.0
      %4698 = vmatprep.subr.mxu0 0.0
      %4699 = vmatpush2.msra.mxu0 0.0
      %4700 = vmatprep.subr.mxu0 0.0
      %4701 = vmatpush2.msra.mxu0 0.0
      %4702 = vmatprep.subr.mxu0 0.0
      %4703 = vmatpush2.msra.mxu0 0.0
      %4704 = vmatprep.mubr.f32.mxu0 0.0
      %4705 = vmatmul.mubr.f32.gmra.mxu0 %v4617
      %v4706 = vpop.f32.mrf.mxu0
      %v4707 = vadd.f32 0.0, %v4706
      %v4708 = vpop.f32.mrf.mxu0
      %4709 = vmatprep.mubr.f32.mxu0 0.0
      %4710 = vmatmul.mubr.f32.gmra.mxu0 %v4620
      %v4711 = vpop.f32.mrf.mxu0
      %v4712 = vadd.f32 0.0, %v4711
      %v4713 = vpop.f32.mrf.mxu0
      %4714 = vmatprep.mubr.f32.mxu0 0.0
      %4715 = vmatmul.mubr.f32.gmra.mxu0 %v4623
      %v4716 = vpop.f32.mrf.mxu0
      %v4717 = vadd.f32 0.0, %v4716
      %v4718 = vpop.f32.mrf.mxu0
      %4719 = vmatprep.mubr.f32.mxu0 0.0
      %4720 = vmatmul.mubr.f32.gmra.mxu0 %v4626
      %v4721 = vpop.f32.mrf.mxu0
      %v4722 = vadd.f32 0.0, %v4721
      %v4723 = vpop.f32.mrf.mxu0
      %4724 = vmatprep.mubr.f32.mxu0 0.0
      %4725 = vmatmul.mubr.f32.gmra.mxu0 %v4629
      %v4726 = vpop.f32.mrf.mxu0
      %v4727 = vadd.f32 0.0, %v4726
      %v4728 = vpop.f32.mrf.mxu0
      %4729 = vmatprep.mubr.f32.mxu0 0.0
      %4730 = vmatmul.mubr.f32.gmra.mxu0 %v4632
      %v4731 = vpop.f32.mrf.mxu0
      %v4732 = vadd.f32 0.0, %v4731
      %v4733 = vpop.f32.mrf.mxu0
      %4734 = vmatprep.mubr.f32.mxu0 0.0
      %4735 = vmatmul.mubr.f32.gmra.mxu0 %v4635
      %v4736 = vpop.f32.mrf.mxu0
      %v4737 = vadd.f32 0.0, %v4736
      %v4738 = vpop.f32.mrf.mxu0
      %4739 = vmatprep.mubr.f32.mxu0 0.0
      %4740 = vmatmul.mubr.f32.gmra.mxu0 %v4638
      %v4741 = vpop.f32.mrf.mxu0
      %v4742 = vadd.f32 0.0, %v4741
      %v4743 = vpop.f32.mrf.mxu0
      %4744 = vdwg.mxu0
      %v4745 = vadd.f32 %v3250, %v4707
      %v4746 = vadd.f32 %v3255, %v4712
      %v4747 = vadd.f32 %v3260, %v4717
      %v4748 = vadd.f32 %v3265, %v4722
      %v4749 = vadd.f32 %v3270, %v4727
      %v4750 = vadd.f32 %v3275, %v4732
      %v4751 = vadd.f32 %v3280, %v4737
      %v4752 = vadd.f32 %v3285, %v4742
      %4753 = vrot.lane.b32.xlu0 %v339, 104
      %v4754 = vpop.permute.xlu0 %4753
      %4755 = vrot.lane.b32.xlu0 %v339, 72
      %v4756 = vpop.permute.xlu0 %4755
      %v4757 = vsel %vm384, %v4754, 0
      %v4759 = vsel %vm384, %v4756, 0
      %4761 = vmatprep.subr.mxu0 0.0
      %4762 = vmatpush1.xpose.msra.mxu0 0.0
      %4763 = vmatprep.subr.mxu0 0.0
      %4764 = vmatpush1.xpose.msra.mxu0 0.0
      %4765 = vmatprep.subr.mxu0 0.0
      %4766 = vmatpush1.xpose.msra.mxu0 0.0
      %4767 = vmatprep.subr.mxu0 0.0
      %4768 = vmatpush1.xpose.msra.mxu0 0.0
      %4769 = vmatprep.subr.mxu0 0.0
      %4770 = vmatpush1.xpose.msra.mxu0 0.0
      %4771 = vmatprep.subr.mxu0 0.0
      %4772 = vmatpush1.xpose.msra.mxu0 0.0
      %4773 = vmatprep.subr.mxu0 0.0
      %4774 = vmatpush1.xpose.msra.mxu0 0.0
      %4775 = vmatprep.subr.mxu0 0.0
      %4776 = vmatpush1.xpose.msra.mxu0 0.0
      %4777 = vmatprep.subr.mxu0 0.0
      %4778 = vmatpush1.xpose.msra.mxu0 0.0
      %4779 = vmatprep.subr.mxu0 0.0
      %4780 = vmatpush1.xpose.msra.mxu0 0.0
      %4781 = vmatprep.subr.mxu0 0.0
      %4782 = vmatpush1.xpose.msra.mxu0 0.0
      %4783 = vmatprep.subr.mxu0 0.0
      %4784 = vmatpush1.xpose.msra.mxu0 0.0
      %4785 = vmatprep.subr.mxu0 0.0
      %4786 = vmatpush1.xpose.msra.mxu0 0.0
      %4787 = vmatprep.subr.mxu0 0.0
      %4788 = vmatpush1.xpose.msra.mxu0 0.0
      %4789 = vmatprep.subr.mxu0 0.0
      %4790 = vmatpush1.xpose.msra.mxu0 0.0
      %4791 = vmatprep.subr.mxu0 0.0
      %4792 = vmatpush1.xpose.msra.mxu0 %v4759
      %4793 = vmatprep.subr.mxu0 0.0
      %4794 = vmatpush2.xpose.msra.mxu0 0.0
      %4795 = vmatprep.subr.mxu0 0.0
      %4796 = vmatpush2.xpose.msra.mxu0 0.0
      %4797 = vmatprep.subr.mxu0 0.0
      %4798 = vmatpush2.xpose.msra.mxu0 0.0
      %4799 = vmatprep.subr.mxu0 0.0
      %4800 = vmatpush2.xpose.msra.mxu0 0.0
      %4801 = vmatprep.subr.mxu0 0.0
      %4802 = vmatpush2.xpose.msra.mxu0 0.0
      %4803 = vmatprep.subr.mxu0 0.0
      %4804 = vmatpush2.xpose.msra.mxu0 0.0
      %4805 = vmatprep.subr.mxu0 0.0
      %4806 = vmatpush2.xpose.msra.mxu0 0.0
      %4807 = vmatprep.subr.mxu0 0.0
      %4808 = vmatpush2.xpose.msra.mxu0 0.0
      %4809 = vmatprep.subr.mxu0 0.0
      %4810 = vmatpush2.xpose.msra.mxu0 0.0
      %4811 = vmatprep.subr.mxu0 0.0
      %4812 = vmatpush2.xpose.msra.mxu0 0.0
      %4813 = vmatprep.subr.mxu0 0.0
      %4814 = vmatpush2.xpose.msra.mxu0 0.0
      %4815 = vmatprep.subr.mxu0 0.0
      %4816 = vmatpush2.xpose.msra.mxu0 0.0
      %4817 = vmatprep.subr.mxu0 0.0
      %4818 = vmatpush2.xpose.msra.mxu0 0.0
      %4819 = vmatprep.subr.mxu0 0.0
      %4820 = vmatpush2.xpose.msra.mxu0 0.0
      %4821 = vmatprep.subr.mxu0 0.0
      %4822 = vmatpush2.xpose.msra.mxu0 0.0
      %4823 = vmatprep.subr.mxu0 0.0
      %4824 = vmatpush2.xpose.msra.mxu0 0.0
      %4825 = vmatprep.mubr.f32.mxu0 0.0
      %4826 = vmatmul.mubr.f32.gmra.mxu0 %v4757
      %v4827 = vpop.f32.mrf.mxu0
      %v4828 = vadd.f32 0.0, %v4827
      %v4829 = vpop.f32.mrf.mxu0
      %4830 = vdwg.mxu0
      %4831 = vrot.lane.b32.xlu0 %v344, 104
      %v4832 = vpop.permute.xlu0 %4831
      %4833 = vrot.lane.b32.xlu0 %v344, 72
      %v4834 = vpop.permute.xlu0 %4833
      %v4835 = vsel %vm384, %v4832, 0
      %v4837 = vsel %vm384, %v4834, 0
      %4839 = vmatprep.subr.mxu0 0.0
      %4840 = vmatpush1.xpose.msra.mxu0 0.0
      %4841 = vmatprep.subr.mxu0 0.0
      %4842 = vmatpush1.xpose.msra.mxu0 0.0
      %4843 = vmatprep.subr.mxu0 0.0
      %4844 = vmatpush1.xpose.msra.mxu0 0.0
      %4845 = vmatprep.subr.mxu0 0.0
      %4846 = vmatpush1.xpose.msra.mxu0 0.0
      %4847 = vmatprep.subr.mxu0 0.0
      %4848 = vmatpush1.xpose.msra.mxu0 0.0
      %4849 = vmatprep.subr.mxu0 0.0
      %4850 = vmatpush1.xpose.msra.mxu0 0.0
      %4851 = vmatprep.subr.mxu0 0.0
      %4852 = vmatpush1.xpose.msra.mxu0 0.0
      %4853 = vmatprep.subr.mxu0 0.0
      %4854 = vmatpush1.xpose.msra.mxu0 0.0
      %4855 = vmatprep.subr.mxu0 0.0
      %4856 = vmatpush1.xpose.msra.mxu0 0.0
      %4857 = vmatprep.subr.mxu0 0.0
      %4858 = vmatpush1.xpose.msra.mxu0 0.0
      %4859 = vmatprep.subr.mxu0 0.0
      %4860 = vmatpush1.xpose.msra.mxu0 0.0
      %4861 = vmatprep.subr.mxu0 0.0
      %4862 = vmatpush1.xpose.msra.mxu0 0.0
      %4863 = vmatprep.subr.mxu0 0.0
      %4864 = vmatpush1.xpose.msra.mxu0 0.0
      %4865 = vmatprep.subr.mxu0 0.0
      %4866 = vmatpush1.xpose.msra.mxu0 0.0
      %4867 = vmatprep.subr.mxu0 0.0
      %4868 = vmatpush1.xpose.msra.mxu0 0.0
      %4869 = vmatprep.subr.mxu0 0.0
      %4870 = vmatpush1.xpose.msra.mxu0 %v4837
      %4871 = vmatprep.subr.mxu0 0.0
      %4872 = vmatpush2.xpose.msra.mxu0 0.0
      %4873 = vmatprep.subr.mxu0 0.0
      %4874 = vmatpush2.xpose.msra.mxu0 0.0
      %4875 = vmatprep.subr.mxu0 0.0
      %4876 = vmatpush2.xpose.msra.mxu0 0.0
      %4877 = vmatprep.subr.mxu0 0.0
      %4878 = vmatpush2.xpose.msra.mxu0 0.0
      %4879 = vmatprep.subr.mxu0 0.0
      %4880 = vmatpush2.xpose.msra.mxu0 0.0
      %4881 = vmatprep.subr.mxu0 0.0
      %4882 = vmatpush2.xpose.msra.mxu0 0.0
      %4883 = vmatprep.subr.mxu0 0.0
      %4884 = vmatpush2.xpose.msra.mxu0 0.0
      %4885 = vmatprep.subr.mxu0 0.0
      %4886 = vmatpush2.xpose.msra.mxu0 0.0
      %4887 = vmatprep.subr.mxu0 0.0
      %4888 = vmatpush2.xpose.msra.mxu0 0.0
      %4889 = vmatprep.subr.mxu0 0.0
      %4890 = vmatpush2.xpose.msra.mxu0 0.0
      %4891 = vmatprep.subr.mxu0 0.0
      %4892 = vmatpush2.xpose.msra.mxu0 0.0
      %4893 = vmatprep.subr.mxu0 0.0
      %4894 = vmatpush2.xpose.msra.mxu0 0.0
      %4895 = vmatprep.subr.mxu0 0.0
      %4896 = vmatpush2.xpose.msra.mxu0 0.0
      %4897 = vmatprep.subr.mxu0 0.0
      %4898 = vmatpush2.xpose.msra.mxu0 0.0
      %4899 = vmatprep.subr.mxu0 0.0
      %4900 = vmatpush2.xpose.msra.mxu0 0.0
      %4901 = vmatprep.subr.mxu0 0.0
      %4902 = vmatpush2.xpose.msra.mxu0 0.0
      %4903 = vmatprep.mubr.f32.mxu0 0.0
      %4904 = vmatmul.mubr.f32.gmra.mxu0 %v4835
      %v4905 = vpop.f32.mrf.mxu0
      %v4906 = vadd.f32 0.0, %v4905
      %v4907 = vpop.f32.mrf.mxu0
      %4908 = vdwg.mxu0
      %4909 = vrot.lane.b32.xlu0 %v349, 104
      %v4910 = vpop.permute.xlu0 %4909
      %4911 = vrot.lane.b32.xlu0 %v349, 72
      %v4912 = vpop.permute.xlu0 %4911
      %v4913 = vsel %vm384, %v4910, 0
      %v4915 = vsel %vm384, %v4912, 0
      %4917 = vmatprep.subr.mxu0 0.0
      %4918 = vmatpush1.xpose.msra.mxu0 0.0
      %4919 = vmatprep.subr.mxu0 0.0
      %4920 = vmatpush1.xpose.msra.mxu0 0.0
      %4921 = vmatprep.subr.mxu0 0.0
      %4922 = vmatpush1.xpose.msra.mxu0 0.0
      %4923 = vmatprep.subr.mxu0 0.0
      %4924 = vmatpush1.xpose.msra.mxu0 0.0
      %4925 = vmatprep.subr.mxu0 0.0
      %4926 = vmatpush1.xpose.msra.mxu0 0.0
      %4927 = vmatprep.subr.mxu0 0.0
      %4928 = vmatpush1.xpose.msra.mxu0 0.0
      %4929 = vmatprep.subr.mxu0 0.0
      %4930 = vmatpush1.xpose.msra.mxu0 0.0
      %4931 = vmatprep.subr.mxu0 0.0
      %4932 = vmatpush1.xpose.msra.mxu0 0.0
      %4933 = vmatprep.subr.mxu0 0.0
      %4934 = vmatpush1.xpose.msra.mxu0 0.0
      %4935 = vmatprep.subr.mxu0 0.0
      %4936 = vmatpush1.xpose.msra.mxu0 0.0
      %4937 = vmatprep.subr.mxu0 0.0
      %4938 = vmatpush1.xpose.msra.mxu0 0.0
      %4939 = vmatprep.subr.mxu0 0.0
      %4940 = vmatpush1.xpose.msra.mxu0 0.0
      %4941 = vmatprep.subr.mxu0 0.0
      %4942 = vmatpush1.xpose.msra.mxu0 0.0
      %4943 = vmatprep.subr.mxu0 0.0
      %4944 = vmatpush1.xpose.msra.mxu0 0.0
      %4945 = vmatprep.subr.mxu0 0.0
      %4946 = vmatpush1.xpose.msra.mxu0 0.0
      %4947 = vmatprep.subr.mxu0 0.0
      %4948 = vmatpush1.xpose.msra.mxu0 %v4915
      %4949 = vmatprep.subr.mxu0 0.0
      %4950 = vmatpush2.xpose.msra.mxu0 0.0
      %4951 = vmatprep.subr.mxu0 0.0
      %4952 = vmatpush2.xpose.msra.mxu0 0.0
      %4953 = vmatprep.subr.mxu0 0.0
      %4954 = vmatpush2.xpose.msra.mxu0 0.0
      %4955 = vmatprep.subr.mxu0 0.0
      %4956 = vmatpush2.xpose.msra.mxu0 0.0
      %4957 = vmatprep.subr.mxu0 0.0
      %4958 = vmatpush2.xpose.msra.mxu0 0.0
      %4959 = vmatprep.subr.mxu0 0.0
      %4960 = vmatpush2.xpose.msra.mxu0 0.0
      %4961 = vmatprep.subr.mxu0 0.0
      %4962 = vmatpush2.xpose.msra.mxu0 0.0
      %4963 = vmatprep.subr.mxu0 0.0
      %4964 = vmatpush2.xpose.msra.mxu0 0.0
      %4965 = vmatprep.subr.mxu0 0.0
      %4966 = vmatpush2.xpose.msra.mxu0 0.0
      %4967 = vmatprep.subr.mxu0 0.0
      %4968 = vmatpush2.xpose.msra.mxu0 0.0
      %4969 = vmatprep.subr.mxu0 0.0
      %4970 = vmatpush2.xpose.msra.mxu0 0.0
      %4971 = vmatprep.subr.mxu0 0.0
      %4972 = vmatpush2.xpose.msra.mxu0 0.0
      %4973 = vmatprep.subr.mxu0 0.0
      %4974 = vmatpush2.xpose.msra.mxu0 0.0
      %4975 = vmatprep.subr.mxu0 0.0
      %4976 = vmatpush2.xpose.msra.mxu0 0.0
      %4977 = vmatprep.subr.mxu0 0.0
      %4978 = vmatpush2.xpose.msra.mxu0 0.0
      %4979 = vmatprep.subr.mxu0 0.0
      %4980 = vmatpush2.xpose.msra.mxu0 0.0
      %4981 = vmatprep.mubr.f32.mxu0 0.0
      %4982 = vmatmul.mubr.f32.gmra.mxu0 %v4913
      %v4983 = vpop.f32.mrf.mxu0
      %v4984 = vadd.f32 0.0, %v4983
      %v4985 = vpop.f32.mrf.mxu0
      %4986 = vdwg.mxu0
      %4987 = vrot.lane.b32.xlu0 %v354, 104
      %v4988 = vpop.permute.xlu0 %4987
      %4989 = vrot.lane.b32.xlu0 %v354, 72
      %v4990 = vpop.permute.xlu0 %4989
      %v4991 = vsel %vm384, %v4988, 0
      %v4993 = vsel %vm384, %v4990, 0
      %4995 = vmatprep.subr.mxu0 0.0
      %4996 = vmatpush1.xpose.msra.mxu0 0.0
      %4997 = vmatprep.subr.mxu0 0.0
      %4998 = vmatpush1.xpose.msra.mxu0 0.0
      %4999 = vmatprep.subr.mxu0 0.0
      %5000 = vmatpush1.xpose.msra.mxu0 0.0
      %5001 = vmatprep.subr.mxu0 0.0
      %5002 = vmatpush1.xpose.msra.mxu0 0.0
      %5003 = vmatprep.subr.mxu0 0.0
      %5004 = vmatpush1.xpose.msra.mxu0 0.0
      %5005 = vmatprep.subr.mxu0 0.0
      %5006 = vmatpush1.xpose.msra.mxu0 0.0
      %5007 = vmatprep.subr.mxu0 0.0
      %5008 = vmatpush1.xpose.msra.mxu0 0.0
      %5009 = vmatprep.subr.mxu0 0.0
      %5010 = vmatpush1.xpose.msra.mxu0 0.0
      %5011 = vmatprep.subr.mxu0 0.0
      %5012 = vmatpush1.xpose.msra.mxu0 0.0
      %5013 = vmatprep.subr.mxu0 0.0
      %5014 = vmatpush1.xpose.msra.mxu0 0.0
      %5015 = vmatprep.subr.mxu0 0.0
      %5016 = vmatpush1.xpose.msra.mxu0 0.0
      %5017 = vmatprep.subr.mxu0 0.0
      %5018 = vmatpush1.xpose.msra.mxu0 0.0
      %5019 = vmatprep.subr.mxu0 0.0
      %5020 = vmatpush1.xpose.msra.mxu0 0.0
      %5021 = vmatprep.subr.mxu0 0.0
      %5022 = vmatpush1.xpose.msra.mxu0 0.0
      %5023 = vmatprep.subr.mxu0 0.0
      %5024 = vmatpush1.xpose.msra.mxu0 0.0
      %5025 = vmatprep.subr.mxu0 0.0
      %5026 = vmatpush1.xpose.msra.mxu0 %v4993
      %5027 = vmatprep.subr.mxu0 0.0
      %5028 = vmatpush2.xpose.msra.mxu0 0.0
      %5029 = vmatprep.subr.mxu0 0.0
      %5030 = vmatpush2.xpose.msra.mxu0 0.0
      %5031 = vmatprep.subr.mxu0 0.0
      %5032 = vmatpush2.xpose.msra.mxu0 0.0
      %5033 = vmatprep.subr.mxu0 0.0
      %5034 = vmatpush2.xpose.msra.mxu0 0.0
      %5035 = vmatprep.subr.mxu0 0.0
      %5036 = vmatpush2.xpose.msra.mxu0 0.0
      %5037 = vmatprep.subr.mxu0 0.0
      %5038 = vmatpush2.xpose.msra.mxu0 0.0
      %5039 = vmatprep.subr.mxu0 0.0
      %5040 = vmatpush2.xpose.msra.mxu0 0.0
      %5041 = vmatprep.subr.mxu0 0.0
      %5042 = vmatpush2.xpose.msra.mxu0 0.0
      %5043 = vmatprep.subr.mxu0 0.0
      %5044 = vmatpush2.xpose.msra.mxu0 0.0
      %5045 = vmatprep.subr.mxu0 0.0
      %5046 = vmatpush2.xpose.msra.mxu0 0.0
      %5047 = vmatprep.subr.mxu0 0.0
      %5048 = vmatpush2.xpose.msra.mxu0 0.0
      %5049 = vmatprep.subr.mxu0 0.0
      %5050 = vmatpush2.xpose.msra.mxu0 0.0
      %5051 = vmatprep.subr.mxu0 0.0
      %5052 = vmatpush2.xpose.msra.mxu0 0.0
      %5053 = vmatprep.subr.mxu0 0.0
      %5054 = vmatpush2.xpose.msra.mxu0 0.0
      %5055 = vmatprep.subr.mxu0 0.0
      %5056 = vmatpush2.xpose.msra.mxu0 0.0
      %5057 = vmatprep.subr.mxu0 0.0
      %5058 = vmatpush2.xpose.msra.mxu0 0.0
      %5059 = vmatprep.mubr.f32.mxu0 0.0
      %5060 = vmatmul.mubr.f32.gmra.mxu0 %v4991
      %v5061 = vpop.f32.mrf.mxu0
      %v5062 = vadd.f32 0.0, %v5061
      %v5063 = vpop.f32.mrf.mxu0
      %5064 = vdwg.mxu0
      %5065 = vrot.lane.b32.xlu0 %v359, 104
      %v5066 = vpop.permute.xlu0 %5065
      %5067 = vrot.lane.b32.xlu0 %v359, 72
      %v5068 = vpop.permute.xlu0 %5067
      %v5069 = vsel %vm384, %v5066, 0
      %v5071 = vsel %vm384, %v5068, 0
      %5073 = vmatprep.subr.mxu0 0.0
      %5074 = vmatpush1.xpose.msra.mxu0 0.0
      %5075 = vmatprep.subr.mxu0 0.0
      %5076 = vmatpush1.xpose.msra.mxu0 0.0
      %5077 = vmatprep.subr.mxu0 0.0
      %5078 = vmatpush1.xpose.msra.mxu0 0.0
      %5079 = vmatprep.subr.mxu0 0.0
      %5080 = vmatpush1.xpose.msra.mxu0 0.0
      %5081 = vmatprep.subr.mxu0 0.0
      %5082 = vmatpush1.xpose.msra.mxu0 0.0
      %5083 = vmatprep.subr.mxu0 0.0
      %5084 = vmatpush1.xpose.msra.mxu0 0.0
      %5085 = vmatprep.subr.mxu0 0.0
      %5086 = vmatpush1.xpose.msra.mxu0 0.0
      %5087 = vmatprep.subr.mxu0 0.0
      %5088 = vmatpush1.xpose.msra.mxu0 0.0
      %5089 = vmatprep.subr.mxu0 0.0
      %5090 = vmatpush1.xpose.msra.mxu0 0.0
      %5091 = vmatprep.subr.mxu0 0.0
      %5092 = vmatpush1.xpose.msra.mxu0 0.0
      %5093 = vmatprep.subr.mxu0 0.0
      %5094 = vmatpush1.xpose.msra.mxu0 0.0
      %5095 = vmatprep.subr.mxu0 0.0
      %5096 = vmatpush1.xpose.msra.mxu0 0.0
      %5097 = vmatprep.subr.mxu0 0.0
      %5098 = vmatpush1.xpose.msra.mxu0 0.0
      %5099 = vmatprep.subr.mxu0 0.0
      %5100 = vmatpush1.xpose.msra.mxu0 0.0
      %5101 = vmatprep.subr.mxu0 0.0
      %5102 = vmatpush1.xpose.msra.mxu0 0.0
      %5103 = vmatprep.subr.mxu0 0.0
      %5104 = vmatpush1.xpose.msra.mxu0 %v5071
      %5105 = vmatprep.subr.mxu0 0.0
      %5106 = vmatpush2.xpose.msra.mxu0 0.0
      %5107 = vmatprep.subr.mxu0 0.0
      %5108 = vmatpush2.xpose.msra.mxu0 0.0
      %5109 = vmatprep.subr.mxu0 0.0
      %5110 = vmatpush2.xpose.msra.mxu0 0.0
      %5111 = vmatprep.subr.mxu0 0.0
      %5112 = vmatpush2.xpose.msra.mxu0 0.0
      %5113 = vmatprep.subr.mxu0 0.0
      %5114 = vmatpush2.xpose.msra.mxu0 0.0
      %5115 = vmatprep.subr.mxu0 0.0
      %5116 = vmatpush2.xpose.msra.mxu0 0.0
      %5117 = vmatprep.subr.mxu0 0.0
      %5118 = vmatpush2.xpose.msra.mxu0 0.0
      %5119 = vmatprep.subr.mxu0 0.0
      %5120 = vmatpush2.xpose.msra.mxu0 0.0
      %5121 = vmatprep.subr.mxu0 0.0
      %5122 = vmatpush2.xpose.msra.mxu0 0.0
      %5123 = vmatprep.subr.mxu0 0.0
      %5124 = vmatpush2.xpose.msra.mxu0 0.0
      %5125 = vmatprep.subr.mxu0 0.0
      %5126 = vmatpush2.xpose.msra.mxu0 0.0
      %5127 = vmatprep.subr.mxu0 0.0
      %5128 = vmatpush2.xpose.msra.mxu0 0.0
      %5129 = vmatprep.subr.mxu0 0.0
      %5130 = vmatpush2.xpose.msra.mxu0 0.0
      %5131 = vmatprep.subr.mxu0 0.0
      %5132 = vmatpush2.xpose.msra.mxu0 0.0
      %5133 = vmatprep.subr.mxu0 0.0
      %5134 = vmatpush2.xpose.msra.mxu0 0.0
      %5135 = vmatprep.subr.mxu0 0.0
      %5136 = vmatpush2.xpose.msra.mxu0 0.0
      %5137 = vmatprep.mubr.f32.mxu0 0.0
      %5138 = vmatmul.mubr.f32.gmra.mxu0 %v5069
      %v5139 = vpop.f32.mrf.mxu0
      %v5140 = vadd.f32 0.0, %v5139
      %v5141 = vpop.f32.mrf.mxu0
      %5142 = vdwg.mxu0
      %5143 = vrot.lane.b32.xlu0 %v364, 104
      %v5144 = vpop.permute.xlu0 %5143
      %5145 = vrot.lane.b32.xlu0 %v364, 72
      %v5146 = vpop.permute.xlu0 %5145
      %v5147 = vsel %vm384, %v5144, 0
      %v5149 = vsel %vm384, %v5146, 0
      %5151 = vmatprep.subr.mxu0 0.0
      %5152 = vmatpush1.xpose.msra.mxu0 0.0
      %5153 = vmatprep.subr.mxu0 0.0
      %5154 = vmatpush1.xpose.msra.mxu0 0.0
      %5155 = vmatprep.subr.mxu0 0.0
      %5156 = vmatpush1.xpose.msra.mxu0 0.0
      %5157 = vmatprep.subr.mxu0 0.0
      %5158 = vmatpush1.xpose.msra.mxu0 0.0
      %5159 = vmatprep.subr.mxu0 0.0
      %5160 = vmatpush1.xpose.msra.mxu0 0.0
      %5161 = vmatprep.subr.mxu0 0.0
      %5162 = vmatpush1.xpose.msra.mxu0 0.0
      %5163 = vmatprep.subr.mxu0 0.0
      %5164 = vmatpush1.xpose.msra.mxu0 0.0
      %5165 = vmatprep.subr.mxu0 0.0
      %5166 = vmatpush1.xpose.msra.mxu0 0.0
      %5167 = vmatprep.subr.mxu0 0.0
      %5168 = vmatpush1.xpose.msra.mxu0 0.0
      %5169 = vmatprep.subr.mxu0 0.0
      %5170 = vmatpush1.xpose.msra.mxu0 0.0
      %5171 = vmatprep.subr.mxu0 0.0
      %5172 = vmatpush1.xpose.msra.mxu0 0.0
      %5173 = vmatprep.subr.mxu0 0.0
      %5174 = vmatpush1.xpose.msra.mxu0 0.0
      %5175 = vmatprep.subr.mxu0 0.0
      %5176 = vmatpush1.xpose.msra.mxu0 0.0
      %5177 = vmatprep.subr.mxu0 0.0
      %5178 = vmatpush1.xpose.msra.mxu0 0.0
      %5179 = vmatprep.subr.mxu0 0.0
      %5180 = vmatpush1.xpose.msra.mxu0 0.0
      %5181 = vmatprep.subr.mxu0 0.0
      %5182 = vmatpush1.xpose.msra.mxu0 %v5149
      %5183 = vmatprep.subr.mxu0 0.0
      %5184 = vmatpush2.xpose.msra.mxu0 0.0
      %5185 = vmatprep.subr.mxu0 0.0
      %5186 = vmatpush2.xpose.msra.mxu0 0.0
      %5187 = vmatprep.subr.mxu0 0.0
      %5188 = vmatpush2.xpose.msra.mxu0 0.0
      %5189 = vmatprep.subr.mxu0 0.0
      %5190 = vmatpush2.xpose.msra.mxu0 0.0
      %5191 = vmatprep.subr.mxu0 0.0
      %5192 = vmatpush2.xpose.msra.mxu0 0.0
      %5193 = vmatprep.subr.mxu0 0.0
      %5194 = vmatpush2.xpose.msra.mxu0 0.0
      %5195 = vmatprep.subr.mxu0 0.0
      %5196 = vmatpush2.xpose.msra.mxu0 0.0
      %5197 = vmatprep.subr.mxu0 0.0
      %5198 = vmatpush2.xpose.msra.mxu0 0.0
      %5199 = vmatprep.subr.mxu0 0.0
      %5200 = vmatpush2.xpose.msra.mxu0 0.0
      %5201 = vmatprep.subr.mxu0 0.0
      %5202 = vmatpush2.xpose.msra.mxu0 0.0
      %5203 = vmatprep.subr.mxu0 0.0
      %5204 = vmatpush2.xpose.msra.mxu0 0.0
      %5205 = vmatprep.subr.mxu0 0.0
      %5206 = vmatpush2.xpose.msra.mxu0 0.0
      %5207 = vmatprep.subr.mxu0 0.0
      %5208 = vmatpush2.xpose.msra.mxu0 0.0
      %5209 = vmatprep.subr.mxu0 0.0
      %5210 = vmatpush2.xpose.msra.mxu0 0.0
      %5211 = vmatprep.subr.mxu0 0.0
      %5212 = vmatpush2.xpose.msra.mxu0 0.0
      %5213 = vmatprep.subr.mxu0 0.0
      %5214 = vmatpush2.xpose.msra.mxu0 0.0
      %5215 = vmatprep.mubr.f32.mxu0 0.0
      %5216 = vmatmul.mubr.f32.gmra.mxu0 %v5147
      %v5217 = vpop.f32.mrf.mxu0
      %v5218 = vadd.f32 0.0, %v5217
      %v5219 = vpop.f32.mrf.mxu0
      %5220 = vdwg.mxu0
      %5221 = vrot.lane.b32.xlu0 %v369, 104
      %v5222 = vpop.permute.xlu0 %5221
      %5223 = vrot.lane.b32.xlu0 %v369, 72
      %v5224 = vpop.permute.xlu0 %5223
      %v5225 = vsel %vm384, %v5222, 0
      %v5227 = vsel %vm384, %v5224, 0
      %5229 = vmatprep.subr.mxu0 0.0
      %5230 = vmatpush1.xpose.msra.mxu0 0.0
      %5231 = vmatprep.subr.mxu0 0.0
      %5232 = vmatpush1.xpose.msra.mxu0 0.0
      %5233 = vmatprep.subr.mxu0 0.0
      %5234 = vmatpush1.xpose.msra.mxu0 0.0
      %5235 = vmatprep.subr.mxu0 0.0
      %5236 = vmatpush1.xpose.msra.mxu0 0.0
      %5237 = vmatprep.subr.mxu0 0.0
      %5238 = vmatpush1.xpose.msra.mxu0 0.0
      %5239 = vmatprep.subr.mxu0 0.0
      %5240 = vmatpush1.xpose.msra.mxu0 0.0
      %5241 = vmatprep.subr.mxu0 0.0
      %5242 = vmatpush1.xpose.msra.mxu0 0.0
      %5243 = vmatprep.subr.mxu0 0.0
      %5244 = vmatpush1.xpose.msra.mxu0 0.0
      %5245 = vmatprep.subr.mxu0 0.0
      %5246 = vmatpush1.xpose.msra.mxu0 0.0
      %5247 = vmatprep.subr.mxu0 0.0
      %5248 = vmatpush1.xpose.msra.mxu0 0.0
      %5249 = vmatprep.subr.mxu0 0.0
      %5250 = vmatpush1.xpose.msra.mxu0 0.0
      %5251 = vmatprep.subr.mxu0 0.0
      %5252 = vmatpush1.xpose.msra.mxu0 0.0
      %5253 = vmatprep.subr.mxu0 0.0
      %5254 = vmatpush1.xpose.msra.mxu0 0.0
      %5255 = vmatprep.subr.mxu0 0.0
      %5256 = vmatpush1.xpose.msra.mxu0 0.0
      %5257 = vmatprep.subr.mxu0 0.0
      %5258 = vmatpush1.xpose.msra.mxu0 0.0
      %5259 = vmatprep.subr.mxu0 0.0
      %5260 = vmatpush1.xpose.msra.mxu0 %v5227
      %5261 = vmatprep.subr.mxu0 0.0
      %5262 = vmatpush2.xpose.msra.mxu0 0.0
      %5263 = vmatprep.subr.mxu0 0.0
      %5264 = vmatpush2.xpose.msra.mxu0 0.0
      %5265 = vmatprep.subr.mxu0 0.0
      %5266 = vmatpush2.xpose.msra.mxu0 0.0
      %5267 = vmatprep.subr.mxu0 0.0
      %5268 = vmatpush2.xpose.msra.mxu0 0.0
      %5269 = vmatprep.subr.mxu0 0.0
      %5270 = vmatpush2.xpose.msra.mxu0 0.0
      %5271 = vmatprep.subr.mxu0 0.0
      %5272 = vmatpush2.xpose.msra.mxu0 0.0
      %5273 = vmatprep.subr.mxu0 0.0
      %5274 = vmatpush2.xpose.msra.mxu0 0.0
      %5275 = vmatprep.subr.mxu0 0.0
      %5276 = vmatpush2.xpose.msra.mxu0 0.0
      %5277 = vmatprep.subr.mxu0 0.0
      %5278 = vmatpush2.xpose.msra.mxu0 0.0
      %5279 = vmatprep.subr.mxu0 0.0
      %5280 = vmatpush2.xpose.msra.mxu0 0.0
      %5281 = vmatprep.subr.mxu0 0.0
      %5282 = vmatpush2.xpose.msra.mxu0 0.0
      %5283 = vmatprep.subr.mxu0 0.0
      %5284 = vmatpush2.xpose.msra.mxu0 0.0
      %5285 = vmatprep.subr.mxu0 0.0
      %5286 = vmatpush2.xpose.msra.mxu0 0.0
      %5287 = vmatprep.subr.mxu0 0.0
      %5288 = vmatpush2.xpose.msra.mxu0 0.0
      %5289 = vmatprep.subr.mxu0 0.0
      %5290 = vmatpush2.xpose.msra.mxu0 0.0
      %5291 = vmatprep.subr.mxu0 0.0
      %5292 = vmatpush2.xpose.msra.mxu0 0.0
      %5293 = vmatprep.mubr.f32.mxu0 0.0
      %5294 = vmatmul.mubr.f32.gmra.mxu0 %v5225
      %v5295 = vpop.f32.mrf.mxu0
      %v5296 = vadd.f32 0.0, %v5295
      %v5297 = vpop.f32.mrf.mxu0
      %5298 = vdwg.mxu0
      %5299 = vrot.lane.b32.xlu0 %v374, 104
      %v5300 = vpop.permute.xlu0 %5299
      %5301 = vrot.lane.b32.xlu0 %v374, 72
      %v5302 = vpop.permute.xlu0 %5301
      %v5303 = vsel %vm384, %v5300, 0
      %v5305 = vsel %vm384, %v5302, 0
      %5307 = vmatprep.subr.mxu0 0.0
      %5308 = vmatpush1.xpose.msra.mxu0 0.0
      %5309 = vmatprep.subr.mxu0 0.0
      %5310 = vmatpush1.xpose.msra.mxu0 0.0
      %5311 = vmatprep.subr.mxu0 0.0
      %5312 = vmatpush1.xpose.msra.mxu0 0.0
      %5313 = vmatprep.subr.mxu0 0.0
      %5314 = vmatpush1.xpose.msra.mxu0 0.0
      %5315 = vmatprep.subr.mxu0 0.0
      %5316 = vmatpush1.xpose.msra.mxu0 0.0
      %5317 = vmatprep.subr.mxu0 0.0
      %5318 = vmatpush1.xpose.msra.mxu0 0.0
      %5319 = vmatprep.subr.mxu0 0.0
      %5320 = vmatpush1.xpose.msra.mxu0 0.0
      %5321 = vmatprep.subr.mxu0 0.0
      %5322 = vmatpush1.xpose.msra.mxu0 0.0
      %5323 = vmatprep.subr.mxu0 0.0
      %5324 = vmatpush1.xpose.msra.mxu0 0.0
      %5325 = vmatprep.subr.mxu0 0.0
      %5326 = vmatpush1.xpose.msra.mxu0 0.0
      %5327 = vmatprep.subr.mxu0 0.0
      %5328 = vmatpush1.xpose.msra.mxu0 0.0
      %5329 = vmatprep.subr.mxu0 0.0
      %5330 = vmatpush1.xpose.msra.mxu0 0.0
      %5331 = vmatprep.subr.mxu0 0.0
      %5332 = vmatpush1.xpose.msra.mxu0 0.0
      %5333 = vmatprep.subr.mxu0 0.0
      %5334 = vmatpush1.xpose.msra.mxu0 0.0
      %5335 = vmatprep.subr.mxu0 0.0
      %5336 = vmatpush1.xpose.msra.mxu0 0.0
      %5337 = vmatprep.subr.mxu0 0.0
      %5338 = vmatpush1.xpose.msra.mxu0 %v5305
      %5339 = vmatprep.subr.mxu0 0.0
      %5340 = vmatpush2.xpose.msra.mxu0 0.0
      %5341 = vmatprep.subr.mxu0 0.0
      %5342 = vmatpush2.xpose.msra.mxu0 0.0
      %5343 = vmatprep.subr.mxu0 0.0
      %5344 = vmatpush2.xpose.msra.mxu0 0.0
      %5345 = vmatprep.subr.mxu0 0.0
      %5346 = vmatpush2.xpose.msra.mxu0 0.0
      %5347 = vmatprep.subr.mxu0 0.0
      %5348 = vmatpush2.xpose.msra.mxu0 0.0
      %5349 = vmatprep.subr.mxu0 0.0
      %5350 = vmatpush2.xpose.msra.mxu0 0.0
      %5351 = vmatprep.subr.mxu0 0.0
      %5352 = vmatpush2.xpose.msra.mxu0 0.0
      %5353 = vmatprep.subr.mxu0 0.0
      %5354 = vmatpush2.xpose.msra.mxu0 0.0
      %5355 = vmatprep.subr.mxu0 0.0
      %5356 = vmatpush2.xpose.msra.mxu0 0.0
      %5357 = vmatprep.subr.mxu0 0.0
      %5358 = vmatpush2.xpose.msra.mxu0 0.0
      %5359 = vmatprep.subr.mxu0 0.0
      %5360 = vmatpush2.xpose.msra.mxu0 0.0
      %5361 = vmatprep.subr.mxu0 0.0
      %5362 = vmatpush2.xpose.msra.mxu0 0.0
      %5363 = vmatprep.subr.mxu0 0.0
      %5364 = vmatpush2.xpose.msra.mxu0 0.0
      %5365 = vmatprep.subr.mxu0 0.0
      %5366 = vmatpush2.xpose.msra.mxu0 0.0
      %5367 = vmatprep.subr.mxu0 0.0
      %5368 = vmatpush2.xpose.msra.mxu0 0.0
      %5369 = vmatprep.subr.mxu0 0.0
      %5370 = vmatpush2.xpose.msra.mxu0 0.0
      %5371 = vmatprep.mubr.f32.mxu0 0.0
      %5372 = vmatmul.mubr.f32.gmra.mxu0 %v5303
      %v5373 = vpop.f32.mrf.mxu0
      %v5374 = vadd.f32 0.0, %v5373
      %v5375 = vpop.f32.mrf.mxu0
      %5376 = vdwg.mxu0
      %v5377 = vmul.f32 %v4828, 0.35355338
      %v5378 = vmul.f32 %v4906, 0.35355338
      %v5379 = vmul.f32 %v4984, 0.35355338
      %v5380 = vmul.f32 %v5062, 0.35355338
      %v5381 = vmul.f32 %v5140, 0.35355338
      %v5382 = vmul.f32 %v5218, 0.35355338
      %v5383 = vmul.f32 %v5296, 0.35355338
      %v5384 = vmul.f32 %v5374, 0.35355338
      %v5385 = vsel %vm384, %v5377, -inf
      %5386 = vmax.xlane.f32.xlu0 %v5385
      %v5387 = vpop.xlane.xlu0 %5386
      %v5388 = vsel %vm384, %v5378, -inf
      %5389 = vmax.xlane.f32.xlu0 %v5388
      %v5390 = vpop.xlane.xlu0 %5389
      %v5391 = vsel %vm384, %v5379, -inf
      %5392 = vmax.xlane.f32.xlu0 %v5391
      %v5393 = vpop.xlane.xlu0 %5392
      %v5394 = vsel %vm384, %v5380, -inf
      %5395 = vmax.xlane.f32.xlu0 %v5394
      %v5396 = vpop.xlane.xlu0 %5395
      %v5397 = vsel %vm384, %v5381, -inf
      %5398 = vmax.xlane.f32.xlu0 %v5397
      %v5399 = vpop.xlane.xlu0 %5398
      %v5400 = vsel %vm384, %v5382, -inf
      %5401 = vmax.xlane.f32.xlu0 %v5400
      %v5402 = vpop.xlane.xlu0 %5401
      %v5403 = vsel %vm384, %v5383, -inf
      %5404 = vmax.xlane.f32.xlu0 %v5403
      %v5405 = vpop.xlane.xlu0 %5404
      %v5406 = vsel %vm384, %v5384, -inf
      %5407 = vmax.xlane.f32.xlu0 %v5406
      %v5408 = vpop.xlane.xlu0 %5407
      %v5409 = vsub.f32 %v5377, %v5387
      %v5410 = vsub.f32 %v5378, %v5390
      %v5411 = vsub.f32 %v5379, %v5393
      %v5412 = vsub.f32 %v5380, %v5396
      %v5413 = vsub.f32 %v5381, %v5399
      %v5414 = vsub.f32 %v5382, %v5402
      %v5415 = vsub.f32 %v5383, %v5405
      %v5416 = vsub.f32 %v5384, %v5408
      %v5417 = vmul.f32 %v5409, 1.442695
      %v5418 = vpow.pop %v5417
      %v5419 = vmul.f32 %v5410, 1.442695
      %v5420 = vpow.pop %v5419
      %v5421 = vmul.f32 %v5411, 1.442695
      %v5422 = vpow.pop %v5421
      %v5423 = vmul.f32 %v5412, 1.442695
      %v5424 = vpow.pop %v5423
      %v5425 = vmul.f32 %v5413, 1.442695
      %v5426 = vpow.pop %v5425
      %v5427 = vmul.f32 %v5414, 1.442695
      %v5428 = vpow.pop %v5427
      %v5429 = vmul.f32 %v5415, 1.442695
      %v5430 = vpow.pop %v5429
      %v5431 = vmul.f32 %v5416, 1.442695
      %v5432 = vpow.pop %v5431
      %v5433 = vsel %vm384, %v5418, 0.0
      %5434 = vadd.xlane.f32.xlu0 %v5433
      %v5435 = vpop.xlane.xlu0 %5434
      %v5436 = vsel %vm384, %v5420, 0.0
      %5437 = vadd.xlane.f32.xlu0 %v5436
      %v5438 = vpop.xlane.xlu0 %5437
      %v5439 = vsel %vm384, %v5422, 0.0
      %5440 = vadd.xlane.f32.xlu0 %v5439
      %v5441 = vpop.xlane.xlu0 %5440
      %v5442 = vsel %vm384, %v5424, 0.0
      %5443 = vadd.xlane.f32.xlu0 %v5442
      %v5444 = vpop.xlane.xlu0 %5443
      %v5445 = vsel %vm384, %v5426, 0.0
      %5446 = vadd.xlane.f32.xlu0 %v5445
      %v5447 = vpop.xlane.xlu0 %5446
      %v5448 = vsel %vm384, %v5428, 0.0
      %5449 = vadd.xlane.f32.xlu0 %v5448
      %v5450 = vpop.xlane.xlu0 %5449
      %v5451 = vsel %vm384, %v5430, 0.0
      %5452 = vadd.xlane.f32.xlu0 %v5451
      %v5453 = vpop.xlane.xlu0 %5452
      %v5454 = vsel %vm384, %v5432, 0.0
      %5455 = vadd.xlane.f32.xlu0 %v5454
      %v5456 = vpop.xlane.xlu0 %5455
      %v5457 = vrcp.pop %v5435
      %v5458 = vrcp.pop %v5438
      %v5459 = vrcp.pop %v5441
      %v5460 = vrcp.pop %v5444
      %v5461 = vrcp.pop %v5447
      %v5462 = vrcp.pop %v5450
      %v5463 = vrcp.pop %v5453
      %v5464 = vrcp.pop %v5456
      %v5465 = vmul.f32 %v5418, %v5457
      %v5466 = vmul.f32 %v5420, %v5458
      %v5467 = vmul.f32 %v5422, %v5459
      %v5468 = vmul.f32 %v5424, %v5460
      %v5469 = vmul.f32 %v5426, %v5461
      %v5470 = vmul.f32 %v5428, %v5462
      %v5471 = vmul.f32 %v5430, %v5463
      %v5472 = vmul.f32 %v5432, %v5464
      %5473 = vrot.lane.b32.xlu0 %v339, 40
      %v5474 = vpop.permute.xlu0 %5473
      %v5477 = vsel %vm384, %v5465, 0
      %5479 = vmatprep.subr.mxu0 0.0
      %5480 = vmatpush1.msra.mxu0 0.0
      %5481 = vmatprep.subr.mxu0 0.0
      %5482 = vmatpush1.msra.mxu0 0.0
      %5483 = vmatprep.subr.mxu0 0.0
      %5484 = vmatpush1.msra.mxu0 0.0
      %5485 = vmatprep.subr.mxu0 0.0
      %5486 = vmatpush1.msra.mxu0 0.0
      %5487 = vmatprep.subr.mxu0 0.0
      %5488 = vmatpush1.msra.mxu0 0.0
      %5489 = vmatprep.subr.mxu0 0.0
      %5490 = vmatpush1.msra.mxu0 0.0
      %5491 = vmatprep.subr.mxu0 0.0
      %5492 = vmatpush1.msra.mxu0 0.0
      %5493 = vmatprep.subr.mxu0 0.0
      %5494 = vmatpush1.msra.mxu0 0.0
      %5495 = vmatprep.subr.mxu0 0.0
      %5496 = vmatpush1.msra.mxu0 0.0
      %5497 = vmatprep.subr.mxu0 0.0
      %5498 = vmatpush1.msra.mxu0 0.0
      %5499 = vmatprep.subr.mxu0 0.0
      %5500 = vmatpush1.msra.mxu0 0.0
      %5501 = vmatprep.subr.mxu0 0.0
      %5502 = vmatpush1.msra.mxu0 0.0
      %5503 = vmatprep.subr.mxu0 0.0
      %5504 = vmatpush1.msra.mxu0 0.0
      %5505 = vmatprep.subr.mxu0 0.0
      %5506 = vmatpush1.msra.mxu0 0.0
      %5507 = vmatprep.subr.mxu0 0.0
      %5508 = vmatpush1.msra.mxu0 0.0
      %5509 = vmatprep.subr.mxu0 0.0
      %5510 = vmatpush1.msra.mxu0 %v5474
      %5511 = vmatprep.subr.mxu0 0.0
      %5512 = vmatpush2.msra.mxu0 0.0
      %5513 = vmatprep.subr.mxu0 0.0
      %5514 = vmatpush2.msra.mxu0 0.0
      %5515 = vmatprep.subr.mxu0 0.0
      %5516 = vmatpush2.msra.mxu0 0.0
      %5517 = vmatprep.subr.mxu0 0.0
      %5518 = vmatpush2.msra.mxu0 0.0
      %5519 = vmatprep.subr.mxu0 0.0
      %5520 = vmatpush2.msra.mxu0 0.0
      %5521 = vmatprep.subr.mxu0 0.0
      %5522 = vmatpush2.msra.mxu0 0.0
      %5523 = vmatprep.subr.mxu0 0.0
      %5524 = vmatpush2.msra.mxu0 0.0
      %5525 = vmatprep.subr.mxu0 0.0
      %5526 = vmatpush2.msra.mxu0 0.0
      %5527 = vmatprep.subr.mxu0 0.0
      %5528 = vmatpush2.msra.mxu0 0.0
      %5529 = vmatprep.subr.mxu0 0.0
      %5530 = vmatpush2.msra.mxu0 0.0
      %5531 = vmatprep.subr.mxu0 0.0
      %5532 = vmatpush2.msra.mxu0 0.0
      %5533 = vmatprep.subr.mxu0 0.0
      %5534 = vmatpush2.msra.mxu0 0.0
      %5535 = vmatprep.subr.mxu0 0.0
      %5536 = vmatpush2.msra.mxu0 0.0
      %5537 = vmatprep.subr.mxu0 0.0
      %5538 = vmatpush2.msra.mxu0 0.0
      %5539 = vmatprep.subr.mxu0 0.0
      %5540 = vmatpush2.msra.mxu0 0.0
      %5541 = vmatprep.subr.mxu0 0.0
      %5542 = vmatpush2.msra.mxu0 0.0
      %5543 = vmatprep.mubr.f32.mxu0 0.0
      %5544 = vmatmul.mubr.f32.gmra.mxu0 %v5477
      %v5545 = vpop.f32.mrf.mxu0
      %v5546 = vadd.f32 0.0, %v5545
      %v5547 = vpop.f32.mrf.mxu0
      %5548 = vdwg.mxu0
      %5549 = vrot.lane.b32.xlu0 %v344, 40
      %v5550 = vpop.permute.xlu0 %5549
      %v5553 = vsel %vm384, %v5466, 0
      %5555 = vmatprep.subr.mxu0 0.0
      %5556 = vmatpush1.msra.mxu0 0.0
      %5557 = vmatprep.subr.mxu0 0.0
      %5558 = vmatpush1.msra.mxu0 0.0
      %5559 = vmatprep.subr.mxu0 0.0
      %5560 = vmatpush1.msra.mxu0 0.0
      %5561 = vmatprep.subr.mxu0 0.0
      %5562 = vmatpush1.msra.mxu0 0.0
      %5563 = vmatprep.subr.mxu0 0.0
      %5564 = vmatpush1.msra.mxu0 0.0
      %5565 = vmatprep.subr.mxu0 0.0
      %5566 = vmatpush1.msra.mxu0 0.0
      %5567 = vmatprep.subr.mxu0 0.0
      %5568 = vmatpush1.msra.mxu0 0.0
      %5569 = vmatprep.subr.mxu0 0.0
      %5570 = vmatpush1.msra.mxu0 0.0
      %5571 = vmatprep.subr.mxu0 0.0
      %5572 = vmatpush1.msra.mxu0 0.0
      %5573 = vmatprep.subr.mxu0 0.0
      %5574 = vmatpush1.msra.mxu0 0.0
      %5575 = vmatprep.subr.mxu0 0.0
      %5576 = vmatpush1.msra.mxu0 0.0
      %5577 = vmatprep.subr.mxu0 0.0
      %5578 = vmatpush1.msra.mxu0 0.0
      %5579 = vmatprep.subr.mxu0 0.0
      %5580 = vmatpush1.msra.mxu0 0.0
      %5581 = vmatprep.subr.mxu0 0.0
      %5582 = vmatpush1.msra.mxu0 0.0
      %5583 = vmatprep.subr.mxu0 0.0
      %5584 = vmatpush1.msra.mxu0 0.0
      %5585 = vmatprep.subr.mxu0 0.0
      %5586 = vmatpush1.msra.mxu0 %v5550
      %5587 = vmatprep.subr.mxu0 0.0
      %5588 = vmatpush2.msra.mxu0 0.0
      %5589 = vmatprep.subr.mxu0 0.0
      %5590 = vmatpush2.msra.mxu0 0.0
      %5591 = vmatprep.subr.mxu0 0.0
      %5592 = vmatpush2.msra.mxu0 0.0
      %5593 = vmatprep.subr.mxu0 0.0
      %5594 = vmatpush2.msra.mxu0 0.0
      %5595 = vmatprep.subr.mxu0 0.0
      %5596 = vmatpush2.msra.mxu0 0.0
      %5597 = vmatprep.subr.mxu0 0.0
      %5598 = vmatpush2.msra.mxu0 0.0
      %5599 = vmatprep.subr.mxu0 0.0
      %5600 = vmatpush2.msra.mxu0 0.0
      %5601 = vmatprep.subr.mxu0 0.0
      %5602 = vmatpush2.msra.mxu0 0.0
      %5603 = vmatprep.subr.mxu0 0.0
      %5604 = vmatpush2.msra.mxu0 0.0
      %5605 = vmatprep.subr.mxu0 0.0
      %5606 = vmatpush2.msra.mxu0 0.0
      %5607 = vmatprep.subr.mxu0 0.0
      %5608 = vmatpush2.msra.mxu0 0.0
      %5609 = vmatprep.subr.mxu0 0.0
      %5610 = vmatpush2.msra.mxu0 0.0
      %5611 = vmatprep.subr.mxu0 0.0
      %5612 = vmatpush2.msra.mxu0 0.0
      %5613 = vmatprep.subr.mxu0 0.0
      %5614 = vmatpush2.msra.mxu0 0.0
      %5615 = vmatprep.subr.mxu0 0.0
      %5616 = vmatpush2.msra.mxu0 0.0
      %5617 = vmatprep.subr.mxu0 0.0
      %5618 = vmatpush2.msra.mxu0 0.0
      %5619 = vmatprep.mubr.f32.mxu0 0.0
      %5620 = vmatmul.mubr.f32.gmra.mxu0 %v5553
      %v5621 = vpop.f32.mrf.mxu0
      %v5622 = vadd.f32 0.0, %v5621
      %v5623 = vpop.f32.mrf.mxu0
      %5624 = vdwg.mxu0
      %5625 = vrot.lane.b32.xlu0 %v349, 40
      %v5626 = vpop.permute.xlu0 %5625
      %v5629 = vsel %vm384, %v5467, 0
      %5631 = vmatprep.subr.mxu0 0.0
      %5632 = vmatpush1.msra.mxu0 0.0
      %5633 = vmatprep.subr.mxu0 0.0
      %5634 = vmatpush1.msra.mxu0 0.0
      %5635 = vmatprep.subr.mxu0 0.0
      %5636 = vmatpush1.msra.mxu0 0.0
      %5637 = vmatprep.subr.mxu0 0.0
      %5638 = vmatpush1.msra.mxu0 0.0
      %5639 = vmatprep.subr.mxu0 0.0
      %5640 = vmatpush1.msra.mxu0 0.0
      %5641 = vmatprep.subr.mxu0 0.0
      %5642 = vmatpush1.msra.mxu0 0.0
      %5643 = vmatprep.subr.mxu0 0.0
      %5644 = vmatpush1.msra.mxu0 0.0
      %5645 = vmatprep.subr.mxu0 0.0
      %5646 = vmatpush1.msra.mxu0 0.0
      %5647 = vmatprep.subr.mxu0 0.0
      %5648 = vmatpush1.msra.mxu0 0.0
      %5649 = vmatprep.subr.mxu0 0.0
      %5650 = vmatpush1.msra.mxu0 0.0
      %5651 = vmatprep.subr.mxu0 0.0
      %5652 = vmatpush1.msra.mxu0 0.0
      %5653 = vmatprep.subr.mxu0 0.0
      %5654 = vmatpush1.msra.mxu0 0.0
      %5655 = vmatprep.subr.mxu0 0.0
      %5656 = vmatpush1.msra.mxu0 0.0
      %5657 = vmatprep.subr.mxu0 0.0
      %5658 = vmatpush1.msra.mxu0 0.0
      %5659 = vmatprep.subr.mxu0 0.0
      %5660 = vmatpush1.msra.mxu0 0.0
      %5661 = vmatprep.subr.mxu0 0.0
      %5662 = vmatpush1.msra.mxu0 %v5626
      %5663 = vmatprep.subr.mxu0 0.0
      %5664 = vmatpush2.msra.mxu0 0.0
      %5665 = vmatprep.subr.mxu0 0.0
      %5666 = vmatpush2.msra.mxu0 0.0
      %5667 = vmatprep.subr.mxu0 0.0
      %5668 = vmatpush2.msra.mxu0 0.0
      %5669 = vmatprep.subr.mxu0 0.0
      %5670 = vmatpush2.msra.mxu0 0.0
      %5671 = vmatprep.subr.mxu0 0.0
      %5672 = vmatpush2.msra.mxu0 0.0
      %5673 = vmatprep.subr.mxu0 0.0
      %5674 = vmatpush2.msra.mxu0 0.0
      %5675 = vmatprep.subr.mxu0 0.0
      %5676 = vmatpush2.msra.mxu0 0.0
      %5677 = vmatprep.subr.mxu0 0.0
      %5678 = vmatpush2.msra.mxu0 0.0
      %5679 = vmatprep.subr.mxu0 0.0
      %5680 = vmatpush2.msra.mxu0 0.0
      %5681 = vmatprep.subr.mxu0 0.0
      %5682 = vmatpush2.msra.mxu0 0.0
      %5683 = vmatprep.subr.mxu0 0.0
      %5684 = vmatpush2.msra.mxu0 0.0
      %5685 = vmatprep.subr.mxu0 0.0
      %5686 = vmatpush2.msra.mxu0 0.0
      %5687 = vmatprep.subr.mxu0 0.0
      %5688 = vmatpush2.msra.mxu0 0.0
      %5689 = vmatprep.subr.mxu0 0.0
      %5690 = vmatpush2.msra.mxu0 0.0
      %5691 = vmatprep.subr.mxu0 0.0
      %5692 = vmatpush2.msra.mxu0 0.0
      %5693 = vmatprep.subr.mxu0 0.0
      %5694 = vmatpush2.msra.mxu0 0.0
      %5695 = vmatprep.mubr.f32.mxu0 0.0
      %5696 = vmatmul.mubr.f32.gmra.mxu0 %v5629
      %v5697 = vpop.f32.mrf.mxu0
      %v5698 = vadd.f32 0.0, %v5697
      %v5699 = vpop.f32.mrf.mxu0
      %5700 = vdwg.mxu0
      %5701 = vrot.lane.b32.xlu0 %v354, 40
      %v5702 = vpop.permute.xlu0 %5701
      %v5705 = vsel %vm384, %v5468, 0
      %5707 = vmatprep.subr.mxu0 0.0
      %5708 = vmatpush1.msra.mxu0 0.0
      %5709 = vmatprep.subr.mxu0 0.0
      %5710 = vmatpush1.msra.mxu0 0.0
      %5711 = vmatprep.subr.mxu0 0.0
      %5712 = vmatpush1.msra.mxu0 0.0
      %5713 = vmatprep.subr.mxu0 0.0
      %5714 = vmatpush1.msra.mxu0 0.0
      %5715 = vmatprep.subr.mxu0 0.0
      %5716 = vmatpush1.msra.mxu0 0.0
      %5717 = vmatprep.subr.mxu0 0.0
      %5718 = vmatpush1.msra.mxu0 0.0
      %5719 = vmatprep.subr.mxu0 0.0
      %5720 = vmatpush1.msra.mxu0 0.0
      %5721 = vmatprep.subr.mxu0 0.0
      %5722 = vmatpush1.msra.mxu0 0.0
      %5723 = vmatprep.subr.mxu0 0.0
      %5724 = vmatpush1.msra.mxu0 0.0
      %5725 = vmatprep.subr.mxu0 0.0
      %5726 = vmatpush1.msra.mxu0 0.0
      %5727 = vmatprep.subr.mxu0 0.0
      %5728 = vmatpush1.msra.mxu0 0.0
      %5729 = vmatprep.subr.mxu0 0.0
      %5730 = vmatpush1.msra.mxu0 0.0
      %5731 = vmatprep.subr.mxu0 0.0
      %5732 = vmatpush1.msra.mxu0 0.0
      %5733 = vmatprep.subr.mxu0 0.0
      %5734 = vmatpush1.msra.mxu0 0.0
      %5735 = vmatprep.subr.mxu0 0.0
      %5736 = vmatpush1.msra.mxu0 0.0
      %5737 = vmatprep.subr.mxu0 0.0
      %5738 = vmatpush1.msra.mxu0 %v5702
      %5739 = vmatprep.subr.mxu0 0.0
      %5740 = vmatpush2.msra.mxu0 0.0
      %5741 = vmatprep.subr.mxu0 0.0
      %5742 = vmatpush2.msra.mxu0 0.0
      %5743 = vmatprep.subr.mxu0 0.0
      %5744 = vmatpush2.msra.mxu0 0.0
      %5745 = vmatprep.subr.mxu0 0.0
      %5746 = vmatpush2.msra.mxu0 0.0
      %5747 = vmatprep.subr.mxu0 0.0
      %5748 = vmatpush2.msra.mxu0 0.0
      %5749 = vmatprep.subr.mxu0 0.0
      %5750 = vmatpush2.msra.mxu0 0.0
      %5751 = vmatprep.subr.mxu0 0.0
      %5752 = vmatpush2.msra.mxu0 0.0
      %5753 = vmatprep.subr.mxu0 0.0
      %5754 = vmatpush2.msra.mxu0 0.0
      %5755 = vmatprep.subr.mxu0 0.0
      %5756 = vmatpush2.msra.mxu0 0.0
      %5757 = vmatprep.subr.mxu0 0.0
      %5758 = vmatpush2.msra.mxu0 0.0
      %5759 = vmatprep.subr.mxu0 0.0
      %5760 = vmatpush2.msra.mxu0 0.0
      %5761 = vmatprep.subr.mxu0 0.0
      %5762 = vmatpush2.msra.mxu0 0.0
      %5763 = vmatprep.subr.mxu0 0.0
      %5764 = vmatpush2.msra.mxu0 0.0
      %5765 = vmatprep.subr.mxu0 0.0
      %5766 = vmatpush2.msra.mxu0 0.0
      %5767 = vmatprep.subr.mxu0 0.0
      %5768 = vmatpush2.msra.mxu0 0.0
      %5769 = vmatprep.subr.mxu0 0.0
      %5770 = vmatpush2.msra.mxu0 0.0
      %5771 = vmatprep.mubr.f32.mxu0 0.0
      %5772 = vmatmul.mubr.f32.gmra.mxu0 %v5705
      %v5773 = vpop.f32.mrf.mxu0
      %v5774 = vadd.f32 0.0, %v5773
      %v5775 = vpop.f32.mrf.mxu0
      %5776 = vdwg.mxu0
      %5777 = vrot.lane.b32.xlu0 %v359, 40
      %v5778 = vpop.permute.xlu0 %5777
      %v5781 = vsel %vm384, %v5469, 0
      %5783 = vmatprep.subr.mxu0 0.0
      %5784 = vmatpush1.msra.mxu0 0.0
      %5785 = vmatprep.subr.mxu0 0.0
      %5786 = vmatpush1.msra.mxu0 0.0
      %5787 = vmatprep.subr.mxu0 0.0
      %5788 = vmatpush1.msra.mxu0 0.0
      %5789 = vmatprep.subr.mxu0 0.0
      %5790 = vmatpush1.msra.mxu0 0.0
      %5791 = vmatprep.subr.mxu0 0.0
      %5792 = vmatpush1.msra.mxu0 0.0
      %5793 = vmatprep.subr.mxu0 0.0
      %5794 = vmatpush1.msra.mxu0 0.0
      %5795 = vmatprep.subr.mxu0 0.0
      %5796 = vmatpush1.msra.mxu0 0.0
      %5797 = vmatprep.subr.mxu0 0.0
      %5798 = vmatpush1.msra.mxu0 0.0
      %5799 = vmatprep.subr.mxu0 0.0
      %5800 = vmatpush1.msra.mxu0 0.0
      %5801 = vmatprep.subr.mxu0 0.0
      %5802 = vmatpush1.msra.mxu0 0.0
      %5803 = vmatprep.subr.mxu0 0.0
      %5804 = vmatpush1.msra.mxu0 0.0
      %5805 = vmatprep.subr.mxu0 0.0
      %5806 = vmatpush1.msra.mxu0 0.0
      %5807 = vmatprep.subr.mxu0 0.0
      %5808 = vmatpush1.msra.mxu0 0.0
      %5809 = vmatprep.subr.mxu0 0.0
      %5810 = vmatpush1.msra.mxu0 0.0
      %5811 = vmatprep.subr.mxu0 0.0
      %5812 = vmatpush1.msra.mxu0 0.0
      %5813 = vmatprep.subr.mxu0 0.0
      %5814 = vmatpush1.msra.mxu0 %v5778
      %5815 = vmatprep.subr.mxu0 0.0
      %5816 = vmatpush2.msra.mxu0 0.0
      %5817 = vmatprep.subr.mxu0 0.0
      %5818 = vmatpush2.msra.mxu0 0.0
      %5819 = vmatprep.subr.mxu0 0.0
      %5820 = vmatpush2.msra.mxu0 0.0
      %5821 = vmatprep.subr.mxu0 0.0
      %5822 = vmatpush2.msra.mxu0 0.0
      %5823 = vmatprep.subr.mxu0 0.0
      %5824 = vmatpush2.msra.mxu0 0.0
      %5825 = vmatprep.subr.mxu0 0.0
      %5826 = vmatpush2.msra.mxu0 0.0
      %5827 = vmatprep.subr.mxu0 0.0
      %5828 = vmatpush2.msra.mxu0 0.0
      %5829 = vmatprep.subr.mxu0 0.0
      %5830 = vmatpush2.msra.mxu0 0.0
      %5831 = vmatprep.subr.mxu0 0.0
      %5832 = vmatpush2.msra.mxu0 0.0
      %5833 = vmatprep.subr.mxu0 0.0
      %5834 = vmatpush2.msra.mxu0 0.0
      %5835 = vmatprep.subr.mxu0 0.0
      %5836 = vmatpush2.msra.mxu0 0.0
      %5837 = vmatprep.subr.mxu0 0.0
      %5838 = vmatpush2.msra.mxu0 0.0
      %5839 = vmatprep.subr.mxu0 0.0
      %5840 = vmatpush2.msra.mxu0 0.0
      %5841 = vmatprep.subr.mxu0 0.0
      %5842 = vmatpush2.msra.mxu0 0.0
      %5843 = vmatprep.subr.mxu0 0.0
      %5844 = vmatpush2.msra.mxu0 0.0
      %5845 = vmatprep.subr.mxu0 0.0
      %5846 = vmatpush2.msra.mxu0 0.0
      %5847 = vmatprep.mubr.f32.mxu0 0.0
      %5848 = vmatmul.mubr.f32.gmra.mxu0 %v5781
      %v5849 = vpop.f32.mrf.mxu0
      %v5850 = vadd.f32 0.0, %v5849
      %v5851 = vpop.f32.mrf.mxu0
      %5852 = vdwg.mxu0
      %5853 = vrot.lane.b32.xlu0 %v364, 40
      %v5854 = vpop.permute.xlu0 %5853
      %v5857 = vsel %vm384, %v5470, 0
      %5859 = vmatprep.subr.mxu0 0.0
      %5860 = vmatpush1.msra.mxu0 0.0
      %5861 = vmatprep.subr.mxu0 0.0
      %5862 = vmatpush1.msra.mxu0 0.0
      %5863 = vmatprep.subr.mxu0 0.0
      %5864 = vmatpush1.msra.mxu0 0.0
      %5865 = vmatprep.subr.mxu0 0.0
      %5866 = vmatpush1.msra.mxu0 0.0
      %5867 = vmatprep.subr.mxu0 0.0
      %5868 = vmatpush1.msra.mxu0 0.0
      %5869 = vmatprep.subr.mxu0 0.0
      %5870 = vmatpush1.msra.mxu0 0.0
      %5871 = vmatprep.subr.mxu0 0.0
      %5872 = vmatpush1.msra.mxu0 0.0
      %5873 = vmatprep.subr.mxu0 0.0
      %5874 = vmatpush1.msra.mxu0 0.0
      %5875 = vmatprep.subr.mxu0 0.0
      %5876 = vmatpush1.msra.mxu0 0.0
      %5877 = vmatprep.subr.mxu0 0.0
      %5878 = vmatpush1.msra.mxu0 0.0
      %5879 = vmatprep.subr.mxu0 0.0
      %5880 = vmatpush1.msra.mxu0 0.0
      %5881 = vmatprep.subr.mxu0 0.0
      %5882 = vmatpush1.msra.mxu0 0.0
      %5883 = vmatprep.subr.mxu0 0.0
      %5884 = vmatpush1.msra.mxu0 0.0
      %5885 = vmatprep.subr.mxu0 0.0
      %5886 = vmatpush1.msra.mxu0 0.0
      %5887 = vmatprep.subr.mxu0 0.0
      %5888 = vmatpush1.msra.mxu0 0.0
      %5889 = vmatprep.subr.mxu0 0.0
      %5890 = vmatpush1.msra.mxu0 %v5854
      %5891 = vmatprep.subr.mxu0 0.0
      %5892 = vmatpush2.msra.mxu0 0.0
      %5893 = vmatprep.subr.mxu0 0.0
      %5894 = vmatpush2.msra.mxu0 0.0
      %5895 = vmatprep.subr.mxu0 0.0
      %5896 = vmatpush2.msra.mxu0 0.0
      %5897 = vmatprep.subr.mxu0 0.0
      %5898 = vmatpush2.msra.mxu0 0.0
      %5899 = vmatprep.subr.mxu0 0.0
      %5900 = vmatpush2.msra.mxu0 0.0
      %5901 = vmatprep.subr.mxu0 0.0
      %5902 = vmatpush2.msra.mxu0 0.0
      %5903 = vmatprep.subr.mxu0 0.0
      %5904 = vmatpush2.msra.mxu0 0.0
      %5905 = vmatprep.subr.mxu0 0.0
      %5906 = vmatpush2.msra.mxu0 0.0
      %5907 = vmatprep.subr.mxu0 0.0
      %5908 = vmatpush2.msra.mxu0 0.0
      %5909 = vmatprep.subr.mxu0 0.0
      %5910 = vmatpush2.msra.mxu0 0.0
      %5911 = vmatprep.subr.mxu0 0.0
      %5912 = vmatpush2.msra.mxu0 0.0
      %5913 = vmatprep.subr.mxu0 0.0
      %5914 = vmatpush2.msra.mxu0 0.0
      %5915 = vmatprep.subr.mxu0 0.0
      %5916 = vmatpush2.msra.mxu0 0.0
      %5917 = vmatprep.subr.mxu0 0.0
      %5918 = vmatpush2.msra.mxu0 0.0
      %5919 = vmatprep.subr.mxu0 0.0
      %5920 = vmatpush2.msra.mxu0 0.0
      %5921 = vmatprep.subr.mxu0 0.0
      %5922 = vmatpush2.msra.mxu0 0.0
      %5923 = vmatprep.mubr.f32.mxu0 0.0
      %5924 = vmatmul.mubr.f32.gmra.mxu0 %v5857
      %v5925 = vpop.f32.mrf.mxu0
      %v5926 = vadd.f32 0.0, %v5925
      %v5927 = vpop.f32.mrf.mxu0
      %5928 = vdwg.mxu0
      %5929 = vrot.lane.b32.xlu0 %v369, 40
      %v5930 = vpop.permute.xlu0 %5929
      %v5933 = vsel %vm384, %v5471, 0
      %5935 = vmatprep.subr.mxu0 0.0
      %5936 = vmatpush1.msra.mxu0 0.0
      %5937 = vmatprep.subr.mxu0 0.0
      %5938 = vmatpush1.msra.mxu0 0.0
      %5939 = vmatprep.subr.mxu0 0.0
      %5940 = vmatpush1.msra.mxu0 0.0
      %5941 = vmatprep.subr.mxu0 0.0
      %5942 = vmatpush1.msra.mxu0 0.0
      %5943 = vmatprep.subr.mxu0 0.0
      %5944 = vmatpush1.msra.mxu0 0.0
      %5945 = vmatprep.subr.mxu0 0.0
      %5946 = vmatpush1.msra.mxu0 0.0
      %5947 = vmatprep.subr.mxu0 0.0
      %5948 = vmatpush1.msra.mxu0 0.0
      %5949 = vmatprep.subr.mxu0 0.0
      %5950 = vmatpush1.msra.mxu0 0.0
      %5951 = vmatprep.subr.mxu0 0.0
      %5952 = vmatpush1.msra.mxu0 0.0
      %5953 = vmatprep.subr.mxu0 0.0
      %5954 = vmatpush1.msra.mxu0 0.0
      %5955 = vmatprep.subr.mxu0 0.0
      %5956 = vmatpush1.msra.mxu0 0.0
      %5957 = vmatprep.subr.mxu0 0.0
      %5958 = vmatpush1.msra.mxu0 0.0
      %5959 = vmatprep.subr.mxu0 0.0
      %5960 = vmatpush1.msra.mxu0 0.0
      %5961 = vmatprep.subr.mxu0 0.0
      %5962 = vmatpush1.msra.mxu0 0.0
      %5963 = vmatprep.subr.mxu0 0.0
      %5964 = vmatpush1.msra.mxu0 0.0
      %5965 = vmatprep.subr.mxu0 0.0
      %5966 = vmatpush1.msra.mxu0 %v5930
      %5967 = vmatprep.subr.mxu0 0.0
      %5968 = vmatpush2.msra.mxu0 0.0
      %5969 = vmatprep.subr.mxu0 0.0
      %5970 = vmatpush2.msra.mxu0 0.0
      %5971 = vmatprep.subr.mxu0 0.0
      %5972 = vmatpush2.msra.mxu0 0.0
      %5973 = vmatprep.subr.mxu0 0.0
      %5974 = vmatpush2.msra.mxu0 0.0
      %5975 = vmatprep.subr.mxu0 0.0
      %5976 = vmatpush2.msra.mxu0 0.0
      %5977 = vmatprep.subr.mxu0 0.0
      %5978 = vmatpush2.msra.mxu0 0.0
      %5979 = vmatprep.subr.mxu0 0.0
      %5980 = vmatpush2.msra.mxu0 0.0
      %5981 = vmatprep.subr.mxu0 0.0
      %5982 = vmatpush2.msra.mxu0 0.0
      %5983 = vmatprep.subr.mxu0 0.0
      %5984 = vmatpush2.msra.mxu0 0.0
      %5985 = vmatprep.subr.mxu0 0.0
      %5986 = vmatpush2.msra.mxu0 0.0
      %5987 = vmatprep.subr.mxu0 0.0
      %5988 = vmatpush2.msra.mxu0 0.0
      %5989 = vmatprep.subr.mxu0 0.0
      %5990 = vmatpush2.msra.mxu0 0.0
      %5991 = vmatprep.subr.mxu0 0.0
      %5992 = vmatpush2.msra.mxu0 0.0
      %5993 = vmatprep.subr.mxu0 0.0
      %5994 = vmatpush2.msra.mxu0 0.0
      %5995 = vmatprep.subr.mxu0 0.0
      %5996 = vmatpush2.msra.mxu0 0.0
      %5997 = vmatprep.subr.mxu0 0.0
      %5998 = vmatpush2.msra.mxu0 0.0
      %5999 = vmatprep.mubr.f32.mxu0 0.0
      %6000 = vmatmul.mubr.f32.gmra.mxu0 %v5933
      %v6001 = vpop.f32.mrf.mxu0
      %v6002 = vadd.f32 0.0, %v6001
      %v6003 = vpop.f32.mrf.mxu0
      %6004 = vdwg.mxu0
      %6005 = vrot.lane.b32.xlu0 %v374, 40
      %v6006 = vpop.permute.xlu0 %6005
      %v6009 = vsel %vm384, %v5472, 0
      %6011 = vmatprep.subr.mxu0 0.0
      %6012 = vmatpush1.msra.mxu0 0.0
      %6013 = vmatprep.subr.mxu0 0.0
      %6014 = vmatpush1.msra.mxu0 0.0
      %6015 = vmatprep.subr.mxu0 0.0
      %6016 = vmatpush1.msra.mxu0 0.0
      %6017 = vmatprep.subr.mxu0 0.0
      %6018 = vmatpush1.msra.mxu0 0.0
      %6019 = vmatprep.subr.mxu0 0.0
      %6020 = vmatpush1.msra.mxu0 0.0
      %6021 = vmatprep.subr.mxu0 0.0
      %6022 = vmatpush1.msra.mxu0 0.0
      %6023 = vmatprep.subr.mxu0 0.0
      %6024 = vmatpush1.msra.mxu0 0.0
      %6025 = vmatprep.subr.mxu0 0.0
      %6026 = vmatpush1.msra.mxu0 0.0
      %6027 = vmatprep.subr.mxu0 0.0
      %6028 = vmatpush1.msra.mxu0 0.0
      %6029 = vmatprep.subr.mxu0 0.0
      %6030 = vmatpush1.msra.mxu0 0.0
      %6031 = vmatprep.subr.mxu0 0.0
      %6032 = vmatpush1.msra.mxu0 0.0
      %6033 = vmatprep.subr.mxu0 0.0
      %6034 = vmatpush1.msra.mxu0 0.0
      %6035 = vmatprep.subr.mxu0 0.0
      %6036 = vmatpush1.msra.mxu0 0.0
      %6037 = vmatprep.subr.mxu0 0.0
      %6038 = vmatpush1.msra.mxu0 0.0
      %6039 = vmatprep.subr.mxu0 0.0
      %6040 = vmatpush1.msra.mxu0 0.0
      %6041 = vmatprep.subr.mxu0 0.0
      %6042 = vmatpush1.msra.mxu0 %v6006
      %6043 = vmatprep.subr.mxu0 0.0
      %6044 = vmatpush2.msra.mxu0 0.0
      %6045 = vmatprep.subr.mxu0 0.0
      %6046 = vmatpush2.msra.mxu0 0.0
      %6047 = vmatprep.subr.mxu0 0.0
      %6048 = vmatpush2.msra.mxu0 0.0
      %6049 = vmatprep.subr.mxu0 0.0
      %6050 = vmatpush2.msra.mxu0 0.0
      %6051 = vmatprep.subr.mxu0 0.0
      %6052 = vmatpush2.msra.mxu0 0.0
      %6053 = vmatprep.subr.mxu0 0.0
      %6054 = vmatpush2.msra.mxu0 0.0
      %6055 = vmatprep.subr.mxu0 0.0
      %6056 = vmatpush2.msra.mxu0 0.0
      %6057 = vmatprep.subr.mxu0 0.0
      %6058 = vmatpush2.msra.mxu0 0.0
      %6059 = vmatprep.subr.mxu0 0.0
      %6060 = vmatpush2.msra.mxu0 0.0
      %6061 = vmatprep.subr.mxu0 0.0
      %6062 = vmatpush2.msra.mxu0 0.0
      %6063 = vmatprep.subr.mxu0 0.0
      %6064 = vmatpush2.msra.mxu0 0.0
      %6065 = vmatprep.subr.mxu0 0.0
      %6066 = vmatpush2.msra.mxu0 0.0
      %6067 = vmatprep.subr.mxu0 0.0
      %6068 = vmatpush2.msra.mxu0 0.0
      %6069 = vmatprep.subr.mxu0 0.0
      %6070 = vmatpush2.msra.mxu0 0.0
      %6071 = vmatprep.subr.mxu0 0.0
      %6072 = vmatpush2.msra.mxu0 0.0
      %6073 = vmatprep.subr.mxu0 0.0
      %6074 = vmatpush2.msra.mxu0 0.0
      %6075 = vmatprep.mubr.f32.mxu0 0.0
      %6076 = vmatmul.mubr.f32.gmra.mxu0 %v6009
      %v6077 = vpop.f32.mrf.mxu0
      %v6078 = vadd.f32 0.0, %v6077
      %v6079 = vpop.f32.mrf.mxu0
      %6080 = vdwg.mxu0
      %v6082 = vsel %vm384, %v5546, 0
      %v6085 = vsel %vm384, %v5622, 0
      %v6088 = vsel %vm384, %v5698, 0
      %v6091 = vsel %vm384, %v5774, 0
      %v6094 = vsel %vm384, %v5850, 0
      %v6097 = vsel %vm384, %v5926, 0
      %v6100 = vsel %vm384, %v6002, 0
      %v6103 = vsel %vm384, %v6078, 0
      %6105 = vmatprep.subr.mxu0 0.0
      %6106 = vmatpush1.msra.mxu0 0.0
      %6107 = vmatprep.subr.mxu0 0.0
      %6108 = vmatpush1.msra.mxu0 0.0
      %6109 = vmatprep.subr.mxu0 0.0
      %6110 = vmatpush1.msra.mxu0 0.0
      %6111 = vmatprep.subr.mxu0 0.0
      %6112 = vmatpush1.msra.mxu0 0.0
      %6113 = vmatprep.subr.mxu0 0.0
      %6114 = vmatpush1.msra.mxu0 0.0
      %6115 = vmatprep.subr.mxu0 0.0
      %6116 = vmatpush1.msra.mxu0 0.0
      %6117 = vmatprep.subr.mxu0 0.0
      %6118 = vmatpush1.msra.mxu0 0.0
      %6119 = vmatprep.subr.mxu0 0.0
      %6120 = vmatpush1.msra.mxu0 0.0
      %6121 = vmatprep.subr.mxu0 0.0
      %6122 = vmatpush1.msra.mxu0 0.0
      %6123 = vmatprep.subr.mxu0 0.0
      %6124 = vmatpush1.msra.mxu0 0.0
      %6125 = vmatprep.subr.mxu0 0.0
      %6126 = vmatpush1.msra.mxu0 0.0
      %6127 = vmatprep.subr.mxu0 0.0
      %6128 = vmatpush1.msra.mxu0 0.0
      %6129 = vmatprep.subr.mxu0 0.0
      %6130 = vmatpush1.msra.mxu0 0.0
      %6131 = vmatprep.subr.mxu0 0.0
      %6132 = vmatpush1.msra.mxu0 0.0
      %6133 = vmatprep.subr.mxu0 0.0
      %6134 = vmatpush1.msra.mxu0 0.0
      %6135 = vmatprep.subr.mxu0 0.0
      %6136 = vmatpush1.msra.mxu0 %v380
      %6137 = vmatprep.subr.mxu0 0.0
      %6138 = vmatpush2.msra.mxu0 0.0
      %6139 = vmatprep.subr.mxu0 0.0
      %6140 = vmatpush2.msra.mxu0 0.0
      %6141 = vmatprep.subr.mxu0 0.0
      %6142 = vmatpush2.msra.mxu0 0.0
      %6143 = vmatprep.subr.mxu0 0.0
      %6144 = vmatpush2.msra.mxu0 0.0
      %6145 = vmatprep.subr.mxu0 0.0
      %6146 = vmatpush2.msra.mxu0 0.0
      %6147 = vmatprep.subr.mxu0 0.0
      %6148 = vmatpush2.msra.mxu0 0.0
      %6149 = vmatprep.subr.mxu0 0.0
      %6150 = vmatpush2.msra.mxu0 0.0
      %6151 = vmatprep.subr.mxu0 0.0
      %6152 = vmatpush2.msra.mxu0 0.0
      %6153 = vmatprep.subr.mxu0 0.0
      %6154 = vmatpush2.msra.mxu0 0.0
      %6155 = vmatprep.subr.mxu0 0.0
      %6156 = vmatpush2.msra.mxu0 0.0
      %6157 = vmatprep.subr.mxu0 0.0
      %6158 = vmatpush2.msra.mxu0 0.0
      %6159 = vmatprep.subr.mxu0 0.0
      %6160 = vmatpush2.msra.mxu0 0.0
      %6161 = vmatprep.subr.mxu0 0.0
      %6162 = vmatpush2.msra.mxu0 0.0
      %6163 = vmatprep.subr.mxu0 0.0
      %6164 = vmatpush2.msra.mxu0 0.0
      %6165 = vmatprep.subr.mxu0 0.0
      %6166 = vmatpush2.msra.mxu0 0.0
      %6167 = vmatprep.subr.mxu0 0.0
      %6168 = vmatpush2.msra.mxu0 0.0
      %6169 = vmatprep.mubr.f32.mxu0 0.0
      %6170 = vmatmul.mubr.f32.gmra.mxu0 %v6082
      %v6171 = vpop.f32.mrf.mxu0
      %v6172 = vadd.f32 0.0, %v6171
      %v6173 = vpop.f32.mrf.mxu0
      %6174 = vmatprep.mubr.f32.mxu0 0.0
      %6175 = vmatmul.mubr.f32.gmra.mxu0 %v6085
      %v6176 = vpop.f32.mrf.mxu0
      %v6177 = vadd.f32 0.0, %v6176
      %v6178 = vpop.f32.mrf.mxu0
      %6179 = vmatprep.mubr.f32.mxu0 0.0
      %6180 = vmatmul.mubr.f32.gmra.mxu0 %v6088
      %v6181 = vpop.f32.mrf.mxu0
      %v6182 = vadd.f32 0.0, %v6181
      %v6183 = vpop.f32.mrf.mxu0
      %6184 = vmatprep.mubr.f32.mxu0 0.0
      %6185 = vmatmul.mubr.f32.gmra.mxu0 %v6091
      %v6186 = vpop.f32.mrf.mxu0
      %v6187 = vadd.f32 0.0, %v6186
      %v6188 = vpop.f32.mrf.mxu0
      %6189 = vmatprep.mubr.f32.mxu0 0.0
      %6190 = vmatmul.mubr.f32.gmra.mxu0 %v6094
      %v6191 = vpop.f32.mrf.mxu0
      %v6192 = vadd.f32 0.0, %v6191
      %v6193 = vpop.f32.mrf.mxu0
      %6194 = vmatprep.mubr.f32.mxu0 0.0
      %6195 = vmatmul.mubr.f32.gmra.mxu0 %v6097
      %v6196 = vpop.f32.mrf.mxu0
      %v6197 = vadd.f32 0.0, %v6196
      %v6198 = vpop.f32.mrf.mxu0
      %6199 = vmatprep.mubr.f32.mxu0 0.0
      %6200 = vmatmul.mubr.f32.gmra.mxu0 %v6100
      %v6201 = vpop.f32.mrf.mxu0
      %v6202 = vadd.f32 0.0, %v6201
      %v6203 = vpop.f32.mrf.mxu0
      %6204 = vmatprep.mubr.f32.mxu0 0.0
      %6205 = vmatmul.mubr.f32.gmra.mxu0 %v6103
      %v6206 = vpop.f32.mrf.mxu0
      %v6207 = vadd.f32 0.0, %v6206
      %v6208 = vpop.f32.mrf.mxu0
      %6209 = vdwg.mxu0
      %v6210 = vadd.f32 %v4745, %v6172
      %v6211 = vadd.f32 %v4746, %v6177
      %v6212 = vadd.f32 %v4747, %v6182
      %v6213 = vadd.f32 %v4748, %v6187
      %v6214 = vadd.f32 %v4749, %v6192
      %v6215 = vadd.f32 %v4750, %v6197
      %v6216 = vadd.f32 %v4751, %v6202
      %v6217 = vadd.f32 %v4752, %v6207
      %v6218 = vld [vmem:[%s4] sm:$0x1]
      %v6220 = vlaneseq
      %v6221 = vshrl.u32 %v6220, 7
      %v6222 = vsub.s32 0, %v6221
      %v6223 = vrot.slane %v6218, %v6222
      %v6225 = vadd.f32 %v6210, %v6223
      %v6226 = vadd.f32 %v6211, %v6223
      %v6227 = vadd.f32 %v6212, %v6223
      %v6228 = vadd.f32 %v6213, %v6223
      %v6229 = vadd.f32 %v6214, %v6223
      %v6230 = vadd.f32 %v6215, %v6223
      %v6231 = vadd.f32 %v6216, %v6223
      %v6232 = vadd.f32 %v6217, %v6223
      %6233 = vst.msk [vmem:[%s226] sm:$0xff] %vm247, %v6225
      %6234 = vst.msk [vmem:[%s226 + $0x8] sm:$0xff] %vm247, %v6226
      %6235 = vst.msk [vmem:[%s226 + $0x10] sm:$0xff] %vm247, %v6227
      %6236 = vst.msk [vmem:[%s226 + $0x18] sm:$0xff] %vm247, %v6228
      %6237 = vst.msk [vmem:[%s226 + $0x20] sm:$0xff] %vm247, %v6229
      %6238 = vst.msk [vmem:[%s226 + $0x28] sm:$0xff] %vm247, %v6230
      %6239 = vst.msk [vmem:[%s226 + $0x30] sm:$0xff] %vm247, %v6231
      %6240 = vst.msk [vmem:[%s226 + $0x38] sm:$0xff] %vm247, %v6232
      %s6241 = smul.u32 8, %s16
      %p6242 = scmp.lt.s32.totalorder %s6241, 15
      %s6243 = scalar_select %p6242, %s6241, 15
      %s6244 = smul.addr %s6243, 8
      %s6245 = scalar_lea.vmem %s5, %s6244
      // Predicated region
      $region41: #{beam_splitter_attention.2} parent=39 // pred_check
        %p6246 = pneg %p144
      $region42: #{beam_splitter_attention.2} parent=39 // pred_check_branch
        %6248 = sbr.rel (%p6246) target = $region44
      $region43: #{beam_splitter_attention.2} parent=39 // pred_region
        %s6249 = smul.u32 8, %s16
      $region44: #{beam_splitter_attention.2} parent=39 // pred_fallthru
        _
    $region40: #{beam_splitter_attention.2} parent=5 // pred_fallthru
      _
    %p6250 = scmp.le.s32.totalorder 2, %s11
    // Predicated region
    $region45: #{beam_splitter_attention.2} parent=5 // pred_check
      %p6251 = pneg %p6250
    $region46: #{beam_splitter_attention.2} parent=5 // pred_check_branch
      %6253 = sbr.rel (%p6251) target = $region48
    $region47: #{beam_splitter_attention.2} parent=5 // pred_region
      %s6254 = ssub.s32 %s11, 2
      // Predicated region
      $region49: #{beam_splitter_attention.2} parent=47 // pred_check
        %p6255 = pneg %p150
      $region50: #{beam_splitter_attention.2} parent=47 // pred_check_branch
        %6257 = sbr.rel (%p6255) target = $region52
      $region51: #{beam_splitter_attention.2} parent=47 // pred_region
        %s6258 = smul.u32 8, %s17
        %p6259 = scmp.lt.s32.totalorder %s6258, 15
        %s6260 = scalar_select %p6259, %s6258, 15
        %s6261 = smul.addr %s6260, 8
        %s6262 = scalar_lea.vmem %s5, %s6261
      $region52: #{beam_splitter_attention.2} parent=47 // pred_fallthru
        _
    $region48: #{beam_splitter_attention.2} parent=5 // pred_fallthru
      _
  $region6: #{beam_splitter_attention.2} parent=0 // loop_footer
    %s15 = sadd.s32 1, %s11
  $region7: #{beam_splitter_attention.2} parent=0 // loop_footer_branch
    %10 = sbr.rel target = $region3
  $region8: #{beam_splitter_attention.2} parent=0 // loop_exit
    _

</llo_original>
